<compile_context>
chip_gen: v7x
topology: tpu7x:2x2x1
jax: 0.10.0
libtpu: 0.0.40
codegen_flags: <defaults>
</compile_context>

<pallas_src>
import jax
import jax.numpy as jnp
from jax.experimental import pallas as pl
from jax.experimental.pallas import tpu as pltpu

EPS = 1e-5  # PyTorch InstanceNorm2d default (affine=False, track_running_stats=False)


def residual_block_kernel(x_ref, w1_ref, w2_ref, o_ref,
                          slab_x_ref, slab_h_ref, hpad_ref, conv_ref):
    # x_ref:      (H+2, W+2, Cp) bf16   spatially pre-padded, channel-padded input
    # w*_ref:     (9, Cp, Cp)    bf16   tap k = dh*3 + dw, layout (Cin, Cout), zero padded
    # o_ref:      (H, W, Cp)     f32    lane-dense output block
    # slab_x_ref: (3, (H+2)*W, Cp) bf16 dw-shifted flattened views of x        (scratch)
    # slab_h_ref: (3, (H+2)*W, Cp) bf16 dw-shifted flattened views of hpad     (scratch)
    # hpad_ref:   (H+2, W+2, Cp)  bf16  zero-bordered intermediate activation  (scratch)
    # conv_ref:   (H*W, Cp)       f32   raw conv output image                  (scratch)
    Hp2, Wp2, Cp = x_ref.shape
    H, W = Hp2 - 2, Wp2 - 2
    HW = H * W

    # Row-block size for bounded accumulator live range (multiple of W, <=~128 rows).
    rpb = max(1, min(H, max(1, 128 // W)))
    while H % rpb:
        rpb -= 1
    TB = rpb * W
    n_blk = HW // TB
    inv_n = 1.0 / float(HW)

    def build_slabs(src_ref, slab_ref):
        # 3 copies per conv (instead of 9 per-tap copies): every tap below reads an
        # aligned leading-axis slice of one of these slabs.
        for dw in range(3):
            slab_ref[dw, :, :] = src_ref[:, dw:dw + W, :].reshape(Hp2 * W, Cp)

    def conv3x3(slab_ref, w_ref):
        # 9 MXU matmuls per row-block with f32 accumulation; raw result -> conv_ref,
        # per-channel column sums for the following instance norm returned as values.
        s = jnp.zeros((1, Cp), jnp.float32)
        ss = jnp.zeros((1, Cp), jnp.float32)
        for rb in range(n_blk):
            r0 = rb * TB
            acc = jnp.zeros((TB, Cp), jnp.float32)
            for k in range(9):
                dh, dw = divmod(k, 3)
                patch = slab_ref[dw, dh * W + r0:dh * W + r0 + TB, :]
                acc = acc + jnp.dot(patch, w_ref[k],
                                    preferred_element_type=jnp.float32)
            conv_ref[r0:r0 + TB, :] = acc
            s = s + jnp.sum(acc, axis=0, keepdims=True)
            ss = ss + jnp.sum(acc * acc, axis=0, keepdims=True)
        return s, ss

    def norm_params(s, ss):
        mean = s * inv_n
        var = jnp.maximum(ss * inv_n - mean * mean, 0.0)
        return mean, jax.lax.rsqrt(var + EPS)

    # ---- conv1 -> InstanceNorm -> ReLU ---------------------------------------------
    build_slabs(x_ref, slab_x_ref)
    mean1, rstd1 = norm_params(*conv3x3(slab_x_ref, w1_ref))

    # Zero only the border of the padded intermediate (interior fully overwritten below).
    zrow = jnp.zeros((1, Wp2, Cp), jnp.bfloat16)
    zcol = jnp.zeros((Hp2, 1, Cp), jnp.bfloat16)
    hpad_ref[0:1, :, :] = zrow
    hpad_ref[H + 1:H + 2, :, :] = zrow
    hpad_ref[:, 0:1, :] = zcol
    hpad_ref[:, W + 1:W + 2, :] = zcol

    for rb in range(n_blk):
        r0 = rb * TB
        hb = jnp.maximum((conv_ref[r0:r0 + TB, :] - mean1) * rstd1, 0.0)
        hpad_ref[1 + rb * rpb:1 + (rb + 1) * rpb, 1:W + 1, :] = (
            hb.astype(jnp.bfloat16).reshape(rpb, W, Cp))

    # ---- conv2 -> InstanceNorm -> residual add -------------------------------------
    build_slabs(hpad_ref, slab_h_ref)
    mean2, rstd2 = norm_params(*conv3x3(slab_h_ref, w2_ref))

    for rb in range(n_blk):
        r0 = rb * TB
        hb = (conv_ref[r0:r0 + TB, :] - mean2) * rstd2
        # Residual: rows [W : W+HW] of the dw=1 input slab are exactly the image center.
        res = slab_x_ref[1, W + r0:W + r0 + TB, :].astype(jnp.float32)
        o_ref[rb * rpb:(rb + 1) * rpb, :, :] = (
            (res + hb).reshape(rpb, W, Cp).astype(o_ref.dtype))


def _vmem_limit_bytes(H, W, Cp):
    bf16, f32 = 2, 4
    hp2, wp2, hw = H + 2, W + 2, H * W
    need = (2 * hp2 * wp2 * Cp * bf16          # double-buffered input block
            + 2 * 2 * 9 * Cp * Cp * bf16       # two weight slabs (double-buffered)
            + 2 * hw * Cp * f32                # double-buffered output block
            + 2 * 3 * hp2 * W * Cp * bf16      # two dw-slab scratch buffers
            + hp2 * wp2 * Cp * bf16            # padded intermediate scratch
            + hw * Cp * f32)                   # f32 conv-result scratch
    return max(min(int(need * 1.25) + (2 << 20), 48 << 20), 16 << 20)


def residual_block(x_nchw, w1, b1, w2, b2):
    """x_nchw: (N, C, H, W) f32; w*: (C, C, 3, 3) PyTorch OIHW; b*: (C,). Returns NCHW f32.

    Biases are accepted for interface parity but are mathematically dead: each conv feeds
    InstanceNorm2d(affine=False), which subtracts the per-channel mean, so they cancel.
    """
    del b1, b2
    N, C, H, W = x_nchw.shape
    Cp = ((C + 127) // 128) * 128                # lane-dense channel padding
    out_dtype = x_nchw.dtype

    # NCHW -> NHWC, channel-pad to Cp, spatial-pad by 1 (3x3 halo), cast once to bf16.
    x = jnp.transpose(x_nchw, (0, 2, 3, 1))
    x_pad = jnp.pad(x, ((0, 0), (1, 1), (1, 1), (0, Cp - C))).astype(jnp.bfloat16)

    # OIHW -> tap-major (9, Cin_p, Cout_p) bf16 slabs (zero padded), tap k = dh*3 + dw.
    def prep_w(w):
        wk = jnp.transpose(w, (2, 3, 1, 0)).reshape(9, C, C)
        wk = jnp.pad(wk, ((0, 0), (0, Cp - C), (0, Cp - C)))
        return wk.astype(jnp.bfloat16)

    w1k, w2k = prep_w(w1), prep_w(w2)

    out_nhwc = pl.pallas_call(
        residual_block_kernel,
        out_shape=jax.ShapeDtypeStruct((N, H, W, Cp), jnp.float32),
        grid_spec=pltpu.PrefetchScalarGridSpec(
            num_scalar_prefetch=0,
            grid=(N,),
            in_specs=[
                pl.BlockSpec((None, H + 2, W + 2, Cp), lambda b: (b, 0, 0, 0)),
                pl.BlockSpec((9, Cp, Cp), lambda b: (0, 0, 0)),
                pl.BlockSpec((9, Cp, Cp), lambda b: (0, 0, 0)),
            ],
            out_specs=pl.BlockSpec((None, H, W, Cp), lambda b: (b, 0, 0, 0)),
            scratch_shapes=[
                pltpu.VMEM((3, (H + 2) * W, Cp), jnp.bfloat16),   # dw-slabs of x
                pltpu.VMEM((3, (H + 2) * W, Cp), jnp.bfloat16),   # dw-slabs of h
                pltpu.VMEM((H + 2, W + 2, Cp), jnp.bfloat16),     # padded intermediate
                pltpu.VMEM((H * W, Cp), jnp.float32),             # raw conv result
            ],
        ),
        compiler_params=pltpu.CompilerParams(
            dimension_semantics=("parallel",),
            vmem_limit_bytes=_vmem_limit_bytes(H, W, Cp),
        ),
    )(x_pad, w1k, w2k)

    out = out_nhwc[:, :, :, :C].astype(out_dtype)   # drop channel padding
    return jnp.transpose(out, (0, 3, 1, 2))         # back to NCHW


def _reference_block(x, w1, b1, w2, b2):
    """Pure-JAX NCHW f32 reference matching the PyTorch module (biases included)."""
    def conv(h, w, b):
        y = jax.lax.conv_general_dilated(
            h, w, window_strides=(1, 1), padding=((1, 1), (1, 1)),
            dimension_numbers=("NCHW", "OIHW", "NCHW"))
        return y + b.reshape(1, -1, 1, 1)

    def inorm(h):
        mean = jnp.mean(h, axis=(2, 3), keepdims=True)
        var = jnp.mean((h - mean) ** 2, axis=(2, 3), keepdims=True)
        return (h - mean) * jax.lax.rsqrt(var + EPS)

    h = jax.nn.relu(inorm(conv(x, w1, b1)))
    h = inorm(conv(h, w2, b2))
    return x + h


if __name__ == "__main__":
    N, C, H, W = 2, 8, 16, 16
    key = jax.random.PRNGKey(0)
    kx, kw1, kb1, kw2, kb2 = jax.random.split(key, 5)

    x = jax.random.normal(kx, (N, C, H, W), jnp.float32)
    # Shapes follow nn.Conv2d(channels, channels, 3, 1, 1)
    w1 = 0.1 * jax.random.normal(kw1, (C, C, 3, 3), jnp.float32)
    b1 = 0.1 * jax.random.normal(kb1, (C,), jnp.float32)
    w2 = 0.1 * jax.random.normal(kw2, (C, C, 3, 3), jnp.float32)
    b2 = 0.1 * jax.random.normal(kb2, (C,), jnp.float32)

    out = jax.block_until_ready(residual_block(x, w1, b1, w2, b2))
    ref = jax.block_until_ready(_reference_block(x, w1, b1, w2, b2))

    assert out.shape == (N, C, H, W) and out.dtype == jnp.float32
    # bf16 activations + weights on the MXU => ~1e-2-level quantization vs f32 reference.
    assert jnp.allclose(out, ref, rtol=1e-1, atol=1e-1), "mismatch vs JAX reference"
    print("KERNEL_OK")
</pallas_src>

<mosaic_0001>
module attributes {stable_mosaic.version = 11 : i64} {
  func.func @residual_block_kernel(%arg0: i32, %arg1: memref<1x18x18x128xbf16, #tpu.memory_space<vmem>>, %arg2: memref<9x128x128xbf16, #tpu.memory_space<vmem>>, %arg3: memref<9x128x128xbf16, #tpu.memory_space<vmem>>, %arg4: memref<1x16x16x128xf32, #tpu.memory_space<vmem>>, %arg5: memref<3x288x128xbf16, #tpu.memory_space<vmem>>, %arg6: memref<3x288x128xbf16, #tpu.memory_space<vmem>>, %arg7: memref<18x18x128xbf16, #tpu.memory_space<vmem>>, %arg8: memref<256x128xf32, #tpu.memory_space<vmem>>) attributes {dimension_semantics = [#tpu.dimension_semantics<parallel>], iteration_bounds = array<i64: 2>, scalar_prefetch = 0 : i64, scratch_operands = 4 : i64, tpu.core_type = #tpu.core_type<tc>, window_params = [{transform_indices = @transform_0, window_bounds = array<i64: 1, 18, 18, 128>}, {pipeline_mode = #tpu.pipeline_mode<synchronous>, transform_indices = @transform_1, window_bounds = array<i64: 9, 128, 128>}, {pipeline_mode = #tpu.pipeline_mode<synchronous>, transform_indices = @transform_2, window_bounds = array<i64: 9, 128, 128>}, {transform_indices = @transform_3, window_bounds = array<i64: 1, 16, 16, 128>}]} {
    %c0 = arith.constant 0 : index
    %c0_0 = arith.constant 0 : index
    %c0_1 = arith.constant 0 : index
    %c0_2 = arith.constant 0 : index
    %0 = vector.load %arg1[%c0, %c0_0, %c0_1, %c0_2] : memref<1x18x18x128xbf16, #tpu.memory_space<vmem>>, vector<1x18x16x128xbf16>
    %1 = vector.shape_cast %0 : vector<1x18x16x128xbf16> to vector<18x16x128xbf16>
    %2 = vector.shape_cast %1 : vector<18x16x128xbf16> to vector<288x128xbf16>
    %c0_3 = arith.constant 0 : index
    %c0_4 = arith.constant 0 : index
    %c0_5 = arith.constant 0 : index
    %3 = vector.load %arg5[%c0_3, %c0_4, %c0_5] : memref<3x288x128xbf16, #tpu.memory_space<vmem>>, vector<1x288x128xbf16>
    %4 = vector.shape_cast %3 : vector<1x288x128xbf16> to vector<288x128xbf16>
    %5 = vector.shape_cast %2 : vector<288x128xbf16> to vector<1x288x128xbf16>
    tpu.vector_store %arg5[%c0_3, %c0_4, %c0_5], %5 {strides = array<i32>} : memref<3x288x128xbf16, #tpu.memory_space<vmem>>, vector<1x288x128xbf16>,
    %c0_6 = arith.constant 0 : index
    %c0_7 = arith.constant 0 : index
    %c1 = arith.constant 1 : index
    %c0_8 = arith.constant 0 : index
    %6 = vector.load %arg1[%c0_6, %c0_7, %c1, %c0_8] : memref<1x18x18x128xbf16, #tpu.memory_space<vmem>>, vector<1x18x16x128xbf16>
    %7 = vector.shape_cast %6 : vector<1x18x16x128xbf16> to vector<18x16x128xbf16>
    %8 = vector.shape_cast %7 : vector<18x16x128xbf16> to vector<288x128xbf16>
    %c1_9 = arith.constant 1 : index
    %c0_10 = arith.constant 0 : index
    %c0_11 = arith.constant 0 : index
    %9 = vector.load %arg5[%c1_9, %c0_10, %c0_11] : memref<3x288x128xbf16, #tpu.memory_space<vmem>>, vector<1x288x128xbf16>
    %10 = vector.shape_cast %9 : vector<1x288x128xbf16> to vector<288x128xbf16>
    %11 = vector.shape_cast %8 : vector<288x128xbf16> to vector<1x288x128xbf16>
    tpu.vector_store %arg5[%c1_9, %c0_10, %c0_11], %11 {strides = array<i32>} : memref<3x288x128xbf16, #tpu.memory_space<vmem>>, vector<1x288x128xbf16>,
    %c0_12 = arith.constant 0 : index
    %c0_13 = arith.constant 0 : index
    %c2 = arith.constant 2 : index
    %c0_14 = arith.constant 0 : index
    %12 = vector.load %arg1[%c0_12, %c0_13, %c2, %c0_14] : memref<1x18x18x128xbf16, #tpu.memory_space<vmem>>, vector<1x18x16x128xbf16>
    %13 = vector.shape_cast %12 : vector<1x18x16x128xbf16> to vector<18x16x128xbf16>
    %14 = vector.shape_cast %13 : vector<18x16x128xbf16> to vector<288x128xbf16>
    %c2_15 = arith.constant 2 : index
    %c0_16 = arith.constant 0 : index
    %c0_17 = arith.constant 0 : index
    %15 = vector.load %arg5[%c2_15, %c0_16, %c0_17] : memref<3x288x128xbf16, #tpu.memory_space<vmem>>, vector<1x288x128xbf16>
    %16 = vector.shape_cast %15 : vector<1x288x128xbf16> to vector<288x128xbf16>
    %17 = vector.shape_cast %14 : vector<288x128xbf16> to vector<1x288x128xbf16>
    tpu.vector_store %arg5[%c2_15, %c0_16, %c0_17], %17 {strides = array<i32>} : memref<3x288x128xbf16, #tpu.memory_space<vmem>>, vector<1x288x128xbf16>,
    %cst = arith.constant 0.000000e+00 : f32
    %18 = vector.broadcast %cst : f32 to vector<1x128xf32>
    %cst_18 = arith.constant 0.000000e+00 : f32
    %19 = vector.broadcast %cst_18 : f32 to vector<1x128xf32>
    %cst_19 = arith.constant 0.000000e+00 : f32
    %20 = vector.broadcast %cst_19 : f32 to vector<128x128xf32>
    %c0_20 = arith.constant 0 : index
    %c0_21 = arith.constant 0 : index
    %c0_22 = arith.constant 0 : index
    %21 = vector.load %arg5[%c0_20, %c0_21, %c0_22] : memref<3x288x128xbf16, #tpu.memory_space<vmem>>, vector<1x128x128xbf16>
    %22 = vector.shape_cast %21 : vector<1x128x128xbf16> to vector<128x128xbf16>
    %c0_23 = arith.constant 0 : index
    %c0_24 = arith.constant 0 : index
    %c0_25 = arith.constant 0 : index
    %23 = vector.load %arg2[%c0_23, %c0_24, %c0_25] : memref<9x128x128xbf16, #tpu.memory_space<vmem>>, vector<1x128x128xbf16>
    %24 = vector.shape_cast %23 : vector<1x128x128xbf16> to vector<128x128xbf16>
    %cst_26 = arith.constant dense<0.000000e+00> : vector<128x128xf32>
    %25 = tpu.matmul %22, %24, %cst_26 {dimension_numbers = #tpu.dot_dimension_numbers<[1], [0], [0], [1], [0, 0, 1, 1], [], []>} : vector<128x128xbf16>, vector<128x128xbf16>, vector<128x128xf32> -> vector<128x128xf32>
    %26 = arith.addf %20, %25 : vector<128x128xf32>
    %c1_27 = arith.constant 1 : index
    %c0_28 = arith.constant 0 : index
    %c0_29 = arith.constant 0 : index
    %27 = vector.load %arg5[%c1_27, %c0_28, %c0_29] : memref<3x288x128xbf16, #tpu.memory_space<vmem>>, vector<1x128x128xbf16>
    %28 = vector.shape_cast %27 : vector<1x128x128xbf16> to vector<128x128xbf16>
    %c1_30 = arith.constant 1 : index
    %c0_31 = arith.constant 0 : index
    %c0_32 = arith.constant 0 : index
    %29 = vector.load %arg2[%c1_30, %c0_31, %c0_32] : memref<9x128x128xbf16, #tpu.memory_space<vmem>>, vector<1x128x128xbf16>
    %30 = vector.shape_cast %29 : vector<1x128x128xbf16> to vector<128x128xbf16>
    %cst_33 = arith.constant dense<0.000000e+00> : vector<128x128xf32>
    %31 = tpu.matmul %28, %30, %cst_33 {dimension_numbers = #tpu.dot_dimension_numbers<[1], [0], [0], [1], [0, 0, 1, 1], [], []>} : vector<128x128xbf16>, vector<128x128xbf16>, vector<128x128xf32> -> vector<128x128xf32>
    %32 = arith.addf %26, %31 : vector<128x128xf32>
    %c2_34 = arith.constant 2 : index
    %c0_35 = arith.constant 0 : index
    %c0_36 = arith.constant 0 : index
    %33 = vector.load %arg5[%c2_34, %c0_35, %c0_36] : memref<3x288x128xbf16, #tpu.memory_space<vmem>>, vector<1x128x128xbf16>
    %34 = vector.shape_cast %33 : vector<1x128x128xbf16> to vector<128x128xbf16>
    %c2_37 = arith.constant 2 : index
    %c0_38 = arith.constant 0 : index
    %c0_39 = arith.constant 0 : index
    %35 = vector.load %arg2[%c2_37, %c0_38, %c0_39] : memref<9x128x128xbf16, #tpu.memory_space<vmem>>, vector<1x128x128xbf16>
    %36 = vector.shape_cast %35 : vector<1x128x128xbf16> to vector<128x128xbf16>
    %cst_40 = arith.constant dense<0.000000e+00> : vector<128x128xf32>
    %37 = tpu.matmul %34, %36, %cst_40 {dimension_numbers = #tpu.dot_dimension_numbers<[1], [0], [0], [1], [0, 0, 1, 1], [], []>} : vector<128x128xbf16>, vector<128x128xbf16>, vector<128x128xf32> -> vector<128x128xf32>
    %38 = arith.addf %32, %37 : vector<128x128xf32>
    %c0_41 = arith.constant 0 : index
    %c16 = arith.constant 16 : index
    %c0_42 = arith.constant 0 : index
    %39 = vector.load %arg5[%c0_41, %c16, %c0_42] : memref<3x288x128xbf16, #tpu.memory_space<vmem>>, vector<1x128x128xbf16>
    %40 = vector.shape_cast %39 : vector<1x128x128xbf16> to vector<128x128xbf16>
    %c3 = arith.constant 3 : index
    %c0_43 = arith.constant 0 : index
    %c0_44 = arith.constant 0 : index
    %41 = vector.load %arg2[%c3, %c0_43, %c0_44] : memref<9x128x128xbf16, #tpu.memory_space<vmem>>, vector<1x128x128xbf16>
    %42 = vector.shape_cast %41 : vector<1x128x128xbf16> to vector<128x128xbf16>
    %cst_45 = arith.constant dense<0.000000e+00> : vector<128x128xf32>
    %43 = tpu.matmul %40, %42, %cst_45 {dimension_numbers = #tpu.dot_dimension_numbers<[1], [0], [0], [1], [0, 0, 1, 1], [], []>} : vector<128x128xbf16>, vector<128x128xbf16>, vector<128x128xf32> -> vector<128x128xf32>
    %44 = arith.addf %38, %43 : vector<128x128xf32>
    %c1_46 = arith.constant 1 : index
    %c16_47 = arith.constant 16 : index
    %c0_48 = arith.constant 0 : index
    %45 = vector.load %arg5[%c1_46, %c16_47, %c0_48] : memref<3x288x128xbf16, #tpu.memory_space<vmem>>, vector<1x128x128xbf16>
    %46 = vector.shape_cast %45 : vector<1x128x128xbf16> to vector<128x128xbf16>
    %c4 = arith.constant 4 : index
    %c0_49 = arith.constant 0 : index
    %c0_50 = arith.constant 0 : index
    %47 = vector.load %arg2[%c4, %c0_49, %c0_50] : memref<9x128x128xbf16, #tpu.memory_space<vmem>>, vector<1x128x128xbf16>
    %48 = vector.shape_cast %47 : vector<1x128x128xbf16> to vector<128x128xbf16>
    %cst_51 = arith.constant dense<0.000000e+00> : vector<128x128xf32>
    %49 = tpu.matmul %46, %48, %cst_51 {dimension_numbers = #tpu.dot_dimension_numbers<[1], [0], [0], [1], [0, 0, 1, 1], [], []>} : vector<128x128xbf16>, vector<128x128xbf16>, vector<128x128xf32> -> vector<128x128xf32>
    %50 = arith.addf %44, %49 : vector<128x128xf32>
    %c2_52 = arith.constant 2 : index
    %c16_53 = arith.constant 16 : index
    %c0_54 = arith.constant 0 : index
    %51 = vector.load %arg5[%c2_52, %c16_53, %c0_54] : memref<3x288x128xbf16, #tpu.memory_space<vmem>>, vector<1x128x128xbf16>
    %52 = vector.shape_cast %51 : vector<1x128x128xbf16> to vector<128x128xbf16>
    %c5 = arith.constant 5 : index
    %c0_55 = arith.constant 0 : index
    %c0_56 = arith.constant 0 : index
    %53 = vector.load %arg2[%c5, %c0_55, %c0_56] : memref<9x128x128xbf16, #tpu.memory_space<vmem>>, vector<1x128x128xbf16>
    %54 = vector.shape_cast %53 : vector<1x128x128xbf16> to vector<128x128xbf16>
    %cst_57 = arith.constant dense<0.000000e+00> : vector<128x128xf32>
    %55 = tpu.matmul %52, %54, %cst_57 {dimension_numbers = #tpu.dot_dimension_numbers<[1], [0], [0], [1], [0, 0, 1, 1], [], []>} : vector<128x128xbf16>, vector<128x128xbf16>, vector<128x128xf32> -> vector<128x128xf32>
    %56 = arith.addf %50, %55 : vector<128x128xf32>
    %c0_58 = arith.constant 0 : index
    %c32 = arith.constant 32 : index
    %c0_59 = arith.constant 0 : index
    %57 = vector.load %arg5[%c0_58, %c32, %c0_59] : memref<3x288x128xbf16, #tpu.memory_space<vmem>>, vector<1x128x128xbf16>
    %58 = vector.shape_cast %57 : vector<1x128x128xbf16> to vector<128x128xbf16>
    %c6 = arith.constant 6 : index
    %c0_60 = arith.constant 0 : index
    %c0_61 = arith.constant 0 : index
    %59 = vector.load %arg2[%c6, %c0_60, %c0_61] : memref<9x128x128xbf16, #tpu.memory_space<vmem>>, vector<1x128x128xbf16>
    %60 = vector.shape_cast %59 : vector<1x128x128xbf16> to vector<128x128xbf16>
    %cst_62 = arith.constant dense<0.000000e+00> : vector<128x128xf32>
    %61 = tpu.matmul %58, %60, %cst_62 {dimension_numbers = #tpu.dot_dimension_numbers<[1], [0], [0], [1], [0, 0, 1, 1], [], []>} : vector<128x128xbf16>, vector<128x128xbf16>, vector<128x128xf32> -> vector<128x128xf32>
    %62 = arith.addf %56, %61 : vector<128x128xf32>
    %c1_63 = arith.constant 1 : index
    %c32_64 = arith.constant 32 : index
    %c0_65 = arith.constant 0 : index
    %63 = vector.load %arg5[%c1_63, %c32_64, %c0_65] : memref<3x288x128xbf16, #tpu.memory_space<vmem>>, vector<1x128x128xbf16>
    %64 = vector.shape_cast %63 : vector<1x128x128xbf16> to vector<128x128xbf16>
    %c7 = arith.constant 7 : index
    %c0_66 = arith.constant 0 : index
    %c0_67 = arith.constant 0 : index
    %65 = vector.load %arg2[%c7, %c0_66, %c0_67] : memref<9x128x128xbf16, #tpu.memory_space<vmem>>, vector<1x128x128xbf16>
    %66 = vector.shape_cast %65 : vector<1x128x128xbf16> to vector<128x128xbf16>
    %cst_68 = arith.constant dense<0.000000e+00> : vector<128x128xf32>
    %67 = tpu.matmul %64, %66, %cst_68 {dimension_numbers = #tpu.dot_dimension_numbers<[1], [0], [0], [1], [0, 0, 1, 1], [], []>} : vector<128x128xbf16>, vector<128x128xbf16>, vector<128x128xf32> -> vector<128x128xf32>
    %68 = arith.addf %62, %67 : vector<128x128xf32>
    %c2_69 = arith.constant 2 : index
    %c32_70 = arith.constant 32 : index
    %c0_71 = arith.constant 0 : index
    %69 = vector.load %arg5[%c2_69, %c32_70, %c0_71] : memref<3x288x128xbf16, #tpu.memory_space<vmem>>, vector<1x128x128xbf16>
    %70 = vector.shape_cast %69 : vector<1x128x128xbf16> to vector<128x128xbf16>
    %c8 = arith.constant 8 : index
    %c0_72 = arith.constant 0 : index
    %c0_73 = arith.constant 0 : index
    %71 = vector.load %arg2[%c8, %c0_72, %c0_73] : memref<9x128x128xbf16, #tpu.memory_space<vmem>>, vector<1x128x128xbf16>
    %72 = vector.shape_cast %71 : vector<1x128x128xbf16> to vector<128x128xbf16>
    %cst_74 = arith.constant dense<0.000000e+00> : vector<128x128xf32>
    %73 = tpu.matmul %70, %72, %cst_74 {dimension_numbers = #tpu.dot_dimension_numbers<[1], [0], [0], [1], [0, 0, 1, 1], [], []>} : vector<128x128xbf16>, vector<128x128xbf16>, vector<128x128xf32> -> vector<128x128xf32>
    %74 = arith.addf %68, %73 : vector<128x128xf32>
    %c0_75 = arith.constant 0 : index
    %c0_76 = arith.constant 0 : index
    %75 = vector.load %arg8[%c0_75, %c0_76] : memref<256x128xf32, #tpu.memory_space<vmem>>, vector<128x128xf32>
    tpu.vector_store %arg8[%c0_75, %c0_76], %74 {strides = array<i32>} : memref<256x128xf32, #tpu.memory_space<vmem>>, vector<128x128xf32>,
    %cst_77 = arith.constant dense<0.000000e+00> : vector<128xf32>
    %76 = vector.multi_reduction <add>, %74, %cst_77 [0] : vector<128x128xf32> to vector<128xf32>
    %77 = vector.shape_cast %76 : vector<128xf32> to vector<1x128xf32>
    %78 = arith.addf %18, %77 : vector<1x128xf32>
    %79 = arith.mulf %74, %74 : vector<128x128xf32>
    %cst_78 = arith.constant dense<0.000000e+00> : vector<128xf32>
    %80 = vector.multi_reduction <add>, %79, %cst_78 [0] : vector<128x128xf32> to vector<128xf32>
    %81 = vector.shape_cast %80 : vector<128xf32> to vector<1x128xf32>
    %82 = arith.addf %19, %81 : vector<1x128xf32>
    %cst_79 = arith.constant 0.000000e+00 : f32
    %83 = vector.broadcast %cst_79 : f32 to vector<128x128xf32>
    %c0_80 = arith.constant 0 : index
    %c128 = arith.constant 128 : index
    %c0_81 = arith.constant 0 : index
    %84 = vector.load %arg5[%c0_80, %c128, %c0_81] : memref<3x288x128xbf16, #tpu.memory_space<vmem>>, vector<1x128x128xbf16>
    %85 = vector.shape_cast %84 : vector<1x128x128xbf16> to vector<128x128xbf16>
    %c0_82 = arith.constant 0 : index
    %c0_83 = arith.constant 0 : index
    %c0_84 = arith.constant 0 : index
    %86 = vector.load %arg2[%c0_82, %c0_83, %c0_84] : memref<9x128x128xbf16, #tpu.memory_space<vmem>>, vector<1x128x128xbf16>
    %87 = vector.shape_cast %86 : vector<1x128x128xbf16> to vector<128x128xbf16>
    %cst_85 = arith.constant dense<0.000000e+00> : vector<128x128xf32>
    %88 = tpu.matmul %85, %87, %cst_85 {dimension_numbers = #tpu.dot_dimension_numbers<[1], [0], [0], [1], [0, 0, 1, 1], [], []>} : vector<128x128xbf16>, vector<128x128xbf16>, vector<128x128xf32> -> vector<128x128xf32>
    %89 = arith.addf %83, %88 : vector<128x128xf32>
    %c1_86 = arith.constant 1 : index
    %c128_87 = arith.constant 128 : index
    %c0_88 = arith.constant 0 : index
    %90 = vector.load %arg5[%c1_86, %c128_87, %c0_88] : memref<3x288x128xbf16, #tpu.memory_space<vmem>>, vector<1x128x128xbf16>
    %91 = vector.shape_cast %90 : vector<1x128x128xbf16> to vector<128x128xbf16>
    %c1_89 = arith.constant 1 : index
    %c0_90 = arith.constant 0 : index
    %c0_91 = arith.constant 0 : index
    %92 = vector.load %arg2[%c1_89, %c0_90, %c0_91] : memref<9x128x128xbf16, #tpu.memory_space<vmem>>, vector<1x128x128xbf16>
    %93 = vector.shape_cast %92 : vector<1x128x128xbf16> to vector<128x128xbf16>
    %cst_92 = arith.constant dense<0.000000e+00> : vector<128x128xf32>
    %94 = tpu.matmul %91, %93, %cst_92 {dimension_numbers = #tpu.dot_dimension_numbers<[1], [0], [0], [1], [0, 0, 1, 1], [], []>} : vector<128x128xbf16>, vector<128x128xbf16>, vector<128x128xf32> -> vector<128x128xf32>
    %95 = arith.addf %89, %94 : vector<128x128xf32>
    %c2_93 = arith.constant 2 : index
    %c128_94 = arith.constant 128 : index
    %c0_95 = arith.constant 0 : index
    %96 = vector.load %arg5[%c2_93, %c128_94, %c0_95] : memref<3x288x128xbf16, #tpu.memory_space<vmem>>, vector<1x128x128xbf16>
    %97 = vector.shape_cast %96 : vector<1x128x128xbf16> to vector<128x128xbf16>
    %c2_96 = arith.constant 2 : index
    %c0_97 = arith.constant 0 : index
    %c0_98 = arith.constant 0 : index
    %98 = vector.load %arg2[%c2_96, %c0_97, %c0_98] : memref<9x128x128xbf16, #tpu.memory_space<vmem>>, vector<1x128x128xbf16>
    %99 = vector.shape_cast %98 : vector<1x128x128xbf16> to vector<128x128xbf16>
    %cst_99 = arith.constant dense<0.000000e+00> : vector<128x128xf32>
    %100 = tpu.matmul %97, %99, %cst_99 {dimension_numbers = #tpu.dot_dimension_numbers<[1], [0], [0], [1], [0, 0, 1, 1], [], []>} : vector<128x128xbf16>, vector<128x128xbf16>, vector<128x128xf32> -> vector<128x128xf32>
    %101 = arith.addf %95, %100 : vector<128x128xf32>
    %c0_100 = arith.constant 0 : index
    %c144 = arith.constant 144 : index
    %c0_101 = arith.constant 0 : index
    %102 = vector.load %arg5[%c0_100, %c144, %c0_101] : memref<3x288x128xbf16, #tpu.memory_space<vmem>>, vector<1x128x128xbf16>
    %103 = vector.shape_cast %102 : vector<1x128x128xbf16> to vector<128x128xbf16>
    %c3_102 = arith.constant 3 : index
    %c0_103 = arith.constant 0 : index
    %c0_104 = arith.constant 0 : index
    %104 = vector.load %arg2[%c3_102, %c0_103, %c0_104] : memref<9x128x128xbf16, #tpu.memory_space<vmem>>, vector<1x128x128xbf16>
    %105 = vector.shape_cast %104 : vector<1x128x128xbf16> to vector<128x128xbf16>
    %cst_105 = arith.constant dense<0.000000e+00> : vector<128x128xf32>
    %106 = tpu.matmul %103, %105, %cst_105 {dimension_numbers = #tpu.dot_dimension_numbers<[1], [0], [0], [1], [0, 0, 1, 1], [], []>} : vector<128x128xbf16>, vector<128x128xbf16>, vector<128x128xf32> -> vector<128x128xf32>
    %107 = arith.addf %101, %106 : vector<128x128xf32>
    %c1_106 = arith.constant 1 : index
    %c144_107 = arith.constant 144 : index
    %c0_108 = arith.constant 0 : index
    %108 = vector.load %arg5[%c1_106, %c144_107, %c0_108] : memref<3x288x128xbf16, #tpu.memory_space<vmem>>, vector<1x128x128xbf16>
    %109 = vector.shape_cast %108 : vector<1x128x128xbf16> to vector<128x128xbf16>
    %c4_109 = arith.constant 4 : index
    %c0_110 = arith.constant 0 : index
    %c0_111 = arith.constant 0 : index
    %110 = vector.load %arg2[%c4_109, %c0_110, %c0_111] : memref<9x128x128xbf16, #tpu.memory_space<vmem>>, vector<1x128x128xbf16>
    %111 = vector.shape_cast %110 : vector<1x128x128xbf16> to vector<128x128xbf16>
    %cst_112 = arith.constant dense<0.000000e+00> : vector<128x128xf32>
    %112 = tpu.matmul %109, %111, %cst_112 {dimension_numbers = #tpu.dot_dimension_numbers<[1], [0], [0], [1], [0, 0, 1, 1], [], []>} : vector<128x128xbf16>, vector<128x128xbf16>, vector<128x128xf32> -> vector<128x128xf32>
    %113 = arith.addf %107, %112 : vector<128x128xf32>
    %c2_113 = arith.constant 2 : index
    %c144_114 = arith.constant 144 : index
    %c0_115 = arith.constant 0 : index
    %114 = vector.load %arg5[%c2_113, %c144_114, %c0_115] : memref<3x288x128xbf16, #tpu.memory_space<vmem>>, vector<1x128x128xbf16>
    %115 = vector.shape_cast %114 : vector<1x128x128xbf16> to vector<128x128xbf16>
    %c5_116 = arith.constant 5 : index
    %c0_117 = arith.constant 0 : index
    %c0_118 = arith.constant 0 : index
    %116 = vector.load %arg2[%c5_116, %c0_117, %c0_118] : memref<9x128x128xbf16, #tpu.memory_space<vmem>>, vector<1x128x128xbf16>
    %117 = vector.shape_cast %116 : vector<1x128x128xbf16> to vector<128x128xbf16>
    %cst_119 = arith.constant dense<0.000000e+00> : vector<128x128xf32>
    %118 = tpu.matmul %115, %117, %cst_119 {dimension_numbers = #tpu.dot_dimension_numbers<[1], [0], [0], [1], [0, 0, 1, 1], [], []>} : vector<128x128xbf16>, vector<128x128xbf16>, vector<128x128xf32> -> vector<128x128xf32>
    %119 = arith.addf %113, %118 : vector<128x128xf32>
    %c0_120 = arith.constant 0 : index
    %c160 = arith.constant 160 : index
    %c0_121 = arith.constant 0 : index
    %120 = vector.load %arg5[%c0_120, %c160, %c0_121] : memref<3x288x128xbf16, #tpu.memory_space<vmem>>, vector<1x128x128xbf16>
    %121 = vector.shape_cast %120 : vector<1x128x128xbf16> to vector<128x128xbf16>
    %c6_122 = arith.constant 6 : index
    %c0_123 = arith.constant 0 : index
    %c0_124 = arith.constant 0 : index
    %122 = vector.load %arg2[%c6_122, %c0_123, %c0_124] : memref<9x128x128xbf16, #tpu.memory_space<vmem>>, vector<1x128x128xbf16>
    %123 = vector.shape_cast %122 : vector<1x128x128xbf16> to vector<128x128xbf16>
    %cst_125 = arith.constant dense<0.000000e+00> : vector<128x128xf32>
    %124 = tpu.matmul %121, %123, %cst_125 {dimension_numbers = #tpu.dot_dimension_numbers<[1], [0], [0], [1], [0, 0, 1, 1], [], []>} : vector<128x128xbf16>, vector<128x128xbf16>, vector<128x128xf32> -> vector<128x128xf32>
    %125 = arith.addf %119, %124 : vector<128x128xf32>
    %c1_126 = arith.constant 1 : index
    %c160_127 = arith.constant 160 : index
    %c0_128 = arith.constant 0 : index
    %126 = vector.load %arg5[%c1_126, %c160_127, %c0_128] : memref<3x288x128xbf16, #tpu.memory_space<vmem>>, vector<1x128x128xbf16>
    %127 = vector.shape_cast %126 : vector<1x128x128xbf16> to vector<128x128xbf16>
    %c7_129 = arith.constant 7 : index
    %c0_130 = arith.constant 0 : index
    %c0_131 = arith.constant 0 : index
    %128 = vector.load %arg2[%c7_129, %c0_130, %c0_131] : memref<9x128x128xbf16, #tpu.memory_space<vmem>>, vector<1x128x128xbf16>
    %129 = vector.shape_cast %128 : vector<1x128x128xbf16> to vector<128x128xbf16>
    %cst_132 = arith.constant dense<0.000000e+00> : vector<128x128xf32>
    %130 = tpu.matmul %127, %129, %cst_132 {dimension_numbers = #tpu.dot_dimension_numbers<[1], [0], [0], [1], [0, 0, 1, 1], [], []>} : vector<128x128xbf16>, vector<128x128xbf16>, vector<128x128xf32> -> vector<128x128xf32>
    %131 = arith.addf %125, %130 : vector<128x128xf32>
    %c2_133 = arith.constant 2 : index
    %c160_134 = arith.constant 160 : index
    %c0_135 = arith.constant 0 : index
    %132 = vector.load %arg5[%c2_133, %c160_134, %c0_135] : memref<3x288x128xbf16, #tpu.memory_space<vmem>>, vector<1x128x128xbf16>
    %133 = vector.shape_cast %132 : vector<1x128x128xbf16> to vector<128x128xbf16>
    %c8_136 = arith.constant 8 : index
    %c0_137 = arith.constant 0 : index
    %c0_138 = arith.constant 0 : index
    %134 = vector.load %arg2[%c8_136, %c0_137, %c0_138] : memref<9x128x128xbf16, #tpu.memory_space<vmem>>, vector<1x128x128xbf16>
    %135 = vector.shape_cast %134 : vector<1x128x128xbf16> to vector<128x128xbf16>
    %cst_139 = arith.constant dense<0.000000e+00> : vector<128x128xf32>
    %136 = tpu.matmul %133, %135, %cst_139 {dimension_numbers = #tpu.dot_dimension_numbers<[1], [0], [0], [1], [0, 0, 1, 1], [], []>} : vector<128x128xbf16>, vector<128x128xbf16>, vector<128x128xf32> -> vector<128x128xf32>
    %137 = arith.addf %131, %136 : vector<128x128xf32>
    %c128_140 = arith.constant 128 : index
    %c0_141 = arith.constant 0 : index
    %138 = vector.load %arg8[%c128_140, %c0_141] : memref<256x128xf32, #tpu.memory_space<vmem>>, vector<128x128xf32>
    tpu.vector_store %arg8[%c128_140, %c0_141], %137 {strides = array<i32>} : memref<256x128xf32, #tpu.memory_space<vmem>>, vector<128x128xf32>,
    %cst_142 = arith.constant dense<0.000000e+00> : vector<128xf32>
    %139 = vector.multi_reduction <add>, %137, %cst_142 [0] : vector<128x128xf32> to vector<128xf32>
    %140 = vector.shape_cast %139 : vector<128xf32> to vector<1x128xf32>
    %141 = arith.addf %78, %140 : vector<1x128xf32>
    %142 = arith.mulf %137, %137 : vector<128x128xf32>
    %cst_143 = arith.constant dense<0.000000e+00> : vector<128xf32>
    %143 = vector.multi_reduction <add>, %142, %cst_143 [0] : vector<128x128xf32> to vector<128xf32>
    %144 = vector.shape_cast %143 : vector<128xf32> to vector<1x128xf32>
    %145 = arith.addf %82, %144 : vector<1x128xf32>
    %cst_144 = arith.constant 3.906250e-03 : f32
    %146 = vector.broadcast %cst_144 : f32 to vector<1x128xf32>
    %147 = arith.mulf %141, %146 : vector<1x128xf32>
    %cst_145 = arith.constant 3.906250e-03 : f32
    %148 = vector.broadcast %cst_145 : f32 to vector<1x128xf32>
    %149 = arith.mulf %145, %148 : vector<1x128xf32>
    %150 = arith.mulf %147, %147 : vector<1x128xf32>
    %151 = arith.subf %149, %150 : vector<1x128xf32>
    %cst_146 = arith.constant 0.000000e+00 : f32
    %152 = vector.broadcast %cst_146 : f32 to vector<1x128xf32>
    %153 = arith.maximumf %151, %152 : vector<1x128xf32>
    %cst_147 = arith.constant 9.99999974E-6 : f32
    %154 = vector.broadcast %cst_147 : f32 to vector<1x128xf32>
    %155 = arith.addf %153, %154 : vector<1x128xf32>
    %156 = math.rsqrt %155 : vector<1x128xf32>
    %cst_148 = arith.constant 0.000000e+00 : bf16
    %157 = vector.broadcast %cst_148 : bf16 to vector<1x18x128xbf16>
    %cst_149 = arith.constant 0.000000e+00 : bf16
    %158 = vector.broadcast %cst_149 : bf16 to vector<18x1x128xbf16>
    %c0_150 = arith.constant 0 : index
    %c0_151 = arith.constant 0 : index
    %c0_152 = arith.constant 0 : index
    %159 = vector.load %arg7[%c0_150, %c0_151, %c0_152] : memref<18x18x128xbf16, #tpu.memory_space<vmem>>, vector<1x18x128xbf16>
    tpu.vector_store %arg7[%c0_150, %c0_151, %c0_152], %157 {strides = array<i32>} : memref<18x18x128xbf16, #tpu.memory_space<vmem>>, vector<1x18x128xbf16>,
    %c17 = arith.constant 17 : index
    %c0_153 = arith.constant 0 : index
    %c0_154 = arith.constant 0 : index
    %160 = vector.load %arg7[%c17, %c0_153, %c0_154] : memref<18x18x128xbf16, #tpu.memory_space<vmem>>, vector<1x18x128xbf16>
    tpu.vector_store %arg7[%c17, %c0_153, %c0_154], %157 {strides = array<i32>} : memref<18x18x128xbf16, #tpu.memory_space<vmem>>, vector<1x18x128xbf16>,
    %c0_155 = arith.constant 0 : index
    %c0_156 = arith.constant 0 : index
    %c0_157 = arith.constant 0 : index
    %161 = vector.load %arg7[%c0_155, %c0_156, %c0_157] : memref<18x18x128xbf16, #tpu.memory_space<vmem>>, vector<18x1x128xbf16>
    tpu.vector_store %arg7[%c0_155, %c0_156, %c0_157], %158 {strides = array<i32>} : memref<18x18x128xbf16, #tpu.memory_space<vmem>>, vector<18x1x128xbf16>,
    %c0_158 = arith.constant 0 : index
    %c17_159 = arith.constant 17 : index
    %c0_160 = arith.constant 0 : index
    %162 = vector.load %arg7[%c0_158, %c17_159, %c0_160] : memref<18x18x128xbf16, #tpu.memory_space<vmem>>, vector<18x1x128xbf16>
    tpu.vector_store %arg7[%c0_158, %c17_159, %c0_160], %158 {strides = array<i32>} : memref<18x18x128xbf16, #tpu.memory_space<vmem>>, vector<18x1x128xbf16>,
    %c0_161 = arith.constant 0 : index
    %c0_162 = arith.constant 0 : index
    %163 = vector.load %arg8[%c0_161, %c0_162] : memref<256x128xf32, #tpu.memory_space<vmem>>, vector<128x128xf32>
    %164 = vector.broadcast %147 : vector<1x128xf32> to vector<128x128xf32>
    %165 = arith.subf %163, %164 : vector<128x128xf32>
    %166 = vector.broadcast %156 : vector<1x128xf32> to vector<128x128xf32>
    %167 = arith.mulf %165, %166 : vector<128x128xf32>
    %cst_163 = arith.constant 0.000000e+00 : f32
    %168 = vector.broadcast %cst_163 : f32 to vector<128x128xf32>
    %169 = arith.maximumf %167, %168 : vector<128x128xf32>
    %170 = arith.truncf %169 : vector<128x128xf32> to vector<128x128xbf16>
    %171 = vector.shape_cast %170 : vector<128x128xbf16> to vector<8x16x128xbf16>
    %c1_164 = arith.constant 1 : index
    %c1_165 = arith.constant 1 : index
    %c0_166 = arith.constant 0 : index
    %172 = vector.load %arg7[%c1_164, %c1_165, %c0_166] : memref<18x18x128xbf16, #tpu.memory_space<vmem>>, vector<8x16x128xbf16>
    tpu.vector_store %arg7[%c1_164, %c1_165, %c0_166], %171 {strides = array<i32>} : memref<18x18x128xbf16, #tpu.memory_space<vmem>>, vector<8x16x128xbf16>,
    %c128_167 = arith.constant 128 : index
    %c0_168 = arith.constant 0 : index
    %173 = vector.load %arg8[%c128_167, %c0_168] : memref<256x128xf32, #tpu.memory_space<vmem>>, vector<128x128xf32>
    %174 = vector.broadcast %147 : vector<1x128xf32> to vector<128x128xf32>
    %175 = arith.subf %173, %174 : vector<128x128xf32>
    %176 = vector.broadcast %156 : vector<1x128xf32> to vector<128x128xf32>
    %177 = arith.mulf %175, %176 : vector<128x128xf32>
    %cst_169 = arith.constant 0.000000e+00 : f32
    %178 = vector.broadcast %cst_169 : f32 to vector<128x128xf32>
    %179 = arith.maximumf %177, %178 : vector<128x128xf32>
    %180 = arith.truncf %179 : vector<128x128xf32> to vector<128x128xbf16>
    %181 = vector.shape_cast %180 : vector<128x128xbf16> to vector<8x16x128xbf16>
    %c9 = arith.constant 9 : index
    %c1_170 = arith.constant 1 : index
    %c0_171 = arith.constant 0 : index
    %182 = vector.load %arg7[%c9, %c1_170, %c0_171] : memref<18x18x128xbf16, #tpu.memory_space<vmem>>, vector<8x16x128xbf16>
    tpu.vector_store %arg7[%c9, %c1_170, %c0_171], %181 {strides = array<i32>} : memref<18x18x128xbf16, #tpu.memory_space<vmem>>, vector<8x16x128xbf16>,
    %c0_172 = arith.constant 0 : index
    %c0_173 = arith.constant 0 : index
    %c0_174 = arith.constant 0 : index
    %183 = vector.load %arg7[%c0_172, %c0_173, %c0_174] : memref<18x18x128xbf16, #tpu.memory_space<vmem>>, vector<18x16x128xbf16>
    %184 = vector.shape_cast %183 : vector<18x16x128xbf16> to vector<288x128xbf16>
    %c0_175 = arith.constant 0 : index
    %c0_176 = arith.constant 0 : index
    %c0_177 = arith.constant 0 : index
    %185 = vector.load %arg6[%c0_175, %c0_176, %c0_177] : memref<3x288x128xbf16, #tpu.memory_space<vmem>>, vector<1x288x128xbf16>
    %186 = vector.shape_cast %185 : vector<1x288x128xbf16> to vector<288x128xbf16>
    %187 = vector.shape_cast %184 : vector<288x128xbf16> to vector<1x288x128xbf16>
    tpu.vector_store %arg6[%c0_175, %c0_176, %c0_177], %187 {strides = array<i32>} : memref<3x288x128xbf16, #tpu.memory_space<vmem>>, vector<1x288x128xbf16>,
    %c0_178 = arith.constant 0 : index
    %c1_179 = arith.constant 1 : index
    %c0_180 = arith.constant 0 : index
    %188 = vector.load %arg7[%c0_178, %c1_179, %c0_180] : memref<18x18x128xbf16, #tpu.memory_space<vmem>>, vector<18x16x128xbf16>
    %189 = vector.shape_cast %188 : vector<18x16x128xbf16> to vector<288x128xbf16>
    %c1_181 = arith.constant 1 : index
    %c0_182 = arith.constant 0 : index
    %c0_183 = arith.constant 0 : index
    %190 = vector.load %arg6[%c1_181, %c0_182, %c0_183] : memref<3x288x128xbf16, #tpu.memory_space<vmem>>, vector<1x288x128xbf16>
    %191 = vector.shape_cast %190 : vector<1x288x128xbf16> to vector<288x128xbf16>
    %192 = vector.shape_cast %189 : vector<288x128xbf16> to vector<1x288x128xbf16>
    tpu.vector_store %arg6[%c1_181, %c0_182, %c0_183], %192 {strides = array<i32>} : memref<3x288x128xbf16, #tpu.memory_space<vmem>>, vector<1x288x128xbf16>,
    %c0_184 = arith.constant 0 : index
    %c2_185 = arith.constant 2 : index
    %c0_186 = arith.constant 0 : index
    %193 = vector.load %arg7[%c0_184, %c2_185, %c0_186] : memref<18x18x128xbf16, #tpu.memory_space<vmem>>, vector<18x16x128xbf16>
    %194 = vector.shape_cast %193 : vector<18x16x128xbf16> to vector<288x128xbf16>
    %c2_187 = arith.constant 2 : index
    %c0_188 = arith.constant 0 : index
    %c0_189 = arith.constant 0 : index
    %195 = vector.load %arg6[%c2_187, %c0_188, %c0_189] : memref<3x288x128xbf16, #tpu.memory_space<vmem>>, vector<1x288x128xbf16>
    %196 = vector.shape_cast %195 : vector<1x288x128xbf16> to vector<288x128xbf16>
    %197 = vector.shape_cast %194 : vector<288x128xbf16> to vector<1x288x128xbf16>
    tpu.vector_store %arg6[%c2_187, %c0_188, %c0_189], %197 {strides = array<i32>} : memref<3x288x128xbf16, #tpu.memory_space<vmem>>, vector<1x288x128xbf16>,
    %cst_190 = arith.constant 0.000000e+00 : f32
    %198 = vector.broadcast %cst_190 : f32 to vector<1x128xf32>
    %cst_191 = arith.constant 0.000000e+00 : f32
    %199 = vector.broadcast %cst_191 : f32 to vector<1x128xf32>
    %cst_192 = arith.constant 0.000000e+00 : f32
    %200 = vector.broadcast %cst_192 : f32 to vector<128x128xf32>
    %c0_193 = arith.constant 0 : index
    %c0_194 = arith.constant 0 : index
    %c0_195 = arith.constant 0 : index
    %201 = vector.load %arg6[%c0_193, %c0_194, %c0_195] : memref<3x288x128xbf16, #tpu.memory_space<vmem>>, vector<1x128x128xbf16>
    %202 = vector.shape_cast %201 : vector<1x128x128xbf16> to vector<128x128xbf16>
    %c0_196 = arith.constant 0 : index
    %c0_197 = arith.constant 0 : index
    %c0_198 = arith.constant 0 : index
    %203 = vector.load %arg3[%c0_196, %c0_197, %c0_198] : memref<9x128x128xbf16, #tpu.memory_space<vmem>>, vector<1x128x128xbf16>
    %204 = vector.shape_cast %203 : vector<1x128x128xbf16> to vector<128x128xbf16>
    %cst_199 = arith.constant dense<0.000000e+00> : vector<128x128xf32>
    %205 = tpu.matmul %202, %204, %cst_199 {dimension_numbers = #tpu.dot_dimension_numbers<[1], [0], [0], [1], [0, 0, 1, 1], [], []>} : vector<128x128xbf16>, vector<128x128xbf16>, vector<128x128xf32> -> vector<128x128xf32>
    %206 = arith.addf %200, %205 : vector<128x128xf32>
    %c1_200 = arith.constant 1 : index
    %c0_201 = arith.constant 0 : index
    %c0_202 = arith.constant 0 : index
    %207 = vector.load %arg6[%c1_200, %c0_201, %c0_202] : memref<3x288x128xbf16, #tpu.memory_space<vmem>>, vector<1x128x128xbf16>
    %208 = vector.shape_cast %207 : vector<1x128x128xbf16> to vector<128x128xbf16>
    %c1_203 = arith.constant 1 : index
    %c0_204 = arith.constant 0 : index
    %c0_205 = arith.constant 0 : index
    %209 = vector.load %arg3[%c1_203, %c0_204, %c0_205] : memref<9x128x128xbf16, #tpu.memory_space<vmem>>, vector<1x128x128xbf16>
    %210 = vector.shape_cast %209 : vector<1x128x128xbf16> to vector<128x128xbf16>
    %cst_206 = arith.constant dense<0.000000e+00> : vector<128x128xf32>
    %211 = tpu.matmul %208, %210, %cst_206 {dimension_numbers = #tpu.dot_dimension_numbers<[1], [0], [0], [1], [0, 0, 1, 1], [], []>} : vector<128x128xbf16>, vector<128x128xbf16>, vector<128x128xf32> -> vector<128x128xf32>
    %212 = arith.addf %206, %211 : vector<128x128xf32>
    %c2_207 = arith.constant 2 : index
    %c0_208 = arith.constant 0 : index
    %c0_209 = arith.constant 0 : index
    %213 = vector.load %arg6[%c2_207, %c0_208, %c0_209] : memref<3x288x128xbf16, #tpu.memory_space<vmem>>, vector<1x128x128xbf16>
    %214 = vector.shape_cast %213 : vector<1x128x128xbf16> to vector<128x128xbf16>
    %c2_210 = arith.constant 2 : index
    %c0_211 = arith.constant 0 : index
    %c0_212 = arith.constant 0 : index
    %215 = vector.load %arg3[%c2_210, %c0_211, %c0_212] : memref<9x128x128xbf16, #tpu.memory_space<vmem>>, vector<1x128x128xbf16>
    %216 = vector.shape_cast %215 : vector<1x128x128xbf16> to vector<128x128xbf16>
    %cst_213 = arith.constant dense<0.000000e+00> : vector<128x128xf32>
    %217 = tpu.matmul %214, %216, %cst_213 {dimension_numbers = #tpu.dot_dimension_numbers<[1], [0], [0], [1], [0, 0, 1, 1], [], []>} : vector<128x128xbf16>, vector<128x128xbf16>, vector<128x128xf32> -> vector<128x128xf32>
    %218 = arith.addf %212, %217 : vector<128x128xf32>
    %c0_214 = arith.constant 0 : index
    %c16_215 = arith.constant 16 : index
    %c0_216 = arith.constant 0 : index
    %219 = vector.load %arg6[%c0_214, %c16_215, %c0_216] : memref<3x288x128xbf16, #tpu.memory_space<vmem>>, vector<1x128x128xbf16>
    %220 = vector.shape_cast %219 : vector<1x128x128xbf16> to vector<128x128xbf16>
    %c3_217 = arith.constant 3 : index
    %c0_218 = arith.constant 0 : index
    %c0_219 = arith.constant 0 : index
    %221 = vector.load %arg3[%c3_217, %c0_218, %c0_219] : memref<9x128x128xbf16, #tpu.memory_space<vmem>>, vector<1x128x128xbf16>
    %222 = vector.shape_cast %221 : vector<1x128x128xbf16> to vector<128x128xbf16>
    %cst_220 = arith.constant dense<0.000000e+00> : vector<128x128xf32>
    %223 = tpu.matmul %220, %222, %cst_220 {dimension_numbers = #tpu.dot_dimension_numbers<[1], [0], [0], [1], [0, 0, 1, 1], [], []>} : vector<128x128xbf16>, vector<128x128xbf16>, vector<128x128xf32> -> vector<128x128xf32>
    %224 = arith.addf %218, %223 : vector<128x128xf32>
    %c1_221 = arith.constant 1 : index
    %c16_222 = arith.constant 16 : index
    %c0_223 = arith.constant 0 : index
    %225 = vector.load %arg6[%c1_221, %c16_222, %c0_223] : memref<3x288x128xbf16, #tpu.memory_space<vmem>>, vector<1x128x128xbf16>
    %226 = vector.shape_cast %225 : vector<1x128x128xbf16> to vector<128x128xbf16>
    %c4_224 = arith.constant 4 : index
    %c0_225 = arith.constant 0 : index
    %c0_226 = arith.constant 0 : index
    %227 = vector.load %arg3[%c4_224, %c0_225, %c0_226] : memref<9x128x128xbf16, #tpu.memory_space<vmem>>, vector<1x128x128xbf16>
    %228 = vector.shape_cast %227 : vector<1x128x128xbf16> to vector<128x128xbf16>
    %cst_227 = arith.constant dense<0.000000e+00> : vector<128x128xf32>
    %229 = tpu.matmul %226, %228, %cst_227 {dimension_numbers = #tpu.dot_dimension_numbers<[1], [0], [0], [1], [0, 0, 1, 1], [], []>} : vector<128x128xbf16>, vector<128x128xbf16>, vector<128x128xf32> -> vector<128x128xf32>
    %230 = arith.addf %224, %229 : vector<128x128xf32>
    %c2_228 = arith.constant 2 : index
    %c16_229 = arith.constant 16 : index
    %c0_230 = arith.constant 0 : index
    %231 = vector.load %arg6[%c2_228, %c16_229, %c0_230] : memref<3x288x128xbf16, #tpu.memory_space<vmem>>, vector<1x128x128xbf16>
    %232 = vector.shape_cast %231 : vector<1x128x128xbf16> to vector<128x128xbf16>
    %c5_231 = arith.constant 5 : index
    %c0_232 = arith.constant 0 : index
    %c0_233 = arith.constant 0 : index
    %233 = vector.load %arg3[%c5_231, %c0_232, %c0_233] : memref<9x128x128xbf16, #tpu.memory_space<vmem>>, vector<1x128x128xbf16>
    %234 = vector.shape_cast %233 : vector<1x128x128xbf16> to vector<128x128xbf16>
    %cst_234 = arith.constant dense<0.000000e+00> : vector<128x128xf32>
    %235 = tpu.matmul %232, %234, %cst_234 {dimension_numbers = #tpu.dot_dimension_numbers<[1], [0], [0], [1], [0, 0, 1, 1], [], []>} : vector<128x128xbf16>, vector<128x128xbf16>, vector<128x128xf32> -> vector<128x128xf32>
    %236 = arith.addf %230, %235 : vector<128x128xf32>
    %c0_235 = arith.constant 0 : index
    %c32_236 = arith.constant 32 : index
    %c0_237 = arith.constant 0 : index
    %237 = vector.load %arg6[%c0_235, %c32_236, %c0_237] : memref<3x288x128xbf16, #tpu.memory_space<vmem>>, vector<1x128x128xbf16>
    %238 = vector.shape_cast %237 : vector<1x128x128xbf16> to vector<128x128xbf16>
    %c6_238 = arith.constant 6 : index
    %c0_239 = arith.constant 0 : index
    %c0_240 = arith.constant 0 : index
    %239 = vector.load %arg3[%c6_238, %c0_239, %c0_240] : memref<9x128x128xbf16, #tpu.memory_space<vmem>>, vector<1x128x128xbf16>
    %240 = vector.shape_cast %239 : vector<1x128x128xbf16> to vector<128x128xbf16>
    %cst_241 = arith.constant dense<0.000000e+00> : vector<128x128xf32>
    %241 = tpu.matmul %238, %240, %cst_241 {dimension_numbers = #tpu.dot_dimension_numbers<[1], [0], [0], [1], [0, 0, 1, 1], [], []>} : vector<128x128xbf16>, vector<128x128xbf16>, vector<128x128xf32> -> vector<128x128xf32>
    %242 = arith.addf %236, %241 : vector<128x128xf32>
    %c1_242 = arith.constant 1 : index
    %c32_243 = arith.constant 32 : index
    %c0_244 = arith.constant 0 : index
    %243 = vector.load %arg6[%c1_242, %c32_243, %c0_244] : memref<3x288x128xbf16, #tpu.memory_space<vmem>>, vector<1x128x128xbf16>
    %244 = vector.shape_cast %243 : vector<1x128x128xbf16> to vector<128x128xbf16>
    %c7_245 = arith.constant 7 : index
    %c0_246 = arith.constant 0 : index
    %c0_247 = arith.constant 0 : index
    %245 = vector.load %arg3[%c7_245, %c0_246, %c0_247] : memref<9x128x128xbf16, #tpu.memory_space<vmem>>, vector<1x128x128xbf16>
    %246 = vector.shape_cast %245 : vector<1x128x128xbf16> to vector<128x128xbf16>
    %cst_248 = arith.constant dense<0.000000e+00> : vector<128x128xf32>
    %247 = tpu.matmul %244, %246, %cst_248 {dimension_numbers = #tpu.dot_dimension_numbers<[1], [0], [0], [1], [0, 0, 1, 1], [], []>} : vector<128x128xbf16>, vector<128x128xbf16>, vector<128x128xf32> -> vector<128x128xf32>
    %248 = arith.addf %242, %247 : vector<128x128xf32>
    %c2_249 = arith.constant 2 : index
    %c32_250 = arith.constant 32 : index
    %c0_251 = arith.constant 0 : index
    %249 = vector.load %arg6[%c2_249, %c32_250, %c0_251] : memref<3x288x128xbf16, #tpu.memory_space<vmem>>, vector<1x128x128xbf16>
    %250 = vector.shape_cast %249 : vector<1x128x128xbf16> to vector<128x128xbf16>
    %c8_252 = arith.constant 8 : index
    %c0_253 = arith.constant 0 : index
    %c0_254 = arith.constant 0 : index
    %251 = vector.load %arg3[%c8_252, %c0_253, %c0_254] : memref<9x128x128xbf16, #tpu.memory_space<vmem>>, vector<1x128x128xbf16>
    %252 = vector.shape_cast %251 : vector<1x128x128xbf16> to vector<128x128xbf16>
    %cst_255 = arith.constant dense<0.000000e+00> : vector<128x128xf32>
    %253 = tpu.matmul %250, %252, %cst_255 {dimension_numbers = #tpu.dot_dimension_numbers<[1], [0], [0], [1], [0, 0, 1, 1], [], []>} : vector<128x128xbf16>, vector<128x128xbf16>, vector<128x128xf32> -> vector<128x128xf32>
    %254 = arith.addf %248, %253 : vector<128x128xf32>
    %c0_256 = arith.constant 0 : index
    %c0_257 = arith.constant 0 : index
    %255 = vector.load %arg8[%c0_256, %c0_257] : memref<256x128xf32, #tpu.memory_space<vmem>>, vector<128x128xf32>
    tpu.vector_store %arg8[%c0_256, %c0_257], %254 {strides = array<i32>} : memref<256x128xf32, #tpu.memory_space<vmem>>, vector<128x128xf32>,
    %cst_258 = arith.constant dense<0.000000e+00> : vector<128xf32>
    %256 = vector.multi_reduction <add>, %254, %cst_258 [0] : vector<128x128xf32> to vector<128xf32>
    %257 = vector.shape_cast %256 : vector<128xf32> to vector<1x128xf32>
    %258 = arith.addf %198, %257 : vector<1x128xf32>
    %259 = arith.mulf %254, %254 : vector<128x128xf32>
    %cst_259 = arith.constant dense<0.000000e+00> : vector<128xf32>
    %260 = vector.multi_reduction <add>, %259, %cst_259 [0] : vector<128x128xf32> to vector<128xf32>
    %261 = vector.shape_cast %260 : vector<128xf32> to vector<1x128xf32>
    %262 = arith.addf %199, %261 : vector<1x128xf32>
    %cst_260 = arith.constant 0.000000e+00 : f32
    %263 = vector.broadcast %cst_260 : f32 to vector<128x128xf32>
    %c0_261 = arith.constant 0 : index
    %c128_262 = arith.constant 128 : index
    %c0_263 = arith.constant 0 : index
    %264 = vector.load %arg6[%c0_261, %c128_262, %c0_263] : memref<3x288x128xbf16, #tpu.memory_space<vmem>>, vector<1x128x128xbf16>
    %265 = vector.shape_cast %264 : vector<1x128x128xbf16> to vector<128x128xbf16>
    %c0_264 = arith.constant 0 : index
    %c0_265 = arith.constant 0 : index
    %c0_266 = arith.constant 0 : index
    %266 = vector.load %arg3[%c0_264, %c0_265, %c0_266] : memref<9x128x128xbf16, #tpu.memory_space<vmem>>, vector<1x128x128xbf16>
    %267 = vector.shape_cast %266 : vector<1x128x128xbf16> to vector<128x128xbf16>
    %cst_267 = arith.constant dense<0.000000e+00> : vector<128x128xf32>
    %268 = tpu.matmul %265, %267, %cst_267 {dimension_numbers = #tpu.dot_dimension_numbers<[1], [0], [0], [1], [0, 0, 1, 1], [], []>} : vector<128x128xbf16>, vector<128x128xbf16>, vector<128x128xf32> -> vector<128x128xf32>
    %269 = arith.addf %263, %268 : vector<128x128xf32>
    %c1_268 = arith.constant 1 : index
    %c128_269 = arith.constant 128 : index
    %c0_270 = arith.constant 0 : index
    %270 = vector.load %arg6[%c1_268, %c128_269, %c0_270] : memref<3x288x128xbf16, #tpu.memory_space<vmem>>, vector<1x128x128xbf16>
    %271 = vector.shape_cast %270 : vector<1x128x128xbf16> to vector<128x128xbf16>
    %c1_271 = arith.constant 1 : index
    %c0_272 = arith.constant 0 : index
    %c0_273 = arith.constant 0 : index
    %272 = vector.load %arg3[%c1_271, %c0_272, %c0_273] : memref<9x128x128xbf16, #tpu.memory_space<vmem>>, vector<1x128x128xbf16>
    %273 = vector.shape_cast %272 : vector<1x128x128xbf16> to vector<128x128xbf16>
    %cst_274 = arith.constant dense<0.000000e+00> : vector<128x128xf32>
    %274 = tpu.matmul %271, %273, %cst_274 {dimension_numbers = #tpu.dot_dimension_numbers<[1], [0], [0], [1], [0, 0, 1, 1], [], []>} : vector<128x128xbf16>, vector<128x128xbf16>, vector<128x128xf32> -> vector<128x128xf32>
    %275 = arith.addf %269, %274 : vector<128x128xf32>
    %c2_275 = arith.constant 2 : index
    %c128_276 = arith.constant 128 : index
    %c0_277 = arith.constant 0 : index
    %276 = vector.load %arg6[%c2_275, %c128_276, %c0_277] : memref<3x288x128xbf16, #tpu.memory_space<vmem>>, vector<1x128x128xbf16>
    %277 = vector.shape_cast %276 : vector<1x128x128xbf16> to vector<128x128xbf16>
    %c2_278 = arith.constant 2 : index
    %c0_279 = arith.constant 0 : index
    %c0_280 = arith.constant 0 : index
    %278 = vector.load %arg3[%c2_278, %c0_279, %c0_280] : memref<9x128x128xbf16, #tpu.memory_space<vmem>>, vector<1x128x128xbf16>
    %279 = vector.shape_cast %278 : vector<1x128x128xbf16> to vector<128x128xbf16>
    %cst_281 = arith.constant dense<0.000000e+00> : vector<128x128xf32>
    %280 = tpu.matmul %277, %279, %cst_281 {dimension_numbers = #tpu.dot_dimension_numbers<[1], [0], [0], [1], [0, 0, 1, 1], [], []>} : vector<128x128xbf16>, vector<128x128xbf16>, vector<128x128xf32> -> vector<128x128xf32>
    %281 = arith.addf %275, %280 : vector<128x128xf32>
    %c0_282 = arith.constant 0 : index
    %c144_283 = arith.constant 144 : index
    %c0_284 = arith.constant 0 : index
    %282 = vector.load %arg6[%c0_282, %c144_283, %c0_284] : memref<3x288x128xbf16, #tpu.memory_space<vmem>>, vector<1x128x128xbf16>
    %283 = vector.shape_cast %282 : vector<1x128x128xbf16> to vector<128x128xbf16>
    %c3_285 = arith.constant 3 : index
    %c0_286 = arith.constant 0 : index
    %c0_287 = arith.constant 0 : index
    %284 = vector.load %arg3[%c3_285, %c0_286, %c0_287] : memref<9x128x128xbf16, #tpu.memory_space<vmem>>, vector<1x128x128xbf16>
    %285 = vector.shape_cast %284 : vector<1x128x128xbf16> to vector<128x128xbf16>
    %cst_288 = arith.constant dense<0.000000e+00> : vector<128x128xf32>
    %286 = tpu.matmul %283, %285, %cst_288 {dimension_numbers = #tpu.dot_dimension_numbers<[1], [0], [0], [1], [0, 0, 1, 1], [], []>} : vector<128x128xbf16>, vector<128x128xbf16>, vector<128x128xf32> -> vector<128x128xf32>
    %287 = arith.addf %281, %286 : vector<128x128xf32>
    %c1_289 = arith.constant 1 : index
    %c144_290 = arith.constant 144 : index
    %c0_291 = arith.constant 0 : index
    %288 = vector.load %arg6[%c1_289, %c144_290, %c0_291] : memref<3x288x128xbf16, #tpu.memory_space<vmem>>, vector<1x128x128xbf16>
    %289 = vector.shape_cast %288 : vector<1x128x128xbf16> to vector<128x128xbf16>
    %c4_292 = arith.constant 4 : index
    %c0_293 = arith.constant 0 : index
    %c0_294 = arith.constant 0 : index
    %290 = vector.load %arg3[%c4_292, %c0_293, %c0_294] : memref<9x128x128xbf16, #tpu.memory_space<vmem>>, vector<1x128x128xbf16>
    %291 = vector.shape_cast %290 : vector<1x128x128xbf16> to vector<128x128xbf16>
    %cst_295 = arith.constant dense<0.000000e+00> : vector<128x128xf32>
    %292 = tpu.matmul %289, %291, %cst_295 {dimension_numbers = #tpu.dot_dimension_numbers<[1], [0], [0], [1], [0, 0, 1, 1], [], []>} : vector<128x128xbf16>, vector<128x128xbf16>, vector<128x128xf32> -> vector<128x128xf32>
    %293 = arith.addf %287, %292 : vector<128x128xf32>
    %c2_296 = arith.constant 2 : index
    %c144_297 = arith.constant 144 : index
    %c0_298 = arith.constant 0 : index
    %294 = vector.load %arg6[%c2_296, %c144_297, %c0_298] : memref<3x288x128xbf16, #tpu.memory_space<vmem>>, vector<1x128x128xbf16>
    %295 = vector.shape_cast %294 : vector<1x128x128xbf16> to vector<128x128xbf16>
    %c5_299 = arith.constant 5 : index
    %c0_300 = arith.constant 0 : index
    %c0_301 = arith.constant 0 : index
    %296 = vector.load %arg3[%c5_299, %c0_300, %c0_301] : memref<9x128x128xbf16, #tpu.memory_space<vmem>>, vector<1x128x128xbf16>
    %297 = vector.shape_cast %296 : vector<1x128x128xbf16> to vector<128x128xbf16>
    %cst_302 = arith.constant dense<0.000000e+00> : vector<128x128xf32>
    %298 = tpu.matmul %295, %297, %cst_302 {dimension_numbers = #tpu.dot_dimension_numbers<[1], [0], [0], [1], [0, 0, 1, 1], [], []>} : vector<128x128xbf16>, vector<128x128xbf16>, vector<128x128xf32> -> vector<128x128xf32>
    %299 = arith.addf %293, %298 : vector<128x128xf32>
    %c0_303 = arith.constant 0 : index
    %c160_304 = arith.constant 160 : index
    %c0_305 = arith.constant 0 : index
    %300 = vector.load %arg6[%c0_303, %c160_304, %c0_305] : memref<3x288x128xbf16, #tpu.memory_space<vmem>>, vector<1x128x128xbf16>
    %301 = vector.shape_cast %300 : vector<1x128x128xbf16> to vector<128x128xbf16>
    %c6_306 = arith.constant 6 : index
    %c0_307 = arith.constant 0 : index
    %c0_308 = arith.constant 0 : index
    %302 = vector.load %arg3[%c6_306, %c0_307, %c0_308] : memref<9x128x128xbf16, #tpu.memory_space<vmem>>, vector<1x128x128xbf16>
    %303 = vector.shape_cast %302 : vector<1x128x128xbf16> to vector<128x128xbf16>
    %cst_309 = arith.constant dense<0.000000e+00> : vector<128x128xf32>
    %304 = tpu.matmul %301, %303, %cst_309 {dimension_numbers = #tpu.dot_dimension_numbers<[1], [0], [0], [1], [0, 0, 1, 1], [], []>} : vector<128x128xbf16>, vector<128x128xbf16>, vector<128x128xf32> -> vector<128x128xf32>
    %305 = arith.addf %299, %304 : vector<128x128xf32>
    %c1_310 = arith.constant 1 : index
    %c160_311 = arith.constant 160 : index
    %c0_312 = arith.constant 0 : index
    %306 = vector.load %arg6[%c1_310, %c160_311, %c0_312] : memref<3x288x128xbf16, #tpu.memory_space<vmem>>, vector<1x128x128xbf16>
    %307 = vector.shape_cast %306 : vector<1x128x128xbf16> to vector<128x128xbf16>
    %c7_313 = arith.constant 7 : index
    %c0_314 = arith.constant 0 : index
    %c0_315 = arith.constant 0 : index
    %308 = vector.load %arg3[%c7_313, %c0_314, %c0_315] : memref<9x128x128xbf16, #tpu.memory_space<vmem>>, vector<1x128x128xbf16>
    %309 = vector.shape_cast %308 : vector<1x128x128xbf16> to vector<128x128xbf16>
    %cst_316 = arith.constant dense<0.000000e+00> : vector<128x128xf32>
    %310 = tpu.matmul %307, %309, %cst_316 {dimension_numbers = #tpu.dot_dimension_numbers<[1], [0], [0], [1], [0, 0, 1, 1], [], []>} : vector<128x128xbf16>, vector<128x128xbf16>, vector<128x128xf32> -> vector<128x128xf32>
    %311 = arith.addf %305, %310 : vector<128x128xf32>
    %c2_317 = arith.constant 2 : index
    %c160_318 = arith.constant 160 : index
    %c0_319 = arith.constant 0 : index
    %312 = vector.load %arg6[%c2_317, %c160_318, %c0_319] : memref<3x288x128xbf16, #tpu.memory_space<vmem>>, vector<1x128x128xbf16>
    %313 = vector.shape_cast %312 : vector<1x128x128xbf16> to vector<128x128xbf16>
    %c8_320 = arith.constant 8 : index
    %c0_321 = arith.constant 0 : index
    %c0_322 = arith.constant 0 : index
    %314 = vector.load %arg3[%c8_320, %c0_321, %c0_322] : memref<9x128x128xbf16, #tpu.memory_space<vmem>>, vector<1x128x128xbf16>
    %315 = vector.shape_cast %314 : vector<1x128x128xbf16> to vector<128x128xbf16>
    %cst_323 = arith.constant dense<0.000000e+00> : vector<128x128xf32>
    %316 = tpu.matmul %313, %315, %cst_323 {dimension_numbers = #tpu.dot_dimension_numbers<[1], [0], [0], [1], [0, 0, 1, 1], [], []>} : vector<128x128xbf16>, vector<128x128xbf16>, vector<128x128xf32> -> vector<128x128xf32>
    %317 = arith.addf %311, %316 : vector<128x128xf32>
    %c128_324 = arith.constant 128 : index
    %c0_325 = arith.constant 0 : index
    %318 = vector.load %arg8[%c128_324, %c0_325] : memref<256x128xf32, #tpu.memory_space<vmem>>, vector<128x128xf32>
    tpu.vector_store %arg8[%c128_324, %c0_325], %317 {strides = array<i32>} : memref<256x128xf32, #tpu.memory_space<vmem>>, vector<128x128xf32>,
    %cst_326 = arith.constant dense<0.000000e+00> : vector<128xf32>
    %319 = vector.multi_reduction <add>, %317, %cst_326 [0] : vector<128x128xf32> to vector<128xf32>
    %320 = vector.shape_cast %319 : vector<128xf32> to vector<1x128xf32>
    %321 = arith.addf %258, %320 : vector<1x128xf32>
    %322 = arith.mulf %317, %317 : vector<128x128xf32>
    %cst_327 = arith.constant dense<0.000000e+00> : vector<128xf32>
    %323 = vector.multi_reduction <add>, %322, %cst_327 [0] : vector<128x128xf32> to vector<128xf32>
    %324 = vector.shape_cast %323 : vector<128xf32> to vector<1x128xf32>
    %325 = arith.addf %262, %324 : vector<1x128xf32>
    %cst_328 = arith.constant 3.906250e-03 : f32
    %326 = vector.broadcast %cst_328 : f32 to vector<1x128xf32>
    %327 = arith.mulf %321, %326 : vector<1x128xf32>
    %cst_329 = arith.constant 3.906250e-03 : f32
    %328 = vector.broadcast %cst_329 : f32 to vector<1x128xf32>
    %329 = arith.mulf %325, %328 : vector<1x128xf32>
    %330 = arith.mulf %327, %327 : vector<1x128xf32>
    %331 = arith.subf %329, %330 : vector<1x128xf32>
    %cst_330 = arith.constant 0.000000e+00 : f32
    %332 = vector.broadcast %cst_330 : f32 to vector<1x128xf32>
    %333 = arith.maximumf %331, %332 : vector<1x128xf32>
    %cst_331 = arith.constant 9.99999974E-6 : f32
    %334 = vector.broadcast %cst_331 : f32 to vector<1x128xf32>
    %335 = arith.addf %333, %334 : vector<1x128xf32>
    %336 = math.rsqrt %335 : vector<1x128xf32>
    %c0_332 = arith.constant 0 : index
    %c0_333 = arith.constant 0 : index
    %337 = vector.load %arg8[%c0_332, %c0_333] : memref<256x128xf32, #tpu.memory_space<vmem>>, vector<128x128xf32>
    %338 = vector.broadcast %327 : vector<1x128xf32> to vector<128x128xf32>
    %339 = arith.subf %337, %338 : vector<128x128xf32>
    %340 = vector.broadcast %336 : vector<1x128xf32> to vector<128x128xf32>
    %341 = arith.mulf %339, %340 : vector<128x128xf32>
    %c1_334 = arith.constant 1 : index
    %c16_335 = arith.constant 16 : index
    %c0_336 = arith.constant 0 : index
    %342 = vector.load %arg5[%c1_334, %c16_335, %c0_336] : memref<3x288x128xbf16, #tpu.memory_space<vmem>>, vector<1x128x128xbf16>
    %343 = vector.shape_cast %342 : vector<1x128x128xbf16> to vector<128x128xbf16>
    %344 = arith.extf %343 : vector<128x128xbf16> to vector<128x128xf32>
    %345 = arith.addf %344, %341 : vector<128x128xf32>
    %346 = vector.shape_cast %345 : vector<128x128xf32> to vector<8x16x128xf32>
    %c0_337 = arith.constant 0 : index
    %c0_338 = arith.constant 0 : index
    %c0_339 = arith.constant 0 : index
    %c0_340 = arith.constant 0 : index
    %347 = vector.load %arg4[%c0_337, %c0_338, %c0_339, %c0_340] : memref<1x16x16x128xf32, #tpu.memory_space<vmem>>, vector<1x8x16x128xf32>
    %348 = vector.shape_cast %347 : vector<1x8x16x128xf32> to vector<8x16x128xf32>
    %349 = vector.shape_cast %346 : vector<8x16x128xf32> to vector<1x8x16x128xf32>
    tpu.vector_store %arg4[%c0_337, %c0_338, %c0_339, %c0_340], %349 {strides = array<i32>} : memref<1x16x16x128xf32, #tpu.memory_space<vmem>>, vector<1x8x16x128xf32>,
    %c128_341 = arith.constant 128 : index
    %c0_342 = arith.constant 0 : index
    %350 = vector.load %arg8[%c128_341, %c0_342] : memref<256x128xf32, #tpu.memory_space<vmem>>, vector<128x128xf32>
    %351 = vector.broadcast %327 : vector<1x128xf32> to vector<128x128xf32>
    %352 = arith.subf %350, %351 : vector<128x128xf32>
    %353 = vector.broadcast %336 : vector<1x128xf32> to vector<128x128xf32>
    %354 = arith.mulf %352, %353 : vector<128x128xf32>
    %c1_343 = arith.constant 1 : index
    %c144_344 = arith.constant 144 : index
    %c0_345 = arith.constant 0 : index
    %355 = vector.load %arg5[%c1_343, %c144_344, %c0_345] : memref<3x288x128xbf16, #tpu.memory_space<vmem>>, vector<1x128x128xbf16>
    %356 = vector.shape_cast %355 : vector<1x128x128xbf16> to vector<128x128xbf16>
    %357 = arith.extf %356 : vector<128x128xbf16> to vector<128x128xf32>
    %358 = arith.addf %357, %354 : vector<128x128xf32>
    %359 = vector.shape_cast %358 : vector<128x128xf32> to vector<8x16x128xf32>
    %c0_346 = arith.constant 0 : index
    %c8_347 = arith.constant 8 : index
    %c0_348 = arith.constant 0 : index
    %c0_349 = arith.constant 0 : index
    %360 = vector.load %arg4[%c0_346, %c8_347, %c0_348, %c0_349] : memref<1x16x16x128xf32, #tpu.memory_space<vmem>>, vector<1x8x16x128xf32>
    %361 = vector.shape_cast %360 : vector<1x8x16x128xf32> to vector<8x16x128xf32>
    %362 = vector.shape_cast %359 : vector<8x16x128xf32> to vector<1x8x16x128xf32>
    tpu.vector_store %arg4[%c0_346, %c8_347, %c0_348, %c0_349], %362 {strides = array<i32>} : memref<1x16x16x128xf32, #tpu.memory_space<vmem>>, vector<1x8x16x128xf32>,
    return
  }
  func.func @transform_0(%arg0: i32) -> (i32, i32, i32, i32) {
    %c0_i32 = arith.constant 0 : i32
    %c0_i32_0 = arith.constant 0 : i32
    %c0_i32_1 = arith.constant 0 : i32
    %c0_i32_2 = arith.constant 0 : i32
    return %arg0, %c0_i32, %c0_i32_0, %c0_i32_1 : i32, i32, i32, i32
  }
  func.func @transform_1(%arg0: i32) -> (i32, i32, i32) {
    %c0_i32 = arith.constant 0 : i32
    %c0_i32_0 = arith.constant 0 : i32
    %c0_i32_1 = arith.constant 0 : i32
    %c0_i32_2 = arith.constant 0 : i32
    return %c0_i32, %c0_i32_0, %c0_i32_1 : i32, i32, i32
  }
  func.func @transform_2(%arg0: i32) -> (i32, i32, i32) {
    %c0_i32 = arith.constant 0 : i32
    %c0_i32_0 = arith.constant 0 : i32
    %c0_i32_1 = arith.constant 0 : i32
    %c0_i32_2 = arith.constant 0 : i32
    return %c0_i32, %c0_i32_0, %c0_i32_1 : i32, i32, i32
  }
  func.func @transform_3(%arg0: i32) -> (i32, i32, i32, i32) {
    %c0_i32 = arith.constant 0 : i32
    %c0_i32_0 = arith.constant 0 : i32
    %c0_i32_1 = arith.constant 0 : i32
    %c0_i32_2 = arith.constant 0 : i32
    return %arg0, %c0_i32, %c0_i32_0, %c0_i32_1 : i32, i32, i32, i32
  }
}

</mosaic_0001>

<llo_original>
// kernel: tpu_custom_call.1
$region0: #{tpu_custom_call.1}
  #allocation0 [shape = 'u32[]', space=smem, size = 0x4, offset = 0x4, fixed_abs, tag = 'smem constant byte address 0x4 - core index']
  #allocation1 [shape = 'u32[144,128]{1,0:T(1,128)}', space=vmem, size = 0x12000, scoped, tag = 'internal scratch']
  #allocation2 [shape = 'bf16[3,288,128]{2,1,0:T(16,128)(2,1)}', space=vmem, size = 0x36000, scoped, tag = 'scratch operand']
  #allocation3 [shape = 'bf16[3,288,128]{2,1,0:T(16,128)(2,1)}', space=vmem, size = 0x36000, scoped, tag = 'scratch operand']
  #allocation4 [shape = 'bf16[18,18,128]{2,1,0:T(8,128)(2,1)}', space=vmem, size = 0x1b000, scoped, tag = 'scratch operand']
  #allocation5 [shape = 'f32[256,128]{1,0:T(8,128)}', space=vmem, size = 0x20000, scoped, tag = 'scratch operand']
  %s0 = inlined_call_operand.vmem [shape: bf16[2,18,18,128], index: 0, kind: input, shape index: {}]
  %s1 = inlined_call_operand.vmem [shape: bf16[9,128,128], index: 1, kind: input, shape index: {}]
  %s2 = inlined_call_operand.hbm [shape: bf16[9,128,128], index: 2, kind: input, shape index: {}]
  %s3 = inlined_call_operand.hbm [shape: f32[2,16,16,128], index: 3, kind: output, shape index: {}]
  %s4 = sld [smem:[#allocation0]]
  $region49: #{tpu_custom_call.1} parent=0
    _
  %s6 = ssub.s32 1, %s4
  %s7 = scalar_select 0, %s6, %s4
  $region1: #{tpu_custom_call.1} parent=0
    #allocation6 [shape = 'u8[294912]{0}', space=vmem, size = 0x48000, scoped, tag = 'input window, operand 2, single buffered']
    #allocation7 [shape = 's32[2]{0}', space=sflag, size = 0x8, scoped, tag = 'scoped memory for tpu_custom_call.1']
    #allocation8 [shape = 's32[2]{0}', space=sflag, size = 0x8, scoped, tag = 'scoped memory for tpu_custom_call.1']
    #allocation9 [shape = 'u8[262144]{0}', space=vmem, size = 0x40000, scoped, tag = 'output window, operand 0']
    %8 = vsyncpa [#allocation7], 0
    %9 = vsyncpa [#allocation8], 0
    %s10 = scalar_lea.sflag [#allocation8], 1
    %11 = vsyncpa %s10, 0
    loop: start=0, step=1, limit=4
    $region2: #{tpu_custom_call.1} parent=1 // loop_pre_header
      _
    $region3: #{tpu_custom_call.1} parent=1 // loop_header
      %s13 = sphi 0, %s17
      %p14 = scmp.ge.s32.totalorder %s13, 4
      %s23 = sphi 0, %s25
      %s26 = sphi 0, %s23
      %s27 = sphi 0, %s26
      %s43 = sphi 0, %s27
      %s47 = sphi 0, %s47
      %s49 = sphi 0, %s47
      %s50 = sphi 0, %s49
      %s64 = sphi 0, %s50
      %s68 = sphi 0, %s68
      %s70 = sphi 0, %s68
      %s71 = sphi 0, %s70
      %s85 = sphi 0, %s71
      %s91 = sphi 0, %s93
      %s94 = sphi 0, %s91
      %s95 = sphi 0, %s94
      %s111 = sphi 0, %s95
    $region4: #{tpu_custom_call.1} parent=1 // loop_header_branch
      %16 = sbr.rel (%p14) target = $region8
    $region5: #{tpu_custom_call.1} parent=1 // loop_body
      %s18 = ssub.s32 %s13, 1
      %s19 = ssub.s32 %s13, 2
      %s20 = sadd.s32 %s13, 1
      %s21 = ssub.s32 %s13, %s20
      %p22 = scmp.eq.s32.totalorder %s21, 0
      %s24 = sadd.s32 %s23, 1
      %s25 = scalar_select %p22, %s23, %s24
      %p28 = pneg %p22
      %p29 = scmp.eq.s32.totalorder %s13, 1
      %p30 = por %p28, %p29
      %p31 = scmp.ne.s32.totalorder %s23, %s26
      %p32 = scmp.eq.s32.totalorder %s13, 0
      %p33 = por %p31, %p32
      %p34 = scmp.ne.s32.totalorder %s23, %s26
      %p35 = scmp.eq.s32.totalorder %s18, 1
      %p36 = por %p34, %p35
      %p37 = scmp.ne.s32.totalorder %s26, %s27
      %p38 = scmp.eq.s32.totalorder %s18, 0
      %p39 = por %p37, %p38
      %p40 = scmp.ne.s32.totalorder %s26, %s27
      %p41 = scmp.eq.s32.totalorder %s19, 1
      %p42 = por %p40, %p41
      %p44 = scmp.ne.s32.totalorder %s27, %s43
      %p45 = scmp.eq.s32.totalorder %s19, 0
      %p46 = por %p44, %p45
      %s48 = sadd.s32 %s47, 1
      %p51 = scmp.eq.s32.totalorder %s13, 1
      %p52 = scmp.ne.s32.totalorder %s47, %s49
      %p53 = scmp.eq.s32.totalorder %s13, 0
      %p54 = por %p52, %p53
      %p55 = scmp.ne.s32.totalorder %s47, %s49
      %p56 = scmp.eq.s32.totalorder %s18, 1
      %p57 = por %p55, %p56
      %p58 = scmp.ne.s32.totalorder %s49, %s50
      %p59 = scmp.eq.s32.totalorder %s18, 0
      %p60 = por %p58, %p59
      %p61 = scmp.ne.s32.totalorder %s49, %s50
      %p62 = scmp.eq.s32.totalorder %s19, 1
      %p63 = por %p61, %p62
      %p65 = scmp.ne.s32.totalorder %s50, %s64
      %p66 = scmp.eq.s32.totalorder %s19, 0
      %p67 = por %p65, %p66
      %s69 = sadd.s32 %s68, 1
      %p72 = scmp.eq.s32.totalorder %s13, 1
      %p73 = scmp.ne.s32.totalorder %s68, %s70
      %p74 = scmp.eq.s32.totalorder %s13, 0
      %p75 = por %p73, %p74
      %p76 = scmp.ne.s32.totalorder %s68, %s70
      %p77 = scmp.eq.s32.totalorder %s18, 1
      %p78 = por %p76, %p77
      %p79 = scmp.ne.s32.totalorder %s70, %s71
      %p80 = scmp.eq.s32.totalorder %s18, 0
      %p81 = por %p79, %p80
      %p82 = scmp.ne.s32.totalorder %s70, %s71
      %p83 = scmp.eq.s32.totalorder %s19, 1
      %p84 = por %p82, %p83
      %p86 = scmp.ne.s32.totalorder %s71, %s85
      %p87 = scmp.eq.s32.totalorder %s19, 0
      %p88 = por %p86, %p87
      %s89 = ssub.s32 %s13, %s20
      %p90 = scmp.eq.s32.totalorder %s89, 0
      %s92 = sadd.s32 %s91, 1
      %s93 = scalar_select %p90, %s91, %s92
      %p96 = pneg %p90
      %p97 = scmp.eq.s32.totalorder %s13, 1
      %p98 = por %p96, %p97
      %p99 = scmp.ne.s32.totalorder %s91, %s94
      %p100 = scmp.eq.s32.totalorder %s13, 0
      %p101 = por %p99, %p100
      %p102 = scmp.ne.s32.totalorder %s91, %s94
      %p103 = scmp.eq.s32.totalorder %s18, 1
      %p104 = por %p102, %p103
      %p105 = scmp.ne.s32.totalorder %s94, %s95
      %p106 = scmp.eq.s32.totalorder %s18, 0
      %p107 = por %p105, %p106
      %p108 = scmp.ne.s32.totalorder %s94, %s95
      %p109 = scmp.eq.s32.totalorder %s19, 1
      %p110 = por %p108, %p109
      %p112 = scmp.ne.s32.totalorder %s95, %s111
      %p113 = scmp.eq.s32.totalorder %s19, 0
      %p114 = por %p112, %p113
      %p115 = scmp.le.s32.totalorder 1, %s13
      %p116 = scmp.lt.s32.totalorder %s13, 3
      %p117 = pnand %p115, %p116
      %p118 = pneg %p117
      // Predicated region
      $region9: #{tpu_custom_call.1} parent=5 // pred_check
        _
      $region10: #{tpu_custom_call.1} parent=5 // pred_check_branch
        %120 = sbr.rel (%p117) target = $region12
      $region11: #{tpu_custom_call.1} parent=5 // pred_region
        %s121 = ssub.s32 %s13, 1
        // Predicated region
        $region13: #{tpu_custom_call.1} parent=11 // pred_check
          %p122 = pneg %p60
        $region14: #{tpu_custom_call.1} parent=11 // pred_check_branch
          %124 = sbr.rel (%p122) target = $region16
        $region15: #{tpu_custom_call.1} parent=11 // pred_region
          _
        $region16: #{tpu_custom_call.1} parent=11 // pred_fallthru
          _
        // Predicated region
        $region17: #{tpu_custom_call.1} parent=11 // pred_check
          %p125 = pneg %p81
        $region18: #{tpu_custom_call.1} parent=11 // pred_check_branch
          %127 = sbr.rel (%p125) target = $region20
        $region19: #{tpu_custom_call.1} parent=11 // pred_region
          %s129 = ssub.s32 9216, 9216
          %130 = vsyncadd [#allocation7], %s129
          %s131 = sshll.u32 [#allocation6], 4
          %s132 = int_to_ptr.vmem [resolvable:$true] %s131
          %137 = dma.hbm_to_vmem [thread:$0]  %s2, 9216, %s132, [#allocation7], 64, 64, 4
        $region20: #{tpu_custom_call.1} parent=11 // pred_fallthru
          _
      $region12: #{tpu_custom_call.1} parent=5 // pred_fallthru
        _
      %p138 = scmp.lt.s32.totalorder %s13, 2
      // Predicated region
      $region21: #{tpu_custom_call.1} parent=5 // pred_check
        %p139 = pneg %p138
      $region22: #{tpu_custom_call.1} parent=5 // pred_check_branch
        %141 = sbr.rel (%p139) target = $region24
      $region23: #{tpu_custom_call.1} parent=5 // pred_region
        // Predicated region
        $region25: #{tpu_custom_call.1} parent=23 // pred_check
          %p142 = pneg %p33
        $region26: #{tpu_custom_call.1} parent=23 // pred_check_branch
          %144 = sbr.rel (%p142) target = $region28
        $region27: #{tpu_custom_call.1} parent=23 // pred_region
          %p145 = scmp.lt.s32.totalorder %s13, 1
          %s146 = scalar_select %p145, %s13, 1
          %s147 = smul.addr %s146, 54
          %s148 = smul.addr %s147, 4
          %s149 = scalar_lea.vmem %s0, %s148
        $region28: #{tpu_custom_call.1} parent=23 // pred_fallthru
          _
      $region24: #{tpu_custom_call.1} parent=5 // pred_fallthru
        _
      %p150 = scmp.le.s32.totalorder 1, %s13
      %p151 = scmp.lt.s32.totalorder %s13, 3
      %p152 = pnand %p150, %p151
      %p153 = pneg %p152
      // Predicated region
      $region29: #{tpu_custom_call.1} parent=5 // pred_check
        _
      $region30: #{tpu_custom_call.1} parent=5 // pred_check_branch
        %155 = sbr.rel (%p152) target = $region32
      $region31: #{tpu_custom_call.1} parent=5 // pred_region
        %s156 = ssub.s32 %s13, 1
        // Predicated region
        $region33: #{tpu_custom_call.1} parent=31 // pred_check
          %p157 = pneg %p81
        $region34: #{tpu_custom_call.1} parent=31 // pred_check_branch
          %159 = sbr.rel (%p157) target = $region36
        $region35: #{tpu_custom_call.1} parent=31 // pred_region
          %160 = dma.done [#allocation7], 9216
        $region36: #{tpu_custom_call.1} parent=31 // pred_fallthru
          _
        %p161 = scmp.lt.s32.totalorder %s18, 1
        %s162 = scalar_select %p161, %s18, 1
        %s163 = smul.addr %s162, 54
        %s164 = smul.addr %s163, 4
        %s165 = scalar_lea.vmem %s0, %s164
        %p166 = pneg %p39
        %p167 = pneg %p36
        %p168 = pneg %p60
        %p169 = pneg %p57
        %p170 = pneg %p81
        %p171 = pneg %p78
        %p172 = pneg %p107
        %p173 = pneg %p104
        %s174 = sand.u32 %s94, 1
        %s175 = scalar_lea.sflag [#allocation8], %s174
        %s176 = sand.u32 %s94, 1
        %s177 = smul.addr %s176, 256
        %s178 = scalar_lea.vmem [#allocation9], %s177
        %p179 = scmp.lt.s32.totalorder %s18, 1
        %s180 = scalar_select %p179, %s18, 1
        %s181 = smul.addr %s180, 54
        %s182 = smul.addr %s181, 4
        %s183 = scalar_lea.vmem %s0, %s182
        %v185 = vld [vmem:[%s183] sm:$0xf]
        %v186 = vld [vmem:[%s183 + $0x4] sm:$0xf]
        %v187 = vld [vmem:[%s183 + $0xc] sm:$0xf]
        %v188 = vld [vmem:[%s183 + $0x10] sm:$0xf]
        %v189 = vld [vmem:[%s183 + $0x18] sm:$0xf]
        %v190 = vld [vmem:[%s183 + $0x1c] sm:$0xf]
        %v191 = vld [vmem:[%s183 + $0x24] sm:$0xf]
        %v192 = vld [vmem:[%s183 + $0x28] sm:$0xf]
        %v193 = vld [vmem:[%s183 + $0x30] sm:$0xf]
        %v194 = vld [vmem:[%s183 + $0x34] sm:$0xf]
        %v195 = vld [vmem:[%s183 + $0x3c] sm:$0xf]
        %v196 = vld [vmem:[%s183 + $0x40] sm:$0xf]
        %v197 = vld [vmem:[%s183 + $0x48] sm:$0xf]
        %v198 = vld [vmem:[%s183 + $0x4c] sm:$0xf]
        %v199 = vld [vmem:[%s183 + $0x54] sm:$0xf]
        %v200 = vld [vmem:[%s183 + $0x58] sm:$0xf]
        %v201 = vld [vmem:[%s183 + $0x60] sm:$0xf]
        %v202 = vld [vmem:[%s183 + $0x64] sm:$0xf]
        %v203 = vld [vmem:[%s183 + $0x6c] sm:$0xf]
        %v204 = vld [vmem:[%s183 + $0x70] sm:$0xf]
        %v205 = vld [vmem:[%s183 + $0x78] sm:$0xf]
        %v206 = vld [vmem:[%s183 + $0x7c] sm:$0xf]
        %v207 = vld [vmem:[%s183 + $0x84] sm:$0xf]
        %v208 = vld [vmem:[%s183 + $0x88] sm:$0xf]
        %v209 = vld [vmem:[%s183 + $0x90] sm:$0xf]
        %v210 = vld [vmem:[%s183 + $0x94] sm:$0xf]
        %v211 = vld [vmem:[%s183 + $0x9c] sm:$0xf]
        %v212 = vld [vmem:[%s183 + $0xa0] sm:$0xf]
        %v213 = vld [vmem:[%s183 + $0xa8] sm:$0xf]
        %v214 = vld [vmem:[%s183 + $0xac] sm:$0xf]
        %v215 = vld [vmem:[%s183 + $0xb4] sm:$0xf]
        %v216 = vld [vmem:[%s183 + $0xb8] sm:$0xf]
        %v217 = vld [vmem:[%s183 + $0xc0] sm:$0xf]
        %v218 = vld [vmem:[%s183 + $0xc4] sm:$0xf]
        %v219 = vld [vmem:[%s183 + $0xcc] sm:$0xf]
        %v220 = vld [vmem:[%s183 + $0xd0] sm:$0xf]
        %v257 = vunpack.c.l.b16 %v185
        %v258 = vunpack.c.l.b16 %v186
        %v259 = vunpack.c.l.b16 %v187
        %v260 = vunpack.c.l.b16 %v188
        %v261 = vunpack.c.l.b16 %v189
        %v262 = vunpack.c.l.b16 %v190
        %v263 = vunpack.c.l.b16 %v191
        %v264 = vunpack.c.l.b16 %v192
        %v265 = vunpack.c.l.b16 %v193
        %v266 = vunpack.c.l.b16 %v194
        %v267 = vunpack.c.l.b16 %v195
        %v268 = vunpack.c.l.b16 %v196
        %v269 = vunpack.c.l.b16 %v197
        %v270 = vunpack.c.l.b16 %v198
        %v271 = vunpack.c.l.b16 %v199
        %v272 = vunpack.c.l.b16 %v200
        %v273 = vunpack.c.l.b16 %v201
        %v274 = vunpack.c.l.b16 %v202
        %v275 = vunpack.c.l.b16 %v203
        %v276 = vunpack.c.l.b16 %v204
        %v277 = vunpack.c.l.b16 %v205
        %v278 = vunpack.c.l.b16 %v206
        %v279 = vunpack.c.l.b16 %v207
        %v280 = vunpack.c.l.b16 %v208
        %v281 = vunpack.c.l.b16 %v209
        %v282 = vunpack.c.l.b16 %v210
        %v283 = vunpack.c.l.b16 %v211
        %v284 = vunpack.c.l.b16 %v212
        %v285 = vunpack.c.l.b16 %v213
        %v286 = vunpack.c.l.b16 %v214
        %v287 = vunpack.c.l.b16 %v215
        %v288 = vunpack.c.l.b16 %v216
        %v289 = vunpack.c.l.b16 %v217
        %v290 = vunpack.c.l.b16 %v218
        %v291 = vunpack.c.l.b16 %v219
        %v292 = vunpack.c.l.b16 %v220
        %v293 = vpack.c.b16 %v258, %v257
        %v294 = vpack.c.b16 %v260, %v259
        %v295 = vpack.c.b16 %v262, %v261
        %v296 = vpack.c.b16 %v264, %v263
        %v297 = vpack.c.b16 %v266, %v265
        %v298 = vpack.c.b16 %v268, %v267
        %v299 = vpack.c.b16 %v270, %v269
        %v300 = vpack.c.b16 %v272, %v271
        %v301 = vpack.c.b16 %v274, %v273
        %v302 = vpack.c.b16 %v276, %v275
        %v303 = vpack.c.b16 %v278, %v277
        %v304 = vpack.c.b16 %v280, %v279
        %v305 = vpack.c.b16 %v282, %v281
        %v306 = vpack.c.b16 %v284, %v283
        %v307 = vpack.c.b16 %v286, %v285
        %v308 = vpack.c.b16 %v288, %v287
        %v309 = vpack.c.b16 %v290, %v289
        %v310 = vpack.c.b16 %v292, %v291
        %329 = vst [vmem:[#allocation2] sm:$0xff] %v293
        %330 = vst [vmem:[#allocation2 + $0x8] sm:$0xff] %v294
        %331 = vst [vmem:[#allocation2 + $0x10] sm:$0xff] %v295
        %332 = vst [vmem:[#allocation2 + $0x18] sm:$0xff] %v296
        %333 = vst [vmem:[#allocation2 + $0x20] sm:$0xff] %v297
        %334 = vst [vmem:[#allocation2 + $0x28] sm:$0xff] %v298
        %335 = vst [vmem:[#allocation2 + $0x30] sm:$0xff] %v299
        %336 = vst [vmem:[#allocation2 + $0x38] sm:$0xff] %v300
        %337 = vst [vmem:[#allocation2 + $0x40] sm:$0xff] %v301
        %338 = vst [vmem:[#allocation2 + $0x48] sm:$0xff] %v302
        %339 = vst [vmem:[#allocation2 + $0x50] sm:$0xff] %v303
        %340 = vst [vmem:[#allocation2 + $0x58] sm:$0xff] %v304
        %341 = vst [vmem:[#allocation2 + $0x60] sm:$0xff] %v305
        %342 = vst [vmem:[#allocation2 + $0x68] sm:$0xff] %v306
        %343 = vst [vmem:[#allocation2 + $0x70] sm:$0xff] %v307
        %344 = vst [vmem:[#allocation2 + $0x78] sm:$0xff] %v308
        %345 = vst [vmem:[#allocation2 + $0x80] sm:$0xff] %v309
        %346 = vst [vmem:[#allocation2 + $0x88] sm:$0xff] %v310
        %v347 = vld [vmem:[%s183] sm:$0xf]
        %v348 = vld [vmem:[%s183 + $0x4] sm:$0xf]
        %v349 = vld [vmem:[%s183 + $0x8] sm:$0x1]
        %v350 = vld [vmem:[%s183 + $0xc] sm:$0xf]
        %v351 = vld [vmem:[%s183 + $0x10] sm:$0xf]
        %v352 = vld [vmem:[%s183 + $0x14] sm:$0x1]
        %v353 = vld [vmem:[%s183 + $0x18] sm:$0xf]
        %v354 = vld [vmem:[%s183 + $0x1c] sm:$0xf]
        %v355 = vld [vmem:[%s183 + $0x20] sm:$0x1]
        %v356 = vld [vmem:[%s183 + $0x24] sm:$0xf]
        %v357 = vld [vmem:[%s183 + $0x28] sm:$0xf]
        %v358 = vld [vmem:[%s183 + $0x2c] sm:$0x1]
        %v359 = vld [vmem:[%s183 + $0x30] sm:$0xf]
        %v360 = vld [vmem:[%s183 + $0x34] sm:$0xf]
        %v361 = vld [vmem:[%s183 + $0x38] sm:$0x1]
        %v362 = vld [vmem:[%s183 + $0x3c] sm:$0xf]
        %v363 = vld [vmem:[%s183 + $0x40] sm:$0xf]
        %v364 = vld [vmem:[%s183 + $0x44] sm:$0x1]
        %v365 = vld [vmem:[%s183 + $0x48] sm:$0xf]
        %v366 = vld [vmem:[%s183 + $0x4c] sm:$0xf]
        %v367 = vld [vmem:[%s183 + $0x50] sm:$0x1]
        %v368 = vld [vmem:[%s183 + $0x54] sm:$0xf]
        %v369 = vld [vmem:[%s183 + $0x58] sm:$0xf]
        %v370 = vld [vmem:[%s183 + $0x5c] sm:$0x1]
        %v371 = vld [vmem:[%s183 + $0x60] sm:$0xf]
        %v372 = vld [vmem:[%s183 + $0x64] sm:$0xf]
        %v373 = vld [vmem:[%s183 + $0x68] sm:$0x1]
        %v374 = vld [vmem:[%s183 + $0x6c] sm:$0xf]
        %v375 = vld [vmem:[%s183 + $0x70] sm:$0xf]
        %v376 = vld [vmem:[%s183 + $0x74] sm:$0x1]
        %v377 = vld [vmem:[%s183 + $0x78] sm:$0xf]
        %v378 = vld [vmem:[%s183 + $0x7c] sm:$0xf]
        %v379 = vld [vmem:[%s183 + $0x80] sm:$0x1]
        %v380 = vld [vmem:[%s183 + $0x84] sm:$0xf]
        %v381 = vld [vmem:[%s183 + $0x88] sm:$0xf]
        %v382 = vld [vmem:[%s183 + $0x8c] sm:$0x1]
        %v383 = vld [vmem:[%s183 + $0x90] sm:$0xf]
        %v384 = vld [vmem:[%s183 + $0x94] sm:$0xf]
        %v385 = vld [vmem:[%s183 + $0x98] sm:$0x1]
        %v386 = vld [vmem:[%s183 + $0x9c] sm:$0xf]
        %v387 = vld [vmem:[%s183 + $0xa0] sm:$0xf]
        %v388 = vld [vmem:[%s183 + $0xa4] sm:$0x1]
        %v389 = vld [vmem:[%s183 + $0xa8] sm:$0xf]
        %v390 = vld [vmem:[%s183 + $0xac] sm:$0xf]
        %v391 = vld [vmem:[%s183 + $0xb0] sm:$0x1]
        %v392 = vld [vmem:[%s183 + $0xb4] sm:$0xf]
        %v393 = vld [vmem:[%s183 + $0xb8] sm:$0xf]
        %v394 = vld [vmem:[%s183 + $0xbc] sm:$0x1]
        %v395 = vld [vmem:[%s183 + $0xc0] sm:$0xf]
        %v396 = vld [vmem:[%s183 + $0xc4] sm:$0xf]
        %v397 = vld [vmem:[%s183 + $0xc8] sm:$0x1]
        %v398 = vld [vmem:[%s183 + $0xcc] sm:$0xf]
        %v399 = vld [vmem:[%s183 + $0xd0] sm:$0xf]
        %v400 = vld [vmem:[%s183 + $0xd4] sm:$0x1]
        %vm401 = vsmask.f32 3328
        %vm402 = vsmask.f32 7440
        %vm403 = vmor %vm401, %vm402
        %v405 = vshrl.u32 %v347, 16
        %v407 = vrot.slane %v405, 4
        %v408 = vshll.u32 %v347, 16
        %v410 = vrot.slane %v408, 5
        %v411 = vor.u32 %v407, %v410
        %v412 = vrot.slane %v411, 4
        %v414 = vshll.u32 %v348, 16
        %v416 = vrot.slane %v414, 5
        %v417 = vsel %vm403, %v412, %v416
        %v418 = vshrl.u32 %v348, 16
        %v420 = vrot.slane %v418, 4
        %v421 = vor.u32 %v420, %v416
        %v422 = vrot.slane %v421, 4
        %v424 = vshll.u32 %v349, 16
        %v426 = vrot.slane %v424, 5
        %v427 = vsel %vm403, %v422, %v426
        %v429 = vshrl.u32 %v350, 16
        %v431 = vrot.slane %v429, 4
        %v432 = vshll.u32 %v350, 16
        %v434 = vrot.slane %v432, 5
        %v435 = vor.u32 %v431, %v434
        %v436 = vrot.slane %v435, 4
        %v438 = vshll.u32 %v351, 16
        %v440 = vrot.slane %v438, 5
        %v441 = vsel %vm403, %v436, %v440
        %v442 = vshrl.u32 %v351, 16
        %v444 = vrot.slane %v442, 4
        %v445 = vor.u32 %v444, %v440
        %v446 = vrot.slane %v445, 4
        %v448 = vshll.u32 %v352, 16
        %v450 = vrot.slane %v448, 5
        %v451 = vsel %vm403, %v446, %v450
        %v453 = vshrl.u32 %v353, 16
        %v455 = vrot.slane %v453, 4
        %v456 = vshll.u32 %v353, 16
        %v458 = vrot.slane %v456, 5
        %v459 = vor.u32 %v455, %v458
        %v460 = vrot.slane %v459, 4
        %v462 = vshll.u32 %v354, 16
        %v464 = vrot.slane %v462, 5
        %v465 = vsel %vm403, %v460, %v464
        %v466 = vshrl.u32 %v354, 16
        %v468 = vrot.slane %v466, 4
        %v469 = vor.u32 %v468, %v464
        %v470 = vrot.slane %v469, 4
        %v472 = vshll.u32 %v355, 16
        %v474 = vrot.slane %v472, 5
        %v475 = vsel %vm403, %v470, %v474
        %v477 = vshrl.u32 %v356, 16
        %v479 = vrot.slane %v477, 4
        %v480 = vshll.u32 %v356, 16
        %v482 = vrot.slane %v480, 5
        %v483 = vor.u32 %v479, %v482
        %v484 = vrot.slane %v483, 4
        %v486 = vshll.u32 %v357, 16
        %v488 = vrot.slane %v486, 5
        %v489 = vsel %vm403, %v484, %v488
        %v490 = vshrl.u32 %v357, 16
        %v492 = vrot.slane %v490, 4
        %v493 = vor.u32 %v492, %v488
        %v494 = vrot.slane %v493, 4
        %v496 = vshll.u32 %v358, 16
        %v498 = vrot.slane %v496, 5
        %v499 = vsel %vm403, %v494, %v498
        %v501 = vshrl.u32 %v359, 16
        %v503 = vrot.slane %v501, 4
        %v504 = vshll.u32 %v359, 16
        %v506 = vrot.slane %v504, 5
        %v507 = vor.u32 %v503, %v506
        %v508 = vrot.slane %v507, 4
        %v510 = vshll.u32 %v360, 16
        %v512 = vrot.slane %v510, 5
        %v513 = vsel %vm403, %v508, %v512
        %v514 = vshrl.u32 %v360, 16
        %v516 = vrot.slane %v514, 4
        %v517 = vor.u32 %v516, %v512
        %v518 = vrot.slane %v517, 4
        %v520 = vshll.u32 %v361, 16
        %v522 = vrot.slane %v520, 5
        %v523 = vsel %vm403, %v518, %v522
        %v525 = vshrl.u32 %v362, 16
        %v527 = vrot.slane %v525, 4
        %v528 = vshll.u32 %v362, 16
        %v530 = vrot.slane %v528, 5
        %v531 = vor.u32 %v527, %v530
        %v532 = vrot.slane %v531, 4
        %v534 = vshll.u32 %v363, 16
        %v536 = vrot.slane %v534, 5
        %v537 = vsel %vm403, %v532, %v536
        %v538 = vshrl.u32 %v363, 16
        %v540 = vrot.slane %v538, 4
        %v541 = vor.u32 %v540, %v536
        %v542 = vrot.slane %v541, 4
        %v544 = vshll.u32 %v364, 16
        %v546 = vrot.slane %v544, 5
        %v547 = vsel %vm403, %v542, %v546
        %v549 = vshrl.u32 %v365, 16
        %v551 = vrot.slane %v549, 4
        %v552 = vshll.u32 %v365, 16
        %v554 = vrot.slane %v552, 5
        %v555 = vor.u32 %v551, %v554
        %v556 = vrot.slane %v555, 4
        %v558 = vshll.u32 %v366, 16
        %v560 = vrot.slane %v558, 5
        %v561 = vsel %vm403, %v556, %v560
        %v562 = vshrl.u32 %v366, 16
        %v564 = vrot.slane %v562, 4
        %v565 = vor.u32 %v564, %v560
        %v566 = vrot.slane %v565, 4
        %v568 = vshll.u32 %v367, 16
        %v570 = vrot.slane %v568, 5
        %v571 = vsel %vm403, %v566, %v570
        %v573 = vshrl.u32 %v368, 16
        %v575 = vrot.slane %v573, 4
        %v576 = vshll.u32 %v368, 16
        %v578 = vrot.slane %v576, 5
        %v579 = vor.u32 %v575, %v578
        %v580 = vrot.slane %v579, 4
        %v582 = vshll.u32 %v369, 16
        %v584 = vrot.slane %v582, 5
        %v585 = vsel %vm403, %v580, %v584
        %v586 = vshrl.u32 %v369, 16
        %v588 = vrot.slane %v586, 4
        %v589 = vor.u32 %v588, %v584
        %v590 = vrot.slane %v589, 4
        %v592 = vshll.u32 %v370, 16
        %v594 = vrot.slane %v592, 5
        %v595 = vsel %vm403, %v590, %v594
        %v597 = vshrl.u32 %v371, 16
        %v599 = vrot.slane %v597, 4
        %v600 = vshll.u32 %v371, 16
        %v602 = vrot.slane %v600, 5
        %v603 = vor.u32 %v599, %v602
        %v604 = vrot.slane %v603, 4
        %v606 = vshll.u32 %v372, 16
        %v608 = vrot.slane %v606, 5
        %v609 = vsel %vm403, %v604, %v608
        %v610 = vshrl.u32 %v372, 16
        %v612 = vrot.slane %v610, 4
        %v613 = vor.u32 %v612, %v608
        %v614 = vrot.slane %v613, 4
        %v616 = vshll.u32 %v373, 16
        %v618 = vrot.slane %v616, 5
        %v619 = vsel %vm403, %v614, %v618
        %v621 = vshrl.u32 %v374, 16
        %v623 = vrot.slane %v621, 4
        %v624 = vshll.u32 %v374, 16
        %v626 = vrot.slane %v624, 5
        %v627 = vor.u32 %v623, %v626
        %v628 = vrot.slane %v627, 4
        %v630 = vshll.u32 %v375, 16
        %v632 = vrot.slane %v630, 5
        %v633 = vsel %vm403, %v628, %v632
        %v634 = vshrl.u32 %v375, 16
        %v636 = vrot.slane %v634, 4
        %v637 = vor.u32 %v636, %v632
        %v638 = vrot.slane %v637, 4
        %v640 = vshll.u32 %v376, 16
        %v642 = vrot.slane %v640, 5
        %v643 = vsel %vm403, %v638, %v642
        %v645 = vshrl.u32 %v377, 16
        %v647 = vrot.slane %v645, 4
        %v648 = vshll.u32 %v377, 16
        %v650 = vrot.slane %v648, 5
        %v651 = vor.u32 %v647, %v650
        %v652 = vrot.slane %v651, 4
        %v654 = vshll.u32 %v378, 16
        %v656 = vrot.slane %v654, 5
        %v657 = vsel %vm403, %v652, %v656
        %v658 = vshrl.u32 %v378, 16
        %v660 = vrot.slane %v658, 4
        %v661 = vor.u32 %v660, %v656
        %v662 = vrot.slane %v661, 4
        %v664 = vshll.u32 %v379, 16
        %v666 = vrot.slane %v664, 5
        %v667 = vsel %vm403, %v662, %v666
        %v669 = vshrl.u32 %v380, 16
        %v671 = vrot.slane %v669, 4
        %v672 = vshll.u32 %v380, 16
        %v674 = vrot.slane %v672, 5
        %v675 = vor.u32 %v671, %v674
        %v676 = vrot.slane %v675, 4
        %v678 = vshll.u32 %v381, 16
        %v680 = vrot.slane %v678, 5
        %v681 = vsel %vm403, %v676, %v680
        %v682 = vshrl.u32 %v381, 16
        %v684 = vrot.slane %v682, 4
        %v685 = vor.u32 %v684, %v680
        %v686 = vrot.slane %v685, 4
        %v688 = vshll.u32 %v382, 16
        %v690 = vrot.slane %v688, 5
        %v691 = vsel %vm403, %v686, %v690
        %v693 = vshrl.u32 %v383, 16
        %v695 = vrot.slane %v693, 4
        %v696 = vshll.u32 %v383, 16
        %v698 = vrot.slane %v696, 5
        %v699 = vor.u32 %v695, %v698
        %v700 = vrot.slane %v699, 4
        %v702 = vshll.u32 %v384, 16
        %v704 = vrot.slane %v702, 5
        %v705 = vsel %vm403, %v700, %v704
        %v706 = vshrl.u32 %v384, 16
        %v708 = vrot.slane %v706, 4
        %v709 = vor.u32 %v708, %v704
        %v710 = vrot.slane %v709, 4
        %v712 = vshll.u32 %v385, 16
        %v714 = vrot.slane %v712, 5
        %v715 = vsel %vm403, %v710, %v714
        %v717 = vshrl.u32 %v386, 16
        %v719 = vrot.slane %v717, 4
        %v720 = vshll.u32 %v386, 16
        %v722 = vrot.slane %v720, 5
        %v723 = vor.u32 %v719, %v722
        %v724 = vrot.slane %v723, 4
        %v726 = vshll.u32 %v387, 16
        %v728 = vrot.slane %v726, 5
        %v729 = vsel %vm403, %v724, %v728
        %v730 = vshrl.u32 %v387, 16
        %v732 = vrot.slane %v730, 4
        %v733 = vor.u32 %v732, %v728
        %v734 = vrot.slane %v733, 4
        %v736 = vshll.u32 %v388, 16
        %v738 = vrot.slane %v736, 5
        %v739 = vsel %vm403, %v734, %v738
        %v741 = vshrl.u32 %v389, 16
        %v743 = vrot.slane %v741, 4
        %v744 = vshll.u32 %v389, 16
        %v746 = vrot.slane %v744, 5
        %v747 = vor.u32 %v743, %v746
        %v748 = vrot.slane %v747, 4
        %v750 = vshll.u32 %v390, 16
        %v752 = vrot.slane %v750, 5
        %v753 = vsel %vm403, %v748, %v752
        %v754 = vshrl.u32 %v390, 16
        %v756 = vrot.slane %v754, 4
        %v757 = vor.u32 %v756, %v752
        %v758 = vrot.slane %v757, 4
        %v760 = vshll.u32 %v391, 16
        %v762 = vrot.slane %v760, 5
        %v763 = vsel %vm403, %v758, %v762
        %v765 = vshrl.u32 %v392, 16
        %v767 = vrot.slane %v765, 4
        %v768 = vshll.u32 %v392, 16
        %v770 = vrot.slane %v768, 5
        %v771 = vor.u32 %v767, %v770
        %v772 = vrot.slane %v771, 4
        %v774 = vshll.u32 %v393, 16
        %v776 = vrot.slane %v774, 5
        %v777 = vsel %vm403, %v772, %v776
        %v778 = vshrl.u32 %v393, 16
        %v780 = vrot.slane %v778, 4
        %v781 = vor.u32 %v780, %v776
        %v782 = vrot.slane %v781, 4
        %v784 = vshll.u32 %v394, 16
        %v786 = vrot.slane %v784, 5
        %v787 = vsel %vm403, %v782, %v786
        %v789 = vshrl.u32 %v395, 16
        %v791 = vrot.slane %v789, 4
        %v792 = vshll.u32 %v395, 16
        %v794 = vrot.slane %v792, 5
        %v795 = vor.u32 %v791, %v794
        %v796 = vrot.slane %v795, 4
        %v798 = vshll.u32 %v396, 16
        %v800 = vrot.slane %v798, 5
        %v801 = vsel %vm403, %v796, %v800
        %v802 = vshrl.u32 %v396, 16
        %v804 = vrot.slane %v802, 4
        %v805 = vor.u32 %v804, %v800
        %v806 = vrot.slane %v805, 4
        %v808 = vshll.u32 %v397, 16
        %v810 = vrot.slane %v808, 5
        %v811 = vsel %vm403, %v806, %v810
        %v813 = vshrl.u32 %v398, 16
        %v815 = vrot.slane %v813, 4
        %v816 = vshll.u32 %v398, 16
        %v818 = vrot.slane %v816, 5
        %v819 = vor.u32 %v815, %v818
        %v820 = vrot.slane %v819, 4
        %v822 = vshll.u32 %v399, 16
        %v824 = vrot.slane %v822, 5
        %v825 = vsel %vm403, %v820, %v824
        %v826 = vshrl.u32 %v399, 16
        %v828 = vrot.slane %v826, 4
        %v829 = vor.u32 %v828, %v824
        %v830 = vrot.slane %v829, 4
        %v832 = vshll.u32 %v400, 16
        %v834 = vrot.slane %v832, 5
        %v835 = vsel %vm403, %v830, %v834
        %v836 = vunpack.c.l.b16 %v417
        %v837 = vunpack.c.l.b16 %v427
        %v838 = vunpack.c.l.b16 %v441
        %v839 = vunpack.c.l.b16 %v451
        %v840 = vunpack.c.l.b16 %v465
        %v841 = vunpack.c.l.b16 %v475
        %v842 = vunpack.c.l.b16 %v489
        %v843 = vunpack.c.l.b16 %v499
        %v844 = vunpack.c.l.b16 %v513
        %v845 = vunpack.c.l.b16 %v523
        %v846 = vunpack.c.l.b16 %v537
        %v847 = vunpack.c.l.b16 %v547
        %v848 = vunpack.c.l.b16 %v561
        %v849 = vunpack.c.l.b16 %v571
        %v850 = vunpack.c.l.b16 %v585
        %v851 = vunpack.c.l.b16 %v595
        %v852 = vunpack.c.l.b16 %v609
        %v853 = vunpack.c.l.b16 %v619
        %v854 = vunpack.c.l.b16 %v633
        %v855 = vunpack.c.l.b16 %v643
        %v856 = vunpack.c.l.b16 %v657
        %v857 = vunpack.c.l.b16 %v667
        %v858 = vunpack.c.l.b16 %v681
        %v859 = vunpack.c.l.b16 %v691
        %v860 = vunpack.c.l.b16 %v705
        %v861 = vunpack.c.l.b16 %v715
        %v862 = vunpack.c.l.b16 %v729
        %v863 = vunpack.c.l.b16 %v739
        %v864 = vunpack.c.l.b16 %v753
        %v865 = vunpack.c.l.b16 %v763
        %v866 = vunpack.c.l.b16 %v777
        %v867 = vunpack.c.l.b16 %v787
        %v868 = vunpack.c.l.b16 %v801
        %v869 = vunpack.c.l.b16 %v811
        %v870 = vunpack.c.l.b16 %v825
        %v871 = vunpack.c.l.b16 %v835
        %v872 = vpack.c.b16 %v837, %v836
        %v873 = vpack.c.b16 %v839, %v838
        %v874 = vpack.c.b16 %v841, %v840
        %v875 = vpack.c.b16 %v843, %v842
        %v876 = vpack.c.b16 %v845, %v844
        %v877 = vpack.c.b16 %v847, %v846
        %v878 = vpack.c.b16 %v849, %v848
        %v879 = vpack.c.b16 %v851, %v850
        %v880 = vpack.c.b16 %v853, %v852
        %v881 = vpack.c.b16 %v855, %v854
        %v882 = vpack.c.b16 %v857, %v856
        %v883 = vpack.c.b16 %v859, %v858
        %v884 = vpack.c.b16 %v861, %v860
        %v885 = vpack.c.b16 %v863, %v862
        %v886 = vpack.c.b16 %v865, %v864
        %v887 = vpack.c.b16 %v867, %v866
        %v888 = vpack.c.b16 %v869, %v868
        %v889 = vpack.c.b16 %v871, %v870
        %s908 = scalar_lea.vmem [#allocation2], 144
        %909 = vst [vmem:[%s908] sm:$0xff] %v872
        %910 = vst [vmem:[%s908 + $0x8] sm:$0xff] %v873
        %911 = vst [vmem:[%s908 + $0x10] sm:$0xff] %v874
        %912 = vst [vmem:[%s908 + $0x18] sm:$0xff] %v875
        %913 = vst [vmem:[%s908 + $0x20] sm:$0xff] %v876
        %914 = vst [vmem:[%s908 + $0x28] sm:$0xff] %v877
        %915 = vst [vmem:[%s908 + $0x30] sm:$0xff] %v878
        %916 = vst [vmem:[%s908 + $0x38] sm:$0xff] %v879
        %917 = vst [vmem:[%s908 + $0x40] sm:$0xff] %v880
        %918 = vst [vmem:[%s908 + $0x48] sm:$0xff] %v881
        %919 = vst [vmem:[%s908 + $0x50] sm:$0xff] %v882
        %920 = vst [vmem:[%s908 + $0x58] sm:$0xff] %v883
        %921 = vst [vmem:[%s908 + $0x60] sm:$0xff] %v884
        %922 = vst [vmem:[%s908 + $0x68] sm:$0xff] %v885
        %923 = vst [vmem:[%s908 + $0x70] sm:$0xff] %v886
        %924 = vst [vmem:[%s908 + $0x78] sm:$0xff] %v887
        %925 = vst [vmem:[%s908 + $0x80] sm:$0xff] %v888
        %926 = vst [vmem:[%s908 + $0x88] sm:$0xff] %v889
        %v927 = vld [vmem:[%s183] sm:$0xe]
        %v928 = vld [vmem:[%s183 + $0x4] sm:$0xf]
        %v929 = vld [vmem:[%s183 + $0x8] sm:$0x1]
        %v930 = vld [vmem:[%s183 + $0xc] sm:$0xe]
        %v931 = vld [vmem:[%s183 + $0x10] sm:$0xf]
        %v932 = vld [vmem:[%s183 + $0x14] sm:$0x1]
        %v933 = vld [vmem:[%s183 + $0x18] sm:$0xe]
        %v934 = vld [vmem:[%s183 + $0x1c] sm:$0xf]
        %v935 = vld [vmem:[%s183 + $0x20] sm:$0x1]
        %v936 = vld [vmem:[%s183 + $0x24] sm:$0xe]
        %v937 = vld [vmem:[%s183 + $0x28] sm:$0xf]
        %v938 = vld [vmem:[%s183 + $0x2c] sm:$0x1]
        %v939 = vld [vmem:[%s183 + $0x30] sm:$0xe]
        %v940 = vld [vmem:[%s183 + $0x34] sm:$0xf]
        %v941 = vld [vmem:[%s183 + $0x38] sm:$0x1]
        %v942 = vld [vmem:[%s183 + $0x3c] sm:$0xe]
        %v943 = vld [vmem:[%s183 + $0x40] sm:$0xf]
        %v944 = vld [vmem:[%s183 + $0x44] sm:$0x1]
        %v945 = vld [vmem:[%s183 + $0x48] sm:$0xe]
        %v946 = vld [vmem:[%s183 + $0x4c] sm:$0xf]
        %v947 = vld [vmem:[%s183 + $0x50] sm:$0x1]
        %v948 = vld [vmem:[%s183 + $0x54] sm:$0xe]
        %v949 = vld [vmem:[%s183 + $0x58] sm:$0xf]
        %v950 = vld [vmem:[%s183 + $0x5c] sm:$0x1]
        %v951 = vld [vmem:[%s183 + $0x60] sm:$0xe]
        %v952 = vld [vmem:[%s183 + $0x64] sm:$0xf]
        %v953 = vld [vmem:[%s183 + $0x68] sm:$0x1]
        %v954 = vld [vmem:[%s183 + $0x6c] sm:$0xe]
        %v955 = vld [vmem:[%s183 + $0x70] sm:$0xf]
        %v956 = vld [vmem:[%s183 + $0x74] sm:$0x1]
        %v957 = vld [vmem:[%s183 + $0x78] sm:$0xe]
        %v958 = vld [vmem:[%s183 + $0x7c] sm:$0xf]
        %v959 = vld [vmem:[%s183 + $0x80] sm:$0x1]
        %v960 = vld [vmem:[%s183 + $0x84] sm:$0xe]
        %v961 = vld [vmem:[%s183 + $0x88] sm:$0xf]
        %v962 = vld [vmem:[%s183 + $0x8c] sm:$0x1]
        %v963 = vld [vmem:[%s183 + $0x90] sm:$0xe]
        %v964 = vld [vmem:[%s183 + $0x94] sm:$0xf]
        %v965 = vld [vmem:[%s183 + $0x98] sm:$0x1]
        %v966 = vld [vmem:[%s183 + $0x9c] sm:$0xe]
        %v967 = vld [vmem:[%s183 + $0xa0] sm:$0xf]
        %v968 = vld [vmem:[%s183 + $0xa4] sm:$0x1]
        %v969 = vld [vmem:[%s183 + $0xa8] sm:$0xe]
        %v970 = vld [vmem:[%s183 + $0xac] sm:$0xf]
        %v971 = vld [vmem:[%s183 + $0xb0] sm:$0x1]
        %v972 = vld [vmem:[%s183 + $0xb4] sm:$0xe]
        %v973 = vld [vmem:[%s183 + $0xb8] sm:$0xf]
        %v974 = vld [vmem:[%s183 + $0xbc] sm:$0x1]
        %v975 = vld [vmem:[%s183 + $0xc0] sm:$0xe]
        %v976 = vld [vmem:[%s183 + $0xc4] sm:$0xf]
        %v977 = vld [vmem:[%s183 + $0xc8] sm:$0x1]
        %v978 = vld [vmem:[%s183 + $0xcc] sm:$0xe]
        %v979 = vld [vmem:[%s183 + $0xd0] sm:$0xf]
        %v980 = vld [vmem:[%s183 + $0xd4] sm:$0x1]
        %vm1035 = vcmask 1042432
        %vm1036 = vcmask 1046532
        %vm1037 = vmor %vm1035, %vm1036
        %v1038 = vrot.slane %v927, 5
        %v1039 = vrot.slane %v1038, 4
        %v1040 = vrot.slane %v928, 5
        %v1041 = vsel %vm1037, %v1039, %v1040
        %v1042 = vrot.slane %v1040, 4
        %v1043 = vrot.slane %v929, 5
        %v1044 = vsel %vm1037, %v1042, %v1043
        %v1045 = vrot.slane %v930, 5
        %v1046 = vrot.slane %v1045, 4
        %v1047 = vrot.slane %v931, 5
        %v1048 = vsel %vm1037, %v1046, %v1047
        %v1049 = vrot.slane %v1047, 4
        %v1050 = vrot.slane %v932, 5
        %v1051 = vsel %vm1037, %v1049, %v1050
        %v1052 = vrot.slane %v933, 5
        %v1053 = vrot.slane %v1052, 4
        %v1054 = vrot.slane %v934, 5
        %v1055 = vsel %vm1037, %v1053, %v1054
        %v1056 = vrot.slane %v1054, 4
        %v1057 = vrot.slane %v935, 5
        %v1058 = vsel %vm1037, %v1056, %v1057
        %v1059 = vrot.slane %v936, 5
        %v1060 = vrot.slane %v1059, 4
        %v1061 = vrot.slane %v937, 5
        %v1062 = vsel %vm1037, %v1060, %v1061
        %v1063 = vrot.slane %v1061, 4
        %v1064 = vrot.slane %v938, 5
        %v1065 = vsel %vm1037, %v1063, %v1064
        %v1066 = vrot.slane %v939, 5
        %v1067 = vrot.slane %v1066, 4
        %v1068 = vrot.slane %v940, 5
        %v1069 = vsel %vm1037, %v1067, %v1068
        %v1070 = vrot.slane %v1068, 4
        %v1071 = vrot.slane %v941, 5
        %v1072 = vsel %vm1037, %v1070, %v1071
        %v1073 = vrot.slane %v942, 5
        %v1074 = vrot.slane %v1073, 4
        %v1075 = vrot.slane %v943, 5
        %v1076 = vsel %vm1037, %v1074, %v1075
        %v1077 = vrot.slane %v1075, 4
        %v1078 = vrot.slane %v944, 5
        %v1079 = vsel %vm1037, %v1077, %v1078
        %v1080 = vrot.slane %v945, 5
        %v1081 = vrot.slane %v1080, 4
        %v1082 = vrot.slane %v946, 5
        %v1083 = vsel %vm1037, %v1081, %v1082
        %v1084 = vrot.slane %v1082, 4
        %v1085 = vrot.slane %v947, 5
        %v1086 = vsel %vm1037, %v1084, %v1085
        %v1087 = vrot.slane %v948, 5
        %v1088 = vrot.slane %v1087, 4
        %v1089 = vrot.slane %v949, 5
        %v1090 = vsel %vm1037, %v1088, %v1089
        %v1091 = vrot.slane %v1089, 4
        %v1092 = vrot.slane %v950, 5
        %v1093 = vsel %vm1037, %v1091, %v1092
        %v1094 = vrot.slane %v951, 5
        %v1095 = vrot.slane %v1094, 4
        %v1096 = vrot.slane %v952, 5
        %v1097 = vsel %vm1037, %v1095, %v1096
        %v1098 = vrot.slane %v1096, 4
        %v1099 = vrot.slane %v953, 5
        %v1100 = vsel %vm1037, %v1098, %v1099
        %v1101 = vrot.slane %v954, 5
        %v1102 = vrot.slane %v1101, 4
        %v1103 = vrot.slane %v955, 5
        %v1104 = vsel %vm1037, %v1102, %v1103
        %v1105 = vrot.slane %v1103, 4
        %v1106 = vrot.slane %v956, 5
        %v1107 = vsel %vm1037, %v1105, %v1106
        %v1108 = vrot.slane %v957, 5
        %v1109 = vrot.slane %v1108, 4
        %v1110 = vrot.slane %v958, 5
        %v1111 = vsel %vm1037, %v1109, %v1110
        %v1112 = vrot.slane %v1110, 4
        %v1113 = vrot.slane %v959, 5
        %v1114 = vsel %vm1037, %v1112, %v1113
        %v1115 = vrot.slane %v960, 5
        %v1116 = vrot.slane %v1115, 4
        %v1117 = vrot.slane %v961, 5
        %v1118 = vsel %vm1037, %v1116, %v1117
        %v1119 = vrot.slane %v1117, 4
        %v1120 = vrot.slane %v962, 5
        %v1121 = vsel %vm1037, %v1119, %v1120
        %v1122 = vrot.slane %v963, 5
        %v1123 = vrot.slane %v1122, 4
        %v1124 = vrot.slane %v964, 5
        %v1125 = vsel %vm1037, %v1123, %v1124
        %v1126 = vrot.slane %v1124, 4
        %v1127 = vrot.slane %v965, 5
        %v1128 = vsel %vm1037, %v1126, %v1127
        %v1129 = vrot.slane %v966, 5
        %v1130 = vrot.slane %v1129, 4
        %v1131 = vrot.slane %v967, 5
        %v1132 = vsel %vm1037, %v1130, %v1131
        %v1133 = vrot.slane %v1131, 4
        %v1134 = vrot.slane %v968, 5
        %v1135 = vsel %vm1037, %v1133, %v1134
        %v1136 = vrot.slane %v969, 5
        %v1137 = vrot.slane %v1136, 4
        %v1138 = vrot.slane %v970, 5
        %v1139 = vsel %vm1037, %v1137, %v1138
        %v1140 = vrot.slane %v1138, 4
        %v1141 = vrot.slane %v971, 5
        %v1142 = vsel %vm1037, %v1140, %v1141
        %v1143 = vrot.slane %v972, 5
        %v1144 = vrot.slane %v1143, 4
        %v1145 = vrot.slane %v973, 5
        %v1146 = vsel %vm1037, %v1144, %v1145
        %v1147 = vrot.slane %v1145, 4
        %v1148 = vrot.slane %v974, 5
        %v1149 = vsel %vm1037, %v1147, %v1148
        %v1150 = vrot.slane %v975, 5
        %v1151 = vrot.slane %v1150, 4
        %v1152 = vrot.slane %v976, 5
        %v1153 = vsel %vm1037, %v1151, %v1152
        %v1154 = vrot.slane %v1152, 4
        %v1155 = vrot.slane %v977, 5
        %v1156 = vsel %vm1037, %v1154, %v1155
        %v1157 = vrot.slane %v978, 5
        %v1158 = vrot.slane %v1157, 4
        %v1159 = vrot.slane %v979, 5
        %v1160 = vsel %vm1037, %v1158, %v1159
        %v1161 = vrot.slane %v1159, 4
        %v1162 = vrot.slane %v980, 5
        %v1163 = vsel %vm1037, %v1161, %v1162
        %v1164 = vunpack.c.l.b16 %v1041
        %v1165 = vunpack.c.l.b16 %v1044
        %v1166 = vunpack.c.l.b16 %v1048
        %v1167 = vunpack.c.l.b16 %v1051
        %v1168 = vunpack.c.l.b16 %v1055
        %v1169 = vunpack.c.l.b16 %v1058
        %v1170 = vunpack.c.l.b16 %v1062
        %v1171 = vunpack.c.l.b16 %v1065
        %v1172 = vunpack.c.l.b16 %v1069
        %v1173 = vunpack.c.l.b16 %v1072
        %v1174 = vunpack.c.l.b16 %v1076
        %v1175 = vunpack.c.l.b16 %v1079
        %v1176 = vunpack.c.l.b16 %v1083
        %v1177 = vunpack.c.l.b16 %v1086
        %v1178 = vunpack.c.l.b16 %v1090
        %v1179 = vunpack.c.l.b16 %v1093
        %v1180 = vunpack.c.l.b16 %v1097
        %v1181 = vunpack.c.l.b16 %v1100
        %v1182 = vunpack.c.l.b16 %v1104
        %v1183 = vunpack.c.l.b16 %v1107
        %v1184 = vunpack.c.l.b16 %v1111
        %v1185 = vunpack.c.l.b16 %v1114
        %v1186 = vunpack.c.l.b16 %v1118
        %v1187 = vunpack.c.l.b16 %v1121
        %v1188 = vunpack.c.l.b16 %v1125
        %v1189 = vunpack.c.l.b16 %v1128
        %v1190 = vunpack.c.l.b16 %v1132
        %v1191 = vunpack.c.l.b16 %v1135
        %v1192 = vunpack.c.l.b16 %v1139
        %v1193 = vunpack.c.l.b16 %v1142
        %v1194 = vunpack.c.l.b16 %v1146
        %v1195 = vunpack.c.l.b16 %v1149
        %v1196 = vunpack.c.l.b16 %v1153
        %v1197 = vunpack.c.l.b16 %v1156
        %v1198 = vunpack.c.l.b16 %v1160
        %v1199 = vunpack.c.l.b16 %v1163
        %v1200 = vpack.c.b16 %v1165, %v1164
        %v1201 = vpack.c.b16 %v1167, %v1166
        %v1202 = vpack.c.b16 %v1169, %v1168
        %v1203 = vpack.c.b16 %v1171, %v1170
        %v1204 = vpack.c.b16 %v1173, %v1172
        %v1205 = vpack.c.b16 %v1175, %v1174
        %v1206 = vpack.c.b16 %v1177, %v1176
        %v1207 = vpack.c.b16 %v1179, %v1178
        %v1208 = vpack.c.b16 %v1181, %v1180
        %v1209 = vpack.c.b16 %v1183, %v1182
        %v1210 = vpack.c.b16 %v1185, %v1184
        %v1211 = vpack.c.b16 %v1187, %v1186
        %v1212 = vpack.c.b16 %v1189, %v1188
        %v1213 = vpack.c.b16 %v1191, %v1190
        %v1214 = vpack.c.b16 %v1193, %v1192
        %v1215 = vpack.c.b16 %v1195, %v1194
        %v1216 = vpack.c.b16 %v1197, %v1196
        %v1217 = vpack.c.b16 %v1199, %v1198
        %s1236 = scalar_lea.vmem [#allocation2], 288
        %1237 = vst [vmem:[%s1236] sm:$0xff] %v1200
        %1238 = vst [vmem:[%s1236 + $0x8] sm:$0xff] %v1201
        %1239 = vst [vmem:[%s1236 + $0x10] sm:$0xff] %v1202
        %1240 = vst [vmem:[%s1236 + $0x18] sm:$0xff] %v1203
        %1241 = vst [vmem:[%s1236 + $0x20] sm:$0xff] %v1204
        %1242 = vst [vmem:[%s1236 + $0x28] sm:$0xff] %v1205
        %1243 = vst [vmem:[%s1236 + $0x30] sm:$0xff] %v1206
        %1244 = vst [vmem:[%s1236 + $0x38] sm:$0xff] %v1207
        %1245 = vst [vmem:[%s1236 + $0x40] sm:$0xff] %v1208
        %1246 = vst [vmem:[%s1236 + $0x48] sm:$0xff] %v1209
        %1247 = vst [vmem:[%s1236 + $0x50] sm:$0xff] %v1210
        %1248 = vst [vmem:[%s1236 + $0x58] sm:$0xff] %v1211
        %1249 = vst [vmem:[%s1236 + $0x60] sm:$0xff] %v1212
        %1250 = vst [vmem:[%s1236 + $0x68] sm:$0xff] %v1213
        %1251 = vst [vmem:[%s1236 + $0x70] sm:$0xff] %v1214
        %1252 = vst [vmem:[%s1236 + $0x78] sm:$0xff] %v1215
        %1253 = vst [vmem:[%s1236 + $0x80] sm:$0xff] %v1216
        %1254 = vst [vmem:[%s1236 + $0x88] sm:$0xff] %v1217
        %v1255 = vld [vmem:[#allocation2] sm:$0xff]
        %v1256 = vld [vmem:[#allocation2 + $0x8] sm:$0xff]
        %v1257 = vld [vmem:[#allocation2 + $0x10] sm:$0xff]
        %v1258 = vld [vmem:[#allocation2 + $0x18] sm:$0xff]
        %v1259 = vld [vmem:[#allocation2 + $0x20] sm:$0xff]
        %v1260 = vld [vmem:[#allocation2 + $0x28] sm:$0xff]
        %v1261 = vld [vmem:[#allocation2 + $0x30] sm:$0xff]
        %v1262 = vld [vmem:[#allocation2 + $0x38] sm:$0xff]
        %v1263 = vld [vmem:[%s1] sm:$0xf]
        %v1264 = vld [vmem:[%s1 + $0x4] sm:$0xf]
        %v1265 = vld [vmem:[%s1 + $0x8] sm:$0xf]
        %v1266 = vld [vmem:[%s1 + $0xc] sm:$0xf]
        %v1267 = vld [vmem:[%s1 + $0x10] sm:$0xf]
        %v1268 = vld [vmem:[%s1 + $0x14] sm:$0xf]
        %v1269 = vld [vmem:[%s1 + $0x18] sm:$0xf]
        %v1270 = vld [vmem:[%s1 + $0x1c] sm:$0xf]
        %v1271 = vld [vmem:[%s1 + $0x20] sm:$0xf]
        %v1272 = vld [vmem:[%s1 + $0x24] sm:$0xf]
        %v1273 = vld [vmem:[%s1 + $0x28] sm:$0xf]
        %v1274 = vld [vmem:[%s1 + $0x2c] sm:$0xf]
        %v1275 = vld [vmem:[%s1 + $0x30] sm:$0xf]
        %v1276 = vld [vmem:[%s1 + $0x34] sm:$0xf]
        %v1277 = vld [vmem:[%s1 + $0x38] sm:$0xf]
        %v1278 = vld [vmem:[%s1 + $0x3c] sm:$0xf]
        %v1279 = vld [vmem:[%s908] sm:$0xff]
        %v1280 = vld [vmem:[%s908 + $0x8] sm:$0xff]
        %v1281 = vld [vmem:[%s908 + $0x10] sm:$0xff]
        %v1282 = vld [vmem:[%s908 + $0x18] sm:$0xff]
        %v1283 = vld [vmem:[%s908 + $0x20] sm:$0xff]
        %v1284 = vld [vmem:[%s908 + $0x28] sm:$0xff]
        %v1285 = vld [vmem:[%s908 + $0x30] sm:$0xff]
        %v1286 = vld [vmem:[%s908 + $0x38] sm:$0xff]
        %s1287 = scalar_lea.vmem %s1, 64
        %v1288 = vld [vmem:[%s1287] sm:$0xf]
        %v1289 = vld [vmem:[%s1287 + $0x4] sm:$0xf]
        %v1290 = vld [vmem:[%s1287 + $0x8] sm:$0xf]
        %v1291 = vld [vmem:[%s1287 + $0xc] sm:$0xf]
        %v1292 = vld [vmem:[%s1287 + $0x10] sm:$0xf]
        %v1293 = vld [vmem:[%s1287 + $0x14] sm:$0xf]
        %v1294 = vld [vmem:[%s1287 + $0x18] sm:$0xf]
        %v1295 = vld [vmem:[%s1287 + $0x1c] sm:$0xf]
        %v1296 = vld [vmem:[%s1287 + $0x20] sm:$0xf]
        %v1297 = vld [vmem:[%s1287 + $0x24] sm:$0xf]
        %v1298 = vld [vmem:[%s1287 + $0x28] sm:$0xf]
        %v1299 = vld [vmem:[%s1287 + $0x2c] sm:$0xf]
        %v1300 = vld [vmem:[%s1287 + $0x30] sm:$0xf]
        %v1301 = vld [vmem:[%s1287 + $0x34] sm:$0xf]
        %v1302 = vld [vmem:[%s1287 + $0x38] sm:$0xf]
        %v1303 = vld [vmem:[%s1287 + $0x3c] sm:$0xf]
        %v1320 = vunpack.c.l.b16 %v1288
        %v1321 = vunpack.c.l.b16 %v1289
        %v1322 = vunpack.c.l.b16 %v1290
        %v1323 = vunpack.c.l.b16 %v1291
        %v1324 = vunpack.c.l.b16 %v1292
        %v1325 = vunpack.c.l.b16 %v1293
        %v1326 = vunpack.c.l.b16 %v1294
        %v1327 = vunpack.c.l.b16 %v1295
        %v1328 = vunpack.c.l.b16 %v1296
        %v1329 = vunpack.c.l.b16 %v1297
        %v1330 = vunpack.c.l.b16 %v1298
        %v1331 = vunpack.c.l.b16 %v1299
        %v1332 = vunpack.c.l.b16 %v1300
        %v1333 = vunpack.c.l.b16 %v1301
        %v1334 = vunpack.c.l.b16 %v1302
        %v1335 = vunpack.c.l.b16 %v1303
        %v1336 = vpack.c.b16 %v1321, %v1320
        %v1337 = vpack.c.b16 %v1323, %v1322
        %v1338 = vpack.c.b16 %v1325, %v1324
        %v1339 = vpack.c.b16 %v1327, %v1326
        %v1340 = vpack.c.b16 %v1329, %v1328
        %v1341 = vpack.c.b16 %v1331, %v1330
        %v1342 = vpack.c.b16 %v1333, %v1332
        %v1343 = vpack.c.b16 %v1335, %v1334
        %1352 = vmatprep.subr.bf16.mxu0 0
        %1353 = vmatpush1.bf16.msra.mxu0 %v1336
        %1354 = vmatprep.subr.bf16.mxu0 0
        %1355 = vmatpush1.bf16.msra.mxu0 %v1337
        %1356 = vmatprep.subr.bf16.mxu0 0
        %1357 = vmatpush1.bf16.msra.mxu0 %v1338
        %1358 = vmatprep.subr.bf16.mxu0 0
        %1359 = vmatpush1.bf16.msra.mxu0 %v1339
        %1360 = vmatprep.subr.bf16.mxu0 0
        %1361 = vmatpush1.bf16.msra.mxu0 %v1340
        %1362 = vmatprep.subr.bf16.mxu0 0
        %1363 = vmatpush1.bf16.msra.mxu0 %v1341
        %1364 = vmatprep.subr.bf16.mxu0 0
        %1365 = vmatpush1.bf16.msra.mxu0 %v1342
        %1366 = vmatprep.subr.bf16.mxu0 0
        %1367 = vmatpush1.bf16.msra.mxu0 %v1343
        %1368 = vmatprep.subr.bf16.mxu0 0
        %1369 = vmatpush1.bf16.msra.mxu0 0
        %1370 = vmatprep.subr.bf16.mxu0 0
        %1371 = vmatpush1.bf16.msra.mxu0 0
        %1372 = vmatprep.subr.bf16.mxu0 0
        %1373 = vmatpush1.bf16.msra.mxu0 0
        %1374 = vmatprep.subr.bf16.mxu0 0
        %1375 = vmatpush1.bf16.msra.mxu0 0
        %1376 = vmatprep.subr.bf16.mxu0 0
        %1377 = vmatpush1.bf16.msra.mxu0 0
        %1378 = vmatprep.subr.bf16.mxu0 0
        %1379 = vmatpush1.bf16.msra.mxu0 0
        %1380 = vmatprep.subr.bf16.mxu0 0
        %1381 = vmatpush1.bf16.msra.mxu0 0
        %1382 = vmatprep.subr.bf16.mxu0 0
        %1383 = vmatpush1.bf16.msra.mxu0 0
        %1384 = vmatprep.mubr.bf16.mxu0 0
        %1385 = vmatmul.mubr.bf16.gmra.mrb[0].mxu0 %v1279
        %v1386 = vpop.f32.mrb[0].mxu0
        %v1387 = vadd.f32 0.0, %v1386
        %v1388 = vpop.f32.mrb[0].mxu0
        %v1389 = vpop.f32.mrb[0].mxu0
        %v1390 = vadd.f32 0.0, %v1389
        %v1391 = vpop.f32.mrb[0].mxu0
        %1392 = vmatprep.mubr.bf16.mxu0 0
        %1393 = vmatmul.mubr.bf16.gmra.mrb[0].mxu0 %v1280
        %v1394 = vpop.f32.mrb[0].mxu0
        %v1395 = vadd.f32 0.0, %v1394
        %v1396 = vpop.f32.mrb[0].mxu0
        %v1397 = vpop.f32.mrb[0].mxu0
        %v1398 = vadd.f32 0.0, %v1397
        %v1399 = vpop.f32.mrb[0].mxu0
        %1400 = vmatprep.mubr.bf16.mxu0 0
        %1401 = vmatmul.mubr.bf16.gmra.mrb[0].mxu0 %v1281
        %v1402 = vpop.f32.mrb[0].mxu0
        %v1403 = vadd.f32 0.0, %v1402
        %v1404 = vpop.f32.mrb[0].mxu0
        %v1405 = vpop.f32.mrb[0].mxu0
        %v1406 = vadd.f32 0.0, %v1405
        %v1407 = vpop.f32.mrb[0].mxu0
        %1408 = vmatprep.mubr.bf16.mxu0 0
        %1409 = vmatmul.mubr.bf16.gmra.mrb[0].mxu0 %v1282
        %v1410 = vpop.f32.mrb[0].mxu0
        %v1411 = vadd.f32 0.0, %v1410
        %v1412 = vpop.f32.mrb[0].mxu0
        %v1413 = vpop.f32.mrb[0].mxu0
        %v1414 = vadd.f32 0.0, %v1413
        %v1415 = vpop.f32.mrb[0].mxu0
        %1416 = vmatprep.mubr.bf16.mxu0 0
        %1417 = vmatmul.mubr.bf16.gmra.mrb[0].mxu0 %v1283
        %v1418 = vpop.f32.mrb[0].mxu0
        %v1419 = vadd.f32 0.0, %v1418
        %v1420 = vpop.f32.mrb[0].mxu0
        %v1421 = vpop.f32.mrb[0].mxu0
        %v1422 = vadd.f32 0.0, %v1421
        %v1423 = vpop.f32.mrb[0].mxu0
        %1424 = vmatprep.mubr.bf16.mxu0 0
        %1425 = vmatmul.mubr.bf16.gmra.mrb[0].mxu0 %v1284
        %v1426 = vpop.f32.mrb[0].mxu0
        %v1427 = vadd.f32 0.0, %v1426
        %v1428 = vpop.f32.mrb[0].mxu0
        %v1429 = vpop.f32.mrb[0].mxu0
        %v1430 = vadd.f32 0.0, %v1429
        %v1431 = vpop.f32.mrb[0].mxu0
        %1432 = vmatprep.mubr.bf16.mxu0 0
        %1433 = vmatmul.mubr.bf16.gmra.mrb[0].mxu0 %v1285
        %v1434 = vpop.f32.mrb[0].mxu0
        %v1435 = vadd.f32 0.0, %v1434
        %v1436 = vpop.f32.mrb[0].mxu0
        %v1437 = vpop.f32.mrb[0].mxu0
        %v1438 = vadd.f32 0.0, %v1437
        %v1439 = vpop.f32.mrb[0].mxu0
        %1440 = vmatprep.mubr.bf16.mxu0 0
        %1441 = vmatmul.mubr.bf16.gmra.mrb[0].mxu0 %v1286
        %v1442 = vpop.f32.mrb[0].mxu0
        %v1443 = vadd.f32 0.0, %v1442
        %v1444 = vpop.f32.mrb[0].mxu0
        %v1445 = vpop.f32.mrb[0].mxu0
        %v1446 = vadd.f32 0.0, %v1445
        %v1447 = vpop.f32.mrb[0].mxu0
        %1448 = vdwg.mxu0
        %v1465 = vunpack.c.l.b16 %v1263
        %v1466 = vunpack.c.l.b16 %v1264
        %v1467 = vunpack.c.l.b16 %v1265
        %v1468 = vunpack.c.l.b16 %v1266
        %v1469 = vunpack.c.l.b16 %v1267
        %v1470 = vunpack.c.l.b16 %v1268
        %v1471 = vunpack.c.l.b16 %v1269
        %v1472 = vunpack.c.l.b16 %v1270
        %v1473 = vunpack.c.l.b16 %v1271
        %v1474 = vunpack.c.l.b16 %v1272
        %v1475 = vunpack.c.l.b16 %v1273
        %v1476 = vunpack.c.l.b16 %v1274
        %v1477 = vunpack.c.l.b16 %v1275
        %v1478 = vunpack.c.l.b16 %v1276
        %v1479 = vunpack.c.l.b16 %v1277
        %v1480 = vunpack.c.l.b16 %v1278
        %v1481 = vpack.c.b16 %v1466, %v1465
        %v1482 = vpack.c.b16 %v1468, %v1467
        %v1483 = vpack.c.b16 %v1470, %v1469
        %v1484 = vpack.c.b16 %v1472, %v1471
        %v1485 = vpack.c.b16 %v1474, %v1473
        %v1486 = vpack.c.b16 %v1476, %v1475
        %v1487 = vpack.c.b16 %v1478, %v1477
        %v1488 = vpack.c.b16 %v1480, %v1479
        %1497 = vmatprep.subr.bf16.mxu0 0
        %1498 = vmatpush1.bf16.msra.mxu0 %v1481
        %1499 = vmatprep.subr.bf16.mxu0 0
        %1500 = vmatpush1.bf16.msra.mxu0 %v1482
        %1501 = vmatprep.subr.bf16.mxu0 0
        %1502 = vmatpush1.bf16.msra.mxu0 %v1483
        %1503 = vmatprep.subr.bf16.mxu0 0
        %1504 = vmatpush1.bf16.msra.mxu0 %v1484
        %1505 = vmatprep.subr.bf16.mxu0 0
        %1506 = vmatpush1.bf16.msra.mxu0 %v1485
        %1507 = vmatprep.subr.bf16.mxu0 0
        %1508 = vmatpush1.bf16.msra.mxu0 %v1486
        %1509 = vmatprep.subr.bf16.mxu0 0
        %1510 = vmatpush1.bf16.msra.mxu0 %v1487
        %1511 = vmatprep.subr.bf16.mxu0 0
        %1512 = vmatpush1.bf16.msra.mxu0 %v1488
        %1513 = vmatprep.subr.bf16.mxu0 0
        %1514 = vmatpush1.bf16.msra.mxu0 0
        %1515 = vmatprep.subr.bf16.mxu0 0
        %1516 = vmatpush1.bf16.msra.mxu0 0
        %1517 = vmatprep.subr.bf16.mxu0 0
        %1518 = vmatpush1.bf16.msra.mxu0 0
        %1519 = vmatprep.subr.bf16.mxu0 0
        %1520 = vmatpush1.bf16.msra.mxu0 0
        %1521 = vmatprep.subr.bf16.mxu0 0
        %1522 = vmatpush1.bf16.msra.mxu0 0
        %1523 = vmatprep.subr.bf16.mxu0 0
        %1524 = vmatpush1.bf16.msra.mxu0 0
        %1525 = vmatprep.subr.bf16.mxu0 0
        %1526 = vmatpush1.bf16.msra.mxu0 0
        %1527 = vmatprep.subr.bf16.mxu0 0
        %1528 = vmatpush1.bf16.msra.mxu0 0
        %1529 = vmatprep.mubr.bf16.mxu0 0
        %1530 = vmatmul.mubr.bf16.gmra.mrb[0].mxu0 %v1255
        %v1531 = vpop.f32.mrb[0].mxu0
        %v1532 = vadd.f32 %v1387, %v1531
        %v1533 = vpop.f32.mrb[0].mxu0
        %v1534 = vpop.f32.mrb[0].mxu0
        %v1535 = vadd.f32 %v1390, %v1534
        %v1536 = vpop.f32.mrb[0].mxu0
        %1537 = vmatprep.mubr.bf16.mxu0 0
        %1538 = vmatmul.mubr.bf16.gmra.mrb[0].mxu0 %v1256
        %v1539 = vpop.f32.mrb[0].mxu0
        %v1540 = vadd.f32 %v1395, %v1539
        %v1541 = vpop.f32.mrb[0].mxu0
        %v1542 = vpop.f32.mrb[0].mxu0
        %v1543 = vadd.f32 %v1398, %v1542
        %v1544 = vpop.f32.mrb[0].mxu0
        %1545 = vmatprep.mubr.bf16.mxu0 0
        %1546 = vmatmul.mubr.bf16.gmra.mrb[0].mxu0 %v1257
        %v1547 = vpop.f32.mrb[0].mxu0
        %v1548 = vadd.f32 %v1403, %v1547
        %v1549 = vpop.f32.mrb[0].mxu0
        %v1550 = vpop.f32.mrb[0].mxu0
        %v1551 = vadd.f32 %v1406, %v1550
        %v1552 = vpop.f32.mrb[0].mxu0
        %1553 = vmatprep.mubr.bf16.mxu0 0
        %1554 = vmatmul.mubr.bf16.gmra.mrb[0].mxu0 %v1258
        %v1555 = vpop.f32.mrb[0].mxu0
        %v1556 = vadd.f32 %v1411, %v1555
        %v1557 = vpop.f32.mrb[0].mxu0
        %v1558 = vpop.f32.mrb[0].mxu0
        %v1559 = vadd.f32 %v1414, %v1558
        %v1560 = vpop.f32.mrb[0].mxu0
        %1561 = vmatprep.mubr.bf16.mxu0 0
        %1562 = vmatmul.mubr.bf16.gmra.mrb[0].mxu0 %v1259
        %v1563 = vpop.f32.mrb[0].mxu0
        %v1564 = vadd.f32 %v1419, %v1563
        %v1565 = vpop.f32.mrb[0].mxu0
        %v1566 = vpop.f32.mrb[0].mxu0
        %v1567 = vadd.f32 %v1422, %v1566
        %v1568 = vpop.f32.mrb[0].mxu0
        %1569 = vmatprep.mubr.bf16.mxu0 0
        %1570 = vmatmul.mubr.bf16.gmra.mrb[0].mxu0 %v1260
        %v1571 = vpop.f32.mrb[0].mxu0
        %v1572 = vadd.f32 %v1427, %v1571
        %v1573 = vpop.f32.mrb[0].mxu0
        %v1574 = vpop.f32.mrb[0].mxu0
        %v1575 = vadd.f32 %v1430, %v1574
        %v1576 = vpop.f32.mrb[0].mxu0
        %1577 = vmatprep.mubr.bf16.mxu0 0
        %1578 = vmatmul.mubr.bf16.gmra.mrb[0].mxu0 %v1261
        %v1579 = vpop.f32.mrb[0].mxu0
        %v1580 = vadd.f32 %v1435, %v1579
        %v1581 = vpop.f32.mrb[0].mxu0
        %v1582 = vpop.f32.mrb[0].mxu0
        %v1583 = vadd.f32 %v1438, %v1582
        %v1584 = vpop.f32.mrb[0].mxu0
        %1585 = vmatprep.mubr.bf16.mxu0 0
        %1586 = vmatmul.mubr.bf16.gmra.mrb[0].mxu0 %v1262
        %v1587 = vpop.f32.mrb[0].mxu0
        %v1588 = vadd.f32 %v1443, %v1587
        %v1589 = vpop.f32.mrb[0].mxu0
        %v1590 = vpop.f32.mrb[0].mxu0
        %v1591 = vadd.f32 %v1446, %v1590
        %v1592 = vpop.f32.mrb[0].mxu0
        %1593 = vdwg.mxu0
        %v1594 = vld [vmem:[%s1236] sm:$0xff]
        %v1595 = vld [vmem:[%s1236 + $0x8] sm:$0xff]
        %v1596 = vld [vmem:[%s1236 + $0x10] sm:$0xff]
        %v1597 = vld [vmem:[%s1236 + $0x18] sm:$0xff]
        %v1598 = vld [vmem:[%s1236 + $0x20] sm:$0xff]
        %v1599 = vld [vmem:[%s1236 + $0x28] sm:$0xff]
        %v1600 = vld [vmem:[%s1236 + $0x30] sm:$0xff]
        %v1601 = vld [vmem:[%s1236 + $0x38] sm:$0xff]
        %s1602 = scalar_lea.vmem %s1, 128
        %v1603 = vld [vmem:[%s1602] sm:$0xf]
        %v1604 = vld [vmem:[%s1602 + $0x4] sm:$0xf]
        %v1605 = vld [vmem:[%s1602 + $0x8] sm:$0xf]
        %v1606 = vld [vmem:[%s1602 + $0xc] sm:$0xf]
        %v1607 = vld [vmem:[%s1602 + $0x10] sm:$0xf]
        %v1608 = vld [vmem:[%s1602 + $0x14] sm:$0xf]
        %v1609 = vld [vmem:[%s1602 + $0x18] sm:$0xf]
        %v1610 = vld [vmem:[%s1602 + $0x1c] sm:$0xf]
        %v1611 = vld [vmem:[%s1602 + $0x20] sm:$0xf]
        %v1612 = vld [vmem:[%s1602 + $0x24] sm:$0xf]
        %v1613 = vld [vmem:[%s1602 + $0x28] sm:$0xf]
        %v1614 = vld [vmem:[%s1602 + $0x2c] sm:$0xf]
        %v1615 = vld [vmem:[%s1602 + $0x30] sm:$0xf]
        %v1616 = vld [vmem:[%s1602 + $0x34] sm:$0xf]
        %v1617 = vld [vmem:[%s1602 + $0x38] sm:$0xf]
        %v1618 = vld [vmem:[%s1602 + $0x3c] sm:$0xf]
        %v1635 = vunpack.c.l.b16 %v1603
        %v1636 = vunpack.c.l.b16 %v1604
        %v1637 = vunpack.c.l.b16 %v1605
        %v1638 = vunpack.c.l.b16 %v1606
        %v1639 = vunpack.c.l.b16 %v1607
        %v1640 = vunpack.c.l.b16 %v1608
        %v1641 = vunpack.c.l.b16 %v1609
        %v1642 = vunpack.c.l.b16 %v1610
        %v1643 = vunpack.c.l.b16 %v1611
        %v1644 = vunpack.c.l.b16 %v1612
        %v1645 = vunpack.c.l.b16 %v1613
        %v1646 = vunpack.c.l.b16 %v1614
        %v1647 = vunpack.c.l.b16 %v1615
        %v1648 = vunpack.c.l.b16 %v1616
        %v1649 = vunpack.c.l.b16 %v1617
        %v1650 = vunpack.c.l.b16 %v1618
        %v1651 = vpack.c.b16 %v1636, %v1635
        %v1652 = vpack.c.b16 %v1638, %v1637
        %v1653 = vpack.c.b16 %v1640, %v1639
        %v1654 = vpack.c.b16 %v1642, %v1641
        %v1655 = vpack.c.b16 %v1644, %v1643
        %v1656 = vpack.c.b16 %v1646, %v1645
        %v1657 = vpack.c.b16 %v1648, %v1647
        %v1658 = vpack.c.b16 %v1650, %v1649
        %1667 = vmatprep.subr.bf16.mxu0 0
        %1668 = vmatpush1.bf16.msra.mxu0 %v1651
        %1669 = vmatprep.subr.bf16.mxu0 0
        %1670 = vmatpush1.bf16.msra.mxu0 %v1652
        %1671 = vmatprep.subr.bf16.mxu0 0
        %1672 = vmatpush1.bf16.msra.mxu0 %v1653
        %1673 = vmatprep.subr.bf16.mxu0 0
        %1674 = vmatpush1.bf16.msra.mxu0 %v1654
        %1675 = vmatprep.subr.bf16.mxu0 0
        %1676 = vmatpush1.bf16.msra.mxu0 %v1655
        %1677 = vmatprep.subr.bf16.mxu0 0
        %1678 = vmatpush1.bf16.msra.mxu0 %v1656
        %1679 = vmatprep.subr.bf16.mxu0 0
        %1680 = vmatpush1.bf16.msra.mxu0 %v1657
        %1681 = vmatprep.subr.bf16.mxu0 0
        %1682 = vmatpush1.bf16.msra.mxu0 %v1658
        %1683 = vmatprep.subr.bf16.mxu0 0
        %1684 = vmatpush1.bf16.msra.mxu0 0
        %1685 = vmatprep.subr.bf16.mxu0 0
        %1686 = vmatpush1.bf16.msra.mxu0 0
        %1687 = vmatprep.subr.bf16.mxu0 0
        %1688 = vmatpush1.bf16.msra.mxu0 0
        %1689 = vmatprep.subr.bf16.mxu0 0
        %1690 = vmatpush1.bf16.msra.mxu0 0
        %1691 = vmatprep.subr.bf16.mxu0 0
        %1692 = vmatpush1.bf16.msra.mxu0 0
        %1693 = vmatprep.subr.bf16.mxu0 0
        %1694 = vmatpush1.bf16.msra.mxu0 0
        %1695 = vmatprep.subr.bf16.mxu0 0
        %1696 = vmatpush1.bf16.msra.mxu0 0
        %1697 = vmatprep.subr.bf16.mxu0 0
        %1698 = vmatpush1.bf16.msra.mxu0 0
        %1699 = vmatprep.mubr.bf16.mxu0 0
        %1700 = vmatmul.mubr.bf16.gmra.mrb[0].mxu0 %v1594
        %v1701 = vpop.f32.mrb[0].mxu0
        %v1702 = vadd.f32 0.0, %v1701
        %v1703 = vpop.f32.mrb[0].mxu0
        %v1704 = vpop.f32.mrb[0].mxu0
        %v1705 = vadd.f32 0.0, %v1704
        %v1706 = vpop.f32.mrb[0].mxu0
        %1707 = vmatprep.mubr.bf16.mxu0 0
        %1708 = vmatmul.mubr.bf16.gmra.mrb[0].mxu0 %v1595
        %v1709 = vpop.f32.mrb[0].mxu0
        %v1710 = vadd.f32 0.0, %v1709
        %v1711 = vpop.f32.mrb[0].mxu0
        %v1712 = vpop.f32.mrb[0].mxu0
        %v1713 = vadd.f32 0.0, %v1712
        %v1714 = vpop.f32.mrb[0].mxu0
        %1715 = vmatprep.mubr.bf16.mxu0 0
        %1716 = vmatmul.mubr.bf16.gmra.mrb[0].mxu0 %v1596
        %v1717 = vpop.f32.mrb[0].mxu0
        %v1718 = vadd.f32 0.0, %v1717
        %v1719 = vpop.f32.mrb[0].mxu0
        %v1720 = vpop.f32.mrb[0].mxu0
        %v1721 = vadd.f32 0.0, %v1720
        %v1722 = vpop.f32.mrb[0].mxu0
        %1723 = vmatprep.mubr.bf16.mxu0 0
        %1724 = vmatmul.mubr.bf16.gmra.mrb[0].mxu0 %v1597
        %v1725 = vpop.f32.mrb[0].mxu0
        %v1726 = vadd.f32 0.0, %v1725
        %v1727 = vpop.f32.mrb[0].mxu0
        %v1728 = vpop.f32.mrb[0].mxu0
        %v1729 = vadd.f32 0.0, %v1728
        %v1730 = vpop.f32.mrb[0].mxu0
        %1731 = vmatprep.mubr.bf16.mxu0 0
        %1732 = vmatmul.mubr.bf16.gmra.mrb[0].mxu0 %v1598
        %v1733 = vpop.f32.mrb[0].mxu0
        %v1734 = vadd.f32 0.0, %v1733
        %v1735 = vpop.f32.mrb[0].mxu0
        %v1736 = vpop.f32.mrb[0].mxu0
        %v1737 = vadd.f32 0.0, %v1736
        %v1738 = vpop.f32.mrb[0].mxu0
        %1739 = vmatprep.mubr.bf16.mxu0 0
        %1740 = vmatmul.mubr.bf16.gmra.mrb[0].mxu0 %v1599
        %v1741 = vpop.f32.mrb[0].mxu0
        %v1742 = vadd.f32 0.0, %v1741
        %v1743 = vpop.f32.mrb[0].mxu0
        %v1744 = vpop.f32.mrb[0].mxu0
        %v1745 = vadd.f32 0.0, %v1744
        %v1746 = vpop.f32.mrb[0].mxu0
        %1747 = vmatprep.mubr.bf16.mxu0 0
        %1748 = vmatmul.mubr.bf16.gmra.mrb[0].mxu0 %v1600
        %v1749 = vpop.f32.mrb[0].mxu0
        %v1750 = vadd.f32 0.0, %v1749
        %v1751 = vpop.f32.mrb[0].mxu0
        %v1752 = vpop.f32.mrb[0].mxu0
        %v1753 = vadd.f32 0.0, %v1752
        %v1754 = vpop.f32.mrb[0].mxu0
        %1755 = vmatprep.mubr.bf16.mxu0 0
        %1756 = vmatmul.mubr.bf16.gmra.mrb[0].mxu0 %v1601
        %v1757 = vpop.f32.mrb[0].mxu0
        %v1758 = vadd.f32 0.0, %v1757
        %v1759 = vpop.f32.mrb[0].mxu0
        %v1760 = vpop.f32.mrb[0].mxu0
        %v1761 = vadd.f32 0.0, %v1760
        %v1762 = vpop.f32.mrb[0].mxu0
        %1763 = vdwg.mxu0
        %v1764 = vadd.f32 %v1532, %v1702
        %v1765 = vadd.f32 %v1535, %v1705
        %v1766 = vadd.f32 %v1540, %v1710
        %v1767 = vadd.f32 %v1543, %v1713
        %v1768 = vadd.f32 %v1548, %v1718
        %v1769 = vadd.f32 %v1551, %v1721
        %v1770 = vadd.f32 %v1556, %v1726
        %v1771 = vadd.f32 %v1559, %v1729
        %v1772 = vadd.f32 %v1564, %v1734
        %v1773 = vadd.f32 %v1567, %v1737
        %v1774 = vadd.f32 %v1572, %v1742
        %v1775 = vadd.f32 %v1575, %v1745
        %v1776 = vadd.f32 %v1580, %v1750
        %v1777 = vadd.f32 %v1583, %v1753
        %v1778 = vadd.f32 %v1588, %v1758
        %v1779 = vadd.f32 %v1591, %v1761
        %v1780 = vld [vmem:[#allocation2 + $0x8] sm:$0xff]
        %v1781 = vld [vmem:[#allocation2 + $0x10] sm:$0xff]
        %v1782 = vld [vmem:[#allocation2 + $0x18] sm:$0xff]
        %v1783 = vld [vmem:[#allocation2 + $0x20] sm:$0xff]
        %v1784 = vld [vmem:[#allocation2 + $0x28] sm:$0xff]
        %v1785 = vld [vmem:[#allocation2 + $0x30] sm:$0xff]
        %v1786 = vld [vmem:[#allocation2 + $0x38] sm:$0xff]
        %v1787 = vld [vmem:[#allocation2 + $0x40] sm:$0xff]
        %s1788 = scalar_lea.vmem %s1, 192
        %v1789 = vld [vmem:[%s1788] sm:$0xf]
        %v1790 = vld [vmem:[%s1788 + $0x4] sm:$0xf]
        %v1791 = vld [vmem:[%s1788 + $0x8] sm:$0xf]
        %v1792 = vld [vmem:[%s1788 + $0xc] sm:$0xf]
        %v1793 = vld [vmem:[%s1788 + $0x10] sm:$0xf]
        %v1794 = vld [vmem:[%s1788 + $0x14] sm:$0xf]
        %v1795 = vld [vmem:[%s1788 + $0x18] sm:$0xf]
        %v1796 = vld [vmem:[%s1788 + $0x1c] sm:$0xf]
        %v1797 = vld [vmem:[%s1788 + $0x20] sm:$0xf]
        %v1798 = vld [vmem:[%s1788 + $0x24] sm:$0xf]
        %v1799 = vld [vmem:[%s1788 + $0x28] sm:$0xf]
        %v1800 = vld [vmem:[%s1788 + $0x2c] sm:$0xf]
        %v1801 = vld [vmem:[%s1788 + $0x30] sm:$0xf]
        %v1802 = vld [vmem:[%s1788 + $0x34] sm:$0xf]
        %v1803 = vld [vmem:[%s1788 + $0x38] sm:$0xf]
        %v1804 = vld [vmem:[%s1788 + $0x3c] sm:$0xf]
        %v1821 = vunpack.c.l.b16 %v1789
        %v1822 = vunpack.c.l.b16 %v1790
        %v1823 = vunpack.c.l.b16 %v1791
        %v1824 = vunpack.c.l.b16 %v1792
        %v1825 = vunpack.c.l.b16 %v1793
        %v1826 = vunpack.c.l.b16 %v1794
        %v1827 = vunpack.c.l.b16 %v1795
        %v1828 = vunpack.c.l.b16 %v1796
        %v1829 = vunpack.c.l.b16 %v1797
        %v1830 = vunpack.c.l.b16 %v1798
        %v1831 = vunpack.c.l.b16 %v1799
        %v1832 = vunpack.c.l.b16 %v1800
        %v1833 = vunpack.c.l.b16 %v1801
        %v1834 = vunpack.c.l.b16 %v1802
        %v1835 = vunpack.c.l.b16 %v1803
        %v1836 = vunpack.c.l.b16 %v1804
        %v1837 = vpack.c.b16 %v1822, %v1821
        %v1838 = vpack.c.b16 %v1824, %v1823
        %v1839 = vpack.c.b16 %v1826, %v1825
        %v1840 = vpack.c.b16 %v1828, %v1827
        %v1841 = vpack.c.b16 %v1830, %v1829
        %v1842 = vpack.c.b16 %v1832, %v1831
        %v1843 = vpack.c.b16 %v1834, %v1833
        %v1844 = vpack.c.b16 %v1836, %v1835
        %1853 = vmatprep.subr.bf16.mxu0 0
        %1854 = vmatpush1.bf16.msra.mxu0 %v1837
        %1855 = vmatprep.subr.bf16.mxu0 0
        %1856 = vmatpush1.bf16.msra.mxu0 %v1838
        %1857 = vmatprep.subr.bf16.mxu0 0
        %1858 = vmatpush1.bf16.msra.mxu0 %v1839
        %1859 = vmatprep.subr.bf16.mxu0 0
        %1860 = vmatpush1.bf16.msra.mxu0 %v1840
        %1861 = vmatprep.subr.bf16.mxu0 0
        %1862 = vmatpush1.bf16.msra.mxu0 %v1841
        %1863 = vmatprep.subr.bf16.mxu0 0
        %1864 = vmatpush1.bf16.msra.mxu0 %v1842
        %1865 = vmatprep.subr.bf16.mxu0 0
        %1866 = vmatpush1.bf16.msra.mxu0 %v1843
        %1867 = vmatprep.subr.bf16.mxu0 0
        %1868 = vmatpush1.bf16.msra.mxu0 %v1844
        %1869 = vmatprep.subr.bf16.mxu0 0
        %1870 = vmatpush1.bf16.msra.mxu0 0
        %1871 = vmatprep.subr.bf16.mxu0 0
        %1872 = vmatpush1.bf16.msra.mxu0 0
        %1873 = vmatprep.subr.bf16.mxu0 0
        %1874 = vmatpush1.bf16.msra.mxu0 0
        %1875 = vmatprep.subr.bf16.mxu0 0
        %1876 = vmatpush1.bf16.msra.mxu0 0
        %1877 = vmatprep.subr.bf16.mxu0 0
        %1878 = vmatpush1.bf16.msra.mxu0 0
        %1879 = vmatprep.subr.bf16.mxu0 0
        %1880 = vmatpush1.bf16.msra.mxu0 0
        %1881 = vmatprep.subr.bf16.mxu0 0
        %1882 = vmatpush1.bf16.msra.mxu0 0
        %1883 = vmatprep.subr.bf16.mxu0 0
        %1884 = vmatpush1.bf16.msra.mxu0 0
        %1885 = vmatprep.mubr.bf16.mxu0 0
        %1886 = vmatmul.mubr.bf16.gmra.mrb[0].mxu0 %v1780
        %v1887 = vpop.f32.mrb[0].mxu0
        %v1888 = vadd.f32 0.0, %v1887
        %v1889 = vpop.f32.mrb[0].mxu0
        %v1890 = vpop.f32.mrb[0].mxu0
        %v1891 = vadd.f32 0.0, %v1890
        %v1892 = vpop.f32.mrb[0].mxu0
        %1893 = vmatprep.mubr.bf16.mxu0 0
        %1894 = vmatmul.mubr.bf16.gmra.mrb[0].mxu0 %v1781
        %v1895 = vpop.f32.mrb[0].mxu0
        %v1896 = vadd.f32 0.0, %v1895
        %v1897 = vpop.f32.mrb[0].mxu0
        %v1898 = vpop.f32.mrb[0].mxu0
        %v1899 = vadd.f32 0.0, %v1898
        %v1900 = vpop.f32.mrb[0].mxu0
        %1901 = vmatprep.mubr.bf16.mxu0 0
        %1902 = vmatmul.mubr.bf16.gmra.mrb[0].mxu0 %v1782
        %v1903 = vpop.f32.mrb[0].mxu0
        %v1904 = vadd.f32 0.0, %v1903
        %v1905 = vpop.f32.mrb[0].mxu0
        %v1906 = vpop.f32.mrb[0].mxu0
        %v1907 = vadd.f32 0.0, %v1906
        %v1908 = vpop.f32.mrb[0].mxu0
        %1909 = vmatprep.mubr.bf16.mxu0 0
        %1910 = vmatmul.mubr.bf16.gmra.mrb[0].mxu0 %v1783
        %v1911 = vpop.f32.mrb[0].mxu0
        %v1912 = vadd.f32 0.0, %v1911
        %v1913 = vpop.f32.mrb[0].mxu0
        %v1914 = vpop.f32.mrb[0].mxu0
        %v1915 = vadd.f32 0.0, %v1914
        %v1916 = vpop.f32.mrb[0].mxu0
        %1917 = vmatprep.mubr.bf16.mxu0 0
        %1918 = vmatmul.mubr.bf16.gmra.mrb[0].mxu0 %v1784
        %v1919 = vpop.f32.mrb[0].mxu0
        %v1920 = vadd.f32 0.0, %v1919
        %v1921 = vpop.f32.mrb[0].mxu0
        %v1922 = vpop.f32.mrb[0].mxu0
        %v1923 = vadd.f32 0.0, %v1922
        %v1924 = vpop.f32.mrb[0].mxu0
        %1925 = vmatprep.mubr.bf16.mxu0 0
        %1926 = vmatmul.mubr.bf16.gmra.mrb[0].mxu0 %v1785
        %v1927 = vpop.f32.mrb[0].mxu0
        %v1928 = vadd.f32 0.0, %v1927
        %v1929 = vpop.f32.mrb[0].mxu0
        %v1930 = vpop.f32.mrb[0].mxu0
        %v1931 = vadd.f32 0.0, %v1930
        %v1932 = vpop.f32.mrb[0].mxu0
        %1933 = vmatprep.mubr.bf16.mxu0 0
        %1934 = vmatmul.mubr.bf16.gmra.mrb[0].mxu0 %v1786
        %v1935 = vpop.f32.mrb[0].mxu0
        %v1936 = vadd.f32 0.0, %v1935
        %v1937 = vpop.f32.mrb[0].mxu0
        %v1938 = vpop.f32.mrb[0].mxu0
        %v1939 = vadd.f32 0.0, %v1938
        %v1940 = vpop.f32.mrb[0].mxu0
        %1941 = vmatprep.mubr.bf16.mxu0 0
        %1942 = vmatmul.mubr.bf16.gmra.mrb[0].mxu0 %v1787
        %v1943 = vpop.f32.mrb[0].mxu0
        %v1944 = vadd.f32 0.0, %v1943
        %v1945 = vpop.f32.mrb[0].mxu0
        %v1946 = vpop.f32.mrb[0].mxu0
        %v1947 = vadd.f32 0.0, %v1946
        %v1948 = vpop.f32.mrb[0].mxu0
        %1949 = vdwg.mxu0
        %v1950 = vadd.f32 %v1764, %v1888
        %v1951 = vadd.f32 %v1765, %v1891
        %v1952 = vadd.f32 %v1766, %v1896
        %v1953 = vadd.f32 %v1767, %v1899
        %v1954 = vadd.f32 %v1768, %v1904
        %v1955 = vadd.f32 %v1769, %v1907
        %v1956 = vadd.f32 %v1770, %v1912
        %v1957 = vadd.f32 %v1771, %v1915
        %v1958 = vadd.f32 %v1772, %v1920
        %v1959 = vadd.f32 %v1773, %v1923
        %v1960 = vadd.f32 %v1774, %v1928
        %v1961 = vadd.f32 %v1775, %v1931
        %v1962 = vadd.f32 %v1776, %v1936
        %v1963 = vadd.f32 %v1777, %v1939
        %v1964 = vadd.f32 %v1778, %v1944
        %v1965 = vadd.f32 %v1779, %v1947
        %v1966 = vld [vmem:[%s908 + $0x8] sm:$0xff]
        %v1967 = vld [vmem:[%s908 + $0x10] sm:$0xff]
        %v1968 = vld [vmem:[%s908 + $0x18] sm:$0xff]
        %v1969 = vld [vmem:[%s908 + $0x20] sm:$0xff]
        %v1970 = vld [vmem:[%s908 + $0x28] sm:$0xff]
        %v1971 = vld [vmem:[%s908 + $0x30] sm:$0xff]
        %v1972 = vld [vmem:[%s908 + $0x38] sm:$0xff]
        %v1973 = vld [vmem:[%s908 + $0x40] sm:$0xff]
        %s1974 = scalar_lea.vmem %s1, 256
        %v1975 = vld [vmem:[%s1974] sm:$0xf]
        %v1976 = vld [vmem:[%s1974 + $0x4] sm:$0xf]
        %v1977 = vld [vmem:[%s1974 + $0x8] sm:$0xf]
        %v1978 = vld [vmem:[%s1974 + $0xc] sm:$0xf]
        %v1979 = vld [vmem:[%s1974 + $0x10] sm:$0xf]
        %v1980 = vld [vmem:[%s1974 + $0x14] sm:$0xf]
        %v1981 = vld [vmem:[%s1974 + $0x18] sm:$0xf]
        %v1982 = vld [vmem:[%s1974 + $0x1c] sm:$0xf]
        %v1983 = vld [vmem:[%s1974 + $0x20] sm:$0xf]
        %v1984 = vld [vmem:[%s1974 + $0x24] sm:$0xf]
        %v1985 = vld [vmem:[%s1974 + $0x28] sm:$0xf]
        %v1986 = vld [vmem:[%s1974 + $0x2c] sm:$0xf]
        %v1987 = vld [vmem:[%s1974 + $0x30] sm:$0xf]
        %v1988 = vld [vmem:[%s1974 + $0x34] sm:$0xf]
        %v1989 = vld [vmem:[%s1974 + $0x38] sm:$0xf]
        %v1990 = vld [vmem:[%s1974 + $0x3c] sm:$0xf]
        %v2007 = vunpack.c.l.b16 %v1975
        %v2008 = vunpack.c.l.b16 %v1976
        %v2009 = vunpack.c.l.b16 %v1977
        %v2010 = vunpack.c.l.b16 %v1978
        %v2011 = vunpack.c.l.b16 %v1979
        %v2012 = vunpack.c.l.b16 %v1980
        %v2013 = vunpack.c.l.b16 %v1981
        %v2014 = vunpack.c.l.b16 %v1982
        %v2015 = vunpack.c.l.b16 %v1983
        %v2016 = vunpack.c.l.b16 %v1984
        %v2017 = vunpack.c.l.b16 %v1985
        %v2018 = vunpack.c.l.b16 %v1986
        %v2019 = vunpack.c.l.b16 %v1987
        %v2020 = vunpack.c.l.b16 %v1988
        %v2021 = vunpack.c.l.b16 %v1989
        %v2022 = vunpack.c.l.b16 %v1990
        %v2023 = vpack.c.b16 %v2008, %v2007
        %v2024 = vpack.c.b16 %v2010, %v2009
        %v2025 = vpack.c.b16 %v2012, %v2011
        %v2026 = vpack.c.b16 %v2014, %v2013
        %v2027 = vpack.c.b16 %v2016, %v2015
        %v2028 = vpack.c.b16 %v2018, %v2017
        %v2029 = vpack.c.b16 %v2020, %v2019
        %v2030 = vpack.c.b16 %v2022, %v2021
        %2039 = vmatprep.subr.bf16.mxu0 0
        %2040 = vmatpush1.bf16.msra.mxu0 %v2023
        %2041 = vmatprep.subr.bf16.mxu0 0
        %2042 = vmatpush1.bf16.msra.mxu0 %v2024
        %2043 = vmatprep.subr.bf16.mxu0 0
        %2044 = vmatpush1.bf16.msra.mxu0 %v2025
        %2045 = vmatprep.subr.bf16.mxu0 0
        %2046 = vmatpush1.bf16.msra.mxu0 %v2026
        %2047 = vmatprep.subr.bf16.mxu0 0
        %2048 = vmatpush1.bf16.msra.mxu0 %v2027
        %2049 = vmatprep.subr.bf16.mxu0 0
        %2050 = vmatpush1.bf16.msra.mxu0 %v2028
        %2051 = vmatprep.subr.bf16.mxu0 0
        %2052 = vmatpush1.bf16.msra.mxu0 %v2029
        %2053 = vmatprep.subr.bf16.mxu0 0
        %2054 = vmatpush1.bf16.msra.mxu0 %v2030
        %2055 = vmatprep.subr.bf16.mxu0 0
        %2056 = vmatpush1.bf16.msra.mxu0 0
        %2057 = vmatprep.subr.bf16.mxu0 0
        %2058 = vmatpush1.bf16.msra.mxu0 0
        %2059 = vmatprep.subr.bf16.mxu0 0
        %2060 = vmatpush1.bf16.msra.mxu0 0
        %2061 = vmatprep.subr.bf16.mxu0 0
        %2062 = vmatpush1.bf16.msra.mxu0 0
        %2063 = vmatprep.subr.bf16.mxu0 0
        %2064 = vmatpush1.bf16.msra.mxu0 0
        %2065 = vmatprep.subr.bf16.mxu0 0
        %2066 = vmatpush1.bf16.msra.mxu0 0
        %2067 = vmatprep.subr.bf16.mxu0 0
        %2068 = vmatpush1.bf16.msra.mxu0 0
        %2069 = vmatprep.subr.bf16.mxu0 0
        %2070 = vmatpush1.bf16.msra.mxu0 0
        %2071 = vmatprep.mubr.bf16.mxu0 0
        %2072 = vmatmul.mubr.bf16.gmra.mrb[0].mxu0 %v1966
        %v2073 = vpop.f32.mrb[0].mxu0
        %v2074 = vadd.f32 0.0, %v2073
        %v2075 = vpop.f32.mrb[0].mxu0
        %v2076 = vpop.f32.mrb[0].mxu0
        %v2077 = vadd.f32 0.0, %v2076
        %v2078 = vpop.f32.mrb[0].mxu0
        %2079 = vmatprep.mubr.bf16.mxu0 0
        %2080 = vmatmul.mubr.bf16.gmra.mrb[0].mxu0 %v1967
        %v2081 = vpop.f32.mrb[0].mxu0
        %v2082 = vadd.f32 0.0, %v2081
        %v2083 = vpop.f32.mrb[0].mxu0
        %v2084 = vpop.f32.mrb[0].mxu0
        %v2085 = vadd.f32 0.0, %v2084
        %v2086 = vpop.f32.mrb[0].mxu0
        %2087 = vmatprep.mubr.bf16.mxu0 0
        %2088 = vmatmul.mubr.bf16.gmra.mrb[0].mxu0 %v1968
        %v2089 = vpop.f32.mrb[0].mxu0
        %v2090 = vadd.f32 0.0, %v2089
        %v2091 = vpop.f32.mrb[0].mxu0
        %v2092 = vpop.f32.mrb[0].mxu0
        %v2093 = vadd.f32 0.0, %v2092
        %v2094 = vpop.f32.mrb[0].mxu0
        %2095 = vmatprep.mubr.bf16.mxu0 0
        %2096 = vmatmul.mubr.bf16.gmra.mrb[0].mxu0 %v1969
        %v2097 = vpop.f32.mrb[0].mxu0
        %v2098 = vadd.f32 0.0, %v2097
        %v2099 = vpop.f32.mrb[0].mxu0
        %v2100 = vpop.f32.mrb[0].mxu0
        %v2101 = vadd.f32 0.0, %v2100
        %v2102 = vpop.f32.mrb[0].mxu0
        %2103 = vmatprep.mubr.bf16.mxu0 0
        %2104 = vmatmul.mubr.bf16.gmra.mrb[0].mxu0 %v1970
        %v2105 = vpop.f32.mrb[0].mxu0
        %v2106 = vadd.f32 0.0, %v2105
        %v2107 = vpop.f32.mrb[0].mxu0
        %v2108 = vpop.f32.mrb[0].mxu0
        %v2109 = vadd.f32 0.0, %v2108
        %v2110 = vpop.f32.mrb[0].mxu0
        %2111 = vmatprep.mubr.bf16.mxu0 0
        %2112 = vmatmul.mubr.bf16.gmra.mrb[0].mxu0 %v1971
        %v2113 = vpop.f32.mrb[0].mxu0
        %v2114 = vadd.f32 0.0, %v2113
        %v2115 = vpop.f32.mrb[0].mxu0
        %v2116 = vpop.f32.mrb[0].mxu0
        %v2117 = vadd.f32 0.0, %v2116
        %v2118 = vpop.f32.mrb[0].mxu0
        %2119 = vmatprep.mubr.bf16.mxu0 0
        %2120 = vmatmul.mubr.bf16.gmra.mrb[0].mxu0 %v1972
        %v2121 = vpop.f32.mrb[0].mxu0
        %v2122 = vadd.f32 0.0, %v2121
        %v2123 = vpop.f32.mrb[0].mxu0
        %v2124 = vpop.f32.mrb[0].mxu0
        %v2125 = vadd.f32 0.0, %v2124
        %v2126 = vpop.f32.mrb[0].mxu0
        %2127 = vmatprep.mubr.bf16.mxu0 0
        %2128 = vmatmul.mubr.bf16.gmra.mrb[0].mxu0 %v1973
        %v2129 = vpop.f32.mrb[0].mxu0
        %v2130 = vadd.f32 0.0, %v2129
        %v2131 = vpop.f32.mrb[0].mxu0
        %v2132 = vpop.f32.mrb[0].mxu0
        %v2133 = vadd.f32 0.0, %v2132
        %v2134 = vpop.f32.mrb[0].mxu0
        %2135 = vdwg.mxu0
        %v2136 = vadd.f32 %v1950, %v2074
        %v2137 = vadd.f32 %v1951, %v2077
        %v2138 = vadd.f32 %v1952, %v2082
        %v2139 = vadd.f32 %v1953, %v2085
        %v2140 = vadd.f32 %v1954, %v2090
        %v2141 = vadd.f32 %v1955, %v2093
        %v2142 = vadd.f32 %v1956, %v2098
        %v2143 = vadd.f32 %v1957, %v2101
        %v2144 = vadd.f32 %v1958, %v2106
        %v2145 = vadd.f32 %v1959, %v2109
        %v2146 = vadd.f32 %v1960, %v2114
        %v2147 = vadd.f32 %v1961, %v2117
        %v2148 = vadd.f32 %v1962, %v2122
        %v2149 = vadd.f32 %v1963, %v2125
        %v2150 = vadd.f32 %v1964, %v2130
        %v2151 = vadd.f32 %v1965, %v2133
        %v2152 = vld [vmem:[%s1236 + $0x8] sm:$0xff]
        %v2153 = vld [vmem:[%s1236 + $0x10] sm:$0xff]
        %v2154 = vld [vmem:[%s1236 + $0x18] sm:$0xff]
        %v2155 = vld [vmem:[%s1236 + $0x20] sm:$0xff]
        %v2156 = vld [vmem:[%s1236 + $0x28] sm:$0xff]
        %v2157 = vld [vmem:[%s1236 + $0x30] sm:$0xff]
        %v2158 = vld [vmem:[%s1236 + $0x38] sm:$0xff]
        %v2159 = vld [vmem:[%s1236 + $0x40] sm:$0xff]
        %s2160 = scalar_lea.vmem %s1, 320
        %v2161 = vld [vmem:[%s2160] sm:$0xf]
        %v2162 = vld [vmem:[%s2160 + $0x4] sm:$0xf]
        %v2163 = vld [vmem:[%s2160 + $0x8] sm:$0xf]
        %v2164 = vld [vmem:[%s2160 + $0xc] sm:$0xf]
        %v2165 = vld [vmem:[%s2160 + $0x10] sm:$0xf]
        %v2166 = vld [vmem:[%s2160 + $0x14] sm:$0xf]
        %v2167 = vld [vmem:[%s2160 + $0x18] sm:$0xf]
        %v2168 = vld [vmem:[%s2160 + $0x1c] sm:$0xf]
        %v2169 = vld [vmem:[%s2160 + $0x20] sm:$0xf]
        %v2170 = vld [vmem:[%s2160 + $0x24] sm:$0xf]
        %v2171 = vld [vmem:[%s2160 + $0x28] sm:$0xf]
        %v2172 = vld [vmem:[%s2160 + $0x2c] sm:$0xf]
        %v2173 = vld [vmem:[%s2160 + $0x30] sm:$0xf]
        %v2174 = vld [vmem:[%s2160 + $0x34] sm:$0xf]
        %v2175 = vld [vmem:[%s2160 + $0x38] sm:$0xf]
        %v2176 = vld [vmem:[%s2160 + $0x3c] sm:$0xf]
        %v2193 = vunpack.c.l.b16 %v2161
        %v2194 = vunpack.c.l.b16 %v2162
        %v2195 = vunpack.c.l.b16 %v2163
        %v2196 = vunpack.c.l.b16 %v2164
        %v2197 = vunpack.c.l.b16 %v2165
        %v2198 = vunpack.c.l.b16 %v2166
        %v2199 = vunpack.c.l.b16 %v2167
        %v2200 = vunpack.c.l.b16 %v2168
        %v2201 = vunpack.c.l.b16 %v2169
        %v2202 = vunpack.c.l.b16 %v2170
        %v2203 = vunpack.c.l.b16 %v2171
        %v2204 = vunpack.c.l.b16 %v2172
        %v2205 = vunpack.c.l.b16 %v2173
        %v2206 = vunpack.c.l.b16 %v2174
        %v2207 = vunpack.c.l.b16 %v2175
        %v2208 = vunpack.c.l.b16 %v2176
        %v2209 = vpack.c.b16 %v2194, %v2193
        %v2210 = vpack.c.b16 %v2196, %v2195
        %v2211 = vpack.c.b16 %v2198, %v2197
        %v2212 = vpack.c.b16 %v2200, %v2199
        %v2213 = vpack.c.b16 %v2202, %v2201
        %v2214 = vpack.c.b16 %v2204, %v2203
        %v2215 = vpack.c.b16 %v2206, %v2205
        %v2216 = vpack.c.b16 %v2208, %v2207
        %2225 = vmatprep.subr.bf16.mxu0 0
        %2226 = vmatpush1.bf16.msra.mxu0 %v2209
        %2227 = vmatprep.subr.bf16.mxu0 0
        %2228 = vmatpush1.bf16.msra.mxu0 %v2210
        %2229 = vmatprep.subr.bf16.mxu0 0
        %2230 = vmatpush1.bf16.msra.mxu0 %v2211
        %2231 = vmatprep.subr.bf16.mxu0 0
        %2232 = vmatpush1.bf16.msra.mxu0 %v2212
        %2233 = vmatprep.subr.bf16.mxu0 0
        %2234 = vmatpush1.bf16.msra.mxu0 %v2213
        %2235 = vmatprep.subr.bf16.mxu0 0
        %2236 = vmatpush1.bf16.msra.mxu0 %v2214
        %2237 = vmatprep.subr.bf16.mxu0 0
        %2238 = vmatpush1.bf16.msra.mxu0 %v2215
        %2239 = vmatprep.subr.bf16.mxu0 0
        %2240 = vmatpush1.bf16.msra.mxu0 %v2216
        %2241 = vmatprep.subr.bf16.mxu0 0
        %2242 = vmatpush1.bf16.msra.mxu0 0
        %2243 = vmatprep.subr.bf16.mxu0 0
        %2244 = vmatpush1.bf16.msra.mxu0 0
        %2245 = vmatprep.subr.bf16.mxu0 0
        %2246 = vmatpush1.bf16.msra.mxu0 0
        %2247 = vmatprep.subr.bf16.mxu0 0
        %2248 = vmatpush1.bf16.msra.mxu0 0
        %2249 = vmatprep.subr.bf16.mxu0 0
        %2250 = vmatpush1.bf16.msra.mxu0 0
        %2251 = vmatprep.subr.bf16.mxu0 0
        %2252 = vmatpush1.bf16.msra.mxu0 0
        %2253 = vmatprep.subr.bf16.mxu0 0
        %2254 = vmatpush1.bf16.msra.mxu0 0
        %2255 = vmatprep.subr.bf16.mxu0 0
        %2256 = vmatpush1.bf16.msra.mxu0 0
        %2257 = vmatprep.mubr.bf16.mxu0 0
        %2258 = vmatmul.mubr.bf16.gmra.mrb[0].mxu0 %v2152
        %v2259 = vpop.f32.mrb[0].mxu0
        %v2260 = vadd.f32 0.0, %v2259
        %v2261 = vpop.f32.mrb[0].mxu0
        %v2262 = vpop.f32.mrb[0].mxu0
        %v2263 = vadd.f32 0.0, %v2262
        %v2264 = vpop.f32.mrb[0].mxu0
        %2265 = vmatprep.mubr.bf16.mxu0 0
        %2266 = vmatmul.mubr.bf16.gmra.mrb[0].mxu0 %v2153
        %v2267 = vpop.f32.mrb[0].mxu0
        %v2268 = vadd.f32 0.0, %v2267
        %v2269 = vpop.f32.mrb[0].mxu0
        %v2270 = vpop.f32.mrb[0].mxu0
        %v2271 = vadd.f32 0.0, %v2270
        %v2272 = vpop.f32.mrb[0].mxu0
        %2273 = vmatprep.mubr.bf16.mxu0 0
        %2274 = vmatmul.mubr.bf16.gmra.mrb[0].mxu0 %v2154
        %v2275 = vpop.f32.mrb[0].mxu0
        %v2276 = vadd.f32 0.0, %v2275
        %v2277 = vpop.f32.mrb[0].mxu0
        %v2278 = vpop.f32.mrb[0].mxu0
        %v2279 = vadd.f32 0.0, %v2278
        %v2280 = vpop.f32.mrb[0].mxu0
        %2281 = vmatprep.mubr.bf16.mxu0 0
        %2282 = vmatmul.mubr.bf16.gmra.mrb[0].mxu0 %v2155
        %v2283 = vpop.f32.mrb[0].mxu0
        %v2284 = vadd.f32 0.0, %v2283
        %v2285 = vpop.f32.mrb[0].mxu0
        %v2286 = vpop.f32.mrb[0].mxu0
        %v2287 = vadd.f32 0.0, %v2286
        %v2288 = vpop.f32.mrb[0].mxu0
        %2289 = vmatprep.mubr.bf16.mxu0 0
        %2290 = vmatmul.mubr.bf16.gmra.mrb[0].mxu0 %v2156
        %v2291 = vpop.f32.mrb[0].mxu0
        %v2292 = vadd.f32 0.0, %v2291
        %v2293 = vpop.f32.mrb[0].mxu0
        %v2294 = vpop.f32.mrb[0].mxu0
        %v2295 = vadd.f32 0.0, %v2294
        %v2296 = vpop.f32.mrb[0].mxu0
        %2297 = vmatprep.mubr.bf16.mxu0 0
        %2298 = vmatmul.mubr.bf16.gmra.mrb[0].mxu0 %v2157
        %v2299 = vpop.f32.mrb[0].mxu0
        %v2300 = vadd.f32 0.0, %v2299
        %v2301 = vpop.f32.mrb[0].mxu0
        %v2302 = vpop.f32.mrb[0].mxu0
        %v2303 = vadd.f32 0.0, %v2302
        %v2304 = vpop.f32.mrb[0].mxu0
        %2305 = vmatprep.mubr.bf16.mxu0 0
        %2306 = vmatmul.mubr.bf16.gmra.mrb[0].mxu0 %v2158
        %v2307 = vpop.f32.mrb[0].mxu0
        %v2308 = vadd.f32 0.0, %v2307
        %v2309 = vpop.f32.mrb[0].mxu0
        %v2310 = vpop.f32.mrb[0].mxu0
        %v2311 = vadd.f32 0.0, %v2310
        %v2312 = vpop.f32.mrb[0].mxu0
        %2313 = vmatprep.mubr.bf16.mxu0 0
        %2314 = vmatmul.mubr.bf16.gmra.mrb[0].mxu0 %v2159
        %v2315 = vpop.f32.mrb[0].mxu0
        %v2316 = vadd.f32 0.0, %v2315
        %v2317 = vpop.f32.mrb[0].mxu0
        %v2318 = vpop.f32.mrb[0].mxu0
        %v2319 = vadd.f32 0.0, %v2318
        %v2320 = vpop.f32.mrb[0].mxu0
        %2321 = vdwg.mxu0
        %v2322 = vadd.f32 %v2136, %v2260
        %v2323 = vadd.f32 %v2137, %v2263
        %v2324 = vadd.f32 %v2138, %v2268
        %v2325 = vadd.f32 %v2139, %v2271
        %v2326 = vadd.f32 %v2140, %v2276
        %v2327 = vadd.f32 %v2141, %v2279
        %v2328 = vadd.f32 %v2142, %v2284
        %v2329 = vadd.f32 %v2143, %v2287
        %v2330 = vadd.f32 %v2144, %v2292
        %v2331 = vadd.f32 %v2145, %v2295
        %v2332 = vadd.f32 %v2146, %v2300
        %v2333 = vadd.f32 %v2147, %v2303
        %v2334 = vadd.f32 %v2148, %v2308
        %v2335 = vadd.f32 %v2149, %v2311
        %v2336 = vadd.f32 %v2150, %v2316
        %v2337 = vadd.f32 %v2151, %v2319
        %v2338 = vld [vmem:[#allocation2 + $0x10] sm:$0xff]
        %v2339 = vld [vmem:[#allocation2 + $0x18] sm:$0xff]
        %v2340 = vld [vmem:[#allocation2 + $0x20] sm:$0xff]
        %v2341 = vld [vmem:[#allocation2 + $0x28] sm:$0xff]
        %v2342 = vld [vmem:[#allocation2 + $0x30] sm:$0xff]
        %v2343 = vld [vmem:[#allocation2 + $0x38] sm:$0xff]
        %v2344 = vld [vmem:[#allocation2 + $0x40] sm:$0xff]
        %v2345 = vld [vmem:[#allocation2 + $0x48] sm:$0xff]
        %s2346 = scalar_lea.vmem %s1, 384
        %v2347 = vld [vmem:[%s2346] sm:$0xf]
        %v2348 = vld [vmem:[%s2346 + $0x4] sm:$0xf]
        %v2349 = vld [vmem:[%s2346 + $0x8] sm:$0xf]
        %v2350 = vld [vmem:[%s2346 + $0xc] sm:$0xf]
        %v2351 = vld [vmem:[%s2346 + $0x10] sm:$0xf]
        %v2352 = vld [vmem:[%s2346 + $0x14] sm:$0xf]
        %v2353 = vld [vmem:[%s2346 + $0x18] sm:$0xf]
        %v2354 = vld [vmem:[%s2346 + $0x1c] sm:$0xf]
        %v2355 = vld [vmem:[%s2346 + $0x20] sm:$0xf]
        %v2356 = vld [vmem:[%s2346 + $0x24] sm:$0xf]
        %v2357 = vld [vmem:[%s2346 + $0x28] sm:$0xf]
        %v2358 = vld [vmem:[%s2346 + $0x2c] sm:$0xf]
        %v2359 = vld [vmem:[%s2346 + $0x30] sm:$0xf]
        %v2360 = vld [vmem:[%s2346 + $0x34] sm:$0xf]
        %v2361 = vld [vmem:[%s2346 + $0x38] sm:$0xf]
        %v2362 = vld [vmem:[%s2346 + $0x3c] sm:$0xf]
        %v2379 = vunpack.c.l.b16 %v2347
        %v2380 = vunpack.c.l.b16 %v2348
        %v2381 = vunpack.c.l.b16 %v2349
        %v2382 = vunpack.c.l.b16 %v2350
        %v2383 = vunpack.c.l.b16 %v2351
        %v2384 = vunpack.c.l.b16 %v2352
        %v2385 = vunpack.c.l.b16 %v2353
        %v2386 = vunpack.c.l.b16 %v2354
        %v2387 = vunpack.c.l.b16 %v2355
        %v2388 = vunpack.c.l.b16 %v2356
        %v2389 = vunpack.c.l.b16 %v2357
        %v2390 = vunpack.c.l.b16 %v2358
        %v2391 = vunpack.c.l.b16 %v2359
        %v2392 = vunpack.c.l.b16 %v2360
        %v2393 = vunpack.c.l.b16 %v2361
        %v2394 = vunpack.c.l.b16 %v2362
        %v2395 = vpack.c.b16 %v2380, %v2379
        %v2396 = vpack.c.b16 %v2382, %v2381
        %v2397 = vpack.c.b16 %v2384, %v2383
        %v2398 = vpack.c.b16 %v2386, %v2385
        %v2399 = vpack.c.b16 %v2388, %v2387
        %v2400 = vpack.c.b16 %v2390, %v2389
        %v2401 = vpack.c.b16 %v2392, %v2391
        %v2402 = vpack.c.b16 %v2394, %v2393
        %2411 = vmatprep.subr.bf16.mxu0 0
        %2412 = vmatpush1.bf16.msra.mxu0 %v2395
        %2413 = vmatprep.subr.bf16.mxu0 0
        %2414 = vmatpush1.bf16.msra.mxu0 %v2396
        %2415 = vmatprep.subr.bf16.mxu0 0
        %2416 = vmatpush1.bf16.msra.mxu0 %v2397
        %2417 = vmatprep.subr.bf16.mxu0 0
        %2418 = vmatpush1.bf16.msra.mxu0 %v2398
        %2419 = vmatprep.subr.bf16.mxu0 0
        %2420 = vmatpush1.bf16.msra.mxu0 %v2399
        %2421 = vmatprep.subr.bf16.mxu0 0
        %2422 = vmatpush1.bf16.msra.mxu0 %v2400
        %2423 = vmatprep.subr.bf16.mxu0 0
        %2424 = vmatpush1.bf16.msra.mxu0 %v2401
        %2425 = vmatprep.subr.bf16.mxu0 0
        %2426 = vmatpush1.bf16.msra.mxu0 %v2402
        %2427 = vmatprep.subr.bf16.mxu0 0
        %2428 = vmatpush1.bf16.msra.mxu0 0
        %2429 = vmatprep.subr.bf16.mxu0 0
        %2430 = vmatpush1.bf16.msra.mxu0 0
        %2431 = vmatprep.subr.bf16.mxu0 0
        %2432 = vmatpush1.bf16.msra.mxu0 0
        %2433 = vmatprep.subr.bf16.mxu0 0
        %2434 = vmatpush1.bf16.msra.mxu0 0
        %2435 = vmatprep.subr.bf16.mxu0 0
        %2436 = vmatpush1.bf16.msra.mxu0 0
        %2437 = vmatprep.subr.bf16.mxu0 0
        %2438 = vmatpush1.bf16.msra.mxu0 0
        %2439 = vmatprep.subr.bf16.mxu0 0
        %2440 = vmatpush1.bf16.msra.mxu0 0
        %2441 = vmatprep.subr.bf16.mxu0 0
        %2442 = vmatpush1.bf16.msra.mxu0 0
        %2443 = vmatprep.mubr.bf16.mxu0 0
        %2444 = vmatmul.mubr.bf16.gmra.mrb[0].mxu0 %v2338
        %v2445 = vpop.f32.mrb[0].mxu0
        %v2446 = vadd.f32 0.0, %v2445
        %v2447 = vpop.f32.mrb[0].mxu0
        %v2448 = vpop.f32.mrb[0].mxu0
        %v2449 = vadd.f32 0.0, %v2448
        %v2450 = vpop.f32.mrb[0].mxu0
        %2451 = vmatprep.mubr.bf16.mxu0 0
        %2452 = vmatmul.mubr.bf16.gmra.mrb[0].mxu0 %v2339
        %v2453 = vpop.f32.mrb[0].mxu0
        %v2454 = vadd.f32 0.0, %v2453
        %v2455 = vpop.f32.mrb[0].mxu0
        %v2456 = vpop.f32.mrb[0].mxu0
        %v2457 = vadd.f32 0.0, %v2456
        %v2458 = vpop.f32.mrb[0].mxu0
        %2459 = vmatprep.mubr.bf16.mxu0 0
        %2460 = vmatmul.mubr.bf16.gmra.mrb[0].mxu0 %v2340
        %v2461 = vpop.f32.mrb[0].mxu0
        %v2462 = vadd.f32 0.0, %v2461
        %v2463 = vpop.f32.mrb[0].mxu0
        %v2464 = vpop.f32.mrb[0].mxu0
        %v2465 = vadd.f32 0.0, %v2464
        %v2466 = vpop.f32.mrb[0].mxu0
        %2467 = vmatprep.mubr.bf16.mxu0 0
        %2468 = vmatmul.mubr.bf16.gmra.mrb[0].mxu0 %v2341
        %v2469 = vpop.f32.mrb[0].mxu0
        %v2470 = vadd.f32 0.0, %v2469
        %v2471 = vpop.f32.mrb[0].mxu0
        %v2472 = vpop.f32.mrb[0].mxu0
        %v2473 = vadd.f32 0.0, %v2472
        %v2474 = vpop.f32.mrb[0].mxu0
        %2475 = vmatprep.mubr.bf16.mxu0 0
        %2476 = vmatmul.mubr.bf16.gmra.mrb[0].mxu0 %v2342
        %v2477 = vpop.f32.mrb[0].mxu0
        %v2478 = vadd.f32 0.0, %v2477
        %v2479 = vpop.f32.mrb[0].mxu0
        %v2480 = vpop.f32.mrb[0].mxu0
        %v2481 = vadd.f32 0.0, %v2480
        %v2482 = vpop.f32.mrb[0].mxu0
        %2483 = vmatprep.mubr.bf16.mxu0 0
        %2484 = vmatmul.mubr.bf16.gmra.mrb[0].mxu0 %v2343
        %v2485 = vpop.f32.mrb[0].mxu0
        %v2486 = vadd.f32 0.0, %v2485
        %v2487 = vpop.f32.mrb[0].mxu0
        %v2488 = vpop.f32.mrb[0].mxu0
        %v2489 = vadd.f32 0.0, %v2488
        %v2490 = vpop.f32.mrb[0].mxu0
        %2491 = vmatprep.mubr.bf16.mxu0 0
        %2492 = vmatmul.mubr.bf16.gmra.mrb[0].mxu0 %v2344
        %v2493 = vpop.f32.mrb[0].mxu0
        %v2494 = vadd.f32 0.0, %v2493
        %v2495 = vpop.f32.mrb[0].mxu0
        %v2496 = vpop.f32.mrb[0].mxu0
        %v2497 = vadd.f32 0.0, %v2496
        %v2498 = vpop.f32.mrb[0].mxu0
        %2499 = vmatprep.mubr.bf16.mxu0 0
        %2500 = vmatmul.mubr.bf16.gmra.mrb[0].mxu0 %v2345
        %v2501 = vpop.f32.mrb[0].mxu0
        %v2502 = vadd.f32 0.0, %v2501
        %v2503 = vpop.f32.mrb[0].mxu0
        %v2504 = vpop.f32.mrb[0].mxu0
        %v2505 = vadd.f32 0.0, %v2504
        %v2506 = vpop.f32.mrb[0].mxu0
        %2507 = vdwg.mxu0
        %v2508 = vadd.f32 %v2322, %v2446
        %v2509 = vadd.f32 %v2323, %v2449
        %v2510 = vadd.f32 %v2324, %v2454
        %v2511 = vadd.f32 %v2325, %v2457
        %v2512 = vadd.f32 %v2326, %v2462
        %v2513 = vadd.f32 %v2327, %v2465
        %v2514 = vadd.f32 %v2328, %v2470
        %v2515 = vadd.f32 %v2329, %v2473
        %v2516 = vadd.f32 %v2330, %v2478
        %v2517 = vadd.f32 %v2331, %v2481
        %v2518 = vadd.f32 %v2332, %v2486
        %v2519 = vadd.f32 %v2333, %v2489
        %v2520 = vadd.f32 %v2334, %v2494
        %v2521 = vadd.f32 %v2335, %v2497
        %v2522 = vadd.f32 %v2336, %v2502
        %v2523 = vadd.f32 %v2337, %v2505
        %v2524 = vld [vmem:[%s908 + $0x10] sm:$0xff]
        %v2525 = vld [vmem:[%s908 + $0x18] sm:$0xff]
        %v2526 = vld [vmem:[%s908 + $0x20] sm:$0xff]
        %v2527 = vld [vmem:[%s908 + $0x28] sm:$0xff]
        %v2528 = vld [vmem:[%s908 + $0x30] sm:$0xff]
        %v2529 = vld [vmem:[%s908 + $0x38] sm:$0xff]
        %v2530 = vld [vmem:[%s908 + $0x40] sm:$0xff]
        %v2531 = vld [vmem:[%s908 + $0x48] sm:$0xff]
        %s2532 = scalar_lea.vmem %s1, 448
        %v2533 = vld [vmem:[%s2532] sm:$0xf]
        %v2534 = vld [vmem:[%s2532 + $0x4] sm:$0xf]
        %v2535 = vld [vmem:[%s2532 + $0x8] sm:$0xf]
        %v2536 = vld [vmem:[%s2532 + $0xc] sm:$0xf]
        %v2537 = vld [vmem:[%s2532 + $0x10] sm:$0xf]
        %v2538 = vld [vmem:[%s2532 + $0x14] sm:$0xf]
        %v2539 = vld [vmem:[%s2532 + $0x18] sm:$0xf]
        %v2540 = vld [vmem:[%s2532 + $0x1c] sm:$0xf]
        %v2541 = vld [vmem:[%s2532 + $0x20] sm:$0xf]
        %v2542 = vld [vmem:[%s2532 + $0x24] sm:$0xf]
        %v2543 = vld [vmem:[%s2532 + $0x28] sm:$0xf]
        %v2544 = vld [vmem:[%s2532 + $0x2c] sm:$0xf]
        %v2545 = vld [vmem:[%s2532 + $0x30] sm:$0xf]
        %v2546 = vld [vmem:[%s2532 + $0x34] sm:$0xf]
        %v2547 = vld [vmem:[%s2532 + $0x38] sm:$0xf]
        %v2548 = vld [vmem:[%s2532 + $0x3c] sm:$0xf]
        %v2565 = vunpack.c.l.b16 %v2533
        %v2566 = vunpack.c.l.b16 %v2534
        %v2567 = vunpack.c.l.b16 %v2535
        %v2568 = vunpack.c.l.b16 %v2536
        %v2569 = vunpack.c.l.b16 %v2537
        %v2570 = vunpack.c.l.b16 %v2538
        %v2571 = vunpack.c.l.b16 %v2539
        %v2572 = vunpack.c.l.b16 %v2540
        %v2573 = vunpack.c.l.b16 %v2541
        %v2574 = vunpack.c.l.b16 %v2542
        %v2575 = vunpack.c.l.b16 %v2543
        %v2576 = vunpack.c.l.b16 %v2544
        %v2577 = vunpack.c.l.b16 %v2545
        %v2578 = vunpack.c.l.b16 %v2546
        %v2579 = vunpack.c.l.b16 %v2547
        %v2580 = vunpack.c.l.b16 %v2548
        %v2581 = vpack.c.b16 %v2566, %v2565
        %v2582 = vpack.c.b16 %v2568, %v2567
        %v2583 = vpack.c.b16 %v2570, %v2569
        %v2584 = vpack.c.b16 %v2572, %v2571
        %v2585 = vpack.c.b16 %v2574, %v2573
        %v2586 = vpack.c.b16 %v2576, %v2575
        %v2587 = vpack.c.b16 %v2578, %v2577
        %v2588 = vpack.c.b16 %v2580, %v2579
        %2597 = vmatprep.subr.bf16.mxu0 0
        %2598 = vmatpush1.bf16.msra.mxu0 %v2581
        %2599 = vmatprep.subr.bf16.mxu0 0
        %2600 = vmatpush1.bf16.msra.mxu0 %v2582
        %2601 = vmatprep.subr.bf16.mxu0 0
        %2602 = vmatpush1.bf16.msra.mxu0 %v2583
        %2603 = vmatprep.subr.bf16.mxu0 0
        %2604 = vmatpush1.bf16.msra.mxu0 %v2584
        %2605 = vmatprep.subr.bf16.mxu0 0
        %2606 = vmatpush1.bf16.msra.mxu0 %v2585
        %2607 = vmatprep.subr.bf16.mxu0 0
        %2608 = vmatpush1.bf16.msra.mxu0 %v2586
        %2609 = vmatprep.subr.bf16.mxu0 0
        %2610 = vmatpush1.bf16.msra.mxu0 %v2587
        %2611 = vmatprep.subr.bf16.mxu0 0
        %2612 = vmatpush1.bf16.msra.mxu0 %v2588
        %2613 = vmatprep.subr.bf16.mxu0 0
        %2614 = vmatpush1.bf16.msra.mxu0 0
        %2615 = vmatprep.subr.bf16.mxu0 0
        %2616 = vmatpush1.bf16.msra.mxu0 0
        %2617 = vmatprep.subr.bf16.mxu0 0
        %2618 = vmatpush1.bf16.msra.mxu0 0
        %2619 = vmatprep.subr.bf16.mxu0 0
        %2620 = vmatpush1.bf16.msra.mxu0 0
        %2621 = vmatprep.subr.bf16.mxu0 0
        %2622 = vmatpush1.bf16.msra.mxu0 0
        %2623 = vmatprep.subr.bf16.mxu0 0
        %2624 = vmatpush1.bf16.msra.mxu0 0
        %2625 = vmatprep.subr.bf16.mxu0 0
        %2626 = vmatpush1.bf16.msra.mxu0 0
        %2627 = vmatprep.subr.bf16.mxu0 0
        %2628 = vmatpush1.bf16.msra.mxu0 0
        %2629 = vmatprep.mubr.bf16.mxu0 0
        %2630 = vmatmul.mubr.bf16.gmra.mrb[0].mxu0 %v2524
        %v2631 = vpop.f32.mrb[0].mxu0
        %v2632 = vadd.f32 0.0, %v2631
        %v2633 = vpop.f32.mrb[0].mxu0
        %v2634 = vpop.f32.mrb[0].mxu0
        %v2635 = vadd.f32 0.0, %v2634
        %v2636 = vpop.f32.mrb[0].mxu0
        %2637 = vmatprep.mubr.bf16.mxu0 0
        %2638 = vmatmul.mubr.bf16.gmra.mrb[0].mxu0 %v2525
        %v2639 = vpop.f32.mrb[0].mxu0
        %v2640 = vadd.f32 0.0, %v2639
        %v2641 = vpop.f32.mrb[0].mxu0
        %v2642 = vpop.f32.mrb[0].mxu0
        %v2643 = vadd.f32 0.0, %v2642
        %v2644 = vpop.f32.mrb[0].mxu0
        %2645 = vmatprep.mubr.bf16.mxu0 0
        %2646 = vmatmul.mubr.bf16.gmra.mrb[0].mxu0 %v2526
        %v2647 = vpop.f32.mrb[0].mxu0
        %v2648 = vadd.f32 0.0, %v2647
        %v2649 = vpop.f32.mrb[0].mxu0
        %v2650 = vpop.f32.mrb[0].mxu0
        %v2651 = vadd.f32 0.0, %v2650
        %v2652 = vpop.f32.mrb[0].mxu0
        %2653 = vmatprep.mubr.bf16.mxu0 0
        %2654 = vmatmul.mubr.bf16.gmra.mrb[0].mxu0 %v2527
        %v2655 = vpop.f32.mrb[0].mxu0
        %v2656 = vadd.f32 0.0, %v2655
        %v2657 = vpop.f32.mrb[0].mxu0
        %v2658 = vpop.f32.mrb[0].mxu0
        %v2659 = vadd.f32 0.0, %v2658
        %v2660 = vpop.f32.mrb[0].mxu0
        %2661 = vmatprep.mubr.bf16.mxu0 0
        %2662 = vmatmul.mubr.bf16.gmra.mrb[0].mxu0 %v2528
        %v2663 = vpop.f32.mrb[0].mxu0
        %v2664 = vadd.f32 0.0, %v2663
        %v2665 = vpop.f32.mrb[0].mxu0
        %v2666 = vpop.f32.mrb[0].mxu0
        %v2667 = vadd.f32 0.0, %v2666
        %v2668 = vpop.f32.mrb[0].mxu0
        %2669 = vmatprep.mubr.bf16.mxu0 0
        %2670 = vmatmul.mubr.bf16.gmra.mrb[0].mxu0 %v2529
        %v2671 = vpop.f32.mrb[0].mxu0
        %v2672 = vadd.f32 0.0, %v2671
        %v2673 = vpop.f32.mrb[0].mxu0
        %v2674 = vpop.f32.mrb[0].mxu0
        %v2675 = vadd.f32 0.0, %v2674
        %v2676 = vpop.f32.mrb[0].mxu0
        %2677 = vmatprep.mubr.bf16.mxu0 0
        %2678 = vmatmul.mubr.bf16.gmra.mrb[0].mxu0 %v2530
        %v2679 = vpop.f32.mrb[0].mxu0
        %v2680 = vadd.f32 0.0, %v2679
        %v2681 = vpop.f32.mrb[0].mxu0
        %v2682 = vpop.f32.mrb[0].mxu0
        %v2683 = vadd.f32 0.0, %v2682
        %v2684 = vpop.f32.mrb[0].mxu0
        %2685 = vmatprep.mubr.bf16.mxu0 0
        %2686 = vmatmul.mubr.bf16.gmra.mrb[0].mxu0 %v2531
        %v2687 = vpop.f32.mrb[0].mxu0
        %v2688 = vadd.f32 0.0, %v2687
        %v2689 = vpop.f32.mrb[0].mxu0
        %v2690 = vpop.f32.mrb[0].mxu0
        %v2691 = vadd.f32 0.0, %v2690
        %v2692 = vpop.f32.mrb[0].mxu0
        %2693 = vdwg.mxu0
        %v2694 = vadd.f32 %v2508, %v2632
        %v2695 = vadd.f32 %v2509, %v2635
        %v2696 = vadd.f32 %v2510, %v2640
        %v2697 = vadd.f32 %v2511, %v2643
        %v2698 = vadd.f32 %v2512, %v2648
        %v2699 = vadd.f32 %v2513, %v2651
        %v2700 = vadd.f32 %v2514, %v2656
        %v2701 = vadd.f32 %v2515, %v2659
        %v2702 = vadd.f32 %v2516, %v2664
        %v2703 = vadd.f32 %v2517, %v2667
        %v2704 = vadd.f32 %v2518, %v2672
        %v2705 = vadd.f32 %v2519, %v2675
        %v2706 = vadd.f32 %v2520, %v2680
        %v2707 = vadd.f32 %v2521, %v2683
        %v2708 = vadd.f32 %v2522, %v2688
        %v2709 = vadd.f32 %v2523, %v2691
        %v2710 = vld [vmem:[%s1236 + $0x10] sm:$0xff]
        %v2711 = vld [vmem:[%s1236 + $0x18] sm:$0xff]
        %v2712 = vld [vmem:[%s1236 + $0x20] sm:$0xff]
        %v2713 = vld [vmem:[%s1236 + $0x28] sm:$0xff]
        %v2714 = vld [vmem:[%s1236 + $0x30] sm:$0xff]
        %v2715 = vld [vmem:[%s1236 + $0x38] sm:$0xff]
        %v2716 = vld [vmem:[%s1236 + $0x40] sm:$0xff]
        %v2717 = vld [vmem:[%s1236 + $0x48] sm:$0xff]
        %s2718 = scalar_lea.vmem %s1, 512
        %v2719 = vld [vmem:[%s2718] sm:$0xf]
        %v2720 = vld [vmem:[%s2718 + $0x4] sm:$0xf]
        %v2721 = vld [vmem:[%s2718 + $0x8] sm:$0xf]
        %v2722 = vld [vmem:[%s2718 + $0xc] sm:$0xf]
        %v2723 = vld [vmem:[%s2718 + $0x10] sm:$0xf]
        %v2724 = vld [vmem:[%s2718 + $0x14] sm:$0xf]
        %v2725 = vld [vmem:[%s2718 + $0x18] sm:$0xf]
        %v2726 = vld [vmem:[%s2718 + $0x1c] sm:$0xf]
        %v2727 = vld [vmem:[%s2718 + $0x20] sm:$0xf]
        %v2728 = vld [vmem:[%s2718 + $0x24] sm:$0xf]
        %v2729 = vld [vmem:[%s2718 + $0x28] sm:$0xf]
        %v2730 = vld [vmem:[%s2718 + $0x2c] sm:$0xf]
        %v2731 = vld [vmem:[%s2718 + $0x30] sm:$0xf]
        %v2732 = vld [vmem:[%s2718 + $0x34] sm:$0xf]
        %v2733 = vld [vmem:[%s2718 + $0x38] sm:$0xf]
        %v2734 = vld [vmem:[%s2718 + $0x3c] sm:$0xf]
        %v2751 = vunpack.c.l.b16 %v2719
        %v2752 = vunpack.c.l.b16 %v2720
        %v2753 = vunpack.c.l.b16 %v2721
        %v2754 = vunpack.c.l.b16 %v2722
        %v2755 = vunpack.c.l.b16 %v2723
        %v2756 = vunpack.c.l.b16 %v2724
        %v2757 = vunpack.c.l.b16 %v2725
        %v2758 = vunpack.c.l.b16 %v2726
        %v2759 = vunpack.c.l.b16 %v2727
        %v2760 = vunpack.c.l.b16 %v2728
        %v2761 = vunpack.c.l.b16 %v2729
        %v2762 = vunpack.c.l.b16 %v2730
        %v2763 = vunpack.c.l.b16 %v2731
        %v2764 = vunpack.c.l.b16 %v2732
        %v2765 = vunpack.c.l.b16 %v2733
        %v2766 = vunpack.c.l.b16 %v2734
        %v2767 = vpack.c.b16 %v2752, %v2751
        %v2768 = vpack.c.b16 %v2754, %v2753
        %v2769 = vpack.c.b16 %v2756, %v2755
        %v2770 = vpack.c.b16 %v2758, %v2757
        %v2771 = vpack.c.b16 %v2760, %v2759
        %v2772 = vpack.c.b16 %v2762, %v2761
        %v2773 = vpack.c.b16 %v2764, %v2763
        %v2774 = vpack.c.b16 %v2766, %v2765
        %2783 = vmatprep.subr.bf16.mxu0 0
        %2784 = vmatpush1.bf16.msra.mxu0 %v2767
        %2785 = vmatprep.subr.bf16.mxu0 0
        %2786 = vmatpush1.bf16.msra.mxu0 %v2768
        %2787 = vmatprep.subr.bf16.mxu0 0
        %2788 = vmatpush1.bf16.msra.mxu0 %v2769
        %2789 = vmatprep.subr.bf16.mxu0 0
        %2790 = vmatpush1.bf16.msra.mxu0 %v2770
        %2791 = vmatprep.subr.bf16.mxu0 0
        %2792 = vmatpush1.bf16.msra.mxu0 %v2771
        %2793 = vmatprep.subr.bf16.mxu0 0
        %2794 = vmatpush1.bf16.msra.mxu0 %v2772
        %2795 = vmatprep.subr.bf16.mxu0 0
        %2796 = vmatpush1.bf16.msra.mxu0 %v2773
        %2797 = vmatprep.subr.bf16.mxu0 0
        %2798 = vmatpush1.bf16.msra.mxu0 %v2774
        %2799 = vmatprep.subr.bf16.mxu0 0
        %2800 = vmatpush1.bf16.msra.mxu0 0
        %2801 = vmatprep.subr.bf16.mxu0 0
        %2802 = vmatpush1.bf16.msra.mxu0 0
        %2803 = vmatprep.subr.bf16.mxu0 0
        %2804 = vmatpush1.bf16.msra.mxu0 0
        %2805 = vmatprep.subr.bf16.mxu0 0
        %2806 = vmatpush1.bf16.msra.mxu0 0
        %2807 = vmatprep.subr.bf16.mxu0 0
        %2808 = vmatpush1.bf16.msra.mxu0 0
        %2809 = vmatprep.subr.bf16.mxu0 0
        %2810 = vmatpush1.bf16.msra.mxu0 0
        %2811 = vmatprep.subr.bf16.mxu0 0
        %2812 = vmatpush1.bf16.msra.mxu0 0
        %2813 = vmatprep.subr.bf16.mxu0 0
        %2814 = vmatpush1.bf16.msra.mxu0 0
        %2815 = vmatprep.mubr.bf16.mxu0 0
        %2816 = vmatmul.mubr.bf16.gmra.mrb[0].mxu0 %v2710
        %v2817 = vpop.f32.mrb[0].mxu0
        %v2818 = vadd.f32 0.0, %v2817
        %v2819 = vpop.f32.mrb[0].mxu0
        %v2820 = vpop.f32.mrb[0].mxu0
        %v2821 = vadd.f32 0.0, %v2820
        %v2822 = vpop.f32.mrb[0].mxu0
        %2823 = vmatprep.mubr.bf16.mxu0 0
        %2824 = vmatmul.mubr.bf16.gmra.mrb[0].mxu0 %v2711
        %v2825 = vpop.f32.mrb[0].mxu0
        %v2826 = vadd.f32 0.0, %v2825
        %v2827 = vpop.f32.mrb[0].mxu0
        %v2828 = vpop.f32.mrb[0].mxu0
        %v2829 = vadd.f32 0.0, %v2828
        %v2830 = vpop.f32.mrb[0].mxu0
        %2831 = vmatprep.mubr.bf16.mxu0 0
        %2832 = vmatmul.mubr.bf16.gmra.mrb[0].mxu0 %v2712
        %v2833 = vpop.f32.mrb[0].mxu0
        %v2834 = vadd.f32 0.0, %v2833
        %v2835 = vpop.f32.mrb[0].mxu0
        %v2836 = vpop.f32.mrb[0].mxu0
        %v2837 = vadd.f32 0.0, %v2836
        %v2838 = vpop.f32.mrb[0].mxu0
        %2839 = vmatprep.mubr.bf16.mxu0 0
        %2840 = vmatmul.mubr.bf16.gmra.mrb[0].mxu0 %v2713
        %v2841 = vpop.f32.mrb[0].mxu0
        %v2842 = vadd.f32 0.0, %v2841
        %v2843 = vpop.f32.mrb[0].mxu0
        %v2844 = vpop.f32.mrb[0].mxu0
        %v2845 = vadd.f32 0.0, %v2844
        %v2846 = vpop.f32.mrb[0].mxu0
        %2847 = vmatprep.mubr.bf16.mxu0 0
        %2848 = vmatmul.mubr.bf16.gmra.mrb[0].mxu0 %v2714
        %v2849 = vpop.f32.mrb[0].mxu0
        %v2850 = vadd.f32 0.0, %v2849
        %v2851 = vpop.f32.mrb[0].mxu0
        %v2852 = vpop.f32.mrb[0].mxu0
        %v2853 = vadd.f32 0.0, %v2852
        %v2854 = vpop.f32.mrb[0].mxu0
        %2855 = vmatprep.mubr.bf16.mxu0 0
        %2856 = vmatmul.mubr.bf16.gmra.mrb[0].mxu0 %v2715
        %v2857 = vpop.f32.mrb[0].mxu0
        %v2858 = vadd.f32 0.0, %v2857
        %v2859 = vpop.f32.mrb[0].mxu0
        %v2860 = vpop.f32.mrb[0].mxu0
        %v2861 = vadd.f32 0.0, %v2860
        %v2862 = vpop.f32.mrb[0].mxu0
        %2863 = vmatprep.mubr.bf16.mxu0 0
        %2864 = vmatmul.mubr.bf16.gmra.mrb[0].mxu0 %v2716
        %v2865 = vpop.f32.mrb[0].mxu0
        %v2866 = vadd.f32 0.0, %v2865
        %v2867 = vpop.f32.mrb[0].mxu0
        %v2868 = vpop.f32.mrb[0].mxu0
        %v2869 = vadd.f32 0.0, %v2868
        %v2870 = vpop.f32.mrb[0].mxu0
        %2871 = vmatprep.mubr.bf16.mxu0 0
        %2872 = vmatmul.mubr.bf16.gmra.mrb[0].mxu0 %v2717
        %v2873 = vpop.f32.mrb[0].mxu0
        %v2874 = vadd.f32 0.0, %v2873
        %v2875 = vpop.f32.mrb[0].mxu0
        %v2876 = vpop.f32.mrb[0].mxu0
        %v2877 = vadd.f32 0.0, %v2876
        %v2878 = vpop.f32.mrb[0].mxu0
        %2879 = vdwg.mxu0
        %v2880 = vadd.f32 %v2694, %v2818
        %v2881 = vadd.f32 %v2695, %v2821
        %v2882 = vadd.f32 %v2696, %v2826
        %v2883 = vadd.f32 %v2697, %v2829
        %v2884 = vadd.f32 %v2698, %v2834
        %v2885 = vadd.f32 %v2699, %v2837
        %v2886 = vadd.f32 %v2700, %v2842
        %v2887 = vadd.f32 %v2701, %v2845
        %v2888 = vadd.f32 %v2702, %v2850
        %v2889 = vadd.f32 %v2703, %v2853
        %v2890 = vadd.f32 %v2704, %v2858
        %v2891 = vadd.f32 %v2705, %v2861
        %v2892 = vadd.f32 %v2706, %v2866
        %v2893 = vadd.f32 %v2707, %v2869
        %v2894 = vadd.f32 %v2708, %v2874
        %v2895 = vadd.f32 %v2709, %v2877
        %2896 = vst [vmem:[#allocation5] sm:$0xff] %v2880
        %2897 = vst [vmem:[#allocation5 + $0x8] sm:$0xff] %v2881
        %2898 = vst [vmem:[#allocation5 + $0x10] sm:$0xff] %v2882
        %2899 = vst [vmem:[#allocation5 + $0x18] sm:$0xff] %v2883
        %2900 = vst [vmem:[#allocation5 + $0x20] sm:$0xff] %v2884
        %2901 = vst [vmem:[#allocation5 + $0x28] sm:$0xff] %v2885
        %2902 = vst [vmem:[#allocation5 + $0x30] sm:$0xff] %v2886
        %2903 = vst [vmem:[#allocation5 + $0x38] sm:$0xff] %v2887
        %2904 = vst [vmem:[#allocation5 + $0x40] sm:$0xff] %v2888
        %2905 = vst [vmem:[#allocation5 + $0x48] sm:$0xff] %v2889
        %2906 = vst [vmem:[#allocation5 + $0x50] sm:$0xff] %v2890
        %2907 = vst [vmem:[#allocation5 + $0x58] sm:$0xff] %v2891
        %2908 = vst [vmem:[#allocation5 + $0x60] sm:$0xff] %v2892
        %2909 = vst [vmem:[#allocation5 + $0x68] sm:$0xff] %v2893
        %2910 = vst [vmem:[#allocation5 + $0x70] sm:$0xff] %v2894
        %2911 = vst [vmem:[#allocation5 + $0x78] sm:$0xff] %v2895
        %v2912 = vadd.f32 %v2880, %v2881
        %v2913 = vadd.f32 %v2912, %v2882
        %v2914 = vadd.f32 %v2913, %v2883
        %v2915 = vadd.f32 %v2914, %v2884
        %v2916 = vadd.f32 %v2915, %v2885
        %v2917 = vadd.f32 %v2916, %v2886
        %v2918 = vadd.f32 %v2917, %v2887
        %v2919 = vadd.f32 %v2918, %v2888
        %v2920 = vadd.f32 %v2919, %v2889
        %v2921 = vadd.f32 %v2920, %v2890
        %v2922 = vadd.f32 %v2921, %v2891
        %v2923 = vadd.f32 %v2922, %v2892
        %v2924 = vadd.f32 %v2923, %v2893
        %v2925 = vadd.f32 %v2924, %v2894
        %v2926 = vadd.f32 %v2925, %v2895
        %v2927 = vrot.slane %v2926, 4
        %v2928 = vadd.f32 %v2926, %v2927
        %v2929 = vrot.slane %v2928, 2
        %v2930 = vadd.f32 %v2928, %v2929
        %v2931 = vrot.slane %v2930, 1
        %v2932 = vadd.f32 %v2930, %v2931
        %v2933 = vadd.f32 %v2932, 0.0
        %v2934 = vmul.f32 %v2880, %v2880
        %v2935 = vmul.f32 %v2881, %v2881
        %v2936 = vmul.f32 %v2882, %v2882
        %v2937 = vmul.f32 %v2883, %v2883
        %v2938 = vmul.f32 %v2884, %v2884
        %v2939 = vmul.f32 %v2885, %v2885
        %v2940 = vmul.f32 %v2886, %v2886
        %v2941 = vmul.f32 %v2887, %v2887
        %v2942 = vmul.f32 %v2888, %v2888
        %v2943 = vmul.f32 %v2889, %v2889
        %v2944 = vmul.f32 %v2890, %v2890
        %v2945 = vmul.f32 %v2891, %v2891
        %v2946 = vmul.f32 %v2892, %v2892
        %v2947 = vmul.f32 %v2893, %v2893
        %v2948 = vmul.f32 %v2894, %v2894
        %v2949 = vmul.f32 %v2895, %v2895
        %v2950 = vadd.f32 %v2934, %v2935
        %v2951 = vadd.f32 %v2950, %v2936
        %v2952 = vadd.f32 %v2951, %v2937
        %v2953 = vadd.f32 %v2952, %v2938
        %v2954 = vadd.f32 %v2953, %v2939
        %v2955 = vadd.f32 %v2954, %v2940
        %v2956 = vadd.f32 %v2955, %v2941
        %v2957 = vadd.f32 %v2956, %v2942
        %v2958 = vadd.f32 %v2957, %v2943
        %v2959 = vadd.f32 %v2958, %v2944
        %v2960 = vadd.f32 %v2959, %v2945
        %v2961 = vadd.f32 %v2960, %v2946
        %v2962 = vadd.f32 %v2961, %v2947
        %v2963 = vadd.f32 %v2962, %v2948
        %v2964 = vadd.f32 %v2963, %v2949
        %v2965 = vrot.slane %v2964, 4
        %v2966 = vadd.f32 %v2964, %v2965
        %v2967 = vrot.slane %v2966, 2
        %v2968 = vadd.f32 %v2966, %v2967
        %v2969 = vrot.slane %v2968, 1
        %v2970 = vadd.f32 %v2968, %v2969
        %v2971 = vadd.f32 %v2970, 0.0
        %v2972 = vld [vmem:[#allocation2 + $0x40] sm:$0xff]
        %v2973 = vld [vmem:[#allocation2 + $0x48] sm:$0xff]
        %v2974 = vld [vmem:[#allocation2 + $0x50] sm:$0xff]
        %v2975 = vld [vmem:[#allocation2 + $0x58] sm:$0xff]
        %v2976 = vld [vmem:[#allocation2 + $0x60] sm:$0xff]
        %v2977 = vld [vmem:[#allocation2 + $0x68] sm:$0xff]
        %v2978 = vld [vmem:[#allocation2 + $0x70] sm:$0xff]
        %v2979 = vld [vmem:[#allocation2 + $0x78] sm:$0xff]
        %v2980 = vld [vmem:[%s1] sm:$0xf]
        %v2981 = vld [vmem:[%s1 + $0x4] sm:$0xf]
        %v2982 = vld [vmem:[%s1 + $0x8] sm:$0xf]
        %v2983 = vld [vmem:[%s1 + $0xc] sm:$0xf]
        %v2984 = vld [vmem:[%s1 + $0x10] sm:$0xf]
        %v2985 = vld [vmem:[%s1 + $0x14] sm:$0xf]
        %v2986 = vld [vmem:[%s1 + $0x18] sm:$0xf]
        %v2987 = vld [vmem:[%s1 + $0x1c] sm:$0xf]
        %v2988 = vld [vmem:[%s1 + $0x20] sm:$0xf]
        %v2989 = vld [vmem:[%s1 + $0x24] sm:$0xf]
        %v2990 = vld [vmem:[%s1 + $0x28] sm:$0xf]
        %v2991 = vld [vmem:[%s1 + $0x2c] sm:$0xf]
        %v2992 = vld [vmem:[%s1 + $0x30] sm:$0xf]
        %v2993 = vld [vmem:[%s1 + $0x34] sm:$0xf]
        %v2994 = vld [vmem:[%s1 + $0x38] sm:$0xf]
        %v2995 = vld [vmem:[%s1 + $0x3c] sm:$0xf]
        %v2996 = vld [vmem:[%s908 + $0x40] sm:$0xff]
        %v2997 = vld [vmem:[%s908 + $0x48] sm:$0xff]
        %v2998 = vld [vmem:[%s908 + $0x50] sm:$0xff]
        %v2999 = vld [vmem:[%s908 + $0x58] sm:$0xff]
        %v3000 = vld [vmem:[%s908 + $0x60] sm:$0xff]
        %v3001 = vld [vmem:[%s908 + $0x68] sm:$0xff]
        %v3002 = vld [vmem:[%s908 + $0x70] sm:$0xff]
        %v3003 = vld [vmem:[%s908 + $0x78] sm:$0xff]
        %v3004 = vld [vmem:[%s1287] sm:$0xf]
        %v3005 = vld [vmem:[%s1287 + $0x4] sm:$0xf]
        %v3006 = vld [vmem:[%s1287 + $0x8] sm:$0xf]
        %v3007 = vld [vmem:[%s1287 + $0xc] sm:$0xf]
        %v3008 = vld [vmem:[%s1287 + $0x10] sm:$0xf]
        %v3009 = vld [vmem:[%s1287 + $0x14] sm:$0xf]
        %v3010 = vld [vmem:[%s1287 + $0x18] sm:$0xf]
        %v3011 = vld [vmem:[%s1287 + $0x1c] sm:$0xf]
        %v3012 = vld [vmem:[%s1287 + $0x20] sm:$0xf]
        %v3013 = vld [vmem:[%s1287 + $0x24] sm:$0xf]
        %v3014 = vld [vmem:[%s1287 + $0x28] sm:$0xf]
        %v3015 = vld [vmem:[%s1287 + $0x2c] sm:$0xf]
        %v3016 = vld [vmem:[%s1287 + $0x30] sm:$0xf]
        %v3017 = vld [vmem:[%s1287 + $0x34] sm:$0xf]
        %v3018 = vld [vmem:[%s1287 + $0x38] sm:$0xf]
        %v3019 = vld [vmem:[%s1287 + $0x3c] sm:$0xf]
        %v3036 = vunpack.c.l.b16 %v3004
        %v3037 = vunpack.c.l.b16 %v3005
        %v3038 = vunpack.c.l.b16 %v3006
        %v3039 = vunpack.c.l.b16 %v3007
        %v3040 = vunpack.c.l.b16 %v3008
        %v3041 = vunpack.c.l.b16 %v3009
        %v3042 = vunpack.c.l.b16 %v3010
        %v3043 = vunpack.c.l.b16 %v3011
        %v3044 = vunpack.c.l.b16 %v3012
        %v3045 = vunpack.c.l.b16 %v3013
        %v3046 = vunpack.c.l.b16 %v3014
        %v3047 = vunpack.c.l.b16 %v3015
        %v3048 = vunpack.c.l.b16 %v3016
        %v3049 = vunpack.c.l.b16 %v3017
        %v3050 = vunpack.c.l.b16 %v3018
        %v3051 = vunpack.c.l.b16 %v3019
        %v3052 = vpack.c.b16 %v3037, %v3036
        %v3053 = vpack.c.b16 %v3039, %v3038
        %v3054 = vpack.c.b16 %v3041, %v3040
        %v3055 = vpack.c.b16 %v3043, %v3042
        %v3056 = vpack.c.b16 %v3045, %v3044
        %v3057 = vpack.c.b16 %v3047, %v3046
        %v3058 = vpack.c.b16 %v3049, %v3048
        %v3059 = vpack.c.b16 %v3051, %v3050
        %3068 = vmatprep.subr.bf16.mxu0 0
        %3069 = vmatpush1.bf16.msra.mxu0 %v3052
        %3070 = vmatprep.subr.bf16.mxu0 0
        %3071 = vmatpush1.bf16.msra.mxu0 %v3053
        %3072 = vmatprep.subr.bf16.mxu0 0
        %3073 = vmatpush1.bf16.msra.mxu0 %v3054
        %3074 = vmatprep.subr.bf16.mxu0 0
        %3075 = vmatpush1.bf16.msra.mxu0 %v3055
        %3076 = vmatprep.subr.bf16.mxu0 0
        %3077 = vmatpush1.bf16.msra.mxu0 %v3056
        %3078 = vmatprep.subr.bf16.mxu0 0
        %3079 = vmatpush1.bf16.msra.mxu0 %v3057
        %3080 = vmatprep.subr.bf16.mxu0 0
        %3081 = vmatpush1.bf16.msra.mxu0 %v3058
        %3082 = vmatprep.subr.bf16.mxu0 0
        %3083 = vmatpush1.bf16.msra.mxu0 %v3059
        %3084 = vmatprep.subr.bf16.mxu0 0
        %3085 = vmatpush1.bf16.msra.mxu0 0
        %3086 = vmatprep.subr.bf16.mxu0 0
        %3087 = vmatpush1.bf16.msra.mxu0 0
        %3088 = vmatprep.subr.bf16.mxu0 0
        %3089 = vmatpush1.bf16.msra.mxu0 0
        %3090 = vmatprep.subr.bf16.mxu0 0
        %3091 = vmatpush1.bf16.msra.mxu0 0
        %3092 = vmatprep.subr.bf16.mxu0 0
        %3093 = vmatpush1.bf16.msra.mxu0 0
        %3094 = vmatprep.subr.bf16.mxu0 0
        %3095 = vmatpush1.bf16.msra.mxu0 0
        %3096 = vmatprep.subr.bf16.mxu0 0
        %3097 = vmatpush1.bf16.msra.mxu0 0
        %3098 = vmatprep.subr.bf16.mxu0 0
        %3099 = vmatpush1.bf16.msra.mxu0 0
        %3100 = vmatprep.mubr.bf16.mxu0 0
        %3101 = vmatmul.mubr.bf16.gmra.mrb[0].mxu0 %v2996
        %v3102 = vpop.f32.mrb[0].mxu0
        %v3103 = vadd.f32 0.0, %v3102
        %v3104 = vpop.f32.mrb[0].mxu0
        %v3105 = vpop.f32.mrb[0].mxu0
        %v3106 = vadd.f32 0.0, %v3105
        %v3107 = vpop.f32.mrb[0].mxu0
        %3108 = vmatprep.mubr.bf16.mxu0 0
        %3109 = vmatmul.mubr.bf16.gmra.mrb[0].mxu0 %v2997
        %v3110 = vpop.f32.mrb[0].mxu0
        %v3111 = vadd.f32 0.0, %v3110
        %v3112 = vpop.f32.mrb[0].mxu0
        %v3113 = vpop.f32.mrb[0].mxu0
        %v3114 = vadd.f32 0.0, %v3113
        %v3115 = vpop.f32.mrb[0].mxu0
        %3116 = vmatprep.mubr.bf16.mxu0 0
        %3117 = vmatmul.mubr.bf16.gmra.mrb[0].mxu0 %v2998
        %v3118 = vpop.f32.mrb[0].mxu0
        %v3119 = vadd.f32 0.0, %v3118
        %v3120 = vpop.f32.mrb[0].mxu0
        %v3121 = vpop.f32.mrb[0].mxu0
        %v3122 = vadd.f32 0.0, %v3121
        %v3123 = vpop.f32.mrb[0].mxu0
        %3124 = vmatprep.mubr.bf16.mxu0 0
        %3125 = vmatmul.mubr.bf16.gmra.mrb[0].mxu0 %v2999
        %v3126 = vpop.f32.mrb[0].mxu0
        %v3127 = vadd.f32 0.0, %v3126
        %v3128 = vpop.f32.mrb[0].mxu0
        %v3129 = vpop.f32.mrb[0].mxu0
        %v3130 = vadd.f32 0.0, %v3129
        %v3131 = vpop.f32.mrb[0].mxu0
        %3132 = vmatprep.mubr.bf16.mxu0 0
        %3133 = vmatmul.mubr.bf16.gmra.mrb[0].mxu0 %v3000
        %v3134 = vpop.f32.mrb[0].mxu0
        %v3135 = vadd.f32 0.0, %v3134
        %v3136 = vpop.f32.mrb[0].mxu0
        %v3137 = vpop.f32.mrb[0].mxu0
        %v3138 = vadd.f32 0.0, %v3137
        %v3139 = vpop.f32.mrb[0].mxu0
        %3140 = vmatprep.mubr.bf16.mxu0 0
        %3141 = vmatmul.mubr.bf16.gmra.mrb[0].mxu0 %v3001
        %v3142 = vpop.f32.mrb[0].mxu0
        %v3143 = vadd.f32 0.0, %v3142
        %v3144 = vpop.f32.mrb[0].mxu0
        %v3145 = vpop.f32.mrb[0].mxu0
        %v3146 = vadd.f32 0.0, %v3145
        %v3147 = vpop.f32.mrb[0].mxu0
        %3148 = vmatprep.mubr.bf16.mxu0 0
        %3149 = vmatmul.mubr.bf16.gmra.mrb[0].mxu0 %v3002
        %v3150 = vpop.f32.mrb[0].mxu0
        %v3151 = vadd.f32 0.0, %v3150
        %v3152 = vpop.f32.mrb[0].mxu0
        %v3153 = vpop.f32.mrb[0].mxu0
        %v3154 = vadd.f32 0.0, %v3153
        %v3155 = vpop.f32.mrb[0].mxu0
        %3156 = vmatprep.mubr.bf16.mxu0 0
        %3157 = vmatmul.mubr.bf16.gmra.mrb[0].mxu0 %v3003
        %v3158 = vpop.f32.mrb[0].mxu0
        %v3159 = vadd.f32 0.0, %v3158
        %v3160 = vpop.f32.mrb[0].mxu0
        %v3161 = vpop.f32.mrb[0].mxu0
        %v3162 = vadd.f32 0.0, %v3161
        %v3163 = vpop.f32.mrb[0].mxu0
        %3164 = vdwg.mxu0
        %v3181 = vunpack.c.l.b16 %v2980
        %v3182 = vunpack.c.l.b16 %v2981
        %v3183 = vunpack.c.l.b16 %v2982
        %v3184 = vunpack.c.l.b16 %v2983
        %v3185 = vunpack.c.l.b16 %v2984
        %v3186 = vunpack.c.l.b16 %v2985
        %v3187 = vunpack.c.l.b16 %v2986
        %v3188 = vunpack.c.l.b16 %v2987
        %v3189 = vunpack.c.l.b16 %v2988
        %v3190 = vunpack.c.l.b16 %v2989
        %v3191 = vunpack.c.l.b16 %v2990
        %v3192 = vunpack.c.l.b16 %v2991
        %v3193 = vunpack.c.l.b16 %v2992
        %v3194 = vunpack.c.l.b16 %v2993
        %v3195 = vunpack.c.l.b16 %v2994
        %v3196 = vunpack.c.l.b16 %v2995
        %v3197 = vpack.c.b16 %v3182, %v3181
        %v3198 = vpack.c.b16 %v3184, %v3183
        %v3199 = vpack.c.b16 %v3186, %v3185
        %v3200 = vpack.c.b16 %v3188, %v3187
        %v3201 = vpack.c.b16 %v3190, %v3189
        %v3202 = vpack.c.b16 %v3192, %v3191
        %v3203 = vpack.c.b16 %v3194, %v3193
        %v3204 = vpack.c.b16 %v3196, %v3195
        %3213 = vmatprep.subr.bf16.mxu0 0
        %3214 = vmatpush1.bf16.msra.mxu0 %v3197
        %3215 = vmatprep.subr.bf16.mxu0 0
        %3216 = vmatpush1.bf16.msra.mxu0 %v3198
        %3217 = vmatprep.subr.bf16.mxu0 0
        %3218 = vmatpush1.bf16.msra.mxu0 %v3199
        %3219 = vmatprep.subr.bf16.mxu0 0
        %3220 = vmatpush1.bf16.msra.mxu0 %v3200
        %3221 = vmatprep.subr.bf16.mxu0 0
        %3222 = vmatpush1.bf16.msra.mxu0 %v3201
        %3223 = vmatprep.subr.bf16.mxu0 0
        %3224 = vmatpush1.bf16.msra.mxu0 %v3202
        %3225 = vmatprep.subr.bf16.mxu0 0
        %3226 = vmatpush1.bf16.msra.mxu0 %v3203
        %3227 = vmatprep.subr.bf16.mxu0 0
        %3228 = vmatpush1.bf16.msra.mxu0 %v3204
        %3229 = vmatprep.subr.bf16.mxu0 0
        %3230 = vmatpush1.bf16.msra.mxu0 0
        %3231 = vmatprep.subr.bf16.mxu0 0
        %3232 = vmatpush1.bf16.msra.mxu0 0
        %3233 = vmatprep.subr.bf16.mxu0 0
        %3234 = vmatpush1.bf16.msra.mxu0 0
        %3235 = vmatprep.subr.bf16.mxu0 0
        %3236 = vmatpush1.bf16.msra.mxu0 0
        %3237 = vmatprep.subr.bf16.mxu0 0
        %3238 = vmatpush1.bf16.msra.mxu0 0
        %3239 = vmatprep.subr.bf16.mxu0 0
        %3240 = vmatpush1.bf16.msra.mxu0 0
        %3241 = vmatprep.subr.bf16.mxu0 0
        %3242 = vmatpush1.bf16.msra.mxu0 0
        %3243 = vmatprep.subr.bf16.mxu0 0
        %3244 = vmatpush1.bf16.msra.mxu0 0
        %3245 = vmatprep.mubr.bf16.mxu0 0
        %3246 = vmatmul.mubr.bf16.gmra.mrb[0].mxu0 %v2972
        %v3247 = vpop.f32.mrb[0].mxu0
        %v3248 = vadd.f32 %v3103, %v3247
        %v3249 = vpop.f32.mrb[0].mxu0
        %v3250 = vpop.f32.mrb[0].mxu0
        %v3251 = vadd.f32 %v3106, %v3250
        %v3252 = vpop.f32.mrb[0].mxu0
        %3253 = vmatprep.mubr.bf16.mxu0 0
        %3254 = vmatmul.mubr.bf16.gmra.mrb[0].mxu0 %v2973
        %v3255 = vpop.f32.mrb[0].mxu0
        %v3256 = vadd.f32 %v3111, %v3255
        %v3257 = vpop.f32.mrb[0].mxu0
        %v3258 = vpop.f32.mrb[0].mxu0
        %v3259 = vadd.f32 %v3114, %v3258
        %v3260 = vpop.f32.mrb[0].mxu0
        %3261 = vmatprep.mubr.bf16.mxu0 0
        %3262 = vmatmul.mubr.bf16.gmra.mrb[0].mxu0 %v2974
        %v3263 = vpop.f32.mrb[0].mxu0
        %v3264 = vadd.f32 %v3119, %v3263
        %v3265 = vpop.f32.mrb[0].mxu0
        %v3266 = vpop.f32.mrb[0].mxu0
        %v3267 = vadd.f32 %v3122, %v3266
        %v3268 = vpop.f32.mrb[0].mxu0
        %3269 = vmatprep.mubr.bf16.mxu0 0
        %3270 = vmatmul.mubr.bf16.gmra.mrb[0].mxu0 %v2975
        %v3271 = vpop.f32.mrb[0].mxu0
        %v3272 = vadd.f32 %v3127, %v3271
        %v3273 = vpop.f32.mrb[0].mxu0
        %v3274 = vpop.f32.mrb[0].mxu0
        %v3275 = vadd.f32 %v3130, %v3274
        %v3276 = vpop.f32.mrb[0].mxu0
        %3277 = vmatprep.mubr.bf16.mxu0 0
        %3278 = vmatmul.mubr.bf16.gmra.mrb[0].mxu0 %v2976
        %v3279 = vpop.f32.mrb[0].mxu0
        %v3280 = vadd.f32 %v3135, %v3279
        %v3281 = vpop.f32.mrb[0].mxu0
        %v3282 = vpop.f32.mrb[0].mxu0
        %v3283 = vadd.f32 %v3138, %v3282
        %v3284 = vpop.f32.mrb[0].mxu0
        %3285 = vmatprep.mubr.bf16.mxu0 0
        %3286 = vmatmul.mubr.bf16.gmra.mrb[0].mxu0 %v2977
        %v3287 = vpop.f32.mrb[0].mxu0
        %v3288 = vadd.f32 %v3143, %v3287
        %v3289 = vpop.f32.mrb[0].mxu0
        %v3290 = vpop.f32.mrb[0].mxu0
        %v3291 = vadd.f32 %v3146, %v3290
        %v3292 = vpop.f32.mrb[0].mxu0
        %3293 = vmatprep.mubr.bf16.mxu0 0
        %3294 = vmatmul.mubr.bf16.gmra.mrb[0].mxu0 %v2978
        %v3295 = vpop.f32.mrb[0].mxu0
        %v3296 = vadd.f32 %v3151, %v3295
        %v3297 = vpop.f32.mrb[0].mxu0
        %v3298 = vpop.f32.mrb[0].mxu0
        %v3299 = vadd.f32 %v3154, %v3298
        %v3300 = vpop.f32.mrb[0].mxu0
        %3301 = vmatprep.mubr.bf16.mxu0 0
        %3302 = vmatmul.mubr.bf16.gmra.mrb[0].mxu0 %v2979
        %v3303 = vpop.f32.mrb[0].mxu0
        %v3304 = vadd.f32 %v3159, %v3303
        %v3305 = vpop.f32.mrb[0].mxu0
        %v3306 = vpop.f32.mrb[0].mxu0
        %v3307 = vadd.f32 %v3162, %v3306
        %v3308 = vpop.f32.mrb[0].mxu0
        %3309 = vdwg.mxu0
        %v3310 = vld [vmem:[%s1236 + $0x40] sm:$0xff]
        %v3311 = vld [vmem:[%s1236 + $0x48] sm:$0xff]
        %v3312 = vld [vmem:[%s1236 + $0x50] sm:$0xff]
        %v3313 = vld [vmem:[%s1236 + $0x58] sm:$0xff]
        %v3314 = vld [vmem:[%s1236 + $0x60] sm:$0xff]
        %v3315 = vld [vmem:[%s1236 + $0x68] sm:$0xff]
        %v3316 = vld [vmem:[%s1236 + $0x70] sm:$0xff]
        %v3317 = vld [vmem:[%s1236 + $0x78] sm:$0xff]
        %v3318 = vld [vmem:[%s1602] sm:$0xf]
        %v3319 = vld [vmem:[%s1602 + $0x4] sm:$0xf]
        %v3320 = vld [vmem:[%s1602 + $0x8] sm:$0xf]
        %v3321 = vld [vmem:[%s1602 + $0xc] sm:$0xf]
        %v3322 = vld [vmem:[%s1602 + $0x10] sm:$0xf]
        %v3323 = vld [vmem:[%s1602 + $0x14] sm:$0xf]
        %v3324 = vld [vmem:[%s1602 + $0x18] sm:$0xf]
        %v3325 = vld [vmem:[%s1602 + $0x1c] sm:$0xf]
        %v3326 = vld [vmem:[%s1602 + $0x20] sm:$0xf]
        %v3327 = vld [vmem:[%s1602 + $0x24] sm:$0xf]
        %v3328 = vld [vmem:[%s1602 + $0x28] sm:$0xf]
        %v3329 = vld [vmem:[%s1602 + $0x2c] sm:$0xf]
        %v3330 = vld [vmem:[%s1602 + $0x30] sm:$0xf]
        %v3331 = vld [vmem:[%s1602 + $0x34] sm:$0xf]
        %v3332 = vld [vmem:[%s1602 + $0x38] sm:$0xf]
        %v3333 = vld [vmem:[%s1602 + $0x3c] sm:$0xf]
        %v3350 = vunpack.c.l.b16 %v3318
        %v3351 = vunpack.c.l.b16 %v3319
        %v3352 = vunpack.c.l.b16 %v3320
        %v3353 = vunpack.c.l.b16 %v3321
        %v3354 = vunpack.c.l.b16 %v3322
        %v3355 = vunpack.c.l.b16 %v3323
        %v3356 = vunpack.c.l.b16 %v3324
        %v3357 = vunpack.c.l.b16 %v3325
        %v3358 = vunpack.c.l.b16 %v3326
        %v3359 = vunpack.c.l.b16 %v3327
        %v3360 = vunpack.c.l.b16 %v3328
        %v3361 = vunpack.c.l.b16 %v3329
        %v3362 = vunpack.c.l.b16 %v3330
        %v3363 = vunpack.c.l.b16 %v3331
        %v3364 = vunpack.c.l.b16 %v3332
        %v3365 = vunpack.c.l.b16 %v3333
        %v3366 = vpack.c.b16 %v3351, %v3350
        %v3367 = vpack.c.b16 %v3353, %v3352
        %v3368 = vpack.c.b16 %v3355, %v3354
        %v3369 = vpack.c.b16 %v3357, %v3356
        %v3370 = vpack.c.b16 %v3359, %v3358
        %v3371 = vpack.c.b16 %v3361, %v3360
        %v3372 = vpack.c.b16 %v3363, %v3362
        %v3373 = vpack.c.b16 %v3365, %v3364
        %3382 = vmatprep.subr.bf16.mxu0 0
        %3383 = vmatpush1.bf16.msra.mxu0 %v3366
        %3384 = vmatprep.subr.bf16.mxu0 0
        %3385 = vmatpush1.bf16.msra.mxu0 %v3367
        %3386 = vmatprep.subr.bf16.mxu0 0
        %3387 = vmatpush1.bf16.msra.mxu0 %v3368
        %3388 = vmatprep.subr.bf16.mxu0 0
        %3389 = vmatpush1.bf16.msra.mxu0 %v3369
        %3390 = vmatprep.subr.bf16.mxu0 0
        %3391 = vmatpush1.bf16.msra.mxu0 %v3370
        %3392 = vmatprep.subr.bf16.mxu0 0
        %3393 = vmatpush1.bf16.msra.mxu0 %v3371
        %3394 = vmatprep.subr.bf16.mxu0 0
        %3395 = vmatpush1.bf16.msra.mxu0 %v3372
        %3396 = vmatprep.subr.bf16.mxu0 0
        %3397 = vmatpush1.bf16.msra.mxu0 %v3373
        %3398 = vmatprep.subr.bf16.mxu0 0
        %3399 = vmatpush1.bf16.msra.mxu0 0
        %3400 = vmatprep.subr.bf16.mxu0 0
        %3401 = vmatpush1.bf16.msra.mxu0 0
        %3402 = vmatprep.subr.bf16.mxu0 0
        %3403 = vmatpush1.bf16.msra.mxu0 0
        %3404 = vmatprep.subr.bf16.mxu0 0
        %3405 = vmatpush1.bf16.msra.mxu0 0
        %3406 = vmatprep.subr.bf16.mxu0 0
        %3407 = vmatpush1.bf16.msra.mxu0 0
        %3408 = vmatprep.subr.bf16.mxu0 0
        %3409 = vmatpush1.bf16.msra.mxu0 0
        %3410 = vmatprep.subr.bf16.mxu0 0
        %3411 = vmatpush1.bf16.msra.mxu0 0
        %3412 = vmatprep.subr.bf16.mxu0 0
        %3413 = vmatpush1.bf16.msra.mxu0 0
        %3414 = vmatprep.mubr.bf16.mxu0 0
        %3415 = vmatmul.mubr.bf16.gmra.mrb[0].mxu0 %v3310
        %v3416 = vpop.f32.mrb[0].mxu0
        %v3417 = vadd.f32 0.0, %v3416
        %v3418 = vpop.f32.mrb[0].mxu0
        %v3419 = vpop.f32.mrb[0].mxu0
        %v3420 = vadd.f32 0.0, %v3419
        %v3421 = vpop.f32.mrb[0].mxu0
        %3422 = vmatprep.mubr.bf16.mxu0 0
        %3423 = vmatmul.mubr.bf16.gmra.mrb[0].mxu0 %v3311
        %v3424 = vpop.f32.mrb[0].mxu0
        %v3425 = vadd.f32 0.0, %v3424
        %v3426 = vpop.f32.mrb[0].mxu0
        %v3427 = vpop.f32.mrb[0].mxu0
        %v3428 = vadd.f32 0.0, %v3427
        %v3429 = vpop.f32.mrb[0].mxu0
        %3430 = vmatprep.mubr.bf16.mxu0 0
        %3431 = vmatmul.mubr.bf16.gmra.mrb[0].mxu0 %v3312
        %v3432 = vpop.f32.mrb[0].mxu0
        %v3433 = vadd.f32 0.0, %v3432
        %v3434 = vpop.f32.mrb[0].mxu0
        %v3435 = vpop.f32.mrb[0].mxu0
        %v3436 = vadd.f32 0.0, %v3435
        %v3437 = vpop.f32.mrb[0].mxu0
        %3438 = vmatprep.mubr.bf16.mxu0 0
        %3439 = vmatmul.mubr.bf16.gmra.mrb[0].mxu0 %v3313
        %v3440 = vpop.f32.mrb[0].mxu0
        %v3441 = vadd.f32 0.0, %v3440
        %v3442 = vpop.f32.mrb[0].mxu0
        %v3443 = vpop.f32.mrb[0].mxu0
        %v3444 = vadd.f32 0.0, %v3443
        %v3445 = vpop.f32.mrb[0].mxu0
        %3446 = vmatprep.mubr.bf16.mxu0 0
        %3447 = vmatmul.mubr.bf16.gmra.mrb[0].mxu0 %v3314
        %v3448 = vpop.f32.mrb[0].mxu0
        %v3449 = vadd.f32 0.0, %v3448
        %v3450 = vpop.f32.mrb[0].mxu0
        %v3451 = vpop.f32.mrb[0].mxu0
        %v3452 = vadd.f32 0.0, %v3451
        %v3453 = vpop.f32.mrb[0].mxu0
        %3454 = vmatprep.mubr.bf16.mxu0 0
        %3455 = vmatmul.mubr.bf16.gmra.mrb[0].mxu0 %v3315
        %v3456 = vpop.f32.mrb[0].mxu0
        %v3457 = vadd.f32 0.0, %v3456
        %v3458 = vpop.f32.mrb[0].mxu0
        %v3459 = vpop.f32.mrb[0].mxu0
        %v3460 = vadd.f32 0.0, %v3459
        %v3461 = vpop.f32.mrb[0].mxu0
        %3462 = vmatprep.mubr.bf16.mxu0 0
        %3463 = vmatmul.mubr.bf16.gmra.mrb[0].mxu0 %v3316
        %v3464 = vpop.f32.mrb[0].mxu0
        %v3465 = vadd.f32 0.0, %v3464
        %v3466 = vpop.f32.mrb[0].mxu0
        %v3467 = vpop.f32.mrb[0].mxu0
        %v3468 = vadd.f32 0.0, %v3467
        %v3469 = vpop.f32.mrb[0].mxu0
        %3470 = vmatprep.mubr.bf16.mxu0 0
        %3471 = vmatmul.mubr.bf16.gmra.mrb[0].mxu0 %v3317
        %v3472 = vpop.f32.mrb[0].mxu0
        %v3473 = vadd.f32 0.0, %v3472
        %v3474 = vpop.f32.mrb[0].mxu0
        %v3475 = vpop.f32.mrb[0].mxu0
        %v3476 = vadd.f32 0.0, %v3475
        %v3477 = vpop.f32.mrb[0].mxu0
        %3478 = vdwg.mxu0
        %v3479 = vadd.f32 %v3248, %v3417
        %v3480 = vadd.f32 %v3251, %v3420
        %v3481 = vadd.f32 %v3256, %v3425
        %v3482 = vadd.f32 %v3259, %v3428
        %v3483 = vadd.f32 %v3264, %v3433
        %v3484 = vadd.f32 %v3267, %v3436
        %v3485 = vadd.f32 %v3272, %v3441
        %v3486 = vadd.f32 %v3275, %v3444
        %v3487 = vadd.f32 %v3280, %v3449
        %v3488 = vadd.f32 %v3283, %v3452
        %v3489 = vadd.f32 %v3288, %v3457
        %v3490 = vadd.f32 %v3291, %v3460
        %v3491 = vadd.f32 %v3296, %v3465
        %v3492 = vadd.f32 %v3299, %v3468
        %v3493 = vadd.f32 %v3304, %v3473
        %v3494 = vadd.f32 %v3307, %v3476
        %v3495 = vld [vmem:[#allocation2 + $0x48] sm:$0xff]
        %v3496 = vld [vmem:[#allocation2 + $0x50] sm:$0xff]
        %v3497 = vld [vmem:[#allocation2 + $0x58] sm:$0xff]
        %v3498 = vld [vmem:[#allocation2 + $0x60] sm:$0xff]
        %v3499 = vld [vmem:[#allocation2 + $0x68] sm:$0xff]
        %v3500 = vld [vmem:[#allocation2 + $0x70] sm:$0xff]
        %v3501 = vld [vmem:[#allocation2 + $0x78] sm:$0xff]
        %v3502 = vld [vmem:[#allocation2 + $0x80] sm:$0xff]
        %v3503 = vld [vmem:[%s1788] sm:$0xf]
        %v3504 = vld [vmem:[%s1788 + $0x4] sm:$0xf]
        %v3505 = vld [vmem:[%s1788 + $0x8] sm:$0xf]
        %v3506 = vld [vmem:[%s1788 + $0xc] sm:$0xf]
        %v3507 = vld [vmem:[%s1788 + $0x10] sm:$0xf]
        %v3508 = vld [vmem:[%s1788 + $0x14] sm:$0xf]
        %v3509 = vld [vmem:[%s1788 + $0x18] sm:$0xf]
        %v3510 = vld [vmem:[%s1788 + $0x1c] sm:$0xf]
        %v3511 = vld [vmem:[%s1788 + $0x20] sm:$0xf]
        %v3512 = vld [vmem:[%s1788 + $0x24] sm:$0xf]
        %v3513 = vld [vmem:[%s1788 + $0x28] sm:$0xf]
        %v3514 = vld [vmem:[%s1788 + $0x2c] sm:$0xf]
        %v3515 = vld [vmem:[%s1788 + $0x30] sm:$0xf]
        %v3516 = vld [vmem:[%s1788 + $0x34] sm:$0xf]
        %v3517 = vld [vmem:[%s1788 + $0x38] sm:$0xf]
        %v3518 = vld [vmem:[%s1788 + $0x3c] sm:$0xf]
        %v3535 = vunpack.c.l.b16 %v3503
        %v3536 = vunpack.c.l.b16 %v3504
        %v3537 = vunpack.c.l.b16 %v3505
        %v3538 = vunpack.c.l.b16 %v3506
        %v3539 = vunpack.c.l.b16 %v3507
        %v3540 = vunpack.c.l.b16 %v3508
        %v3541 = vunpack.c.l.b16 %v3509
        %v3542 = vunpack.c.l.b16 %v3510
        %v3543 = vunpack.c.l.b16 %v3511
        %v3544 = vunpack.c.l.b16 %v3512
        %v3545 = vunpack.c.l.b16 %v3513
        %v3546 = vunpack.c.l.b16 %v3514
        %v3547 = vunpack.c.l.b16 %v3515
        %v3548 = vunpack.c.l.b16 %v3516
        %v3549 = vunpack.c.l.b16 %v3517
        %v3550 = vunpack.c.l.b16 %v3518
        %v3551 = vpack.c.b16 %v3536, %v3535
        %v3552 = vpack.c.b16 %v3538, %v3537
        %v3553 = vpack.c.b16 %v3540, %v3539
        %v3554 = vpack.c.b16 %v3542, %v3541
        %v3555 = vpack.c.b16 %v3544, %v3543
        %v3556 = vpack.c.b16 %v3546, %v3545
        %v3557 = vpack.c.b16 %v3548, %v3547
        %v3558 = vpack.c.b16 %v3550, %v3549
        %3567 = vmatprep.subr.bf16.mxu0 0
        %3568 = vmatpush1.bf16.msra.mxu0 %v3551
        %3569 = vmatprep.subr.bf16.mxu0 0
        %3570 = vmatpush1.bf16.msra.mxu0 %v3552
        %3571 = vmatprep.subr.bf16.mxu0 0
        %3572 = vmatpush1.bf16.msra.mxu0 %v3553
        %3573 = vmatprep.subr.bf16.mxu0 0
        %3574 = vmatpush1.bf16.msra.mxu0 %v3554
        %3575 = vmatprep.subr.bf16.mxu0 0
        %3576 = vmatpush1.bf16.msra.mxu0 %v3555
        %3577 = vmatprep.subr.bf16.mxu0 0
        %3578 = vmatpush1.bf16.msra.mxu0 %v3556
        %3579 = vmatprep.subr.bf16.mxu0 0
        %3580 = vmatpush1.bf16.msra.mxu0 %v3557
        %3581 = vmatprep.subr.bf16.mxu0 0
        %3582 = vmatpush1.bf16.msra.mxu0 %v3558
        %3583 = vmatprep.subr.bf16.mxu0 0
        %3584 = vmatpush1.bf16.msra.mxu0 0
        %3585 = vmatprep.subr.bf16.mxu0 0
        %3586 = vmatpush1.bf16.msra.mxu0 0
        %3587 = vmatprep.subr.bf16.mxu0 0
        %3588 = vmatpush1.bf16.msra.mxu0 0
        %3589 = vmatprep.subr.bf16.mxu0 0
        %3590 = vmatpush1.bf16.msra.mxu0 0
        %3591 = vmatprep.subr.bf16.mxu0 0
        %3592 = vmatpush1.bf16.msra.mxu0 0
        %3593 = vmatprep.subr.bf16.mxu0 0
        %3594 = vmatpush1.bf16.msra.mxu0 0
        %3595 = vmatprep.subr.bf16.mxu0 0
        %3596 = vmatpush1.bf16.msra.mxu0 0
        %3597 = vmatprep.subr.bf16.mxu0 0
        %3598 = vmatpush1.bf16.msra.mxu0 0
        %3599 = vmatprep.mubr.bf16.mxu0 0
        %3600 = vmatmul.mubr.bf16.gmra.mrb[0].mxu0 %v3495
        %v3601 = vpop.f32.mrb[0].mxu0
        %v3602 = vadd.f32 0.0, %v3601
        %v3603 = vpop.f32.mrb[0].mxu0
        %v3604 = vpop.f32.mrb[0].mxu0
        %v3605 = vadd.f32 0.0, %v3604
        %v3606 = vpop.f32.mrb[0].mxu0
        %3607 = vmatprep.mubr.bf16.mxu0 0
        %3608 = vmatmul.mubr.bf16.gmra.mrb[0].mxu0 %v3496
        %v3609 = vpop.f32.mrb[0].mxu0
        %v3610 = vadd.f32 0.0, %v3609
        %v3611 = vpop.f32.mrb[0].mxu0
        %v3612 = vpop.f32.mrb[0].mxu0
        %v3613 = vadd.f32 0.0, %v3612
        %v3614 = vpop.f32.mrb[0].mxu0
        %3615 = vmatprep.mubr.bf16.mxu0 0
        %3616 = vmatmul.mubr.bf16.gmra.mrb[0].mxu0 %v3497
        %v3617 = vpop.f32.mrb[0].mxu0
        %v3618 = vadd.f32 0.0, %v3617
        %v3619 = vpop.f32.mrb[0].mxu0
        %v3620 = vpop.f32.mrb[0].mxu0
        %v3621 = vadd.f32 0.0, %v3620
        %v3622 = vpop.f32.mrb[0].mxu0
        %3623 = vmatprep.mubr.bf16.mxu0 0
        %3624 = vmatmul.mubr.bf16.gmra.mrb[0].mxu0 %v3498
        %v3625 = vpop.f32.mrb[0].mxu0
        %v3626 = vadd.f32 0.0, %v3625
        %v3627 = vpop.f32.mrb[0].mxu0
        %v3628 = vpop.f32.mrb[0].mxu0
        %v3629 = vadd.f32 0.0, %v3628
        %v3630 = vpop.f32.mrb[0].mxu0
        %3631 = vmatprep.mubr.bf16.mxu0 0
        %3632 = vmatmul.mubr.bf16.gmra.mrb[0].mxu0 %v3499
        %v3633 = vpop.f32.mrb[0].mxu0
        %v3634 = vadd.f32 0.0, %v3633
        %v3635 = vpop.f32.mrb[0].mxu0
        %v3636 = vpop.f32.mrb[0].mxu0
        %v3637 = vadd.f32 0.0, %v3636
        %v3638 = vpop.f32.mrb[0].mxu0
        %3639 = vmatprep.mubr.bf16.mxu0 0
        %3640 = vmatmul.mubr.bf16.gmra.mrb[0].mxu0 %v3500
        %v3641 = vpop.f32.mrb[0].mxu0
        %v3642 = vadd.f32 0.0, %v3641
        %v3643 = vpop.f32.mrb[0].mxu0
        %v3644 = vpop.f32.mrb[0].mxu0
        %v3645 = vadd.f32 0.0, %v3644
        %v3646 = vpop.f32.mrb[0].mxu0
        %3647 = vmatprep.mubr.bf16.mxu0 0
        %3648 = vmatmul.mubr.bf16.gmra.mrb[0].mxu0 %v3501
        %v3649 = vpop.f32.mrb[0].mxu0
        %v3650 = vadd.f32 0.0, %v3649
        %v3651 = vpop.f32.mrb[0].mxu0
        %v3652 = vpop.f32.mrb[0].mxu0
        %v3653 = vadd.f32 0.0, %v3652
        %v3654 = vpop.f32.mrb[0].mxu0
        %3655 = vmatprep.mubr.bf16.mxu0 0
        %3656 = vmatmul.mubr.bf16.gmra.mrb[0].mxu0 %v3502
        %v3657 = vpop.f32.mrb[0].mxu0
        %v3658 = vadd.f32 0.0, %v3657
        %v3659 = vpop.f32.mrb[0].mxu0
        %v3660 = vpop.f32.mrb[0].mxu0
        %v3661 = vadd.f32 0.0, %v3660
        %v3662 = vpop.f32.mrb[0].mxu0
        %3663 = vdwg.mxu0
        %v3664 = vadd.f32 %v3479, %v3602
        %v3665 = vadd.f32 %v3480, %v3605
        %v3666 = vadd.f32 %v3481, %v3610
        %v3667 = vadd.f32 %v3482, %v3613
        %v3668 = vadd.f32 %v3483, %v3618
        %v3669 = vadd.f32 %v3484, %v3621
        %v3670 = vadd.f32 %v3485, %v3626
        %v3671 = vadd.f32 %v3486, %v3629
        %v3672 = vadd.f32 %v3487, %v3634
        %v3673 = vadd.f32 %v3488, %v3637
        %v3674 = vadd.f32 %v3489, %v3642
        %v3675 = vadd.f32 %v3490, %v3645
        %v3676 = vadd.f32 %v3491, %v3650
        %v3677 = vadd.f32 %v3492, %v3653
        %v3678 = vadd.f32 %v3493, %v3658
        %v3679 = vadd.f32 %v3494, %v3661
        %v3680 = vld [vmem:[%s908 + $0x48] sm:$0xff]
        %v3681 = vld [vmem:[%s908 + $0x50] sm:$0xff]
        %v3682 = vld [vmem:[%s908 + $0x58] sm:$0xff]
        %v3683 = vld [vmem:[%s908 + $0x60] sm:$0xff]
        %v3684 = vld [vmem:[%s908 + $0x68] sm:$0xff]
        %v3685 = vld [vmem:[%s908 + $0x70] sm:$0xff]
        %v3686 = vld [vmem:[%s908 + $0x78] sm:$0xff]
        %v3687 = vld [vmem:[%s908 + $0x80] sm:$0xff]
        %v3688 = vld [vmem:[%s1974] sm:$0xf]
        %v3689 = vld [vmem:[%s1974 + $0x4] sm:$0xf]
        %v3690 = vld [vmem:[%s1974 + $0x8] sm:$0xf]
        %v3691 = vld [vmem:[%s1974 + $0xc] sm:$0xf]
        %v3692 = vld [vmem:[%s1974 + $0x10] sm:$0xf]
        %v3693 = vld [vmem:[%s1974 + $0x14] sm:$0xf]
        %v3694 = vld [vmem:[%s1974 + $0x18] sm:$0xf]
        %v3695 = vld [vmem:[%s1974 + $0x1c] sm:$0xf]
        %v3696 = vld [vmem:[%s1974 + $0x20] sm:$0xf]
        %v3697 = vld [vmem:[%s1974 + $0x24] sm:$0xf]
        %v3698 = vld [vmem:[%s1974 + $0x28] sm:$0xf]
        %v3699 = vld [vmem:[%s1974 + $0x2c] sm:$0xf]
        %v3700 = vld [vmem:[%s1974 + $0x30] sm:$0xf]
        %v3701 = vld [vmem:[%s1974 + $0x34] sm:$0xf]
        %v3702 = vld [vmem:[%s1974 + $0x38] sm:$0xf]
        %v3703 = vld [vmem:[%s1974 + $0x3c] sm:$0xf]
        %v3720 = vunpack.c.l.b16 %v3688
        %v3721 = vunpack.c.l.b16 %v3689
        %v3722 = vunpack.c.l.b16 %v3690
        %v3723 = vunpack.c.l.b16 %v3691
        %v3724 = vunpack.c.l.b16 %v3692
        %v3725 = vunpack.c.l.b16 %v3693
        %v3726 = vunpack.c.l.b16 %v3694
        %v3727 = vunpack.c.l.b16 %v3695
        %v3728 = vunpack.c.l.b16 %v3696
        %v3729 = vunpack.c.l.b16 %v3697
        %v3730 = vunpack.c.l.b16 %v3698
        %v3731 = vunpack.c.l.b16 %v3699
        %v3732 = vunpack.c.l.b16 %v3700
        %v3733 = vunpack.c.l.b16 %v3701
        %v3734 = vunpack.c.l.b16 %v3702
        %v3735 = vunpack.c.l.b16 %v3703
        %v3736 = vpack.c.b16 %v3721, %v3720
        %v3737 = vpack.c.b16 %v3723, %v3722
        %v3738 = vpack.c.b16 %v3725, %v3724
        %v3739 = vpack.c.b16 %v3727, %v3726
        %v3740 = vpack.c.b16 %v3729, %v3728
        %v3741 = vpack.c.b16 %v3731, %v3730
        %v3742 = vpack.c.b16 %v3733, %v3732
        %v3743 = vpack.c.b16 %v3735, %v3734
        %3752 = vmatprep.subr.bf16.mxu0 0
        %3753 = vmatpush1.bf16.msra.mxu0 %v3736
        %3754 = vmatprep.subr.bf16.mxu0 0
        %3755 = vmatpush1.bf16.msra.mxu0 %v3737
        %3756 = vmatprep.subr.bf16.mxu0 0
        %3757 = vmatpush1.bf16.msra.mxu0 %v3738
        %3758 = vmatprep.subr.bf16.mxu0 0
        %3759 = vmatpush1.bf16.msra.mxu0 %v3739
        %3760 = vmatprep.subr.bf16.mxu0 0
        %3761 = vmatpush1.bf16.msra.mxu0 %v3740
        %3762 = vmatprep.subr.bf16.mxu0 0
        %3763 = vmatpush1.bf16.msra.mxu0 %v3741
        %3764 = vmatprep.subr.bf16.mxu0 0
        %3765 = vmatpush1.bf16.msra.mxu0 %v3742
        %3766 = vmatprep.subr.bf16.mxu0 0
        %3767 = vmatpush1.bf16.msra.mxu0 %v3743
        %3768 = vmatprep.subr.bf16.mxu0 0
        %3769 = vmatpush1.bf16.msra.mxu0 0
        %3770 = vmatprep.subr.bf16.mxu0 0
        %3771 = vmatpush1.bf16.msra.mxu0 0
        %3772 = vmatprep.subr.bf16.mxu0 0
        %3773 = vmatpush1.bf16.msra.mxu0 0
        %3774 = vmatprep.subr.bf16.mxu0 0
        %3775 = vmatpush1.bf16.msra.mxu0 0
        %3776 = vmatprep.subr.bf16.mxu0 0
        %3777 = vmatpush1.bf16.msra.mxu0 0
        %3778 = vmatprep.subr.bf16.mxu0 0
        %3779 = vmatpush1.bf16.msra.mxu0 0
        %3780 = vmatprep.subr.bf16.mxu0 0
        %3781 = vmatpush1.bf16.msra.mxu0 0
        %3782 = vmatprep.subr.bf16.mxu0 0
        %3783 = vmatpush1.bf16.msra.mxu0 0
        %3784 = vmatprep.mubr.bf16.mxu0 0
        %3785 = vmatmul.mubr.bf16.gmra.mrb[0].mxu0 %v3680
        %v3786 = vpop.f32.mrb[0].mxu0
        %v3787 = vadd.f32 0.0, %v3786
        %v3788 = vpop.f32.mrb[0].mxu0
        %v3789 = vpop.f32.mrb[0].mxu0
        %v3790 = vadd.f32 0.0, %v3789
        %v3791 = vpop.f32.mrb[0].mxu0
        %3792 = vmatprep.mubr.bf16.mxu0 0
        %3793 = vmatmul.mubr.bf16.gmra.mrb[0].mxu0 %v3681
        %v3794 = vpop.f32.mrb[0].mxu0
        %v3795 = vadd.f32 0.0, %v3794
        %v3796 = vpop.f32.mrb[0].mxu0
        %v3797 = vpop.f32.mrb[0].mxu0
        %v3798 = vadd.f32 0.0, %v3797
        %v3799 = vpop.f32.mrb[0].mxu0
        %3800 = vmatprep.mubr.bf16.mxu0 0
        %3801 = vmatmul.mubr.bf16.gmra.mrb[0].mxu0 %v3682
        %v3802 = vpop.f32.mrb[0].mxu0
        %v3803 = vadd.f32 0.0, %v3802
        %v3804 = vpop.f32.mrb[0].mxu0
        %v3805 = vpop.f32.mrb[0].mxu0
        %v3806 = vadd.f32 0.0, %v3805
        %v3807 = vpop.f32.mrb[0].mxu0
        %3808 = vmatprep.mubr.bf16.mxu0 0
        %3809 = vmatmul.mubr.bf16.gmra.mrb[0].mxu0 %v3683
        %v3810 = vpop.f32.mrb[0].mxu0
        %v3811 = vadd.f32 0.0, %v3810
        %v3812 = vpop.f32.mrb[0].mxu0
        %v3813 = vpop.f32.mrb[0].mxu0
        %v3814 = vadd.f32 0.0, %v3813
        %v3815 = vpop.f32.mrb[0].mxu0
        %3816 = vmatprep.mubr.bf16.mxu0 0
        %3817 = vmatmul.mubr.bf16.gmra.mrb[0].mxu0 %v3684
        %v3818 = vpop.f32.mrb[0].mxu0
        %v3819 = vadd.f32 0.0, %v3818
        %v3820 = vpop.f32.mrb[0].mxu0
        %v3821 = vpop.f32.mrb[0].mxu0
        %v3822 = vadd.f32 0.0, %v3821
        %v3823 = vpop.f32.mrb[0].mxu0
        %3824 = vmatprep.mubr.bf16.mxu0 0
        %3825 = vmatmul.mubr.bf16.gmra.mrb[0].mxu0 %v3685
        %v3826 = vpop.f32.mrb[0].mxu0
        %v3827 = vadd.f32 0.0, %v3826
        %v3828 = vpop.f32.mrb[0].mxu0
        %v3829 = vpop.f32.mrb[0].mxu0
        %v3830 = vadd.f32 0.0, %v3829
        %v3831 = vpop.f32.mrb[0].mxu0
        %3832 = vmatprep.mubr.bf16.mxu0 0
        %3833 = vmatmul.mubr.bf16.gmra.mrb[0].mxu0 %v3686
        %v3834 = vpop.f32.mrb[0].mxu0
        %v3835 = vadd.f32 0.0, %v3834
        %v3836 = vpop.f32.mrb[0].mxu0
        %v3837 = vpop.f32.mrb[0].mxu0
        %v3838 = vadd.f32 0.0, %v3837
        %v3839 = vpop.f32.mrb[0].mxu0
        %3840 = vmatprep.mubr.bf16.mxu0 0
        %3841 = vmatmul.mubr.bf16.gmra.mrb[0].mxu0 %v3687
        %v3842 = vpop.f32.mrb[0].mxu0
        %v3843 = vadd.f32 0.0, %v3842
        %v3844 = vpop.f32.mrb[0].mxu0
        %v3845 = vpop.f32.mrb[0].mxu0
        %v3846 = vadd.f32 0.0, %v3845
        %v3847 = vpop.f32.mrb[0].mxu0
        %3848 = vdwg.mxu0
        %v3849 = vadd.f32 %v3664, %v3787
        %v3850 = vadd.f32 %v3665, %v3790
        %v3851 = vadd.f32 %v3666, %v3795
        %v3852 = vadd.f32 %v3667, %v3798
        %v3853 = vadd.f32 %v3668, %v3803
        %v3854 = vadd.f32 %v3669, %v3806
        %v3855 = vadd.f32 %v3670, %v3811
        %v3856 = vadd.f32 %v3671, %v3814
        %v3857 = vadd.f32 %v3672, %v3819
        %v3858 = vadd.f32 %v3673, %v3822
        %v3859 = vadd.f32 %v3674, %v3827
        %v3860 = vadd.f32 %v3675, %v3830
        %v3861 = vadd.f32 %v3676, %v3835
        %v3862 = vadd.f32 %v3677, %v3838
        %v3863 = vadd.f32 %v3678, %v3843
        %v3864 = vadd.f32 %v3679, %v3846
        %v3865 = vld [vmem:[%s1236 + $0x48] sm:$0xff]
        %v3866 = vld [vmem:[%s1236 + $0x50] sm:$0xff]
        %v3867 = vld [vmem:[%s1236 + $0x58] sm:$0xff]
        %v3868 = vld [vmem:[%s1236 + $0x60] sm:$0xff]
        %v3869 = vld [vmem:[%s1236 + $0x68] sm:$0xff]
        %v3870 = vld [vmem:[%s1236 + $0x70] sm:$0xff]
        %v3871 = vld [vmem:[%s1236 + $0x78] sm:$0xff]
        %v3872 = vld [vmem:[%s1236 + $0x80] sm:$0xff]
        %v3873 = vld [vmem:[%s2160] sm:$0xf]
        %v3874 = vld [vmem:[%s2160 + $0x4] sm:$0xf]
        %v3875 = vld [vmem:[%s2160 + $0x8] sm:$0xf]
        %v3876 = vld [vmem:[%s2160 + $0xc] sm:$0xf]
        %v3877 = vld [vmem:[%s2160 + $0x10] sm:$0xf]
        %v3878 = vld [vmem:[%s2160 + $0x14] sm:$0xf]
        %v3879 = vld [vmem:[%s2160 + $0x18] sm:$0xf]
        %v3880 = vld [vmem:[%s2160 + $0x1c] sm:$0xf]
        %v3881 = vld [vmem:[%s2160 + $0x20] sm:$0xf]
        %v3882 = vld [vmem:[%s2160 + $0x24] sm:$0xf]
        %v3883 = vld [vmem:[%s2160 + $0x28] sm:$0xf]
        %v3884 = vld [vmem:[%s2160 + $0x2c] sm:$0xf]
        %v3885 = vld [vmem:[%s2160 + $0x30] sm:$0xf]
        %v3886 = vld [vmem:[%s2160 + $0x34] sm:$0xf]
        %v3887 = vld [vmem:[%s2160 + $0x38] sm:$0xf]
        %v3888 = vld [vmem:[%s2160 + $0x3c] sm:$0xf]
        %v3905 = vunpack.c.l.b16 %v3873
        %v3906 = vunpack.c.l.b16 %v3874
        %v3907 = vunpack.c.l.b16 %v3875
        %v3908 = vunpack.c.l.b16 %v3876
        %v3909 = vunpack.c.l.b16 %v3877
        %v3910 = vunpack.c.l.b16 %v3878
        %v3911 = vunpack.c.l.b16 %v3879
        %v3912 = vunpack.c.l.b16 %v3880
        %v3913 = vunpack.c.l.b16 %v3881
        %v3914 = vunpack.c.l.b16 %v3882
        %v3915 = vunpack.c.l.b16 %v3883
        %v3916 = vunpack.c.l.b16 %v3884
        %v3917 = vunpack.c.l.b16 %v3885
        %v3918 = vunpack.c.l.b16 %v3886
        %v3919 = vunpack.c.l.b16 %v3887
        %v3920 = vunpack.c.l.b16 %v3888
        %v3921 = vpack.c.b16 %v3906, %v3905
        %v3922 = vpack.c.b16 %v3908, %v3907
        %v3923 = vpack.c.b16 %v3910, %v3909
        %v3924 = vpack.c.b16 %v3912, %v3911
        %v3925 = vpack.c.b16 %v3914, %v3913
        %v3926 = vpack.c.b16 %v3916, %v3915
        %v3927 = vpack.c.b16 %v3918, %v3917
        %v3928 = vpack.c.b16 %v3920, %v3919
        %3937 = vmatprep.subr.bf16.mxu0 0
        %3938 = vmatpush1.bf16.msra.mxu0 %v3921
        %3939 = vmatprep.subr.bf16.mxu0 0
        %3940 = vmatpush1.bf16.msra.mxu0 %v3922
        %3941 = vmatprep.subr.bf16.mxu0 0
        %3942 = vmatpush1.bf16.msra.mxu0 %v3923
        %3943 = vmatprep.subr.bf16.mxu0 0
        %3944 = vmatpush1.bf16.msra.mxu0 %v3924
        %3945 = vmatprep.subr.bf16.mxu0 0
        %3946 = vmatpush1.bf16.msra.mxu0 %v3925
        %3947 = vmatprep.subr.bf16.mxu0 0
        %3948 = vmatpush1.bf16.msra.mxu0 %v3926
        %3949 = vmatprep.subr.bf16.mxu0 0
        %3950 = vmatpush1.bf16.msra.mxu0 %v3927
        %3951 = vmatprep.subr.bf16.mxu0 0
        %3952 = vmatpush1.bf16.msra.mxu0 %v3928
        %3953 = vmatprep.subr.bf16.mxu0 0
        %3954 = vmatpush1.bf16.msra.mxu0 0
        %3955 = vmatprep.subr.bf16.mxu0 0
        %3956 = vmatpush1.bf16.msra.mxu0 0
        %3957 = vmatprep.subr.bf16.mxu0 0
        %3958 = vmatpush1.bf16.msra.mxu0 0
        %3959 = vmatprep.subr.bf16.mxu0 0
        %3960 = vmatpush1.bf16.msra.mxu0 0
        %3961 = vmatprep.subr.bf16.mxu0 0
        %3962 = vmatpush1.bf16.msra.mxu0 0
        %3963 = vmatprep.subr.bf16.mxu0 0
        %3964 = vmatpush1.bf16.msra.mxu0 0
        %3965 = vmatprep.subr.bf16.mxu0 0
        %3966 = vmatpush1.bf16.msra.mxu0 0
        %3967 = vmatprep.subr.bf16.mxu0 0
        %3968 = vmatpush1.bf16.msra.mxu0 0
        %3969 = vmatprep.mubr.bf16.mxu0 0
        %3970 = vmatmul.mubr.bf16.gmra.mrb[0].mxu0 %v3865
        %v3971 = vpop.f32.mrb[0].mxu0
        %v3972 = vadd.f32 0.0, %v3971
        %v3973 = vpop.f32.mrb[0].mxu0
        %v3974 = vpop.f32.mrb[0].mxu0
        %v3975 = vadd.f32 0.0, %v3974
        %v3976 = vpop.f32.mrb[0].mxu0
        %3977 = vmatprep.mubr.bf16.mxu0 0
        %3978 = vmatmul.mubr.bf16.gmra.mrb[0].mxu0 %v3866
        %v3979 = vpop.f32.mrb[0].mxu0
        %v3980 = vadd.f32 0.0, %v3979
        %v3981 = vpop.f32.mrb[0].mxu0
        %v3982 = vpop.f32.mrb[0].mxu0
        %v3983 = vadd.f32 0.0, %v3982
        %v3984 = vpop.f32.mrb[0].mxu0
        %3985 = vmatprep.mubr.bf16.mxu0 0
        %3986 = vmatmul.mubr.bf16.gmra.mrb[0].mxu0 %v3867
        %v3987 = vpop.f32.mrb[0].mxu0
        %v3988 = vadd.f32 0.0, %v3987
        %v3989 = vpop.f32.mrb[0].mxu0
        %v3990 = vpop.f32.mrb[0].mxu0
        %v3991 = vadd.f32 0.0, %v3990
        %v3992 = vpop.f32.mrb[0].mxu0
        %3993 = vmatprep.mubr.bf16.mxu0 0
        %3994 = vmatmul.mubr.bf16.gmra.mrb[0].mxu0 %v3868
        %v3995 = vpop.f32.mrb[0].mxu0
        %v3996 = vadd.f32 0.0, %v3995
        %v3997 = vpop.f32.mrb[0].mxu0
        %v3998 = vpop.f32.mrb[0].mxu0
        %v3999 = vadd.f32 0.0, %v3998
        %v4000 = vpop.f32.mrb[0].mxu0
        %4001 = vmatprep.mubr.bf16.mxu0 0
        %4002 = vmatmul.mubr.bf16.gmra.mrb[0].mxu0 %v3869
        %v4003 = vpop.f32.mrb[0].mxu0
        %v4004 = vadd.f32 0.0, %v4003
        %v4005 = vpop.f32.mrb[0].mxu0
        %v4006 = vpop.f32.mrb[0].mxu0
        %v4007 = vadd.f32 0.0, %v4006
        %v4008 = vpop.f32.mrb[0].mxu0
        %4009 = vmatprep.mubr.bf16.mxu0 0
        %4010 = vmatmul.mubr.bf16.gmra.mrb[0].mxu0 %v3870
        %v4011 = vpop.f32.mrb[0].mxu0
        %v4012 = vadd.f32 0.0, %v4011
        %v4013 = vpop.f32.mrb[0].mxu0
        %v4014 = vpop.f32.mrb[0].mxu0
        %v4015 = vadd.f32 0.0, %v4014
        %v4016 = vpop.f32.mrb[0].mxu0
        %4017 = vmatprep.mubr.bf16.mxu0 0
        %4018 = vmatmul.mubr.bf16.gmra.mrb[0].mxu0 %v3871
        %v4019 = vpop.f32.mrb[0].mxu0
        %v4020 = vadd.f32 0.0, %v4019
        %v4021 = vpop.f32.mrb[0].mxu0
        %v4022 = vpop.f32.mrb[0].mxu0
        %v4023 = vadd.f32 0.0, %v4022
        %v4024 = vpop.f32.mrb[0].mxu0
        %4025 = vmatprep.mubr.bf16.mxu0 0
        %4026 = vmatmul.mubr.bf16.gmra.mrb[0].mxu0 %v3872
        %v4027 = vpop.f32.mrb[0].mxu0
        %v4028 = vadd.f32 0.0, %v4027
        %v4029 = vpop.f32.mrb[0].mxu0
        %v4030 = vpop.f32.mrb[0].mxu0
        %v4031 = vadd.f32 0.0, %v4030
        %v4032 = vpop.f32.mrb[0].mxu0
        %4033 = vdwg.mxu0
        %v4034 = vadd.f32 %v3849, %v3972
        %v4035 = vadd.f32 %v3850, %v3975
        %v4036 = vadd.f32 %v3851, %v3980
        %v4037 = vadd.f32 %v3852, %v3983
        %v4038 = vadd.f32 %v3853, %v3988
        %v4039 = vadd.f32 %v3854, %v3991
        %v4040 = vadd.f32 %v3855, %v3996
        %v4041 = vadd.f32 %v3856, %v3999
        %v4042 = vadd.f32 %v3857, %v4004
        %v4043 = vadd.f32 %v3858, %v4007
        %v4044 = vadd.f32 %v3859, %v4012
        %v4045 = vadd.f32 %v3860, %v4015
        %v4046 = vadd.f32 %v3861, %v4020
        %v4047 = vadd.f32 %v3862, %v4023
        %v4048 = vadd.f32 %v3863, %v4028
        %v4049 = vadd.f32 %v3864, %v4031
        %v4050 = vld [vmem:[#allocation2 + $0x50] sm:$0xff]
        %v4051 = vld [vmem:[#allocation2 + $0x58] sm:$0xff]
        %v4052 = vld [vmem:[#allocation2 + $0x60] sm:$0xff]
        %v4053 = vld [vmem:[#allocation2 + $0x68] sm:$0xff]
        %v4054 = vld [vmem:[#allocation2 + $0x70] sm:$0xff]
        %v4055 = vld [vmem:[#allocation2 + $0x78] sm:$0xff]
        %v4056 = vld [vmem:[#allocation2 + $0x80] sm:$0xff]
        %v4057 = vld [vmem:[#allocation2 + $0x88] sm:$0xff]
        %v4058 = vld [vmem:[%s2346] sm:$0xf]
        %v4059 = vld [vmem:[%s2346 + $0x4] sm:$0xf]
        %v4060 = vld [vmem:[%s2346 + $0x8] sm:$0xf]
        %v4061 = vld [vmem:[%s2346 + $0xc] sm:$0xf]
        %v4062 = vld [vmem:[%s2346 + $0x10] sm:$0xf]
        %v4063 = vld [vmem:[%s2346 + $0x14] sm:$0xf]
        %v4064 = vld [vmem:[%s2346 + $0x18] sm:$0xf]
        %v4065 = vld [vmem:[%s2346 + $0x1c] sm:$0xf]
        %v4066 = vld [vmem:[%s2346 + $0x20] sm:$0xf]
        %v4067 = vld [vmem:[%s2346 + $0x24] sm:$0xf]
        %v4068 = vld [vmem:[%s2346 + $0x28] sm:$0xf]
        %v4069 = vld [vmem:[%s2346 + $0x2c] sm:$0xf]
        %v4070 = vld [vmem:[%s2346 + $0x30] sm:$0xf]
        %v4071 = vld [vmem:[%s2346 + $0x34] sm:$0xf]
        %v4072 = vld [vmem:[%s2346 + $0x38] sm:$0xf]
        %v4073 = vld [vmem:[%s2346 + $0x3c] sm:$0xf]
        %v4090 = vunpack.c.l.b16 %v4058
        %v4091 = vunpack.c.l.b16 %v4059
        %v4092 = vunpack.c.l.b16 %v4060
        %v4093 = vunpack.c.l.b16 %v4061
        %v4094 = vunpack.c.l.b16 %v4062
        %v4095 = vunpack.c.l.b16 %v4063
        %v4096 = vunpack.c.l.b16 %v4064
        %v4097 = vunpack.c.l.b16 %v4065
        %v4098 = vunpack.c.l.b16 %v4066
        %v4099 = vunpack.c.l.b16 %v4067
        %v4100 = vunpack.c.l.b16 %v4068
        %v4101 = vunpack.c.l.b16 %v4069
        %v4102 = vunpack.c.l.b16 %v4070
        %v4103 = vunpack.c.l.b16 %v4071
        %v4104 = vunpack.c.l.b16 %v4072
        %v4105 = vunpack.c.l.b16 %v4073
        %v4106 = vpack.c.b16 %v4091, %v4090
        %v4107 = vpack.c.b16 %v4093, %v4092
        %v4108 = vpack.c.b16 %v4095, %v4094
        %v4109 = vpack.c.b16 %v4097, %v4096
        %v4110 = vpack.c.b16 %v4099, %v4098
        %v4111 = vpack.c.b16 %v4101, %v4100
        %v4112 = vpack.c.b16 %v4103, %v4102
        %v4113 = vpack.c.b16 %v4105, %v4104
        %4122 = vmatprep.subr.bf16.mxu0 0
        %4123 = vmatpush1.bf16.msra.mxu0 %v4106
        %4124 = vmatprep.subr.bf16.mxu0 0
        %4125 = vmatpush1.bf16.msra.mxu0 %v4107
        %4126 = vmatprep.subr.bf16.mxu0 0
        %4127 = vmatpush1.bf16.msra.mxu0 %v4108
        %4128 = vmatprep.subr.bf16.mxu0 0
        %4129 = vmatpush1.bf16.msra.mxu0 %v4109
        %4130 = vmatprep.subr.bf16.mxu0 0
        %4131 = vmatpush1.bf16.msra.mxu0 %v4110
        %4132 = vmatprep.subr.bf16.mxu0 0
        %4133 = vmatpush1.bf16.msra.mxu0 %v4111
        %4134 = vmatprep.subr.bf16.mxu0 0
        %4135 = vmatpush1.bf16.msra.mxu0 %v4112
        %4136 = vmatprep.subr.bf16.mxu0 0
        %4137 = vmatpush1.bf16.msra.mxu0 %v4113
        %4138 = vmatprep.subr.bf16.mxu0 0
        %4139 = vmatpush1.bf16.msra.mxu0 0
        %4140 = vmatprep.subr.bf16.mxu0 0
        %4141 = vmatpush1.bf16.msra.mxu0 0
        %4142 = vmatprep.subr.bf16.mxu0 0
        %4143 = vmatpush1.bf16.msra.mxu0 0
        %4144 = vmatprep.subr.bf16.mxu0 0
        %4145 = vmatpush1.bf16.msra.mxu0 0
        %4146 = vmatprep.subr.bf16.mxu0 0
        %4147 = vmatpush1.bf16.msra.mxu0 0
        %4148 = vmatprep.subr.bf16.mxu0 0
        %4149 = vmatpush1.bf16.msra.mxu0 0
        %4150 = vmatprep.subr.bf16.mxu0 0
        %4151 = vmatpush1.bf16.msra.mxu0 0
        %4152 = vmatprep.subr.bf16.mxu0 0
        %4153 = vmatpush1.bf16.msra.mxu0 0
        %4154 = vmatprep.mubr.bf16.mxu0 0
        %4155 = vmatmul.mubr.bf16.gmra.mrb[0].mxu0 %v4050
        %v4156 = vpop.f32.mrb[0].mxu0
        %v4157 = vadd.f32 0.0, %v4156
        %v4158 = vpop.f32.mrb[0].mxu0
        %v4159 = vpop.f32.mrb[0].mxu0
        %v4160 = vadd.f32 0.0, %v4159
        %v4161 = vpop.f32.mrb[0].mxu0
        %4162 = vmatprep.mubr.bf16.mxu0 0
        %4163 = vmatmul.mubr.bf16.gmra.mrb[0].mxu0 %v4051
        %v4164 = vpop.f32.mrb[0].mxu0
        %v4165 = vadd.f32 0.0, %v4164
        %v4166 = vpop.f32.mrb[0].mxu0
        %v4167 = vpop.f32.mrb[0].mxu0
        %v4168 = vadd.f32 0.0, %v4167
        %v4169 = vpop.f32.mrb[0].mxu0
        %4170 = vmatprep.mubr.bf16.mxu0 0
        %4171 = vmatmul.mubr.bf16.gmra.mrb[0].mxu0 %v4052
        %v4172 = vpop.f32.mrb[0].mxu0
        %v4173 = vadd.f32 0.0, %v4172
        %v4174 = vpop.f32.mrb[0].mxu0
        %v4175 = vpop.f32.mrb[0].mxu0
        %v4176 = vadd.f32 0.0, %v4175
        %v4177 = vpop.f32.mrb[0].mxu0
        %4178 = vmatprep.mubr.bf16.mxu0 0
        %4179 = vmatmul.mubr.bf16.gmra.mrb[0].mxu0 %v4053
        %v4180 = vpop.f32.mrb[0].mxu0
        %v4181 = vadd.f32 0.0, %v4180
        %v4182 = vpop.f32.mrb[0].mxu0
        %v4183 = vpop.f32.mrb[0].mxu0
        %v4184 = vadd.f32 0.0, %v4183
        %v4185 = vpop.f32.mrb[0].mxu0
        %4186 = vmatprep.mubr.bf16.mxu0 0
        %4187 = vmatmul.mubr.bf16.gmra.mrb[0].mxu0 %v4054
        %v4188 = vpop.f32.mrb[0].mxu0
        %v4189 = vadd.f32 0.0, %v4188
        %v4190 = vpop.f32.mrb[0].mxu0
        %v4191 = vpop.f32.mrb[0].mxu0
        %v4192 = vadd.f32 0.0, %v4191
        %v4193 = vpop.f32.mrb[0].mxu0
        %4194 = vmatprep.mubr.bf16.mxu0 0
        %4195 = vmatmul.mubr.bf16.gmra.mrb[0].mxu0 %v4055
        %v4196 = vpop.f32.mrb[0].mxu0
        %v4197 = vadd.f32 0.0, %v4196
        %v4198 = vpop.f32.mrb[0].mxu0
        %v4199 = vpop.f32.mrb[0].mxu0
        %v4200 = vadd.f32 0.0, %v4199
        %v4201 = vpop.f32.mrb[0].mxu0
        %4202 = vmatprep.mubr.bf16.mxu0 0
        %4203 = vmatmul.mubr.bf16.gmra.mrb[0].mxu0 %v4056
        %v4204 = vpop.f32.mrb[0].mxu0
        %v4205 = vadd.f32 0.0, %v4204
        %v4206 = vpop.f32.mrb[0].mxu0
        %v4207 = vpop.f32.mrb[0].mxu0
        %v4208 = vadd.f32 0.0, %v4207
        %v4209 = vpop.f32.mrb[0].mxu0
        %4210 = vmatprep.mubr.bf16.mxu0 0
        %4211 = vmatmul.mubr.bf16.gmra.mrb[0].mxu0 %v4057
        %v4212 = vpop.f32.mrb[0].mxu0
        %v4213 = vadd.f32 0.0, %v4212
        %v4214 = vpop.f32.mrb[0].mxu0
        %v4215 = vpop.f32.mrb[0].mxu0
        %v4216 = vadd.f32 0.0, %v4215
        %v4217 = vpop.f32.mrb[0].mxu0
        %4218 = vdwg.mxu0
        %v4219 = vadd.f32 %v4034, %v4157
        %v4220 = vadd.f32 %v4035, %v4160
        %v4221 = vadd.f32 %v4036, %v4165
        %v4222 = vadd.f32 %v4037, %v4168
        %v4223 = vadd.f32 %v4038, %v4173
        %v4224 = vadd.f32 %v4039, %v4176
        %v4225 = vadd.f32 %v4040, %v4181
        %v4226 = vadd.f32 %v4041, %v4184
        %v4227 = vadd.f32 %v4042, %v4189
        %v4228 = vadd.f32 %v4043, %v4192
        %v4229 = vadd.f32 %v4044, %v4197
        %v4230 = vadd.f32 %v4045, %v4200
        %v4231 = vadd.f32 %v4046, %v4205
        %v4232 = vadd.f32 %v4047, %v4208
        %v4233 = vadd.f32 %v4048, %v4213
        %v4234 = vadd.f32 %v4049, %v4216
        %v4235 = vld [vmem:[%s908 + $0x50] sm:$0xff]
        %v4236 = vld [vmem:[%s908 + $0x58] sm:$0xff]
        %v4237 = vld [vmem:[%s908 + $0x60] sm:$0xff]
        %v4238 = vld [vmem:[%s908 + $0x68] sm:$0xff]
        %v4239 = vld [vmem:[%s908 + $0x70] sm:$0xff]
        %v4240 = vld [vmem:[%s908 + $0x78] sm:$0xff]
        %v4241 = vld [vmem:[%s908 + $0x80] sm:$0xff]
        %v4242 = vld [vmem:[%s908 + $0x88] sm:$0xff]
        %v4243 = vld [vmem:[%s2532] sm:$0xf]
        %v4244 = vld [vmem:[%s2532 + $0x4] sm:$0xf]
        %v4245 = vld [vmem:[%s2532 + $0x8] sm:$0xf]
        %v4246 = vld [vmem:[%s2532 + $0xc] sm:$0xf]
        %v4247 = vld [vmem:[%s2532 + $0x10] sm:$0xf]
        %v4248 = vld [vmem:[%s2532 + $0x14] sm:$0xf]
        %v4249 = vld [vmem:[%s2532 + $0x18] sm:$0xf]
        %v4250 = vld [vmem:[%s2532 + $0x1c] sm:$0xf]
        %v4251 = vld [vmem:[%s2532 + $0x20] sm:$0xf]
        %v4252 = vld [vmem:[%s2532 + $0x24] sm:$0xf]
        %v4253 = vld [vmem:[%s2532 + $0x28] sm:$0xf]
        %v4254 = vld [vmem:[%s2532 + $0x2c] sm:$0xf]
        %v4255 = vld [vmem:[%s2532 + $0x30] sm:$0xf]
        %v4256 = vld [vmem:[%s2532 + $0x34] sm:$0xf]
        %v4257 = vld [vmem:[%s2532 + $0x38] sm:$0xf]
        %v4258 = vld [vmem:[%s2532 + $0x3c] sm:$0xf]
        %v4275 = vunpack.c.l.b16 %v4243
        %v4276 = vunpack.c.l.b16 %v4244
        %v4277 = vunpack.c.l.b16 %v4245
        %v4278 = vunpack.c.l.b16 %v4246
        %v4279 = vunpack.c.l.b16 %v4247
        %v4280 = vunpack.c.l.b16 %v4248
        %v4281 = vunpack.c.l.b16 %v4249
        %v4282 = vunpack.c.l.b16 %v4250
        %v4283 = vunpack.c.l.b16 %v4251
        %v4284 = vunpack.c.l.b16 %v4252
        %v4285 = vunpack.c.l.b16 %v4253
        %v4286 = vunpack.c.l.b16 %v4254
        %v4287 = vunpack.c.l.b16 %v4255
        %v4288 = vunpack.c.l.b16 %v4256
        %v4289 = vunpack.c.l.b16 %v4257
        %v4290 = vunpack.c.l.b16 %v4258
        %v4291 = vpack.c.b16 %v4276, %v4275
        %v4292 = vpack.c.b16 %v4278, %v4277
        %v4293 = vpack.c.b16 %v4280, %v4279
        %v4294 = vpack.c.b16 %v4282, %v4281
        %v4295 = vpack.c.b16 %v4284, %v4283
        %v4296 = vpack.c.b16 %v4286, %v4285
        %v4297 = vpack.c.b16 %v4288, %v4287
        %v4298 = vpack.c.b16 %v4290, %v4289
        %4307 = vmatprep.subr.bf16.mxu0 0
        %4308 = vmatpush1.bf16.msra.mxu0 %v4291
        %4309 = vmatprep.subr.bf16.mxu0 0
        %4310 = vmatpush1.bf16.msra.mxu0 %v4292
        %4311 = vmatprep.subr.bf16.mxu0 0
        %4312 = vmatpush1.bf16.msra.mxu0 %v4293
        %4313 = vmatprep.subr.bf16.mxu0 0
        %4314 = vmatpush1.bf16.msra.mxu0 %v4294
        %4315 = vmatprep.subr.bf16.mxu0 0
        %4316 = vmatpush1.bf16.msra.mxu0 %v4295
        %4317 = vmatprep.subr.bf16.mxu0 0
        %4318 = vmatpush1.bf16.msra.mxu0 %v4296
        %4319 = vmatprep.subr.bf16.mxu0 0
        %4320 = vmatpush1.bf16.msra.mxu0 %v4297
        %4321 = vmatprep.subr.bf16.mxu0 0
        %4322 = vmatpush1.bf16.msra.mxu0 %v4298
        %4323 = vmatprep.subr.bf16.mxu0 0
        %4324 = vmatpush1.bf16.msra.mxu0 0
        %4325 = vmatprep.subr.bf16.mxu0 0
        %4326 = vmatpush1.bf16.msra.mxu0 0
        %4327 = vmatprep.subr.bf16.mxu0 0
        %4328 = vmatpush1.bf16.msra.mxu0 0
        %4329 = vmatprep.subr.bf16.mxu0 0
        %4330 = vmatpush1.bf16.msra.mxu0 0
        %4331 = vmatprep.subr.bf16.mxu0 0
        %4332 = vmatpush1.bf16.msra.mxu0 0
        %4333 = vmatprep.subr.bf16.mxu0 0
        %4334 = vmatpush1.bf16.msra.mxu0 0
        %4335 = vmatprep.subr.bf16.mxu0 0
        %4336 = vmatpush1.bf16.msra.mxu0 0
        %4337 = vmatprep.subr.bf16.mxu0 0
        %4338 = vmatpush1.bf16.msra.mxu0 0
        %4339 = vmatprep.mubr.bf16.mxu0 0
        %4340 = vmatmul.mubr.bf16.gmra.mrb[0].mxu0 %v4235
        %v4341 = vpop.f32.mrb[0].mxu0
        %v4342 = vadd.f32 0.0, %v4341
        %v4343 = vpop.f32.mrb[0].mxu0
        %v4344 = vpop.f32.mrb[0].mxu0
        %v4345 = vadd.f32 0.0, %v4344
        %v4346 = vpop.f32.mrb[0].mxu0
        %4347 = vmatprep.mubr.bf16.mxu0 0
        %4348 = vmatmul.mubr.bf16.gmra.mrb[0].mxu0 %v4236
        %v4349 = vpop.f32.mrb[0].mxu0
        %v4350 = vadd.f32 0.0, %v4349
        %v4351 = vpop.f32.mrb[0].mxu0
        %v4352 = vpop.f32.mrb[0].mxu0
        %v4353 = vadd.f32 0.0, %v4352
        %v4354 = vpop.f32.mrb[0].mxu0
        %4355 = vmatprep.mubr.bf16.mxu0 0
        %4356 = vmatmul.mubr.bf16.gmra.mrb[0].mxu0 %v4237
        %v4357 = vpop.f32.mrb[0].mxu0
        %v4358 = vadd.f32 0.0, %v4357
        %v4359 = vpop.f32.mrb[0].mxu0
        %v4360 = vpop.f32.mrb[0].mxu0
        %v4361 = vadd.f32 0.0, %v4360
        %v4362 = vpop.f32.mrb[0].mxu0
        %4363 = vmatprep.mubr.bf16.mxu0 0
        %4364 = vmatmul.mubr.bf16.gmra.mrb[0].mxu0 %v4238
        %v4365 = vpop.f32.mrb[0].mxu0
        %v4366 = vadd.f32 0.0, %v4365
        %v4367 = vpop.f32.mrb[0].mxu0
        %v4368 = vpop.f32.mrb[0].mxu0
        %v4369 = vadd.f32 0.0, %v4368
        %v4370 = vpop.f32.mrb[0].mxu0
        %4371 = vmatprep.mubr.bf16.mxu0 0
        %4372 = vmatmul.mubr.bf16.gmra.mrb[0].mxu0 %v4239
        %v4373 = vpop.f32.mrb[0].mxu0
        %v4374 = vadd.f32 0.0, %v4373
        %v4375 = vpop.f32.mrb[0].mxu0
        %v4376 = vpop.f32.mrb[0].mxu0
        %v4377 = vadd.f32 0.0, %v4376
        %v4378 = vpop.f32.mrb[0].mxu0
        %4379 = vmatprep.mubr.bf16.mxu0 0
        %4380 = vmatmul.mubr.bf16.gmra.mrb[0].mxu0 %v4240
        %v4381 = vpop.f32.mrb[0].mxu0
        %v4382 = vadd.f32 0.0, %v4381
        %v4383 = vpop.f32.mrb[0].mxu0
        %v4384 = vpop.f32.mrb[0].mxu0
        %v4385 = vadd.f32 0.0, %v4384
        %v4386 = vpop.f32.mrb[0].mxu0
        %4387 = vmatprep.mubr.bf16.mxu0 0
        %4388 = vmatmul.mubr.bf16.gmra.mrb[0].mxu0 %v4241
        %v4389 = vpop.f32.mrb[0].mxu0
        %v4390 = vadd.f32 0.0, %v4389
        %v4391 = vpop.f32.mrb[0].mxu0
        %v4392 = vpop.f32.mrb[0].mxu0
        %v4393 = vadd.f32 0.0, %v4392
        %v4394 = vpop.f32.mrb[0].mxu0
        %4395 = vmatprep.mubr.bf16.mxu0 0
        %4396 = vmatmul.mubr.bf16.gmra.mrb[0].mxu0 %v4242
        %v4397 = vpop.f32.mrb[0].mxu0
        %v4398 = vadd.f32 0.0, %v4397
        %v4399 = vpop.f32.mrb[0].mxu0
        %v4400 = vpop.f32.mrb[0].mxu0
        %v4401 = vadd.f32 0.0, %v4400
        %v4402 = vpop.f32.mrb[0].mxu0
        %4403 = vdwg.mxu0
        %v4404 = vadd.f32 %v4219, %v4342
        %v4405 = vadd.f32 %v4220, %v4345
        %v4406 = vadd.f32 %v4221, %v4350
        %v4407 = vadd.f32 %v4222, %v4353
        %v4408 = vadd.f32 %v4223, %v4358
        %v4409 = vadd.f32 %v4224, %v4361
        %v4410 = vadd.f32 %v4225, %v4366
        %v4411 = vadd.f32 %v4226, %v4369
        %v4412 = vadd.f32 %v4227, %v4374
        %v4413 = vadd.f32 %v4228, %v4377
        %v4414 = vadd.f32 %v4229, %v4382
        %v4415 = vadd.f32 %v4230, %v4385
        %v4416 = vadd.f32 %v4231, %v4390
        %v4417 = vadd.f32 %v4232, %v4393
        %v4418 = vadd.f32 %v4233, %v4398
        %v4419 = vadd.f32 %v4234, %v4401
        %v4420 = vld [vmem:[%s1236 + $0x50] sm:$0xff]
        %v4421 = vld [vmem:[%s1236 + $0x58] sm:$0xff]
        %v4422 = vld [vmem:[%s1236 + $0x60] sm:$0xff]
        %v4423 = vld [vmem:[%s1236 + $0x68] sm:$0xff]
        %v4424 = vld [vmem:[%s1236 + $0x70] sm:$0xff]
        %v4425 = vld [vmem:[%s1236 + $0x78] sm:$0xff]
        %v4426 = vld [vmem:[%s1236 + $0x80] sm:$0xff]
        %v4427 = vld [vmem:[%s1236 + $0x88] sm:$0xff]
        %v4428 = vld [vmem:[%s2718] sm:$0xf]
        %v4429 = vld [vmem:[%s2718 + $0x4] sm:$0xf]
        %v4430 = vld [vmem:[%s2718 + $0x8] sm:$0xf]
        %v4431 = vld [vmem:[%s2718 + $0xc] sm:$0xf]
        %v4432 = vld [vmem:[%s2718 + $0x10] sm:$0xf]
        %v4433 = vld [vmem:[%s2718 + $0x14] sm:$0xf]
        %v4434 = vld [vmem:[%s2718 + $0x18] sm:$0xf]
        %v4435 = vld [vmem:[%s2718 + $0x1c] sm:$0xf]
        %v4436 = vld [vmem:[%s2718 + $0x20] sm:$0xf]
        %v4437 = vld [vmem:[%s2718 + $0x24] sm:$0xf]
        %v4438 = vld [vmem:[%s2718 + $0x28] sm:$0xf]
        %v4439 = vld [vmem:[%s2718 + $0x2c] sm:$0xf]
        %v4440 = vld [vmem:[%s2718 + $0x30] sm:$0xf]
        %v4441 = vld [vmem:[%s2718 + $0x34] sm:$0xf]
        %v4442 = vld [vmem:[%s2718 + $0x38] sm:$0xf]
        %v4443 = vld [vmem:[%s2718 + $0x3c] sm:$0xf]
        %v4460 = vunpack.c.l.b16 %v4428
        %v4461 = vunpack.c.l.b16 %v4429
        %v4462 = vunpack.c.l.b16 %v4430
        %v4463 = vunpack.c.l.b16 %v4431
        %v4464 = vunpack.c.l.b16 %v4432
        %v4465 = vunpack.c.l.b16 %v4433
        %v4466 = vunpack.c.l.b16 %v4434
        %v4467 = vunpack.c.l.b16 %v4435
        %v4468 = vunpack.c.l.b16 %v4436
        %v4469 = vunpack.c.l.b16 %v4437
        %v4470 = vunpack.c.l.b16 %v4438
        %v4471 = vunpack.c.l.b16 %v4439
        %v4472 = vunpack.c.l.b16 %v4440
        %v4473 = vunpack.c.l.b16 %v4441
        %v4474 = vunpack.c.l.b16 %v4442
        %v4475 = vunpack.c.l.b16 %v4443
        %v4476 = vpack.c.b16 %v4461, %v4460
        %v4477 = vpack.c.b16 %v4463, %v4462
        %v4478 = vpack.c.b16 %v4465, %v4464
        %v4479 = vpack.c.b16 %v4467, %v4466
        %v4480 = vpack.c.b16 %v4469, %v4468
        %v4481 = vpack.c.b16 %v4471, %v4470
        %v4482 = vpack.c.b16 %v4473, %v4472
        %v4483 = vpack.c.b16 %v4475, %v4474
        %4492 = vmatprep.subr.bf16.mxu0 0
        %4493 = vmatpush1.bf16.msra.mxu0 %v4476
        %4494 = vmatprep.subr.bf16.mxu0 0
        %4495 = vmatpush1.bf16.msra.mxu0 %v4477
        %4496 = vmatprep.subr.bf16.mxu0 0
        %4497 = vmatpush1.bf16.msra.mxu0 %v4478
        %4498 = vmatprep.subr.bf16.mxu0 0
        %4499 = vmatpush1.bf16.msra.mxu0 %v4479
        %4500 = vmatprep.subr.bf16.mxu0 0
        %4501 = vmatpush1.bf16.msra.mxu0 %v4480
        %4502 = vmatprep.subr.bf16.mxu0 0
        %4503 = vmatpush1.bf16.msra.mxu0 %v4481
        %4504 = vmatprep.subr.bf16.mxu0 0
        %4505 = vmatpush1.bf16.msra.mxu0 %v4482
        %4506 = vmatprep.subr.bf16.mxu0 0
        %4507 = vmatpush1.bf16.msra.mxu0 %v4483
        %4508 = vmatprep.subr.bf16.mxu0 0
        %4509 = vmatpush1.bf16.msra.mxu0 0
        %4510 = vmatprep.subr.bf16.mxu0 0
        %4511 = vmatpush1.bf16.msra.mxu0 0
        %4512 = vmatprep.subr.bf16.mxu0 0
        %4513 = vmatpush1.bf16.msra.mxu0 0
        %4514 = vmatprep.subr.bf16.mxu0 0
        %4515 = vmatpush1.bf16.msra.mxu0 0
        %4516 = vmatprep.subr.bf16.mxu0 0
        %4517 = vmatpush1.bf16.msra.mxu0 0
        %4518 = vmatprep.subr.bf16.mxu0 0
        %4519 = vmatpush1.bf16.msra.mxu0 0
        %4520 = vmatprep.subr.bf16.mxu0 0
        %4521 = vmatpush1.bf16.msra.mxu0 0
        %4522 = vmatprep.subr.bf16.mxu0 0
        %4523 = vmatpush1.bf16.msra.mxu0 0
        %4524 = vmatprep.mubr.bf16.mxu0 0
        %4525 = vmatmul.mubr.bf16.gmra.mrb[0].mxu0 %v4420
        %v4526 = vpop.f32.mrb[0].mxu0
        %v4527 = vadd.f32 0.0, %v4526
        %v4528 = vpop.f32.mrb[0].mxu0
        %v4529 = vpop.f32.mrb[0].mxu0
        %v4530 = vadd.f32 0.0, %v4529
        %v4531 = vpop.f32.mrb[0].mxu0
        %4532 = vmatprep.mubr.bf16.mxu0 0
        %4533 = vmatmul.mubr.bf16.gmra.mrb[0].mxu0 %v4421
        %v4534 = vpop.f32.mrb[0].mxu0
        %v4535 = vadd.f32 0.0, %v4534
        %v4536 = vpop.f32.mrb[0].mxu0
        %v4537 = vpop.f32.mrb[0].mxu0
        %v4538 = vadd.f32 0.0, %v4537
        %v4539 = vpop.f32.mrb[0].mxu0
        %4540 = vmatprep.mubr.bf16.mxu0 0
        %4541 = vmatmul.mubr.bf16.gmra.mrb[0].mxu0 %v4422
        %v4542 = vpop.f32.mrb[0].mxu0
        %v4543 = vadd.f32 0.0, %v4542
        %v4544 = vpop.f32.mrb[0].mxu0
        %v4545 = vpop.f32.mrb[0].mxu0
        %v4546 = vadd.f32 0.0, %v4545
        %v4547 = vpop.f32.mrb[0].mxu0
        %4548 = vmatprep.mubr.bf16.mxu0 0
        %4549 = vmatmul.mubr.bf16.gmra.mrb[0].mxu0 %v4423
        %v4550 = vpop.f32.mrb[0].mxu0
        %v4551 = vadd.f32 0.0, %v4550
        %v4552 = vpop.f32.mrb[0].mxu0
        %v4553 = vpop.f32.mrb[0].mxu0
        %v4554 = vadd.f32 0.0, %v4553
        %v4555 = vpop.f32.mrb[0].mxu0
        %4556 = vmatprep.mubr.bf16.mxu0 0
        %4557 = vmatmul.mubr.bf16.gmra.mrb[0].mxu0 %v4424
        %v4558 = vpop.f32.mrb[0].mxu0
        %v4559 = vadd.f32 0.0, %v4558
        %v4560 = vpop.f32.mrb[0].mxu0
        %v4561 = vpop.f32.mrb[0].mxu0
        %v4562 = vadd.f32 0.0, %v4561
        %v4563 = vpop.f32.mrb[0].mxu0
        %4564 = vmatprep.mubr.bf16.mxu0 0
        %4565 = vmatmul.mubr.bf16.gmra.mrb[0].mxu0 %v4425
        %v4566 = vpop.f32.mrb[0].mxu0
        %v4567 = vadd.f32 0.0, %v4566
        %v4568 = vpop.f32.mrb[0].mxu0
        %v4569 = vpop.f32.mrb[0].mxu0
        %v4570 = vadd.f32 0.0, %v4569
        %v4571 = vpop.f32.mrb[0].mxu0
        %4572 = vmatprep.mubr.bf16.mxu0 0
        %4573 = vmatmul.mubr.bf16.gmra.mrb[0].mxu0 %v4426
        %v4574 = vpop.f32.mrb[0].mxu0
        %v4575 = vadd.f32 0.0, %v4574
        %v4576 = vpop.f32.mrb[0].mxu0
        %v4577 = vpop.f32.mrb[0].mxu0
        %v4578 = vadd.f32 0.0, %v4577
        %v4579 = vpop.f32.mrb[0].mxu0
        %4580 = vmatprep.mubr.bf16.mxu0 0
        %4581 = vmatmul.mubr.bf16.gmra.mrb[0].mxu0 %v4427
        %v4582 = vpop.f32.mrb[0].mxu0
        %v4583 = vadd.f32 0.0, %v4582
        %v4584 = vpop.f32.mrb[0].mxu0
        %v4585 = vpop.f32.mrb[0].mxu0
        %v4586 = vadd.f32 0.0, %v4585
        %v4587 = vpop.f32.mrb[0].mxu0
        %4588 = vdwg.mxu0
        %v4589 = vadd.f32 %v4404, %v4527
        %v4590 = vadd.f32 %v4405, %v4530
        %v4591 = vadd.f32 %v4406, %v4535
        %v4592 = vadd.f32 %v4407, %v4538
        %v4593 = vadd.f32 %v4408, %v4543
        %v4594 = vadd.f32 %v4409, %v4546
        %v4595 = vadd.f32 %v4410, %v4551
        %v4596 = vadd.f32 %v4411, %v4554
        %v4597 = vadd.f32 %v4412, %v4559
        %v4598 = vadd.f32 %v4413, %v4562
        %v4599 = vadd.f32 %v4414, %v4567
        %v4600 = vadd.f32 %v4415, %v4570
        %v4601 = vadd.f32 %v4416, %v4575
        %v4602 = vadd.f32 %v4417, %v4578
        %v4603 = vadd.f32 %v4418, %v4583
        %v4604 = vadd.f32 %v4419, %v4586
        %4605 = vst [vmem:[#allocation5 + $0x80] sm:$0xff] %v4589
        %4606 = vst [vmem:[#allocation5 + $0x88] sm:$0xff] %v4590
        %4607 = vst [vmem:[#allocation5 + $0x90] sm:$0xff] %v4591
        %4608 = vst [vmem:[#allocation5 + $0x98] sm:$0xff] %v4592
        %4609 = vst [vmem:[#allocation5 + $0xa0] sm:$0xff] %v4593
        %4610 = vst [vmem:[#allocation5 + $0xa8] sm:$0xff] %v4594
        %4611 = vst [vmem:[#allocation5 + $0xb0] sm:$0xff] %v4595
        %4612 = vst [vmem:[#allocation5 + $0xb8] sm:$0xff] %v4596
        %4613 = vst [vmem:[#allocation5 + $0xc0] sm:$0xff] %v4597
        %4614 = vst [vmem:[#allocation5 + $0xc8] sm:$0xff] %v4598
        %4615 = vst [vmem:[#allocation5 + $0xd0] sm:$0xff] %v4599
        %4616 = vst [vmem:[#allocation5 + $0xd8] sm:$0xff] %v4600
        %4617 = vst [vmem:[#allocation5 + $0xe0] sm:$0xff] %v4601
        %4618 = vst [vmem:[#allocation5 + $0xe8] sm:$0xff] %v4602
        %4619 = vst [vmem:[#allocation5 + $0xf0] sm:$0xff] %v4603
        %4620 = vst [vmem:[#allocation5 + $0xf8] sm:$0xff] %v4604
        %v4621 = vadd.f32 %v4589, %v4590
        %v4622 = vadd.f32 %v4621, %v4591
        %v4623 = vadd.f32 %v4622, %v4592
        %v4624 = vadd.f32 %v4623, %v4593
        %v4625 = vadd.f32 %v4624, %v4594
        %v4626 = vadd.f32 %v4625, %v4595
        %v4627 = vadd.f32 %v4626, %v4596
        %v4628 = vadd.f32 %v4627, %v4597
        %v4629 = vadd.f32 %v4628, %v4598
        %v4630 = vadd.f32 %v4629, %v4599
        %v4631 = vadd.f32 %v4630, %v4600
        %v4632 = vadd.f32 %v4631, %v4601
        %v4633 = vadd.f32 %v4632, %v4602
        %v4634 = vadd.f32 %v4633, %v4603
        %v4635 = vadd.f32 %v4634, %v4604
        %v4636 = vrot.slane %v4635, 4
        %v4637 = vadd.f32 %v4635, %v4636
        %v4638 = vrot.slane %v4637, 2
        %v4639 = vadd.f32 %v4637, %v4638
        %v4640 = vrot.slane %v4639, 1
        %v4641 = vadd.f32 %v4639, %v4640
        %v4642 = vadd.f32 %v2933, %v4641
        %v4643 = vmul.f32 %v4589, %v4589
        %v4644 = vmul.f32 %v4590, %v4590
        %v4645 = vmul.f32 %v4591, %v4591
        %v4646 = vmul.f32 %v4592, %v4592
        %v4647 = vmul.f32 %v4593, %v4593
        %v4648 = vmul.f32 %v4594, %v4594
        %v4649 = vmul.f32 %v4595, %v4595
        %v4650 = vmul.f32 %v4596, %v4596
        %v4651 = vmul.f32 %v4597, %v4597
        %v4652 = vmul.f32 %v4598, %v4598
        %v4653 = vmul.f32 %v4599, %v4599
        %v4654 = vmul.f32 %v4600, %v4600
        %v4655 = vmul.f32 %v4601, %v4601
        %v4656 = vmul.f32 %v4602, %v4602
        %v4657 = vmul.f32 %v4603, %v4603
        %v4658 = vmul.f32 %v4604, %v4604
        %v4659 = vadd.f32 %v4643, %v4644
        %v4660 = vadd.f32 %v4659, %v4645
        %v4661 = vadd.f32 %v4660, %v4646
        %v4662 = vadd.f32 %v4661, %v4647
        %v4663 = vadd.f32 %v4662, %v4648
        %v4664 = vadd.f32 %v4663, %v4649
        %v4665 = vadd.f32 %v4664, %v4650
        %v4666 = vadd.f32 %v4665, %v4651
        %v4667 = vadd.f32 %v4666, %v4652
        %v4668 = vadd.f32 %v4667, %v4653
        %v4669 = vadd.f32 %v4668, %v4654
        %v4670 = vadd.f32 %v4669, %v4655
        %v4671 = vadd.f32 %v4670, %v4656
        %v4672 = vadd.f32 %v4671, %v4657
        %v4673 = vadd.f32 %v4672, %v4658
        %v4674 = vrot.slane %v4673, 4
        %v4675 = vadd.f32 %v4673, %v4674
        %v4676 = vrot.slane %v4675, 2
        %v4677 = vadd.f32 %v4675, %v4676
        %v4678 = vrot.slane %v4677, 1
        %v4679 = vadd.f32 %v4677, %v4678
        %v4680 = vadd.f32 %v2971, %v4679
        %v4681 = vmul.f32 %v4642, 0.00390625
        %v4682 = vmul.f32 %v4680, 0.00390625
        %v4683 = vmul.f32 %v4681, %v4681
        %v4684 = vsub.f32 %v4682, %v4683
        %v4685 = vmax.f32 %v4684, 0.0
        %v4686 = vadd.f32 %v4685, 1e-05
        %v4687 = vrsqrt.pop %v4686
        %4688 = vst [vmem:[#allocation4] sm:$0xf] 0
        %4689 = vst [vmem:[#allocation4 + $0x4] sm:$0xf] 0
        %4690 = vst [vmem:[#allocation4 + $0x8] sm:$0x1] 0
        %s4691 = scalar_lea.vmem [#allocation4], 204
        %4692 = vst [vmem:[%s4691] sm:$0xf] 0
        %4693 = vst [vmem:[%s4691 + $0x4] sm:$0xf] 0
        %4694 = vst [vmem:[%s4691 + $0x8] sm:$0x1] 0
        %vm4695 = vcmask 1040384
        %vm4696 = vsmask.f32 256
        %vm4697 = vmand %vm4695, %vm4696
        %v4698 = vld [vmem:[#allocation4] sm:$0x1]
        %v4699 = vsel %vm4697, 0, %v4698
        %4700 = vst [vmem:[#allocation4] sm:$0x1] %v4699
        %v4701 = vld [vmem:[#allocation4 + $0xc] sm:$0x1]
        %v4702 = vsel %vm4697, 0, %v4701
        %4703 = vst [vmem:[#allocation4 + $0xc] sm:$0x1] %v4702
        %v4704 = vld [vmem:[#allocation4 + $0x18] sm:$0x1]
        %v4705 = vsel %vm4697, 0, %v4704
        %4706 = vst [vmem:[#allocation4 + $0x18] sm:$0x1] %v4705
        %v4707 = vld [vmem:[#allocation4 + $0x24] sm:$0x1]
        %v4708 = vsel %vm4697, 0, %v4707
        %4709 = vst [vmem:[#allocation4 + $0x24] sm:$0x1] %v4708
        %v4710 = vld [vmem:[#allocation4 + $0x30] sm:$0x1]
        %v4711 = vsel %vm4697, 0, %v4710
        %4712 = vst [vmem:[#allocation4 + $0x30] sm:$0x1] %v4711
        %v4713 = vld [vmem:[#allocation4 + $0x3c] sm:$0x1]
        %v4714 = vsel %vm4697, 0, %v4713
        %4715 = vst [vmem:[#allocation4 + $0x3c] sm:$0x1] %v4714
        %v4716 = vld [vmem:[#allocation4 + $0x48] sm:$0x1]
        %v4717 = vsel %vm4697, 0, %v4716
        %4718 = vst [vmem:[#allocation4 + $0x48] sm:$0x1] %v4717
        %v4719 = vld [vmem:[#allocation4 + $0x54] sm:$0x1]
        %v4720 = vsel %vm4697, 0, %v4719
        %4721 = vst [vmem:[#allocation4 + $0x54] sm:$0x1] %v4720
        %v4722 = vld [vmem:[#allocation4 + $0x60] sm:$0x1]
        %v4723 = vsel %vm4697, 0, %v4722
        %4724 = vst [vmem:[#allocation4 + $0x60] sm:$0x1] %v4723
        %v4725 = vld [vmem:[#allocation4 + $0x6c] sm:$0x1]
        %v4726 = vsel %vm4697, 0, %v4725
        %4727 = vst [vmem:[#allocation4 + $0x6c] sm:$0x1] %v4726
        %v4728 = vld [vmem:[#allocation4 + $0x78] sm:$0x1]
        %v4729 = vsel %vm4697, 0, %v4728
        %4730 = vst [vmem:[#allocation4 + $0x78] sm:$0x1] %v4729
        %v4731 = vld [vmem:[#allocation4 + $0x84] sm:$0x1]
        %v4732 = vsel %vm4697, 0, %v4731
        %4733 = vst [vmem:[#allocation4 + $0x84] sm:$0x1] %v4732
        %v4734 = vld [vmem:[#allocation4 + $0x90] sm:$0x1]
        %v4735 = vsel %vm4697, 0, %v4734
        %4736 = vst [vmem:[#allocation4 + $0x90] sm:$0x1] %v4735
        %v4737 = vld [vmem:[#allocation4 + $0x9c] sm:$0x1]
        %v4738 = vsel %vm4697, 0, %v4737
        %4739 = vst [vmem:[#allocation4 + $0x9c] sm:$0x1] %v4738
        %v4740 = vld [vmem:[#allocation4 + $0xa8] sm:$0x1]
        %v4741 = vsel %vm4697, 0, %v4740
        %4742 = vst [vmem:[#allocation4 + $0xa8] sm:$0x1] %v4741
        %v4743 = vld [vmem:[#allocation4 + $0xb4] sm:$0x1]
        %v4744 = vsel %vm4697, 0, %v4743
        %4745 = vst [vmem:[#allocation4 + $0xb4] sm:$0x1] %v4744
        %v4746 = vld [vmem:[#allocation4 + $0xc0] sm:$0x1]
        %v4747 = vsel %vm4697, 0, %v4746
        %4748 = vst [vmem:[#allocation4 + $0xc0] sm:$0x1] %v4747
        %v4749 = vld [vmem:[#allocation4 + $0xcc] sm:$0x1]
        %v4750 = vsel %vm4697, 0, %v4749
        %4751 = vst [vmem:[#allocation4 + $0xcc] sm:$0x1] %v4750
        %vm4752 = vsmask.f32 7938
        %vm4753 = vmand %vm4695, %vm4752
        %v4754 = vld [vmem:[#allocation4 + $0x8] sm:$0x1]
        %v4755 = vsel %vm4753, 0, %v4754
        %4756 = vst [vmem:[#allocation4 + $0x8] sm:$0x1] %v4755
        %v4757 = vld [vmem:[#allocation4 + $0x14] sm:$0x1]
        %v4758 = vsel %vm4753, 0, %v4757
        %4759 = vst [vmem:[#allocation4 + $0x14] sm:$0x1] %v4758
        %v4760 = vld [vmem:[#allocation4 + $0x20] sm:$0x1]
        %v4761 = vsel %vm4753, 0, %v4760
        %4762 = vst [vmem:[#allocation4 + $0x20] sm:$0x1] %v4761
        %v4763 = vld [vmem:[#allocation4 + $0x2c] sm:$0x1]
        %v4764 = vsel %vm4753, 0, %v4763
        %4765 = vst [vmem:[#allocation4 + $0x2c] sm:$0x1] %v4764
        %v4766 = vld [vmem:[#allocation4 + $0x38] sm:$0x1]
        %v4767 = vsel %vm4753, 0, %v4766
        %4768 = vst [vmem:[#allocation4 + $0x38] sm:$0x1] %v4767
        %v4769 = vld [vmem:[#allocation4 + $0x44] sm:$0x1]
        %v4770 = vsel %vm4753, 0, %v4769
        %4771 = vst [vmem:[#allocation4 + $0x44] sm:$0x1] %v4770
        %v4772 = vld [vmem:[#allocation4 + $0x50] sm:$0x1]
        %v4773 = vsel %vm4753, 0, %v4772
        %4774 = vst [vmem:[#allocation4 + $0x50] sm:$0x1] %v4773
        %v4775 = vld [vmem:[#allocation4 + $0x5c] sm:$0x1]
        %v4776 = vsel %vm4753, 0, %v4775
        %4777 = vst [vmem:[#allocation4 + $0x5c] sm:$0x1] %v4776
        %v4778 = vld [vmem:[#allocation4 + $0x68] sm:$0x1]
        %v4779 = vsel %vm4753, 0, %v4778
        %4780 = vst [vmem:[#allocation4 + $0x68] sm:$0x1] %v4779
        %v4781 = vld [vmem:[#allocation4 + $0x74] sm:$0x1]
        %v4782 = vsel %vm4753, 0, %v4781
        %4783 = vst [vmem:[#allocation4 + $0x74] sm:$0x1] %v4782
        %v4784 = vld [vmem:[#allocation4 + $0x80] sm:$0x1]
        %v4785 = vsel %vm4753, 0, %v4784
        %4786 = vst [vmem:[#allocation4 + $0x80] sm:$0x1] %v4785
        %v4787 = vld [vmem:[#allocation4 + $0x8c] sm:$0x1]
        %v4788 = vsel %vm4753, 0, %v4787
        %4789 = vst [vmem:[#allocation4 + $0x8c] sm:$0x1] %v4788
        %v4790 = vld [vmem:[#allocation4 + $0x98] sm:$0x1]
        %v4791 = vsel %vm4753, 0, %v4790
        %4792 = vst [vmem:[#allocation4 + $0x98] sm:$0x1] %v4791
        %v4793 = vld [vmem:[#allocation4 + $0xa4] sm:$0x1]
        %v4794 = vsel %vm4753, 0, %v4793
        %4795 = vst [vmem:[#allocation4 + $0xa4] sm:$0x1] %v4794
        %v4796 = vld [vmem:[#allocation4 + $0xb0] sm:$0x1]
        %v4797 = vsel %vm4753, 0, %v4796
        %4798 = vst [vmem:[#allocation4 + $0xb0] sm:$0x1] %v4797
        %v4799 = vld [vmem:[#allocation4 + $0xbc] sm:$0x1]
        %v4800 = vsel %vm4753, 0, %v4799
        %4801 = vst [vmem:[#allocation4 + $0xbc] sm:$0x1] %v4800
        %v4802 = vld [vmem:[#allocation4 + $0xc8] sm:$0x1]
        %v4803 = vsel %vm4753, 0, %v4802
        %4804 = vst [vmem:[#allocation4 + $0xc8] sm:$0x1] %v4803
        %v4805 = vld [vmem:[#allocation4 + $0xd4] sm:$0x1]
        %v4806 = vsel %vm4753, 0, %v4805
        %4807 = vst [vmem:[#allocation4 + $0xd4] sm:$0x1] %v4806
        %v4808 = vld [vmem:[#allocation5] sm:$0xff]
        %v4809 = vld [vmem:[#allocation5 + $0x8] sm:$0xff]
        %v4810 = vld [vmem:[#allocation5 + $0x10] sm:$0xff]
        %v4811 = vld [vmem:[#allocation5 + $0x18] sm:$0xff]
        %v4812 = vld [vmem:[#allocation5 + $0x20] sm:$0xff]
        %v4813 = vld [vmem:[#allocation5 + $0x28] sm:$0xff]
        %v4814 = vld [vmem:[#allocation5 + $0x30] sm:$0xff]
        %v4815 = vld [vmem:[#allocation5 + $0x38] sm:$0xff]
        %v4816 = vld [vmem:[#allocation5 + $0x40] sm:$0xff]
        %v4817 = vld [vmem:[#allocation5 + $0x48] sm:$0xff]
        %v4818 = vld [vmem:[#allocation5 + $0x50] sm:$0xff]
        %v4819 = vld [vmem:[#allocation5 + $0x58] sm:$0xff]
        %v4820 = vld [vmem:[#allocation5 + $0x60] sm:$0xff]
        %v4821 = vld [vmem:[#allocation5 + $0x68] sm:$0xff]
        %v4822 = vld [vmem:[#allocation5 + $0x70] sm:$0xff]
        %v4823 = vld [vmem:[#allocation5 + $0x78] sm:$0xff]
        %v4824 = vsub.f32 %v4808, %v4681
        %v4825 = vsub.f32 %v4809, %v4681
        %v4826 = vsub.f32 %v4810, %v4681
        %v4827 = vsub.f32 %v4811, %v4681
        %v4828 = vsub.f32 %v4812, %v4681
        %v4829 = vsub.f32 %v4813, %v4681
        %v4830 = vsub.f32 %v4814, %v4681
        %v4831 = vsub.f32 %v4815, %v4681
        %v4832 = vsub.f32 %v4816, %v4681
        %v4833 = vsub.f32 %v4817, %v4681
        %v4834 = vsub.f32 %v4818, %v4681
        %v4835 = vsub.f32 %v4819, %v4681
        %v4836 = vsub.f32 %v4820, %v4681
        %v4837 = vsub.f32 %v4821, %v4681
        %v4838 = vsub.f32 %v4822, %v4681
        %v4839 = vsub.f32 %v4823, %v4681
        %v4840 = vmul.f32 %v4824, %v4687
        %v4841 = vmul.f32 %v4825, %v4687
        %v4842 = vmul.f32 %v4826, %v4687
        %v4843 = vmul.f32 %v4827, %v4687
        %v4844 = vmul.f32 %v4828, %v4687
        %v4845 = vmul.f32 %v4829, %v4687
        %v4846 = vmul.f32 %v4830, %v4687
        %v4847 = vmul.f32 %v4831, %v4687
        %v4848 = vmul.f32 %v4832, %v4687
        %v4849 = vmul.f32 %v4833, %v4687
        %v4850 = vmul.f32 %v4834, %v4687
        %v4851 = vmul.f32 %v4835, %v4687
        %v4852 = vmul.f32 %v4836, %v4687
        %v4853 = vmul.f32 %v4837, %v4687
        %v4854 = vmul.f32 %v4838, %v4687
        %v4855 = vmul.f32 %v4839, %v4687
        %v4856 = vmax.f32 %v4840, 0.0
        %v4857 = vmax.f32 %v4841, 0.0
        %v4858 = vmax.f32 %v4842, 0.0
        %v4859 = vmax.f32 %v4843, 0.0
        %v4860 = vmax.f32 %v4844, 0.0
        %v4861 = vmax.f32 %v4845, 0.0
        %v4862 = vmax.f32 %v4846, 0.0
        %v4863 = vmax.f32 %v4847, 0.0
        %v4864 = vmax.f32 %v4848, 0.0
        %v4865 = vmax.f32 %v4849, 0.0
        %v4866 = vmax.f32 %v4850, 0.0
        %v4867 = vmax.f32 %v4851, 0.0
        %v4868 = vmax.f32 %v4852, 0.0
        %v4869 = vmax.f32 %v4853, 0.0
        %v4870 = vmax.f32 %v4854, 0.0
        %v4871 = vmax.f32 %v4855, 0.0
        %v4872 = vpack.c.bf16 %v4857, %v4856
        %v4873 = vpack.c.bf16 %v4859, %v4858
        %v4874 = vpack.c.bf16 %v4861, %v4860
        %v4875 = vpack.c.bf16 %v4863, %v4862
        %v4876 = vpack.c.bf16 %v4865, %v4864
        %v4877 = vpack.c.bf16 %v4867, %v4866
        %v4878 = vpack.c.bf16 %v4869, %v4868
        %v4879 = vpack.c.bf16 %v4871, %v4870
        %v4888 = vunpack.c.l.b16 %v4872
        %v4889 = vunpack.c.h.b16 %v4872
        %v4890 = vunpack.c.l.b16 %v4873
        %v4891 = vunpack.c.h.b16 %v4873
        %v4892 = vunpack.c.l.b16 %v4874
        %v4893 = vunpack.c.h.b16 %v4874
        %v4894 = vunpack.c.l.b16 %v4875
        %v4895 = vunpack.c.h.b16 %v4875
        %v4896 = vunpack.c.l.b16 %v4876
        %v4897 = vunpack.c.h.b16 %v4876
        %v4898 = vunpack.c.l.b16 %v4877
        %v4899 = vunpack.c.h.b16 %v4877
        %v4900 = vunpack.c.l.b16 %v4878
        %v4901 = vunpack.c.h.b16 %v4878
        %v4902 = vunpack.c.l.b16 %v4879
        %v4903 = vunpack.c.h.b16 %v4879
        %v4904 = vpack.c.b16 %v4888, %v4888
        %v4905 = vpack.c.b16 %v4889, %v4889
        %v4906 = vpack.c.b16 %v4890, %v4890
        %v4907 = vpack.c.b16 %v4891, %v4891
        %v4908 = vpack.c.b16 %v4892, %v4892
        %v4909 = vpack.c.b16 %v4893, %v4893
        %v4910 = vpack.c.b16 %v4894, %v4894
        %v4911 = vpack.c.b16 %v4895, %v4895
        %v4912 = vpack.c.b16 %v4896, %v4896
        %v4913 = vpack.c.b16 %v4897, %v4897
        %v4914 = vpack.c.b16 %v4898, %v4898
        %v4915 = vpack.c.b16 %v4899, %v4899
        %v4916 = vpack.c.b16 %v4900, %v4900
        %v4917 = vpack.c.b16 %v4901, %v4901
        %v4918 = vpack.c.b16 %v4902, %v4902
        %v4919 = vpack.c.b16 %v4903, %v4903
        %vm4920 = vsmask.f32 4368
        %vm4921 = vmor %vm4696, %vm4920
        %v4923 = vshrl.u32 %v4904, 16
        %v4925 = vrot.slane %v4923, 7
        %v4926 = vshll.u32 %v4904, 16
        %v4928 = vor.u32 %v4925, %v4926
        %v4929 = vrot.slane %v4925, 4
        %v4931 = vshrl.u32 %v4905, 16
        %v4933 = vrot.slane %v4931, 7
        %v4934 = vshll.u32 %v4905, 16
        %v4936 = vor.u32 %v4933, %v4934
        %v4937 = vsel %vm4921, %v4929, %v4936
        %v4938 = vrot.slane %v4933, 4
        %v4940 = vshrl.u32 %v4906, 16
        %v4942 = vrot.slane %v4940, 7
        %v4943 = vshll.u32 %v4906, 16
        %v4945 = vor.u32 %v4942, %v4943
        %v4946 = vrot.slane %v4942, 4
        %v4948 = vshrl.u32 %v4907, 16
        %v4950 = vrot.slane %v4948, 7
        %v4951 = vshll.u32 %v4907, 16
        %v4953 = vor.u32 %v4950, %v4951
        %v4954 = vsel %vm4921, %v4946, %v4953
        %v4955 = vrot.slane %v4950, 4
        %v4957 = vshrl.u32 %v4908, 16
        %v4959 = vrot.slane %v4957, 7
        %v4960 = vshll.u32 %v4908, 16
        %v4962 = vor.u32 %v4959, %v4960
        %v4963 = vrot.slane %v4959, 4
        %v4965 = vshrl.u32 %v4909, 16
        %v4967 = vrot.slane %v4965, 7
        %v4968 = vshll.u32 %v4909, 16
        %v4970 = vor.u32 %v4967, %v4968
        %v4971 = vsel %vm4921, %v4963, %v4970
        %v4972 = vrot.slane %v4967, 4
        %v4974 = vshrl.u32 %v4910, 16
        %v4976 = vrot.slane %v4974, 7
        %v4977 = vshll.u32 %v4910, 16
        %v4979 = vor.u32 %v4976, %v4977
        %v4980 = vrot.slane %v4976, 4
        %v4982 = vshrl.u32 %v4911, 16
        %v4984 = vrot.slane %v4982, 7
        %v4985 = vshll.u32 %v4911, 16
        %v4987 = vor.u32 %v4984, %v4985
        %v4988 = vsel %vm4921, %v4980, %v4987
        %v4989 = vrot.slane %v4984, 4
        %v4991 = vshrl.u32 %v4912, 16
        %v4993 = vrot.slane %v4991, 7
        %v4994 = vshll.u32 %v4912, 16
        %v4996 = vor.u32 %v4993, %v4994
        %v4997 = vrot.slane %v4993, 4
        %v4999 = vshrl.u32 %v4913, 16
        %v5001 = vrot.slane %v4999, 7
        %v5002 = vshll.u32 %v4913, 16
        %v5004 = vor.u32 %v5001, %v5002
        %v5005 = vsel %vm4921, %v4997, %v5004
        %v5006 = vrot.slane %v5001, 4
        %v5008 = vshrl.u32 %v4914, 16
        %v5010 = vrot.slane %v5008, 7
        %v5011 = vshll.u32 %v4914, 16
        %v5013 = vor.u32 %v5010, %v5011
        %v5014 = vrot.slane %v5010, 4
        %v5016 = vshrl.u32 %v4915, 16
        %v5018 = vrot.slane %v5016, 7
        %v5019 = vshll.u32 %v4915, 16
        %v5021 = vor.u32 %v5018, %v5019
        %v5022 = vsel %vm4921, %v5014, %v5021
        %v5023 = vrot.slane %v5018, 4
        %v5025 = vshrl.u32 %v4916, 16
        %v5027 = vrot.slane %v5025, 7
        %v5028 = vshll.u32 %v4916, 16
        %v5030 = vor.u32 %v5027, %v5028
        %v5031 = vrot.slane %v5027, 4
        %v5033 = vshrl.u32 %v4917, 16
        %v5035 = vrot.slane %v5033, 7
        %v5036 = vshll.u32 %v4917, 16
        %v5038 = vor.u32 %v5035, %v5036
        %v5039 = vsel %vm4921, %v5031, %v5038
        %v5040 = vrot.slane %v5035, 4
        %v5042 = vshrl.u32 %v4918, 16
        %v5044 = vrot.slane %v5042, 7
        %v5045 = vshll.u32 %v4918, 16
        %v5047 = vor.u32 %v5044, %v5045
        %v5048 = vrot.slane %v5044, 4
        %v5050 = vshrl.u32 %v4919, 16
        %v5052 = vrot.slane %v5050, 7
        %v5053 = vshll.u32 %v4919, 16
        %v5055 = vor.u32 %v5052, %v5053
        %v5056 = vsel %vm4921, %v5048, %v5055
        %v5057 = vrot.slane %v5052, 4
        %s5082 = scalar_lea.vmem [#allocation4], 12
        %vm5083 = vcmask 1043456
        %vm5084 = vmand %vm5083, %vm4752
        %v5085 = vld [vmem:[%s5082] sm:$0xf]
        %v5086 = vsel %vm5084, %v4928, %v5085
        %5087 = vst [vmem:[%s5082] sm:$0xf] %v5086
        %5088 = vst [vmem:[%s5082 + $0x4] sm:$0xf] %v4937
        %v5089 = vld [vmem:[%s5082 + $0x8] sm:$0x1]
        %v5090 = vsel %vm4697, %v4938, %v5089
        %5091 = vst [vmem:[%s5082 + $0x8] sm:$0x1] %v5090
        %v5092 = vld [vmem:[%s5082 + $0xc] sm:$0xf]
        %v5093 = vsel %vm5084, %v4945, %v5092
        %5094 = vst [vmem:[%s5082 + $0xc] sm:$0xf] %v5093
        %5095 = vst [vmem:[%s5082 + $0x10] sm:$0xf] %v4954
        %v5096 = vld [vmem:[%s5082 + $0x14] sm:$0x1]
        %v5097 = vsel %vm4697, %v4955, %v5096
        %5098 = vst [vmem:[%s5082 + $0x14] sm:$0x1] %v5097
        %v5099 = vld [vmem:[%s5082 + $0x18] sm:$0xf]
        %v5100 = vsel %vm5084, %v4962, %v5099
        %5101 = vst [vmem:[%s5082 + $0x18] sm:$0xf] %v5100
        %5102 = vst [vmem:[%s5082 + $0x1c] sm:$0xf] %v4971
        %v5103 = vld [vmem:[%s5082 + $0x20] sm:$0x1]
        %v5104 = vsel %vm4697, %v4972, %v5103
        %5105 = vst [vmem:[%s5082 + $0x20] sm:$0x1] %v5104
        %v5106 = vld [vmem:[%s5082 + $0x24] sm:$0xf]
        %v5107 = vsel %vm5084, %v4979, %v5106
        %5108 = vst [vmem:[%s5082 + $0x24] sm:$0xf] %v5107
        %5109 = vst [vmem:[%s5082 + $0x28] sm:$0xf] %v4988
        %v5110 = vld [vmem:[%s5082 + $0x2c] sm:$0x1]
        %v5111 = vsel %vm4697, %v4989, %v5110
        %5112 = vst [vmem:[%s5082 + $0x2c] sm:$0x1] %v5111
        %v5113 = vld [vmem:[%s5082 + $0x30] sm:$0xf]
        %v5114 = vsel %vm5084, %v4996, %v5113
        %5115 = vst [vmem:[%s5082 + $0x30] sm:$0xf] %v5114
        %5116 = vst [vmem:[%s5082 + $0x34] sm:$0xf] %v5005
        %v5117 = vld [vmem:[%s5082 + $0x38] sm:$0x1]
        %v5118 = vsel %vm4697, %v5006, %v5117
        %5119 = vst [vmem:[%s5082 + $0x38] sm:$0x1] %v5118
        %v5120 = vld [vmem:[%s5082 + $0x3c] sm:$0xf]
        %v5121 = vsel %vm5084, %v5013, %v5120
        %5122 = vst [vmem:[%s5082 + $0x3c] sm:$0xf] %v5121
        %5123 = vst [vmem:[%s5082 + $0x40] sm:$0xf] %v5022
        %v5124 = vld [vmem:[%s5082 + $0x44] sm:$0x1]
        %v5125 = vsel %vm4697, %v5023, %v5124
        %5126 = vst [vmem:[%s5082 + $0x44] sm:$0x1] %v5125
        %v5127 = vld [vmem:[%s5082 + $0x48] sm:$0xf]
        %v5128 = vsel %vm5084, %v5030, %v5127
        %5129 = vst [vmem:[%s5082 + $0x48] sm:$0xf] %v5128
        %5130 = vst [vmem:[%s5082 + $0x4c] sm:$0xf] %v5039
        %v5131 = vld [vmem:[%s5082 + $0x50] sm:$0x1]
        %v5132 = vsel %vm4697, %v5040, %v5131
        %5133 = vst [vmem:[%s5082 + $0x50] sm:$0x1] %v5132
        %v5134 = vld [vmem:[%s5082 + $0x54] sm:$0xf]
        %v5135 = vsel %vm5084, %v5047, %v5134
        %5136 = vst [vmem:[%s5082 + $0x54] sm:$0xf] %v5135
        %5137 = vst [vmem:[%s5082 + $0x58] sm:$0xf] %v5056
        %v5138 = vld [vmem:[%s5082 + $0x5c] sm:$0x1]
        %v5139 = vsel %vm4697, %v5057, %v5138
        %5140 = vst [vmem:[%s5082 + $0x5c] sm:$0x1] %v5139
        %v5141 = vld [vmem:[#allocation5 + $0x80] sm:$0xff]
        %v5142 = vld [vmem:[#allocation5 + $0x88] sm:$0xff]
        %v5143 = vld [vmem:[#allocation5 + $0x90] sm:$0xff]
        %v5144 = vld [vmem:[#allocation5 + $0x98] sm:$0xff]
        %v5145 = vld [vmem:[#allocation5 + $0xa0] sm:$0xff]
        %v5146 = vld [vmem:[#allocation5 + $0xa8] sm:$0xff]
        %v5147 = vld [vmem:[#allocation5 + $0xb0] sm:$0xff]
        %v5148 = vld [vmem:[#allocation5 + $0xb8] sm:$0xff]
        %v5149 = vld [vmem:[#allocation5 + $0xc0] sm:$0xff]
        %v5150 = vld [vmem:[#allocation5 + $0xc8] sm:$0xff]
        %v5151 = vld [vmem:[#allocation5 + $0xd0] sm:$0xff]
        %v5152 = vld [vmem:[#allocation5 + $0xd8] sm:$0xff]
        %v5153 = vld [vmem:[#allocation5 + $0xe0] sm:$0xff]
        %v5154 = vld [vmem:[#allocation5 + $0xe8] sm:$0xff]
        %v5155 = vld [vmem:[#allocation5 + $0xf0] sm:$0xff]
        %v5156 = vld [vmem:[#allocation5 + $0xf8] sm:$0xff]
        %v5157 = vsub.f32 %v5141, %v4681
        %v5158 = vsub.f32 %v5142, %v4681
        %v5159 = vsub.f32 %v5143, %v4681
        %v5160 = vsub.f32 %v5144, %v4681
        %v5161 = vsub.f32 %v5145, %v4681
        %v5162 = vsub.f32 %v5146, %v4681
        %v5163 = vsub.f32 %v5147, %v4681
        %v5164 = vsub.f32 %v5148, %v4681
        %v5165 = vsub.f32 %v5149, %v4681
        %v5166 = vsub.f32 %v5150, %v4681
        %v5167 = vsub.f32 %v5151, %v4681
        %v5168 = vsub.f32 %v5152, %v4681
        %v5169 = vsub.f32 %v5153, %v4681
        %v5170 = vsub.f32 %v5154, %v4681
        %v5171 = vsub.f32 %v5155, %v4681
        %v5172 = vsub.f32 %v5156, %v4681
        %v5173 = vmul.f32 %v5157, %v4687
        %v5174 = vmul.f32 %v5158, %v4687
        %v5175 = vmul.f32 %v5159, %v4687
        %v5176 = vmul.f32 %v5160, %v4687
        %v5177 = vmul.f32 %v5161, %v4687
        %v5178 = vmul.f32 %v5162, %v4687
        %v5179 = vmul.f32 %v5163, %v4687
        %v5180 = vmul.f32 %v5164, %v4687
        %v5181 = vmul.f32 %v5165, %v4687
        %v5182 = vmul.f32 %v5166, %v4687
        %v5183 = vmul.f32 %v5167, %v4687
        %v5184 = vmul.f32 %v5168, %v4687
        %v5185 = vmul.f32 %v5169, %v4687
        %v5186 = vmul.f32 %v5170, %v4687
        %v5187 = vmul.f32 %v5171, %v4687
        %v5188 = vmul.f32 %v5172, %v4687
        %v5189 = vmax.f32 %v5173, 0.0
        %v5190 = vmax.f32 %v5174, 0.0
        %v5191 = vmax.f32 %v5175, 0.0
        %v5192 = vmax.f32 %v5176, 0.0
        %v5193 = vmax.f32 %v5177, 0.0
        %v5194 = vmax.f32 %v5178, 0.0
        %v5195 = vmax.f32 %v5179, 0.0
        %v5196 = vmax.f32 %v5180, 0.0
        %v5197 = vmax.f32 %v5181, 0.0
        %v5198 = vmax.f32 %v5182, 0.0
        %v5199 = vmax.f32 %v5183, 0.0
        %v5200 = vmax.f32 %v5184, 0.0
        %v5201 = vmax.f32 %v5185, 0.0
        %v5202 = vmax.f32 %v5186, 0.0
        %v5203 = vmax.f32 %v5187, 0.0
        %v5204 = vmax.f32 %v5188, 0.0
        %v5205 = vpack.c.bf16 %v5190, %v5189
        %v5206 = vpack.c.bf16 %v5192, %v5191
        %v5207 = vpack.c.bf16 %v5194, %v5193
        %v5208 = vpack.c.bf16 %v5196, %v5195
        %v5209 = vpack.c.bf16 %v5198, %v5197
        %v5210 = vpack.c.bf16 %v5200, %v5199
        %v5211 = vpack.c.bf16 %v5202, %v5201
        %v5212 = vpack.c.bf16 %v5204, %v5203
        %v5221 = vunpack.c.l.b16 %v5205
        %v5222 = vunpack.c.h.b16 %v5205
        %v5223 = vunpack.c.l.b16 %v5206
        %v5224 = vunpack.c.h.b16 %v5206
        %v5225 = vunpack.c.l.b16 %v5207
        %v5226 = vunpack.c.h.b16 %v5207
        %v5227 = vunpack.c.l.b16 %v5208
        %v5228 = vunpack.c.h.b16 %v5208
        %v5229 = vunpack.c.l.b16 %v5209
        %v5230 = vunpack.c.h.b16 %v5209
        %v5231 = vunpack.c.l.b16 %v5210
        %v5232 = vunpack.c.h.b16 %v5210
        %v5233 = vunpack.c.l.b16 %v5211
        %v5234 = vunpack.c.h.b16 %v5211
        %v5235 = vunpack.c.l.b16 %v5212
        %v5236 = vunpack.c.h.b16 %v5212
        %v5237 = vpack.c.b16 %v5221, %v5221
        %v5238 = vpack.c.b16 %v5222, %v5222
        %v5239 = vpack.c.b16 %v5223, %v5223
        %v5240 = vpack.c.b16 %v5224, %v5224
        %v5241 = vpack.c.b16 %v5225, %v5225
        %v5242 = vpack.c.b16 %v5226, %v5226
        %v5243 = vpack.c.b16 %v5227, %v5227
        %v5244 = vpack.c.b16 %v5228, %v5228
        %v5245 = vpack.c.b16 %v5229, %v5229
        %v5246 = vpack.c.b16 %v5230, %v5230
        %v5247 = vpack.c.b16 %v5231, %v5231
        %v5248 = vpack.c.b16 %v5232, %v5232
        %v5249 = vpack.c.b16 %v5233, %v5233
        %v5250 = vpack.c.b16 %v5234, %v5234
        %v5251 = vpack.c.b16 %v5235, %v5235
        %v5252 = vpack.c.b16 %v5236, %v5236
        %v5254 = vshrl.u32 %v5237, 16
        %v5256 = vrot.slane %v5254, 7
        %v5257 = vshll.u32 %v5237, 16
        %v5259 = vor.u32 %v5256, %v5257
        %v5260 = vrot.slane %v5256, 4
        %v5262 = vshrl.u32 %v5238, 16
        %v5264 = vrot.slane %v5262, 7
        %v5265 = vshll.u32 %v5238, 16
        %v5267 = vor.u32 %v5264, %v5265
        %v5268 = vsel %vm4921, %v5260, %v5267
        %v5269 = vrot.slane %v5264, 4
        %v5271 = vshrl.u32 %v5239, 16
        %v5273 = vrot.slane %v5271, 7
        %v5274 = vshll.u32 %v5239, 16
        %v5276 = vor.u32 %v5273, %v5274
        %v5277 = vrot.slane %v5273, 4
        %v5279 = vshrl.u32 %v5240, 16
        %v5281 = vrot.slane %v5279, 7
        %v5282 = vshll.u32 %v5240, 16
        %v5284 = vor.u32 %v5281, %v5282
        %v5285 = vsel %vm4921, %v5277, %v5284
        %v5286 = vrot.slane %v5281, 4
        %v5288 = vshrl.u32 %v5241, 16
        %v5290 = vrot.slane %v5288, 7
        %v5291 = vshll.u32 %v5241, 16
        %v5293 = vor.u32 %v5290, %v5291
        %v5294 = vrot.slane %v5290, 4
        %v5296 = vshrl.u32 %v5242, 16
        %v5298 = vrot.slane %v5296, 7
        %v5299 = vshll.u32 %v5242, 16
        %v5301 = vor.u32 %v5298, %v5299
        %v5302 = vsel %vm4921, %v5294, %v5301
        %v5303 = vrot.slane %v5298, 4
        %v5305 = vshrl.u32 %v5243, 16
        %v5307 = vrot.slane %v5305, 7
        %v5308 = vshll.u32 %v5243, 16
        %v5310 = vor.u32 %v5307, %v5308
        %v5311 = vrot.slane %v5307, 4
        %v5313 = vshrl.u32 %v5244, 16
        %v5315 = vrot.slane %v5313, 7
        %v5316 = vshll.u32 %v5244, 16
        %v5318 = vor.u32 %v5315, %v5316
        %v5319 = vsel %vm4921, %v5311, %v5318
        %v5320 = vrot.slane %v5315, 4
        %v5322 = vshrl.u32 %v5245, 16
        %v5324 = vrot.slane %v5322, 7
        %v5325 = vshll.u32 %v5245, 16
        %v5327 = vor.u32 %v5324, %v5325
        %v5328 = vrot.slane %v5324, 4
        %v5330 = vshrl.u32 %v5246, 16
        %v5332 = vrot.slane %v5330, 7
        %v5333 = vshll.u32 %v5246, 16
        %v5335 = vor.u32 %v5332, %v5333
        %v5336 = vsel %vm4921, %v5328, %v5335
        %v5337 = vrot.slane %v5332, 4
        %v5339 = vshrl.u32 %v5247, 16
        %v5341 = vrot.slane %v5339, 7
        %v5342 = vshll.u32 %v5247, 16
        %v5344 = vor.u32 %v5341, %v5342
        %v5345 = vrot.slane %v5341, 4
        %v5347 = vshrl.u32 %v5248, 16
        %v5349 = vrot.slane %v5347, 7
        %v5350 = vshll.u32 %v5248, 16
        %v5352 = vor.u32 %v5349, %v5350
        %v5353 = vsel %vm4921, %v5345, %v5352
        %v5354 = vrot.slane %v5349, 4
        %v5356 = vshrl.u32 %v5249, 16
        %v5358 = vrot.slane %v5356, 7
        %v5359 = vshll.u32 %v5249, 16
        %v5361 = vor.u32 %v5358, %v5359
        %v5362 = vrot.slane %v5358, 4
        %v5364 = vshrl.u32 %v5250, 16
        %v5366 = vrot.slane %v5364, 7
        %v5367 = vshll.u32 %v5250, 16
        %v5369 = vor.u32 %v5366, %v5367
        %v5370 = vsel %vm4921, %v5362, %v5369
        %v5371 = vrot.slane %v5366, 4
        %v5373 = vshrl.u32 %v5251, 16
        %v5375 = vrot.slane %v5373, 7
        %v5376 = vshll.u32 %v5251, 16
        %v5378 = vor.u32 %v5375, %v5376
        %v5379 = vrot.slane %v5375, 4
        %v5381 = vshrl.u32 %v5252, 16
        %v5383 = vrot.slane %v5381, 7
        %v5384 = vshll.u32 %v5252, 16
        %v5386 = vor.u32 %v5383, %v5384
        %v5387 = vsel %vm4921, %v5379, %v5386
        %v5388 = vrot.slane %v5383, 4
        %s5413 = scalar_lea.vmem [#allocation4], 108
        %v5414 = vld [vmem:[%s5413] sm:$0xf]
        %v5415 = vsel %vm5084, %v5259, %v5414
        %5416 = vst [vmem:[%s5413] sm:$0xf] %v5415
        %5417 = vst [vmem:[%s5413 + $0x4] sm:$0xf] %v5268
        %v5418 = vld [vmem:[%s5413 + $0x8] sm:$0x1]
        %v5419 = vsel %vm4697, %v5269, %v5418
        %5420 = vst [vmem:[%s5413 + $0x8] sm:$0x1] %v5419
        %v5421 = vld [vmem:[%s5413 + $0xc] sm:$0xf]
        %v5422 = vsel %vm5084, %v5276, %v5421
        %5423 = vst [vmem:[%s5413 + $0xc] sm:$0xf] %v5422
        %5424 = vst [vmem:[%s5413 + $0x10] sm:$0xf] %v5285
        %v5425 = vld [vmem:[%s5413 + $0x14] sm:$0x1]
        %v5426 = vsel %vm4697, %v5286, %v5425
        %5427 = vst [vmem:[%s5413 + $0x14] sm:$0x1] %v5426
        %v5428 = vld [vmem:[%s5413 + $0x18] sm:$0xf]
        %v5429 = vsel %vm5084, %v5293, %v5428
        %5430 = vst [vmem:[%s5413 + $0x18] sm:$0xf] %v5429
        %5431 = vst [vmem:[%s5413 + $0x1c] sm:$0xf] %v5302
        %v5432 = vld [vmem:[%s5413 + $0x20] sm:$0x1]
        %v5433 = vsel %vm4697, %v5303, %v5432
        %5434 = vst [vmem:[%s5413 + $0x20] sm:$0x1] %v5433
        %v5435 = vld [vmem:[%s5413 + $0x24] sm:$0xf]
        %v5436 = vsel %vm5084, %v5310, %v5435
        %5437 = vst [vmem:[%s5413 + $0x24] sm:$0xf] %v5436
        %5438 = vst [vmem:[%s5413 + $0x28] sm:$0xf] %v5319
        %v5439 = vld [vmem:[%s5413 + $0x2c] sm:$0x1]
        %v5440 = vsel %vm4697, %v5320, %v5439
        %5441 = vst [vmem:[%s5413 + $0x2c] sm:$0x1] %v5440
        %v5442 = vld [vmem:[%s5413 + $0x30] sm:$0xf]
        %v5443 = vsel %vm5084, %v5327, %v5442
        %5444 = vst [vmem:[%s5413 + $0x30] sm:$0xf] %v5443
        %5445 = vst [vmem:[%s5413 + $0x34] sm:$0xf] %v5336
        %v5446 = vld [vmem:[%s5413 + $0x38] sm:$0x1]
        %v5447 = vsel %vm4697, %v5337, %v5446
        %5448 = vst [vmem:[%s5413 + $0x38] sm:$0x1] %v5447
        %v5449 = vld [vmem:[%s5413 + $0x3c] sm:$0xf]
        %v5450 = vsel %vm5084, %v5344, %v5449
        %5451 = vst [vmem:[%s5413 + $0x3c] sm:$0xf] %v5450
        %5452 = vst [vmem:[%s5413 + $0x40] sm:$0xf] %v5353
        %v5453 = vld [vmem:[%s5413 + $0x44] sm:$0x1]
        %v5454 = vsel %vm4697, %v5354, %v5453
        %5455 = vst [vmem:[%s5413 + $0x44] sm:$0x1] %v5454
        %v5456 = vld [vmem:[%s5413 + $0x48] sm:$0xf]
        %v5457 = vsel %vm5084, %v5361, %v5456
        %5458 = vst [vmem:[%s5413 + $0x48] sm:$0xf] %v5457
        %5459 = vst [vmem:[%s5413 + $0x4c] sm:$0xf] %v5370
        %v5460 = vld [vmem:[%s5413 + $0x50] sm:$0x1]
        %v5461 = vsel %vm4697, %v5371, %v5460
        %5462 = vst [vmem:[%s5413 + $0x50] sm:$0x1] %v5461
        %v5463 = vld [vmem:[%s5413 + $0x54] sm:$0xf]
        %v5464 = vsel %vm5084, %v5378, %v5463
        %5465 = vst [vmem:[%s5413 + $0x54] sm:$0xf] %v5464
        %5466 = vst [vmem:[%s5413 + $0x58] sm:$0xf] %v5387
        %v5467 = vld [vmem:[%s5413 + $0x5c] sm:$0x1]
        %v5468 = vsel %vm4697, %v5388, %v5467
        %5469 = vst [vmem:[%s5413 + $0x5c] sm:$0x1] %v5468
        %v5470 = vld [vmem:[#allocation4] sm:$0xf]
        %v5471 = vld [vmem:[#allocation4 + $0x4] sm:$0xf]
        %v5472 = vld [vmem:[#allocation4 + $0xc] sm:$0xf]
        %v5473 = vld [vmem:[#allocation4 + $0x10] sm:$0xf]
        %v5474 = vld [vmem:[#allocation4 + $0x18] sm:$0xf]
        %v5475 = vld [vmem:[#allocation4 + $0x1c] sm:$0xf]
        %v5476 = vld [vmem:[#allocation4 + $0x24] sm:$0xf]
        %v5477 = vld [vmem:[#allocation4 + $0x28] sm:$0xf]
        %v5478 = vld [vmem:[#allocation4 + $0x30] sm:$0xf]
        %v5479 = vld [vmem:[#allocation4 + $0x34] sm:$0xf]
        %v5480 = vld [vmem:[#allocation4 + $0x3c] sm:$0xf]
        %v5481 = vld [vmem:[#allocation4 + $0x40] sm:$0xf]
        %v5482 = vld [vmem:[#allocation4 + $0x48] sm:$0xf]
        %v5483 = vld [vmem:[#allocation4 + $0x4c] sm:$0xf]
        %v5484 = vld [vmem:[#allocation4 + $0x54] sm:$0xf]
        %v5485 = vld [vmem:[#allocation4 + $0x58] sm:$0xf]
        %v5486 = vld [vmem:[#allocation4 + $0x60] sm:$0xf]
        %v5487 = vld [vmem:[#allocation4 + $0x64] sm:$0xf]
        %v5488 = vld [vmem:[#allocation4 + $0x6c] sm:$0xf]
        %v5489 = vld [vmem:[#allocation4 + $0x70] sm:$0xf]
        %v5490 = vld [vmem:[#allocation4 + $0x78] sm:$0xf]
        %v5491 = vld [vmem:[#allocation4 + $0x7c] sm:$0xf]
        %v5492 = vld [vmem:[#allocation4 + $0x84] sm:$0xf]
        %v5493 = vld [vmem:[#allocation4 + $0x88] sm:$0xf]
        %v5494 = vld [vmem:[#allocation4 + $0x90] sm:$0xf]
        %v5495 = vld [vmem:[#allocation4 + $0x94] sm:$0xf]
        %v5496 = vld [vmem:[#allocation4 + $0x9c] sm:$0xf]
        %v5497 = vld [vmem:[#allocation4 + $0xa0] sm:$0xf]
        %v5498 = vld [vmem:[#allocation4 + $0xa8] sm:$0xf]
        %v5499 = vld [vmem:[#allocation4 + $0xac] sm:$0xf]
        %v5500 = vld [vmem:[#allocation4 + $0xb4] sm:$0xf]
        %v5501 = vld [vmem:[#allocation4 + $0xb8] sm:$0xf]
        %v5502 = vld [vmem:[#allocation4 + $0xc0] sm:$0xf]
        %v5503 = vld [vmem:[#allocation4 + $0xc4] sm:$0xf]
        %v5504 = vld [vmem:[#allocation4 + $0xcc] sm:$0xf]
        %v5505 = vld [vmem:[#allocation4 + $0xd0] sm:$0xf]
        %v5542 = vunpack.c.l.b16 %v5470
        %v5543 = vunpack.c.l.b16 %v5471
        %v5544 = vunpack.c.l.b16 %v5472
        %v5545 = vunpack.c.l.b16 %v5473
        %v5546 = vunpack.c.l.b16 %v5474
        %v5547 = vunpack.c.l.b16 %v5475
        %v5548 = vunpack.c.l.b16 %v5476
        %v5549 = vunpack.c.l.b16 %v5477
        %v5550 = vunpack.c.l.b16 %v5478
        %v5551 = vunpack.c.l.b16 %v5479
        %v5552 = vunpack.c.l.b16 %v5480
        %v5553 = vunpack.c.l.b16 %v5481
        %v5554 = vunpack.c.l.b16 %v5482
        %v5555 = vunpack.c.l.b16 %v5483
        %v5556 = vunpack.c.l.b16 %v5484
        %v5557 = vunpack.c.l.b16 %v5485
        %v5558 = vunpack.c.l.b16 %v5486
        %v5559 = vunpack.c.l.b16 %v5487
        %v5560 = vunpack.c.l.b16 %v5488
        %v5561 = vunpack.c.l.b16 %v5489
        %v5562 = vunpack.c.l.b16 %v5490
        %v5563 = vunpack.c.l.b16 %v5491
        %v5564 = vunpack.c.l.b16 %v5492
        %v5565 = vunpack.c.l.b16 %v5493
        %v5566 = vunpack.c.l.b16 %v5494
        %v5567 = vunpack.c.l.b16 %v5495
        %v5568 = vunpack.c.l.b16 %v5496
        %v5569 = vunpack.c.l.b16 %v5497
        %v5570 = vunpack.c.l.b16 %v5498
        %v5571 = vunpack.c.l.b16 %v5499
        %v5572 = vunpack.c.l.b16 %v5500
        %v5573 = vunpack.c.l.b16 %v5501
        %v5574 = vunpack.c.l.b16 %v5502
        %v5575 = vunpack.c.l.b16 %v5503
        %v5576 = vunpack.c.l.b16 %v5504
        %v5577 = vunpack.c.l.b16 %v5505
        %v5578 = vpack.c.b16 %v5543, %v5542
        %v5579 = vpack.c.b16 %v5545, %v5544
        %v5580 = vpack.c.b16 %v5547, %v5546
        %v5581 = vpack.c.b16 %v5549, %v5548
        %v5582 = vpack.c.b16 %v5551, %v5550
        %v5583 = vpack.c.b16 %v5553, %v5552
        %v5584 = vpack.c.b16 %v5555, %v5554
        %v5585 = vpack.c.b16 %v5557, %v5556
        %v5586 = vpack.c.b16 %v5559, %v5558
        %v5587 = vpack.c.b16 %v5561, %v5560
        %v5588 = vpack.c.b16 %v5563, %v5562
        %v5589 = vpack.c.b16 %v5565, %v5564
        %v5590 = vpack.c.b16 %v5567, %v5566
        %v5591 = vpack.c.b16 %v5569, %v5568
        %v5592 = vpack.c.b16 %v5571, %v5570
        %v5593 = vpack.c.b16 %v5573, %v5572
        %v5594 = vpack.c.b16 %v5575, %v5574
        %v5595 = vpack.c.b16 %v5577, %v5576
        %5614 = vst [vmem:[#allocation3] sm:$0xff] %v5578
        %5615 = vst [vmem:[#allocation3 + $0x8] sm:$0xff] %v5579
        %5616 = vst [vmem:[#allocation3 + $0x10] sm:$0xff] %v5580
        %5617 = vst [vmem:[#allocation3 + $0x18] sm:$0xff] %v5581
        %5618 = vst [vmem:[#allocation3 + $0x20] sm:$0xff] %v5582
        %5619 = vst [vmem:[#allocation3 + $0x28] sm:$0xff] %v5583
        %5620 = vst [vmem:[#allocation3 + $0x30] sm:$0xff] %v5584
        %5621 = vst [vmem:[#allocation3 + $0x38] sm:$0xff] %v5585
        %5622 = vst [vmem:[#allocation3 + $0x40] sm:$0xff] %v5586
        %5623 = vst [vmem:[#allocation3 + $0x48] sm:$0xff] %v5587
        %5624 = vst [vmem:[#allocation3 + $0x50] sm:$0xff] %v5588
        %5625 = vst [vmem:[#allocation3 + $0x58] sm:$0xff] %v5589
        %5626 = vst [vmem:[#allocation3 + $0x60] sm:$0xff] %v5590
        %5627 = vst [vmem:[#allocation3 + $0x68] sm:$0xff] %v5591
        %5628 = vst [vmem:[#allocation3 + $0x70] sm:$0xff] %v5592
        %5629 = vst [vmem:[#allocation3 + $0x78] sm:$0xff] %v5593
        %5630 = vst [vmem:[#allocation3 + $0x80] sm:$0xff] %v5594
        %5631 = vst [vmem:[#allocation3 + $0x88] sm:$0xff] %v5595
        %v5632 = vld [vmem:[#allocation4] sm:$0xf]
        %v5633 = vld [vmem:[#allocation4 + $0x4] sm:$0xf]
        %v5634 = vld [vmem:[#allocation4 + $0x8] sm:$0x1]
        %v5635 = vld [vmem:[#allocation4 + $0xc] sm:$0xf]
        %v5636 = vld [vmem:[#allocation4 + $0x10] sm:$0xf]
        %v5637 = vld [vmem:[#allocation4 + $0x14] sm:$0x1]
        %v5638 = vld [vmem:[#allocation4 + $0x18] sm:$0xf]
        %v5639 = vld [vmem:[#allocation4 + $0x1c] sm:$0xf]
        %v5640 = vld [vmem:[#allocation4 + $0x20] sm:$0x1]
        %v5641 = vld [vmem:[#allocation4 + $0x24] sm:$0xf]
        %v5642 = vld [vmem:[#allocation4 + $0x28] sm:$0xf]
        %v5643 = vld [vmem:[#allocation4 + $0x2c] sm:$0x1]
        %v5644 = vld [vmem:[#allocation4 + $0x30] sm:$0xf]
        %v5645 = vld [vmem:[#allocation4 + $0x34] sm:$0xf]
        %v5646 = vld [vmem:[#allocation4 + $0x38] sm:$0x1]
        %v5647 = vld [vmem:[#allocation4 + $0x3c] sm:$0xf]
        %v5648 = vld [vmem:[#allocation4 + $0x40] sm:$0xf]
        %v5649 = vld [vmem:[#allocation4 + $0x44] sm:$0x1]
        %v5650 = vld [vmem:[#allocation4 + $0x48] sm:$0xf]
        %v5651 = vld [vmem:[#allocation4 + $0x4c] sm:$0xf]
        %v5652 = vld [vmem:[#allocation4 + $0x50] sm:$0x1]
        %v5653 = vld [vmem:[#allocation4 + $0x54] sm:$0xf]
        %v5654 = vld [vmem:[#allocation4 + $0x58] sm:$0xf]
        %v5655 = vld [vmem:[#allocation4 + $0x5c] sm:$0x1]
        %v5656 = vld [vmem:[#allocation4 + $0x60] sm:$0xf]
        %v5657 = vld [vmem:[#allocation4 + $0x64] sm:$0xf]
        %v5658 = vld [vmem:[#allocation4 + $0x68] sm:$0x1]
        %v5659 = vld [vmem:[#allocation4 + $0x6c] sm:$0xf]
        %v5660 = vld [vmem:[#allocation4 + $0x70] sm:$0xf]
        %v5661 = vld [vmem:[#allocation4 + $0x74] sm:$0x1]
        %v5662 = vld [vmem:[#allocation4 + $0x78] sm:$0xf]
        %v5663 = vld [vmem:[#allocation4 + $0x7c] sm:$0xf]
        %v5664 = vld [vmem:[#allocation4 + $0x80] sm:$0x1]
        %v5665 = vld [vmem:[#allocation4 + $0x84] sm:$0xf]
        %v5666 = vld [vmem:[#allocation4 + $0x88] sm:$0xf]
        %v5667 = vld [vmem:[#allocation4 + $0x8c] sm:$0x1]
        %v5668 = vld [vmem:[#allocation4 + $0x90] sm:$0xf]
        %v5669 = vld [vmem:[#allocation4 + $0x94] sm:$0xf]
        %v5670 = vld [vmem:[#allocation4 + $0x98] sm:$0x1]
        %v5671 = vld [vmem:[#allocation4 + $0x9c] sm:$0xf]
        %v5672 = vld [vmem:[#allocation4 + $0xa0] sm:$0xf]
        %v5673 = vld [vmem:[#allocation4 + $0xa4] sm:$0x1]
        %v5674 = vld [vmem:[#allocation4 + $0xa8] sm:$0xf]
        %v5675 = vld [vmem:[#allocation4 + $0xac] sm:$0xf]
        %v5676 = vld [vmem:[#allocation4 + $0xb0] sm:$0x1]
        %v5677 = vld [vmem:[#allocation4 + $0xb4] sm:$0xf]
        %v5678 = vld [vmem:[#allocation4 + $0xb8] sm:$0xf]
        %v5679 = vld [vmem:[#allocation4 + $0xbc] sm:$0x1]
        %v5680 = vld [vmem:[#allocation4 + $0xc0] sm:$0xf]
        %v5681 = vld [vmem:[#allocation4 + $0xc4] sm:$0xf]
        %v5682 = vld [vmem:[#allocation4 + $0xc8] sm:$0x1]
        %v5683 = vld [vmem:[#allocation4 + $0xcc] sm:$0xf]
        %v5684 = vld [vmem:[#allocation4 + $0xd0] sm:$0xf]
        %v5685 = vld [vmem:[#allocation4 + $0xd4] sm:$0x1]
        %v5687 = vshrl.u32 %v5632, 16
        %v5689 = vrot.slane %v5687, 4
        %v5690 = vshll.u32 %v5632, 16
        %v5692 = vrot.slane %v5690, 5
        %v5693 = vor.u32 %v5689, %v5692
        %v5694 = vrot.slane %v5693, 4
        %v5696 = vshll.u32 %v5633, 16
        %v5698 = vrot.slane %v5696, 5
        %v5699 = vsel %vm403, %v5694, %v5698
        %v5700 = vshrl.u32 %v5633, 16
        %v5702 = vrot.slane %v5700, 4
        %v5703 = vor.u32 %v5702, %v5698
        %v5704 = vrot.slane %v5703, 4
        %v5706 = vshll.u32 %v5634, 16
        %v5708 = vrot.slane %v5706, 5
        %v5709 = vsel %vm403, %v5704, %v5708
        %v5711 = vshrl.u32 %v5635, 16
        %v5713 = vrot.slane %v5711, 4
        %v5714 = vshll.u32 %v5635, 16
        %v5716 = vrot.slane %v5714, 5
        %v5717 = vor.u32 %v5713, %v5716
        %v5718 = vrot.slane %v5717, 4
        %v5720 = vshll.u32 %v5636, 16
        %v5722 = vrot.slane %v5720, 5
        %v5723 = vsel %vm403, %v5718, %v5722
        %v5724 = vshrl.u32 %v5636, 16
        %v5726 = vrot.slane %v5724, 4
        %v5727 = vor.u32 %v5726, %v5722
        %v5728 = vrot.slane %v5727, 4
        %v5730 = vshll.u32 %v5637, 16
        %v5732 = vrot.slane %v5730, 5
        %v5733 = vsel %vm403, %v5728, %v5732
        %v5735 = vshrl.u32 %v5638, 16
        %v5737 = vrot.slane %v5735, 4
        %v5738 = vshll.u32 %v5638, 16
        %v5740 = vrot.slane %v5738, 5
        %v5741 = vor.u32 %v5737, %v5740
        %v5742 = vrot.slane %v5741, 4
        %v5744 = vshll.u32 %v5639, 16
        %v5746 = vrot.slane %v5744, 5
        %v5747 = vsel %vm403, %v5742, %v5746
        %v5748 = vshrl.u32 %v5639, 16
        %v5750 = vrot.slane %v5748, 4
        %v5751 = vor.u32 %v5750, %v5746
        %v5752 = vrot.slane %v5751, 4
        %v5754 = vshll.u32 %v5640, 16
        %v5756 = vrot.slane %v5754, 5
        %v5757 = vsel %vm403, %v5752, %v5756
        %v5759 = vshrl.u32 %v5641, 16
        %v5761 = vrot.slane %v5759, 4
        %v5762 = vshll.u32 %v5641, 16
        %v5764 = vrot.slane %v5762, 5
        %v5765 = vor.u32 %v5761, %v5764
        %v5766 = vrot.slane %v5765, 4
        %v5768 = vshll.u32 %v5642, 16
        %v5770 = vrot.slane %v5768, 5
        %v5771 = vsel %vm403, %v5766, %v5770
        %v5772 = vshrl.u32 %v5642, 16
        %v5774 = vrot.slane %v5772, 4
        %v5775 = vor.u32 %v5774, %v5770
        %v5776 = vrot.slane %v5775, 4
        %v5778 = vshll.u32 %v5643, 16
        %v5780 = vrot.slane %v5778, 5
        %v5781 = vsel %vm403, %v5776, %v5780
        %v5783 = vshrl.u32 %v5644, 16
        %v5785 = vrot.slane %v5783, 4
        %v5786 = vshll.u32 %v5644, 16
        %v5788 = vrot.slane %v5786, 5
        %v5789 = vor.u32 %v5785, %v5788
        %v5790 = vrot.slane %v5789, 4
        %v5792 = vshll.u32 %v5645, 16
        %v5794 = vrot.slane %v5792, 5
        %v5795 = vsel %vm403, %v5790, %v5794
        %v5796 = vshrl.u32 %v5645, 16
        %v5798 = vrot.slane %v5796, 4
        %v5799 = vor.u32 %v5798, %v5794
        %v5800 = vrot.slane %v5799, 4
        %v5802 = vshll.u32 %v5646, 16
        %v5804 = vrot.slane %v5802, 5
        %v5805 = vsel %vm403, %v5800, %v5804
        %v5807 = vshrl.u32 %v5647, 16
        %v5809 = vrot.slane %v5807, 4
        %v5810 = vshll.u32 %v5647, 16
        %v5812 = vrot.slane %v5810, 5
        %v5813 = vor.u32 %v5809, %v5812
        %v5814 = vrot.slane %v5813, 4
        %v5816 = vshll.u32 %v5648, 16
        %v5818 = vrot.slane %v5816, 5
        %v5819 = vsel %vm403, %v5814, %v5818
        %v5820 = vshrl.u32 %v5648, 16
        %v5822 = vrot.slane %v5820, 4
        %v5823 = vor.u32 %v5822, %v5818
        %v5824 = vrot.slane %v5823, 4
        %v5826 = vshll.u32 %v5649, 16
        %v5828 = vrot.slane %v5826, 5
        %v5829 = vsel %vm403, %v5824, %v5828
        %v5831 = vshrl.u32 %v5650, 16
        %v5833 = vrot.slane %v5831, 4
        %v5834 = vshll.u32 %v5650, 16
        %v5836 = vrot.slane %v5834, 5
        %v5837 = vor.u32 %v5833, %v5836
        %v5838 = vrot.slane %v5837, 4
        %v5840 = vshll.u32 %v5651, 16
        %v5842 = vrot.slane %v5840, 5
        %v5843 = vsel %vm403, %v5838, %v5842
        %v5844 = vshrl.u32 %v5651, 16
        %v5846 = vrot.slane %v5844, 4
        %v5847 = vor.u32 %v5846, %v5842
        %v5848 = vrot.slane %v5847, 4
        %v5850 = vshll.u32 %v5652, 16
        %v5852 = vrot.slane %v5850, 5
        %v5853 = vsel %vm403, %v5848, %v5852
        %v5855 = vshrl.u32 %v5653, 16
        %v5857 = vrot.slane %v5855, 4
        %v5858 = vshll.u32 %v5653, 16
        %v5860 = vrot.slane %v5858, 5
        %v5861 = vor.u32 %v5857, %v5860
        %v5862 = vrot.slane %v5861, 4
        %v5864 = vshll.u32 %v5654, 16
        %v5866 = vrot.slane %v5864, 5
        %v5867 = vsel %vm403, %v5862, %v5866
        %v5868 = vshrl.u32 %v5654, 16
        %v5870 = vrot.slane %v5868, 4
        %v5871 = vor.u32 %v5870, %v5866
        %v5872 = vrot.slane %v5871, 4
        %v5874 = vshll.u32 %v5655, 16
        %v5876 = vrot.slane %v5874, 5
        %v5877 = vsel %vm403, %v5872, %v5876
        %v5879 = vshrl.u32 %v5656, 16
        %v5881 = vrot.slane %v5879, 4
        %v5882 = vshll.u32 %v5656, 16
        %v5884 = vrot.slane %v5882, 5
        %v5885 = vor.u32 %v5881, %v5884
        %v5886 = vrot.slane %v5885, 4
        %v5888 = vshll.u32 %v5657, 16
        %v5890 = vrot.slane %v5888, 5
        %v5891 = vsel %vm403, %v5886, %v5890
        %v5892 = vshrl.u32 %v5657, 16
        %v5894 = vrot.slane %v5892, 4
        %v5895 = vor.u32 %v5894, %v5890
        %v5896 = vrot.slane %v5895, 4
        %v5898 = vshll.u32 %v5658, 16
        %v5900 = vrot.slane %v5898, 5
        %v5901 = vsel %vm403, %v5896, %v5900
        %v5903 = vshrl.u32 %v5659, 16
        %v5905 = vrot.slane %v5903, 4
        %v5906 = vshll.u32 %v5659, 16
        %v5908 = vrot.slane %v5906, 5
        %v5909 = vor.u32 %v5905, %v5908
        %v5910 = vrot.slane %v5909, 4
        %v5912 = vshll.u32 %v5660, 16
        %v5914 = vrot.slane %v5912, 5
        %v5915 = vsel %vm403, %v5910, %v5914
        %v5916 = vshrl.u32 %v5660, 16
        %v5918 = vrot.slane %v5916, 4
        %v5919 = vor.u32 %v5918, %v5914
        %v5920 = vrot.slane %v5919, 4
        %v5922 = vshll.u32 %v5661, 16
        %v5924 = vrot.slane %v5922, 5
        %v5925 = vsel %vm403, %v5920, %v5924
        %v5927 = vshrl.u32 %v5662, 16
        %v5929 = vrot.slane %v5927, 4
        %v5930 = vshll.u32 %v5662, 16
        %v5932 = vrot.slane %v5930, 5
        %v5933 = vor.u32 %v5929, %v5932
        %v5934 = vrot.slane %v5933, 4
        %v5936 = vshll.u32 %v5663, 16
        %v5938 = vrot.slane %v5936, 5
        %v5939 = vsel %vm403, %v5934, %v5938
        %v5940 = vshrl.u32 %v5663, 16
        %v5942 = vrot.slane %v5940, 4
        %v5943 = vor.u32 %v5942, %v5938
        %v5944 = vrot.slane %v5943, 4
        %v5946 = vshll.u32 %v5664, 16
        %v5948 = vrot.slane %v5946, 5
        %v5949 = vsel %vm403, %v5944, %v5948
        %v5951 = vshrl.u32 %v5665, 16
        %v5953 = vrot.slane %v5951, 4
        %v5954 = vshll.u32 %v5665, 16
        %v5956 = vrot.slane %v5954, 5
        %v5957 = vor.u32 %v5953, %v5956
        %v5958 = vrot.slane %v5957, 4
        %v5960 = vshll.u32 %v5666, 16
        %v5962 = vrot.slane %v5960, 5
        %v5963 = vsel %vm403, %v5958, %v5962
        %v5964 = vshrl.u32 %v5666, 16
        %v5966 = vrot.slane %v5964, 4
        %v5967 = vor.u32 %v5966, %v5962
        %v5968 = vrot.slane %v5967, 4
        %v5970 = vshll.u32 %v5667, 16
        %v5972 = vrot.slane %v5970, 5
        %v5973 = vsel %vm403, %v5968, %v5972
        %v5975 = vshrl.u32 %v5668, 16
        %v5977 = vrot.slane %v5975, 4
        %v5978 = vshll.u32 %v5668, 16
        %v5980 = vrot.slane %v5978, 5
        %v5981 = vor.u32 %v5977, %v5980
        %v5982 = vrot.slane %v5981, 4
        %v5984 = vshll.u32 %v5669, 16
        %v5986 = vrot.slane %v5984, 5
        %v5987 = vsel %vm403, %v5982, %v5986
        %v5988 = vshrl.u32 %v5669, 16
        %v5990 = vrot.slane %v5988, 4
        %v5991 = vor.u32 %v5990, %v5986
        %v5992 = vrot.slane %v5991, 4
        %v5994 = vshll.u32 %v5670, 16
        %v5996 = vrot.slane %v5994, 5
        %v5997 = vsel %vm403, %v5992, %v5996
        %v5999 = vshrl.u32 %v5671, 16
        %v6001 = vrot.slane %v5999, 4
        %v6002 = vshll.u32 %v5671, 16
        %v6004 = vrot.slane %v6002, 5
        %v6005 = vor.u32 %v6001, %v6004
        %v6006 = vrot.slane %v6005, 4
        %v6008 = vshll.u32 %v5672, 16
        %v6010 = vrot.slane %v6008, 5
        %v6011 = vsel %vm403, %v6006, %v6010
        %v6012 = vshrl.u32 %v5672, 16
        %v6014 = vrot.slane %v6012, 4
        %v6015 = vor.u32 %v6014, %v6010
        %v6016 = vrot.slane %v6015, 4
        %v6018 = vshll.u32 %v5673, 16
        %v6020 = vrot.slane %v6018, 5
        %v6021 = vsel %vm403, %v6016, %v6020
        %v6023 = vshrl.u32 %v5674, 16
        %v6025 = vrot.slane %v6023, 4
        %v6026 = vshll.u32 %v5674, 16
        %v6028 = vrot.slane %v6026, 5
        %v6029 = vor.u32 %v6025, %v6028
        %v6030 = vrot.slane %v6029, 4
        %v6032 = vshll.u32 %v5675, 16
        %v6034 = vrot.slane %v6032, 5
        %v6035 = vsel %vm403, %v6030, %v6034
        %v6036 = vshrl.u32 %v5675, 16
        %v6038 = vrot.slane %v6036, 4
        %v6039 = vor.u32 %v6038, %v6034
        %v6040 = vrot.slane %v6039, 4
        %v6042 = vshll.u32 %v5676, 16
        %v6044 = vrot.slane %v6042, 5
        %v6045 = vsel %vm403, %v6040, %v6044
        %v6047 = vshrl.u32 %v5677, 16
        %v6049 = vrot.slane %v6047, 4
        %v6050 = vshll.u32 %v5677, 16
        %v6052 = vrot.slane %v6050, 5
        %v6053 = vor.u32 %v6049, %v6052
        %v6054 = vrot.slane %v6053, 4
        %v6056 = vshll.u32 %v5678, 16
        %v6058 = vrot.slane %v6056, 5
        %v6059 = vsel %vm403, %v6054, %v6058
        %v6060 = vshrl.u32 %v5678, 16
        %v6062 = vrot.slane %v6060, 4
        %v6063 = vor.u32 %v6062, %v6058
        %v6064 = vrot.slane %v6063, 4
        %v6066 = vshll.u32 %v5679, 16
        %v6068 = vrot.slane %v6066, 5
        %v6069 = vsel %vm403, %v6064, %v6068
        %v6071 = vshrl.u32 %v5680, 16
        %v6073 = vrot.slane %v6071, 4
        %v6074 = vshll.u32 %v5680, 16
        %v6076 = vrot.slane %v6074, 5
        %v6077 = vor.u32 %v6073, %v6076
        %v6078 = vrot.slane %v6077, 4
        %v6080 = vshll.u32 %v5681, 16
        %v6082 = vrot.slane %v6080, 5
        %v6083 = vsel %vm403, %v6078, %v6082
        %v6084 = vshrl.u32 %v5681, 16
        %v6086 = vrot.slane %v6084, 4
        %v6087 = vor.u32 %v6086, %v6082
        %v6088 = vrot.slane %v6087, 4
        %v6090 = vshll.u32 %v5682, 16
        %v6092 = vrot.slane %v6090, 5
        %v6093 = vsel %vm403, %v6088, %v6092
        %v6095 = vshrl.u32 %v5683, 16
        %v6097 = vrot.slane %v6095, 4
        %v6098 = vshll.u32 %v5683, 16
        %v6100 = vrot.slane %v6098, 5
        %v6101 = vor.u32 %v6097, %v6100
        %v6102 = vrot.slane %v6101, 4
        %v6104 = vshll.u32 %v5684, 16
        %v6106 = vrot.slane %v6104, 5
        %v6107 = vsel %vm403, %v6102, %v6106
        %v6108 = vshrl.u32 %v5684, 16
        %v6110 = vrot.slane %v6108, 4
        %v6111 = vor.u32 %v6110, %v6106
        %v6112 = vrot.slane %v6111, 4
        %v6114 = vshll.u32 %v5685, 16
        %v6116 = vrot.slane %v6114, 5
        %v6117 = vsel %vm403, %v6112, %v6116
        %v6118 = vunpack.c.l.b16 %v5699
        %v6119 = vunpack.c.l.b16 %v5709
        %v6120 = vunpack.c.l.b16 %v5723
        %v6121 = vunpack.c.l.b16 %v5733
        %v6122 = vunpack.c.l.b16 %v5747
        %v6123 = vunpack.c.l.b16 %v5757
        %v6124 = vunpack.c.l.b16 %v5771
        %v6125 = vunpack.c.l.b16 %v5781
        %v6126 = vunpack.c.l.b16 %v5795
        %v6127 = vunpack.c.l.b16 %v5805
        %v6128 = vunpack.c.l.b16 %v5819
        %v6129 = vunpack.c.l.b16 %v5829
        %v6130 = vunpack.c.l.b16 %v5843
        %v6131 = vunpack.c.l.b16 %v5853
        %v6132 = vunpack.c.l.b16 %v5867
        %v6133 = vunpack.c.l.b16 %v5877
        %v6134 = vunpack.c.l.b16 %v5891
        %v6135 = vunpack.c.l.b16 %v5901
        %v6136 = vunpack.c.l.b16 %v5915
        %v6137 = vunpack.c.l.b16 %v5925
        %v6138 = vunpack.c.l.b16 %v5939
        %v6139 = vunpack.c.l.b16 %v5949
        %v6140 = vunpack.c.l.b16 %v5963
        %v6141 = vunpack.c.l.b16 %v5973
        %v6142 = vunpack.c.l.b16 %v5987
        %v6143 = vunpack.c.l.b16 %v5997
        %v6144 = vunpack.c.l.b16 %v6011
        %v6145 = vunpack.c.l.b16 %v6021
        %v6146 = vunpack.c.l.b16 %v6035
        %v6147 = vunpack.c.l.b16 %v6045
        %v6148 = vunpack.c.l.b16 %v6059
        %v6149 = vunpack.c.l.b16 %v6069
        %v6150 = vunpack.c.l.b16 %v6083
        %v6151 = vunpack.c.l.b16 %v6093
        %v6152 = vunpack.c.l.b16 %v6107
        %v6153 = vunpack.c.l.b16 %v6117
        %v6154 = vpack.c.b16 %v6119, %v6118
        %v6155 = vpack.c.b16 %v6121, %v6120
        %v6156 = vpack.c.b16 %v6123, %v6122
        %v6157 = vpack.c.b16 %v6125, %v6124
        %v6158 = vpack.c.b16 %v6127, %v6126
        %v6159 = vpack.c.b16 %v6129, %v6128
        %v6160 = vpack.c.b16 %v6131, %v6130
        %v6161 = vpack.c.b16 %v6133, %v6132
        %v6162 = vpack.c.b16 %v6135, %v6134
        %v6163 = vpack.c.b16 %v6137, %v6136
        %v6164 = vpack.c.b16 %v6139, %v6138
        %v6165 = vpack.c.b16 %v6141, %v6140
        %v6166 = vpack.c.b16 %v6143, %v6142
        %v6167 = vpack.c.b16 %v6145, %v6144
        %v6168 = vpack.c.b16 %v6147, %v6146
        %v6169 = vpack.c.b16 %v6149, %v6148
        %v6170 = vpack.c.b16 %v6151, %v6150
        %v6171 = vpack.c.b16 %v6153, %v6152
        %s6190 = scalar_lea.vmem [#allocation3], 144
        %6191 = vst [vmem:[%s6190] sm:$0xff] %v6154
        %6192 = vst [vmem:[%s6190 + $0x8] sm:$0xff] %v6155
        %6193 = vst [vmem:[%s6190 + $0x10] sm:$0xff] %v6156
        %6194 = vst [vmem:[%s6190 + $0x18] sm:$0xff] %v6157
        %6195 = vst [vmem:[%s6190 + $0x20] sm:$0xff] %v6158
        %6196 = vst [vmem:[%s6190 + $0x28] sm:$0xff] %v6159
        %6197 = vst [vmem:[%s6190 + $0x30] sm:$0xff] %v6160
        %6198 = vst [vmem:[%s6190 + $0x38] sm:$0xff] %v6161
        %6199 = vst [vmem:[%s6190 + $0x40] sm:$0xff] %v6162
        %6200 = vst [vmem:[%s6190 + $0x48] sm:$0xff] %v6163
        %6201 = vst [vmem:[%s6190 + $0x50] sm:$0xff] %v6164
        %6202 = vst [vmem:[%s6190 + $0x58] sm:$0xff] %v6165
        %6203 = vst [vmem:[%s6190 + $0x60] sm:$0xff] %v6166
        %6204 = vst [vmem:[%s6190 + $0x68] sm:$0xff] %v6167
        %6205 = vst [vmem:[%s6190 + $0x70] sm:$0xff] %v6168
        %6206 = vst [vmem:[%s6190 + $0x78] sm:$0xff] %v6169
        %6207 = vst [vmem:[%s6190 + $0x80] sm:$0xff] %v6170
        %6208 = vst [vmem:[%s6190 + $0x88] sm:$0xff] %v6171
        %v6209 = vld [vmem:[#allocation4] sm:$0xe]
        %v6210 = vld [vmem:[#allocation4 + $0x4] sm:$0xf]
        %v6211 = vld [vmem:[#allocation4 + $0x8] sm:$0x1]
        %v6212 = vld [vmem:[#allocation4 + $0xc] sm:$0xe]
        %v6213 = vld [vmem:[#allocation4 + $0x10] sm:$0xf]
        %v6214 = vld [vmem:[#allocation4 + $0x14] sm:$0x1]
        %v6215 = vld [vmem:[#allocation4 + $0x18] sm:$0xe]
        %v6216 = vld [vmem:[#allocation4 + $0x1c] sm:$0xf]
        %v6217 = vld [vmem:[#allocation4 + $0x20] sm:$0x1]
        %v6218 = vld [vmem:[#allocation4 + $0x24] sm:$0xe]
        %v6219 = vld [vmem:[#allocation4 + $0x28] sm:$0xf]
        %v6220 = vld [vmem:[#allocation4 + $0x2c] sm:$0x1]
        %v6221 = vld [vmem:[#allocation4 + $0x30] sm:$0xe]
        %v6222 = vld [vmem:[#allocation4 + $0x34] sm:$0xf]
        %v6223 = vld [vmem:[#allocation4 + $0x38] sm:$0x1]
        %v6224 = vld [vmem:[#allocation4 + $0x3c] sm:$0xe]
        %v6225 = vld [vmem:[#allocation4 + $0x40] sm:$0xf]
        %v6226 = vld [vmem:[#allocation4 + $0x44] sm:$0x1]
        %v6227 = vld [vmem:[#allocation4 + $0x48] sm:$0xe]
        %v6228 = vld [vmem:[#allocation4 + $0x4c] sm:$0xf]
        %v6229 = vld [vmem:[#allocation4 + $0x50] sm:$0x1]
        %v6230 = vld [vmem:[#allocation4 + $0x54] sm:$0xe]
        %v6231 = vld [vmem:[#allocation4 + $0x58] sm:$0xf]
        %v6232 = vld [vmem:[#allocation4 + $0x5c] sm:$0x1]
        %v6233 = vld [vmem:[#allocation4 + $0x60] sm:$0xe]
        %v6234 = vld [vmem:[#allocation4 + $0x64] sm:$0xf]
        %v6235 = vld [vmem:[#allocation4 + $0x68] sm:$0x1]
        %v6236 = vld [vmem:[#allocation4 + $0x6c] sm:$0xe]
        %v6237 = vld [vmem:[#allocation4 + $0x70] sm:$0xf]
        %v6238 = vld [vmem:[#allocation4 + $0x74] sm:$0x1]
        %v6239 = vld [vmem:[#allocation4 + $0x78] sm:$0xe]
        %v6240 = vld [vmem:[#allocation4 + $0x7c] sm:$0xf]
        %v6241 = vld [vmem:[#allocation4 + $0x80] sm:$0x1]
        %v6242 = vld [vmem:[#allocation4 + $0x84] sm:$0xe]
        %v6243 = vld [vmem:[#allocation4 + $0x88] sm:$0xf]
        %v6244 = vld [vmem:[#allocation4 + $0x8c] sm:$0x1]
        %v6245 = vld [vmem:[#allocation4 + $0x90] sm:$0xe]
        %v6246 = vld [vmem:[#allocation4 + $0x94] sm:$0xf]
        %v6247 = vld [vmem:[#allocation4 + $0x98] sm:$0x1]
        %v6248 = vld [vmem:[#allocation4 + $0x9c] sm:$0xe]
        %v6249 = vld [vmem:[#allocation4 + $0xa0] sm:$0xf]
        %v6250 = vld [vmem:[#allocation4 + $0xa4] sm:$0x1]
        %v6251 = vld [vmem:[#allocation4 + $0xa8] sm:$0xe]
        %v6252 = vld [vmem:[#allocation4 + $0xac] sm:$0xf]
        %v6253 = vld [vmem:[#allocation4 + $0xb0] sm:$0x1]
        %v6254 = vld [vmem:[#allocation4 + $0xb4] sm:$0xe]
        %v6255 = vld [vmem:[#allocation4 + $0xb8] sm:$0xf]
        %v6256 = vld [vmem:[#allocation4 + $0xbc] sm:$0x1]
        %v6257 = vld [vmem:[#allocation4 + $0xc0] sm:$0xe]
        %v6258 = vld [vmem:[#allocation4 + $0xc4] sm:$0xf]
        %v6259 = vld [vmem:[#allocation4 + $0xc8] sm:$0x1]
        %v6260 = vld [vmem:[#allocation4 + $0xcc] sm:$0xe]
        %v6261 = vld [vmem:[#allocation4 + $0xd0] sm:$0xf]
        %v6262 = vld [vmem:[#allocation4 + $0xd4] sm:$0x1]
        %v6317 = vrot.slane %v6209, 5
        %v6318 = vrot.slane %v6317, 4
        %v6319 = vrot.slane %v6210, 5
        %v6320 = vsel %vm1037, %v6318, %v6319
        %v6321 = vrot.slane %v6319, 4
        %v6322 = vrot.slane %v6211, 5
        %v6323 = vsel %vm1037, %v6321, %v6322
        %v6324 = vrot.slane %v6212, 5
        %v6325 = vrot.slane %v6324, 4
        %v6326 = vrot.slane %v6213, 5
        %v6327 = vsel %vm1037, %v6325, %v6326
        %v6328 = vrot.slane %v6326, 4
        %v6329 = vrot.slane %v6214, 5
        %v6330 = vsel %vm1037, %v6328, %v6329
        %v6331 = vrot.slane %v6215, 5
        %v6332 = vrot.slane %v6331, 4
        %v6333 = vrot.slane %v6216, 5
        %v6334 = vsel %vm1037, %v6332, %v6333
        %v6335 = vrot.slane %v6333, 4
        %v6336 = vrot.slane %v6217, 5
        %v6337 = vsel %vm1037, %v6335, %v6336
        %v6338 = vrot.slane %v6218, 5
        %v6339 = vrot.slane %v6338, 4
        %v6340 = vrot.slane %v6219, 5
        %v6341 = vsel %vm1037, %v6339, %v6340
        %v6342 = vrot.slane %v6340, 4
        %v6343 = vrot.slane %v6220, 5
        %v6344 = vsel %vm1037, %v6342, %v6343
        %v6345 = vrot.slane %v6221, 5
        %v6346 = vrot.slane %v6345, 4
        %v6347 = vrot.slane %v6222, 5
        %v6348 = vsel %vm1037, %v6346, %v6347
        %v6349 = vrot.slane %v6347, 4
        %v6350 = vrot.slane %v6223, 5
        %v6351 = vsel %vm1037, %v6349, %v6350
        %v6352 = vrot.slane %v6224, 5
        %v6353 = vrot.slane %v6352, 4
        %v6354 = vrot.slane %v6225, 5
        %v6355 = vsel %vm1037, %v6353, %v6354
        %v6356 = vrot.slane %v6354, 4
        %v6357 = vrot.slane %v6226, 5
        %v6358 = vsel %vm1037, %v6356, %v6357
        %v6359 = vrot.slane %v6227, 5
        %v6360 = vrot.slane %v6359, 4
        %v6361 = vrot.slane %v6228, 5
        %v6362 = vsel %vm1037, %v6360, %v6361
        %v6363 = vrot.slane %v6361, 4
        %v6364 = vrot.slane %v6229, 5
        %v6365 = vsel %vm1037, %v6363, %v6364
        %v6366 = vrot.slane %v6230, 5
        %v6367 = vrot.slane %v6366, 4
        %v6368 = vrot.slane %v6231, 5
        %v6369 = vsel %vm1037, %v6367, %v6368
        %v6370 = vrot.slane %v6368, 4
        %v6371 = vrot.slane %v6232, 5
        %v6372 = vsel %vm1037, %v6370, %v6371
        %v6373 = vrot.slane %v6233, 5
        %v6374 = vrot.slane %v6373, 4
        %v6375 = vrot.slane %v6234, 5
        %v6376 = vsel %vm1037, %v6374, %v6375
        %v6377 = vrot.slane %v6375, 4
        %v6378 = vrot.slane %v6235, 5
        %v6379 = vsel %vm1037, %v6377, %v6378
        %v6380 = vrot.slane %v6236, 5
        %v6381 = vrot.slane %v6380, 4
        %v6382 = vrot.slane %v6237, 5
        %v6383 = vsel %vm1037, %v6381, %v6382
        %v6384 = vrot.slane %v6382, 4
        %v6385 = vrot.slane %v6238, 5
        %v6386 = vsel %vm1037, %v6384, %v6385
        %v6387 = vrot.slane %v6239, 5
        %v6388 = vrot.slane %v6387, 4
        %v6389 = vrot.slane %v6240, 5
        %v6390 = vsel %vm1037, %v6388, %v6389
        %v6391 = vrot.slane %v6389, 4
        %v6392 = vrot.slane %v6241, 5
        %v6393 = vsel %vm1037, %v6391, %v6392
        %v6394 = vrot.slane %v6242, 5
        %v6395 = vrot.slane %v6394, 4
        %v6396 = vrot.slane %v6243, 5
        %v6397 = vsel %vm1037, %v6395, %v6396
        %v6398 = vrot.slane %v6396, 4
        %v6399 = vrot.slane %v6244, 5
        %v6400 = vsel %vm1037, %v6398, %v6399
        %v6401 = vrot.slane %v6245, 5
        %v6402 = vrot.slane %v6401, 4
        %v6403 = vrot.slane %v6246, 5
        %v6404 = vsel %vm1037, %v6402, %v6403
        %v6405 = vrot.slane %v6403, 4
        %v6406 = vrot.slane %v6247, 5
        %v6407 = vsel %vm1037, %v6405, %v6406
        %v6408 = vrot.slane %v6248, 5
        %v6409 = vrot.slane %v6408, 4
        %v6410 = vrot.slane %v6249, 5
        %v6411 = vsel %vm1037, %v6409, %v6410
        %v6412 = vrot.slane %v6410, 4
        %v6413 = vrot.slane %v6250, 5
        %v6414 = vsel %vm1037, %v6412, %v6413
        %v6415 = vrot.slane %v6251, 5
        %v6416 = vrot.slane %v6415, 4
        %v6417 = vrot.slane %v6252, 5
        %v6418 = vsel %vm1037, %v6416, %v6417
        %v6419 = vrot.slane %v6417, 4
        %v6420 = vrot.slane %v6253, 5
        %v6421 = vsel %vm1037, %v6419, %v6420
        %v6422 = vrot.slane %v6254, 5
        %v6423 = vrot.slane %v6422, 4
        %v6424 = vrot.slane %v6255, 5
        %v6425 = vsel %vm1037, %v6423, %v6424
        %v6426 = vrot.slane %v6424, 4
        %v6427 = vrot.slane %v6256, 5
        %v6428 = vsel %vm1037, %v6426, %v6427
        %v6429 = vrot.slane %v6257, 5
        %v6430 = vrot.slane %v6429, 4
        %v6431 = vrot.slane %v6258, 5
        %v6432 = vsel %vm1037, %v6430, %v6431
        %v6433 = vrot.slane %v6431, 4
        %v6434 = vrot.slane %v6259, 5
        %v6435 = vsel %vm1037, %v6433, %v6434
        %v6436 = vrot.slane %v6260, 5
        %v6437 = vrot.slane %v6436, 4
        %v6438 = vrot.slane %v6261, 5
        %v6439 = vsel %vm1037, %v6437, %v6438
        %v6440 = vrot.slane %v6438, 4
        %v6441 = vrot.slane %v6262, 5
        %v6442 = vsel %vm1037, %v6440, %v6441
        %v6443 = vunpack.c.l.b16 %v6320
        %v6444 = vunpack.c.l.b16 %v6323
        %v6445 = vunpack.c.l.b16 %v6327
        %v6446 = vunpack.c.l.b16 %v6330
        %v6447 = vunpack.c.l.b16 %v6334
        %v6448 = vunpack.c.l.b16 %v6337
        %v6449 = vunpack.c.l.b16 %v6341
        %v6450 = vunpack.c.l.b16 %v6344
        %v6451 = vunpack.c.l.b16 %v6348
        %v6452 = vunpack.c.l.b16 %v6351
        %v6453 = vunpack.c.l.b16 %v6355
        %v6454 = vunpack.c.l.b16 %v6358
        %v6455 = vunpack.c.l.b16 %v6362
        %v6456 = vunpack.c.l.b16 %v6365
        %v6457 = vunpack.c.l.b16 %v6369
        %v6458 = vunpack.c.l.b16 %v6372
        %v6459 = vunpack.c.l.b16 %v6376
        %v6460 = vunpack.c.l.b16 %v6379
        %v6461 = vunpack.c.l.b16 %v6383
        %v6462 = vunpack.c.l.b16 %v6386
        %v6463 = vunpack.c.l.b16 %v6390
        %v6464 = vunpack.c.l.b16 %v6393
        %v6465 = vunpack.c.l.b16 %v6397
        %v6466 = vunpack.c.l.b16 %v6400
        %v6467 = vunpack.c.l.b16 %v6404
        %v6468 = vunpack.c.l.b16 %v6407
        %v6469 = vunpack.c.l.b16 %v6411
        %v6470 = vunpack.c.l.b16 %v6414
        %v6471 = vunpack.c.l.b16 %v6418
        %v6472 = vunpack.c.l.b16 %v6421
        %v6473 = vunpack.c.l.b16 %v6425
        %v6474 = vunpack.c.l.b16 %v6428
        %v6475 = vunpack.c.l.b16 %v6432
        %v6476 = vunpack.c.l.b16 %v6435
        %v6477 = vunpack.c.l.b16 %v6439
        %v6478 = vunpack.c.l.b16 %v6442
        %v6479 = vpack.c.b16 %v6444, %v6443
        %v6480 = vpack.c.b16 %v6446, %v6445
        %v6481 = vpack.c.b16 %v6448, %v6447
        %v6482 = vpack.c.b16 %v6450, %v6449
        %v6483 = vpack.c.b16 %v6452, %v6451
        %v6484 = vpack.c.b16 %v6454, %v6453
        %v6485 = vpack.c.b16 %v6456, %v6455
        %v6486 = vpack.c.b16 %v6458, %v6457
        %v6487 = vpack.c.b16 %v6460, %v6459
        %v6488 = vpack.c.b16 %v6462, %v6461
        %v6489 = vpack.c.b16 %v6464, %v6463
        %v6490 = vpack.c.b16 %v6466, %v6465
        %v6491 = vpack.c.b16 %v6468, %v6467
        %v6492 = vpack.c.b16 %v6470, %v6469
        %v6493 = vpack.c.b16 %v6472, %v6471
        %v6494 = vpack.c.b16 %v6474, %v6473
        %v6495 = vpack.c.b16 %v6476, %v6475
        %v6496 = vpack.c.b16 %v6478, %v6477
        %s6515 = scalar_lea.vmem [#allocation3], 288
        %6516 = vst [vmem:[%s6515] sm:$0xff] %v6479
        %6517 = vst [vmem:[%s6515 + $0x8] sm:$0xff] %v6480
        %6518 = vst [vmem:[%s6515 + $0x10] sm:$0xff] %v6481
        %6519 = vst [vmem:[%s6515 + $0x18] sm:$0xff] %v6482
        %6520 = vst [vmem:[%s6515 + $0x20] sm:$0xff] %v6483
        %6521 = vst [vmem:[%s6515 + $0x28] sm:$0xff] %v6484
        %6522 = vst [vmem:[%s6515 + $0x30] sm:$0xff] %v6485
        %6523 = vst [vmem:[%s6515 + $0x38] sm:$0xff] %v6486
        %6524 = vst [vmem:[%s6515 + $0x40] sm:$0xff] %v6487
        %6525 = vst [vmem:[%s6515 + $0x48] sm:$0xff] %v6488
        %6526 = vst [vmem:[%s6515 + $0x50] sm:$0xff] %v6489
        %6527 = vst [vmem:[%s6515 + $0x58] sm:$0xff] %v6490
        %6528 = vst [vmem:[%s6515 + $0x60] sm:$0xff] %v6491
        %6529 = vst [vmem:[%s6515 + $0x68] sm:$0xff] %v6492
        %6530 = vst [vmem:[%s6515 + $0x70] sm:$0xff] %v6493
        %6531 = vst [vmem:[%s6515 + $0x78] sm:$0xff] %v6494
        %6532 = vst [vmem:[%s6515 + $0x80] sm:$0xff] %v6495
        %6533 = vst [vmem:[%s6515 + $0x88] sm:$0xff] %v6496
        %v6534 = vld [vmem:[#allocation3] sm:$0xff]
        %v6535 = vld [vmem:[#allocation3 + $0x8] sm:$0xff]
        %v6536 = vld [vmem:[#allocation3 + $0x10] sm:$0xff]
        %v6537 = vld [vmem:[#allocation3 + $0x18] sm:$0xff]
        %v6538 = vld [vmem:[#allocation3 + $0x20] sm:$0xff]
        %v6539 = vld [vmem:[#allocation3 + $0x28] sm:$0xff]
        %v6540 = vld [vmem:[#allocation3 + $0x30] sm:$0xff]
        %v6541 = vld [vmem:[#allocation3 + $0x38] sm:$0xff]
        %v6542 = vld [vmem:[#allocation6] sm:$0xf]
        %v6543 = vld [vmem:[#allocation6 + $0x4] sm:$0xf]
        %v6544 = vld [vmem:[#allocation6 + $0x8] sm:$0xf]
        %v6545 = vld [vmem:[#allocation6 + $0xc] sm:$0xf]
        %v6546 = vld [vmem:[#allocation6 + $0x10] sm:$0xf]
        %v6547 = vld [vmem:[#allocation6 + $0x14] sm:$0xf]
        %v6548 = vld [vmem:[#allocation6 + $0x18] sm:$0xf]
        %v6549 = vld [vmem:[#allocation6 + $0x1c] sm:$0xf]
        %v6550 = vld [vmem:[#allocation6 + $0x20] sm:$0xf]
        %v6551 = vld [vmem:[#allocation6 + $0x24] sm:$0xf]
        %v6552 = vld [vmem:[#allocation6 + $0x28] sm:$0xf]
        %v6553 = vld [vmem:[#allocation6 + $0x2c] sm:$0xf]
        %v6554 = vld [vmem:[#allocation6 + $0x30] sm:$0xf]
        %v6555 = vld [vmem:[#allocation6 + $0x34] sm:$0xf]
        %v6556 = vld [vmem:[#allocation6 + $0x38] sm:$0xf]
        %v6557 = vld [vmem:[#allocation6 + $0x3c] sm:$0xf]
        %v6558 = vld [vmem:[%s6190] sm:$0xff]
        %v6559 = vld [vmem:[%s6190 + $0x8] sm:$0xff]
        %v6560 = vld [vmem:[%s6190 + $0x10] sm:$0xff]
        %v6561 = vld [vmem:[%s6190 + $0x18] sm:$0xff]
        %v6562 = vld [vmem:[%s6190 + $0x20] sm:$0xff]
        %v6563 = vld [vmem:[%s6190 + $0x28] sm:$0xff]
        %v6564 = vld [vmem:[%s6190 + $0x30] sm:$0xff]
        %v6565 = vld [vmem:[%s6190 + $0x38] sm:$0xff]
        %s6566 = scalar_lea.vmem [#allocation6], 64
        %v6567 = vld [vmem:[%s6566] sm:$0xf]
        %v6568 = vld [vmem:[%s6566 + $0x4] sm:$0xf]
        %v6569 = vld [vmem:[%s6566 + $0x8] sm:$0xf]
        %v6570 = vld [vmem:[%s6566 + $0xc] sm:$0xf]
        %v6571 = vld [vmem:[%s6566 + $0x10] sm:$0xf]
        %v6572 = vld [vmem:[%s6566 + $0x14] sm:$0xf]
        %v6573 = vld [vmem:[%s6566 + $0x18] sm:$0xf]
        %v6574 = vld [vmem:[%s6566 + $0x1c] sm:$0xf]
        %v6575 = vld [vmem:[%s6566 + $0x20] sm:$0xf]
        %v6576 = vld [vmem:[%s6566 + $0x24] sm:$0xf]
        %v6577 = vld [vmem:[%s6566 + $0x28] sm:$0xf]
        %v6578 = vld [vmem:[%s6566 + $0x2c] sm:$0xf]
        %v6579 = vld [vmem:[%s6566 + $0x30] sm:$0xf]
        %v6580 = vld [vmem:[%s6566 + $0x34] sm:$0xf]
        %v6581 = vld [vmem:[%s6566 + $0x38] sm:$0xf]
        %v6582 = vld [vmem:[%s6566 + $0x3c] sm:$0xf]
        %v6599 = vunpack.c.l.b16 %v6567
        %v6600 = vunpack.c.l.b16 %v6568
        %v6601 = vunpack.c.l.b16 %v6569
        %v6602 = vunpack.c.l.b16 %v6570
        %v6603 = vunpack.c.l.b16 %v6571
        %v6604 = vunpack.c.l.b16 %v6572
        %v6605 = vunpack.c.l.b16 %v6573
        %v6606 = vunpack.c.l.b16 %v6574
        %v6607 = vunpack.c.l.b16 %v6575
        %v6608 = vunpack.c.l.b16 %v6576
        %v6609 = vunpack.c.l.b16 %v6577
        %v6610 = vunpack.c.l.b16 %v6578
        %v6611 = vunpack.c.l.b16 %v6579
        %v6612 = vunpack.c.l.b16 %v6580
        %v6613 = vunpack.c.l.b16 %v6581
        %v6614 = vunpack.c.l.b16 %v6582
        %v6615 = vpack.c.b16 %v6600, %v6599
        %v6616 = vpack.c.b16 %v6602, %v6601
        %v6617 = vpack.c.b16 %v6604, %v6603
        %v6618 = vpack.c.b16 %v6606, %v6605
        %v6619 = vpack.c.b16 %v6608, %v6607
        %v6620 = vpack.c.b16 %v6610, %v6609
        %v6621 = vpack.c.b16 %v6612, %v6611
        %v6622 = vpack.c.b16 %v6614, %v6613
        %6631 = vmatprep.subr.bf16.mxu0 0
        %6632 = vmatpush1.bf16.msra.mxu0 %v6615
        %6633 = vmatprep.subr.bf16.mxu0 0
        %6634 = vmatpush1.bf16.msra.mxu0 %v6616
        %6635 = vmatprep.subr.bf16.mxu0 0
        %6636 = vmatpush1.bf16.msra.mxu0 %v6617
        %6637 = vmatprep.subr.bf16.mxu0 0
        %6638 = vmatpush1.bf16.msra.mxu0 %v6618
        %6639 = vmatprep.subr.bf16.mxu0 0
        %6640 = vmatpush1.bf16.msra.mxu0 %v6619
        %6641 = vmatprep.subr.bf16.mxu0 0
        %6642 = vmatpush1.bf16.msra.mxu0 %v6620
        %6643 = vmatprep.subr.bf16.mxu0 0
        %6644 = vmatpush1.bf16.msra.mxu0 %v6621
        %6645 = vmatprep.subr.bf16.mxu0 0
        %6646 = vmatpush1.bf16.msra.mxu0 %v6622
        %6647 = vmatprep.subr.bf16.mxu0 0
        %6648 = vmatpush1.bf16.msra.mxu0 0
        %6649 = vmatprep.subr.bf16.mxu0 0
        %6650 = vmatpush1.bf16.msra.mxu0 0
        %6651 = vmatprep.subr.bf16.mxu0 0
        %6652 = vmatpush1.bf16.msra.mxu0 0
        %6653 = vmatprep.subr.bf16.mxu0 0
        %6654 = vmatpush1.bf16.msra.mxu0 0
        %6655 = vmatprep.subr.bf16.mxu0 0
        %6656 = vmatpush1.bf16.msra.mxu0 0
        %6657 = vmatprep.subr.bf16.mxu0 0
        %6658 = vmatpush1.bf16.msra.mxu0 0
        %6659 = vmatprep.subr.bf16.mxu0 0
        %6660 = vmatpush1.bf16.msra.mxu0 0
        %6661 = vmatprep.subr.bf16.mxu0 0
        %6662 = vmatpush1.bf16.msra.mxu0 0
        %6663 = vmatprep.mubr.bf16.mxu0 0
        %6664 = vmatmul.mubr.bf16.gmra.mrb[0].mxu0 %v6558
        %v6665 = vpop.f32.mrb[0].mxu0
        %v6666 = vadd.f32 0.0, %v6665
        %v6667 = vpop.f32.mrb[0].mxu0
        %v6668 = vpop.f32.mrb[0].mxu0
        %v6669 = vadd.f32 0.0, %v6668
        %v6670 = vpop.f32.mrb[0].mxu0
        %6671 = vmatprep.mubr.bf16.mxu0 0
        %6672 = vmatmul.mubr.bf16.gmra.mrb[0].mxu0 %v6559
        %v6673 = vpop.f32.mrb[0].mxu0
        %v6674 = vadd.f32 0.0, %v6673
        %v6675 = vpop.f32.mrb[0].mxu0
        %v6676 = vpop.f32.mrb[0].mxu0
        %v6677 = vadd.f32 0.0, %v6676
        %v6678 = vpop.f32.mrb[0].mxu0
        %6679 = vmatprep.mubr.bf16.mxu0 0
        %6680 = vmatmul.mubr.bf16.gmra.mrb[0].mxu0 %v6560
        %v6681 = vpop.f32.mrb[0].mxu0
        %v6682 = vadd.f32 0.0, %v6681
        %v6683 = vpop.f32.mrb[0].mxu0
        %v6684 = vpop.f32.mrb[0].mxu0
        %v6685 = vadd.f32 0.0, %v6684
        %v6686 = vpop.f32.mrb[0].mxu0
        %6687 = vmatprep.mubr.bf16.mxu0 0
        %6688 = vmatmul.mubr.bf16.gmra.mrb[0].mxu0 %v6561
        %v6689 = vpop.f32.mrb[0].mxu0
        %v6690 = vadd.f32 0.0, %v6689
        %v6691 = vpop.f32.mrb[0].mxu0
        %v6692 = vpop.f32.mrb[0].mxu0
        %v6693 = vadd.f32 0.0, %v6692
        %v6694 = vpop.f32.mrb[0].mxu0
        %6695 = vmatprep.mubr.bf16.mxu0 0
        %6696 = vmatmul.mubr.bf16.gmra.mrb[0].mxu0 %v6562
        %v6697 = vpop.f32.mrb[0].mxu0
        %v6698 = vadd.f32 0.0, %v6697
        %v6699 = vpop.f32.mrb[0].mxu0
        %v6700 = vpop.f32.mrb[0].mxu0
        %v6701 = vadd.f32 0.0, %v6700
        %v6702 = vpop.f32.mrb[0].mxu0
        %6703 = vmatprep.mubr.bf16.mxu0 0
        %6704 = vmatmul.mubr.bf16.gmra.mrb[0].mxu0 %v6563
        %v6705 = vpop.f32.mrb[0].mxu0
        %v6706 = vadd.f32 0.0, %v6705
        %v6707 = vpop.f32.mrb[0].mxu0
        %v6708 = vpop.f32.mrb[0].mxu0
        %v6709 = vadd.f32 0.0, %v6708
        %v6710 = vpop.f32.mrb[0].mxu0
        %6711 = vmatprep.mubr.bf16.mxu0 0
        %6712 = vmatmul.mubr.bf16.gmra.mrb[0].mxu0 %v6564
        %v6713 = vpop.f32.mrb[0].mxu0
        %v6714 = vadd.f32 0.0, %v6713
        %v6715 = vpop.f32.mrb[0].mxu0
        %v6716 = vpop.f32.mrb[0].mxu0
        %v6717 = vadd.f32 0.0, %v6716
        %v6718 = vpop.f32.mrb[0].mxu0
        %6719 = vmatprep.mubr.bf16.mxu0 0
        %6720 = vmatmul.mubr.bf16.gmra.mrb[0].mxu0 %v6565
        %v6721 = vpop.f32.mrb[0].mxu0
        %v6722 = vadd.f32 0.0, %v6721
        %v6723 = vpop.f32.mrb[0].mxu0
        %v6724 = vpop.f32.mrb[0].mxu0
        %v6725 = vadd.f32 0.0, %v6724
        %v6726 = vpop.f32.mrb[0].mxu0
        %6727 = vdwg.mxu0
        %v6744 = vunpack.c.l.b16 %v6542
        %v6745 = vunpack.c.l.b16 %v6543
        %v6746 = vunpack.c.l.b16 %v6544
        %v6747 = vunpack.c.l.b16 %v6545
        %v6748 = vunpack.c.l.b16 %v6546
        %v6749 = vunpack.c.l.b16 %v6547
        %v6750 = vunpack.c.l.b16 %v6548
        %v6751 = vunpack.c.l.b16 %v6549
        %v6752 = vunpack.c.l.b16 %v6550
        %v6753 = vunpack.c.l.b16 %v6551
        %v6754 = vunpack.c.l.b16 %v6552
        %v6755 = vunpack.c.l.b16 %v6553
        %v6756 = vunpack.c.l.b16 %v6554
        %v6757 = vunpack.c.l.b16 %v6555
        %v6758 = vunpack.c.l.b16 %v6556
        %v6759 = vunpack.c.l.b16 %v6557
        %v6760 = vpack.c.b16 %v6745, %v6744
        %v6761 = vpack.c.b16 %v6747, %v6746
        %v6762 = vpack.c.b16 %v6749, %v6748
        %v6763 = vpack.c.b16 %v6751, %v6750
        %v6764 = vpack.c.b16 %v6753, %v6752
        %v6765 = vpack.c.b16 %v6755, %v6754
        %v6766 = vpack.c.b16 %v6757, %v6756
        %v6767 = vpack.c.b16 %v6759, %v6758
        %6776 = vmatprep.subr.bf16.mxu0 0
        %6777 = vmatpush1.bf16.msra.mxu0 %v6760
        %6778 = vmatprep.subr.bf16.mxu0 0
        %6779 = vmatpush1.bf16.msra.mxu0 %v6761
        %6780 = vmatprep.subr.bf16.mxu0 0
        %6781 = vmatpush1.bf16.msra.mxu0 %v6762
        %6782 = vmatprep.subr.bf16.mxu0 0
        %6783 = vmatpush1.bf16.msra.mxu0 %v6763
        %6784 = vmatprep.subr.bf16.mxu0 0
        %6785 = vmatpush1.bf16.msra.mxu0 %v6764
        %6786 = vmatprep.subr.bf16.mxu0 0
        %6787 = vmatpush1.bf16.msra.mxu0 %v6765
        %6788 = vmatprep.subr.bf16.mxu0 0
        %6789 = vmatpush1.bf16.msra.mxu0 %v6766
        %6790 = vmatprep.subr.bf16.mxu0 0
        %6791 = vmatpush1.bf16.msra.mxu0 %v6767
        %6792 = vmatprep.subr.bf16.mxu0 0
        %6793 = vmatpush1.bf16.msra.mxu0 0
        %6794 = vmatprep.subr.bf16.mxu0 0
        %6795 = vmatpush1.bf16.msra.mxu0 0
        %6796 = vmatprep.subr.bf16.mxu0 0
        %6797 = vmatpush1.bf16.msra.mxu0 0
        %6798 = vmatprep.subr.bf16.mxu0 0
        %6799 = vmatpush1.bf16.msra.mxu0 0
        %6800 = vmatprep.subr.bf16.mxu0 0
        %6801 = vmatpush1.bf16.msra.mxu0 0
        %6802 = vmatprep.subr.bf16.mxu0 0
        %6803 = vmatpush1.bf16.msra.mxu0 0
        %6804 = vmatprep.subr.bf16.mxu0 0
        %6805 = vmatpush1.bf16.msra.mxu0 0
        %6806 = vmatprep.subr.bf16.mxu0 0
        %6807 = vmatpush1.bf16.msra.mxu0 0
        %6808 = vmatprep.mubr.bf16.mxu0 0
        %6809 = vmatmul.mubr.bf16.gmra.mrb[0].mxu0 %v6534
        %v6810 = vpop.f32.mrb[0].mxu0
        %v6811 = vadd.f32 %v6666, %v6810
        %v6812 = vpop.f32.mrb[0].mxu0
        %v6813 = vpop.f32.mrb[0].mxu0
        %v6814 = vadd.f32 %v6669, %v6813
        %v6815 = vpop.f32.mrb[0].mxu0
        %6816 = vmatprep.mubr.bf16.mxu0 0
        %6817 = vmatmul.mubr.bf16.gmra.mrb[0].mxu0 %v6535
        %v6818 = vpop.f32.mrb[0].mxu0
        %v6819 = vadd.f32 %v6674, %v6818
        %v6820 = vpop.f32.mrb[0].mxu0
        %v6821 = vpop.f32.mrb[0].mxu0
        %v6822 = vadd.f32 %v6677, %v6821
        %v6823 = vpop.f32.mrb[0].mxu0
        %6824 = vmatprep.mubr.bf16.mxu0 0
        %6825 = vmatmul.mubr.bf16.gmra.mrb[0].mxu0 %v6536
        %v6826 = vpop.f32.mrb[0].mxu0
        %v6827 = vadd.f32 %v6682, %v6826
        %v6828 = vpop.f32.mrb[0].mxu0
        %v6829 = vpop.f32.mrb[0].mxu0
        %v6830 = vadd.f32 %v6685, %v6829
        %v6831 = vpop.f32.mrb[0].mxu0
        %6832 = vmatprep.mubr.bf16.mxu0 0
        %6833 = vmatmul.mubr.bf16.gmra.mrb[0].mxu0 %v6537
        %v6834 = vpop.f32.mrb[0].mxu0
        %v6835 = vadd.f32 %v6690, %v6834
        %v6836 = vpop.f32.mrb[0].mxu0
        %v6837 = vpop.f32.mrb[0].mxu0
        %v6838 = vadd.f32 %v6693, %v6837
        %v6839 = vpop.f32.mrb[0].mxu0
        %6840 = vmatprep.mubr.bf16.mxu0 0
        %6841 = vmatmul.mubr.bf16.gmra.mrb[0].mxu0 %v6538
        %v6842 = vpop.f32.mrb[0].mxu0
        %v6843 = vadd.f32 %v6698, %v6842
        %v6844 = vpop.f32.mrb[0].mxu0
        %v6845 = vpop.f32.mrb[0].mxu0
        %v6846 = vadd.f32 %v6701, %v6845
        %v6847 = vpop.f32.mrb[0].mxu0
        %6848 = vmatprep.mubr.bf16.mxu0 0
        %6849 = vmatmul.mubr.bf16.gmra.mrb[0].mxu0 %v6539
        %v6850 = vpop.f32.mrb[0].mxu0
        %v6851 = vadd.f32 %v6706, %v6850
        %v6852 = vpop.f32.mrb[0].mxu0
        %v6853 = vpop.f32.mrb[0].mxu0
        %v6854 = vadd.f32 %v6709, %v6853
        %v6855 = vpop.f32.mrb[0].mxu0
        %6856 = vmatprep.mubr.bf16.mxu0 0
        %6857 = vmatmul.mubr.bf16.gmra.mrb[0].mxu0 %v6540
        %v6858 = vpop.f32.mrb[0].mxu0
        %v6859 = vadd.f32 %v6714, %v6858
        %v6860 = vpop.f32.mrb[0].mxu0
        %v6861 = vpop.f32.mrb[0].mxu0
        %v6862 = vadd.f32 %v6717, %v6861
        %v6863 = vpop.f32.mrb[0].mxu0
        %6864 = vmatprep.mubr.bf16.mxu0 0
        %6865 = vmatmul.mubr.bf16.gmra.mrb[0].mxu0 %v6541
        %v6866 = vpop.f32.mrb[0].mxu0
        %v6867 = vadd.f32 %v6722, %v6866
        %v6868 = vpop.f32.mrb[0].mxu0
        %v6869 = vpop.f32.mrb[0].mxu0
        %v6870 = vadd.f32 %v6725, %v6869
        %v6871 = vpop.f32.mrb[0].mxu0
        %6872 = vdwg.mxu0
        %v6873 = vld [vmem:[%s6515] sm:$0xff]
        %v6874 = vld [vmem:[%s6515 + $0x8] sm:$0xff]
        %v6875 = vld [vmem:[%s6515 + $0x10] sm:$0xff]
        %v6876 = vld [vmem:[%s6515 + $0x18] sm:$0xff]
        %v6877 = vld [vmem:[%s6515 + $0x20] sm:$0xff]
        %v6878 = vld [vmem:[%s6515 + $0x28] sm:$0xff]
        %v6879 = vld [vmem:[%s6515 + $0x30] sm:$0xff]
        %v6880 = vld [vmem:[%s6515 + $0x38] sm:$0xff]
        %s6881 = scalar_lea.vmem [#allocation6], 128
        %v6882 = vld [vmem:[%s6881] sm:$0xf]
        %v6883 = vld [vmem:[%s6881 + $0x4] sm:$0xf]
        %v6884 = vld [vmem:[%s6881 + $0x8] sm:$0xf]
        %v6885 = vld [vmem:[%s6881 + $0xc] sm:$0xf]
        %v6886 = vld [vmem:[%s6881 + $0x10] sm:$0xf]
        %v6887 = vld [vmem:[%s6881 + $0x14] sm:$0xf]
        %v6888 = vld [vmem:[%s6881 + $0x18] sm:$0xf]
        %v6889 = vld [vmem:[%s6881 + $0x1c] sm:$0xf]
        %v6890 = vld [vmem:[%s6881 + $0x20] sm:$0xf]
        %v6891 = vld [vmem:[%s6881 + $0x24] sm:$0xf]
        %v6892 = vld [vmem:[%s6881 + $0x28] sm:$0xf]
        %v6893 = vld [vmem:[%s6881 + $0x2c] sm:$0xf]
        %v6894 = vld [vmem:[%s6881 + $0x30] sm:$0xf]
        %v6895 = vld [vmem:[%s6881 + $0x34] sm:$0xf]
        %v6896 = vld [vmem:[%s6881 + $0x38] sm:$0xf]
        %v6897 = vld [vmem:[%s6881 + $0x3c] sm:$0xf]
        %v6914 = vunpack.c.l.b16 %v6882
        %v6915 = vunpack.c.l.b16 %v6883
        %v6916 = vunpack.c.l.b16 %v6884
        %v6917 = vunpack.c.l.b16 %v6885
        %v6918 = vunpack.c.l.b16 %v6886
        %v6919 = vunpack.c.l.b16 %v6887
        %v6920 = vunpack.c.l.b16 %v6888
        %v6921 = vunpack.c.l.b16 %v6889
        %v6922 = vunpack.c.l.b16 %v6890
        %v6923 = vunpack.c.l.b16 %v6891
        %v6924 = vunpack.c.l.b16 %v6892
        %v6925 = vunpack.c.l.b16 %v6893
        %v6926 = vunpack.c.l.b16 %v6894
        %v6927 = vunpack.c.l.b16 %v6895
        %v6928 = vunpack.c.l.b16 %v6896
        %v6929 = vunpack.c.l.b16 %v6897
        %v6930 = vpack.c.b16 %v6915, %v6914
        %v6931 = vpack.c.b16 %v6917, %v6916
        %v6932 = vpack.c.b16 %v6919, %v6918
        %v6933 = vpack.c.b16 %v6921, %v6920
        %v6934 = vpack.c.b16 %v6923, %v6922
        %v6935 = vpack.c.b16 %v6925, %v6924
        %v6936 = vpack.c.b16 %v6927, %v6926
        %v6937 = vpack.c.b16 %v6929, %v6928
        %6946 = vmatprep.subr.bf16.mxu0 0
        %6947 = vmatpush1.bf16.msra.mxu0 %v6930
        %6948 = vmatprep.subr.bf16.mxu0 0
        %6949 = vmatpush1.bf16.msra.mxu0 %v6931
        %6950 = vmatprep.subr.bf16.mxu0 0
        %6951 = vmatpush1.bf16.msra.mxu0 %v6932
        %6952 = vmatprep.subr.bf16.mxu0 0
        %6953 = vmatpush1.bf16.msra.mxu0 %v6933
        %6954 = vmatprep.subr.bf16.mxu0 0
        %6955 = vmatpush1.bf16.msra.mxu0 %v6934
        %6956 = vmatprep.subr.bf16.mxu0 0
        %6957 = vmatpush1.bf16.msra.mxu0 %v6935
        %6958 = vmatprep.subr.bf16.mxu0 0
        %6959 = vmatpush1.bf16.msra.mxu0 %v6936
        %6960 = vmatprep.subr.bf16.mxu0 0
        %6961 = vmatpush1.bf16.msra.mxu0 %v6937
        %6962 = vmatprep.subr.bf16.mxu0 0
        %6963 = vmatpush1.bf16.msra.mxu0 0
        %6964 = vmatprep.subr.bf16.mxu0 0
        %6965 = vmatpush1.bf16.msra.mxu0 0
        %6966 = vmatprep.subr.bf16.mxu0 0
        %6967 = vmatpush1.bf16.msra.mxu0 0
        %6968 = vmatprep.subr.bf16.mxu0 0
        %6969 = vmatpush1.bf16.msra.mxu0 0
        %6970 = vmatprep.subr.bf16.mxu0 0
        %6971 = vmatpush1.bf16.msra.mxu0 0
        %6972 = vmatprep.subr.bf16.mxu0 0
        %6973 = vmatpush1.bf16.msra.mxu0 0
        %6974 = vmatprep.subr.bf16.mxu0 0
        %6975 = vmatpush1.bf16.msra.mxu0 0
        %6976 = vmatprep.subr.bf16.mxu0 0
        %6977 = vmatpush1.bf16.msra.mxu0 0
        %6978 = vmatprep.mubr.bf16.mxu0 0
        %6979 = vmatmul.mubr.bf16.gmra.mrb[0].mxu0 %v6873
        %v6980 = vpop.f32.mrb[0].mxu0
        %v6981 = vadd.f32 0.0, %v6980
        %v6982 = vpop.f32.mrb[0].mxu0
        %v6983 = vpop.f32.mrb[0].mxu0
        %v6984 = vadd.f32 0.0, %v6983
        %v6985 = vpop.f32.mrb[0].mxu0
        %6986 = vmatprep.mubr.bf16.mxu0 0
        %6987 = vmatmul.mubr.bf16.gmra.mrb[0].mxu0 %v6874
        %v6988 = vpop.f32.mrb[0].mxu0
        %v6989 = vadd.f32 0.0, %v6988
        %v6990 = vpop.f32.mrb[0].mxu0
        %v6991 = vpop.f32.mrb[0].mxu0
        %v6992 = vadd.f32 0.0, %v6991
        %v6993 = vpop.f32.mrb[0].mxu0
        %6994 = vmatprep.mubr.bf16.mxu0 0
        %6995 = vmatmul.mubr.bf16.gmra.mrb[0].mxu0 %v6875
        %v6996 = vpop.f32.mrb[0].mxu0
        %v6997 = vadd.f32 0.0, %v6996
        %v6998 = vpop.f32.mrb[0].mxu0
        %v6999 = vpop.f32.mrb[0].mxu0
        %v7000 = vadd.f32 0.0, %v6999
        %v7001 = vpop.f32.mrb[0].mxu0
        %7002 = vmatprep.mubr.bf16.mxu0 0
        %7003 = vmatmul.mubr.bf16.gmra.mrb[0].mxu0 %v6876
        %v7004 = vpop.f32.mrb[0].mxu0
        %v7005 = vadd.f32 0.0, %v7004
        %v7006 = vpop.f32.mrb[0].mxu0
        %v7007 = vpop.f32.mrb[0].mxu0
        %v7008 = vadd.f32 0.0, %v7007
        %v7009 = vpop.f32.mrb[0].mxu0
        %7010 = vmatprep.mubr.bf16.mxu0 0
        %7011 = vmatmul.mubr.bf16.gmra.mrb[0].mxu0 %v6877
        %v7012 = vpop.f32.mrb[0].mxu0
        %v7013 = vadd.f32 0.0, %v7012
        %v7014 = vpop.f32.mrb[0].mxu0
        %v7015 = vpop.f32.mrb[0].mxu0
        %v7016 = vadd.f32 0.0, %v7015
        %v7017 = vpop.f32.mrb[0].mxu0
        %7018 = vmatprep.mubr.bf16.mxu0 0
        %7019 = vmatmul.mubr.bf16.gmra.mrb[0].mxu0 %v6878
        %v7020 = vpop.f32.mrb[0].mxu0
        %v7021 = vadd.f32 0.0, %v7020
        %v7022 = vpop.f32.mrb[0].mxu0
        %v7023 = vpop.f32.mrb[0].mxu0
        %v7024 = vadd.f32 0.0, %v7023
        %v7025 = vpop.f32.mrb[0].mxu0
        %7026 = vmatprep.mubr.bf16.mxu0 0
        %7027 = vmatmul.mubr.bf16.gmra.mrb[0].mxu0 %v6879
        %v7028 = vpop.f32.mrb[0].mxu0
        %v7029 = vadd.f32 0.0, %v7028
        %v7030 = vpop.f32.mrb[0].mxu0
        %v7031 = vpop.f32.mrb[0].mxu0
        %v7032 = vadd.f32 0.0, %v7031
        %v7033 = vpop.f32.mrb[0].mxu0
        %7034 = vmatprep.mubr.bf16.mxu0 0
        %7035 = vmatmul.mubr.bf16.gmra.mrb[0].mxu0 %v6880
        %v7036 = vpop.f32.mrb[0].mxu0
        %v7037 = vadd.f32 0.0, %v7036
        %v7038 = vpop.f32.mrb[0].mxu0
        %v7039 = vpop.f32.mrb[0].mxu0
        %v7040 = vadd.f32 0.0, %v7039
        %v7041 = vpop.f32.mrb[0].mxu0
        %7042 = vdwg.mxu0
        %v7043 = vadd.f32 %v6811, %v6981
        %v7044 = vadd.f32 %v6814, %v6984
        %v7045 = vadd.f32 %v6819, %v6989
        %v7046 = vadd.f32 %v6822, %v6992
        %v7047 = vadd.f32 %v6827, %v6997
        %v7048 = vadd.f32 %v6830, %v7000
        %v7049 = vadd.f32 %v6835, %v7005
        %v7050 = vadd.f32 %v6838, %v7008
        %v7051 = vadd.f32 %v6843, %v7013
        %v7052 = vadd.f32 %v6846, %v7016
        %v7053 = vadd.f32 %v6851, %v7021
        %v7054 = vadd.f32 %v6854, %v7024
        %v7055 = vadd.f32 %v6859, %v7029
        %v7056 = vadd.f32 %v6862, %v7032
        %v7057 = vadd.f32 %v6867, %v7037
        %v7058 = vadd.f32 %v6870, %v7040
        %v7059 = vld [vmem:[#allocation3 + $0x8] sm:$0xff]
        %v7060 = vld [vmem:[#allocation3 + $0x10] sm:$0xff]
        %v7061 = vld [vmem:[#allocation3 + $0x18] sm:$0xff]
        %v7062 = vld [vmem:[#allocation3 + $0x20] sm:$0xff]
        %v7063 = vld [vmem:[#allocation3 + $0x28] sm:$0xff]
        %v7064 = vld [vmem:[#allocation3 + $0x30] sm:$0xff]
        %v7065 = vld [vmem:[#allocation3 + $0x38] sm:$0xff]
        %v7066 = vld [vmem:[#allocation3 + $0x40] sm:$0xff]
        %s7067 = scalar_lea.vmem [#allocation6], 192
        %v7068 = vld [vmem:[%s7067] sm:$0xf]
        %v7069 = vld [vmem:[%s7067 + $0x4] sm:$0xf]
        %v7070 = vld [vmem:[%s7067 + $0x8] sm:$0xf]
        %v7071 = vld [vmem:[%s7067 + $0xc] sm:$0xf]
        %v7072 = vld [vmem:[%s7067 + $0x10] sm:$0xf]
        %v7073 = vld [vmem:[%s7067 + $0x14] sm:$0xf]
        %v7074 = vld [vmem:[%s7067 + $0x18] sm:$0xf]
        %v7075 = vld [vmem:[%s7067 + $0x1c] sm:$0xf]
        %v7076 = vld [vmem:[%s7067 + $0x20] sm:$0xf]
        %v7077 = vld [vmem:[%s7067 + $0x24] sm:$0xf]
        %v7078 = vld [vmem:[%s7067 + $0x28] sm:$0xf]
        %v7079 = vld [vmem:[%s7067 + $0x2c] sm:$0xf]
        %v7080 = vld [vmem:[%s7067 + $0x30] sm:$0xf]
        %v7081 = vld [vmem:[%s7067 + $0x34] sm:$0xf]
        %v7082 = vld [vmem:[%s7067 + $0x38] sm:$0xf]
        %v7083 = vld [vmem:[%s7067 + $0x3c] sm:$0xf]
        %v7100 = vunpack.c.l.b16 %v7068
        %v7101 = vunpack.c.l.b16 %v7069
        %v7102 = vunpack.c.l.b16 %v7070
        %v7103 = vunpack.c.l.b16 %v7071
        %v7104 = vunpack.c.l.b16 %v7072
        %v7105 = vunpack.c.l.b16 %v7073
        %v7106 = vunpack.c.l.b16 %v7074
        %v7107 = vunpack.c.l.b16 %v7075
        %v7108 = vunpack.c.l.b16 %v7076
        %v7109 = vunpack.c.l.b16 %v7077
        %v7110 = vunpack.c.l.b16 %v7078
        %v7111 = vunpack.c.l.b16 %v7079
        %v7112 = vunpack.c.l.b16 %v7080
        %v7113 = vunpack.c.l.b16 %v7081
        %v7114 = vunpack.c.l.b16 %v7082
        %v7115 = vunpack.c.l.b16 %v7083
        %v7116 = vpack.c.b16 %v7101, %v7100
        %v7117 = vpack.c.b16 %v7103, %v7102
        %v7118 = vpack.c.b16 %v7105, %v7104
        %v7119 = vpack.c.b16 %v7107, %v7106
        %v7120 = vpack.c.b16 %v7109, %v7108
        %v7121 = vpack.c.b16 %v7111, %v7110
        %v7122 = vpack.c.b16 %v7113, %v7112
        %v7123 = vpack.c.b16 %v7115, %v7114
        %7132 = vmatprep.subr.bf16.mxu0 0
        %7133 = vmatpush1.bf16.msra.mxu0 %v7116
        %7134 = vmatprep.subr.bf16.mxu0 0
        %7135 = vmatpush1.bf16.msra.mxu0 %v7117
        %7136 = vmatprep.subr.bf16.mxu0 0
        %7137 = vmatpush1.bf16.msra.mxu0 %v7118
        %7138 = vmatprep.subr.bf16.mxu0 0
        %7139 = vmatpush1.bf16.msra.mxu0 %v7119
        %7140 = vmatprep.subr.bf16.mxu0 0
        %7141 = vmatpush1.bf16.msra.mxu0 %v7120
        %7142 = vmatprep.subr.bf16.mxu0 0
        %7143 = vmatpush1.bf16.msra.mxu0 %v7121
        %7144 = vmatprep.subr.bf16.mxu0 0
        %7145 = vmatpush1.bf16.msra.mxu0 %v7122
        %7146 = vmatprep.subr.bf16.mxu0 0
        %7147 = vmatpush1.bf16.msra.mxu0 %v7123
        %7148 = vmatprep.subr.bf16.mxu0 0
        %7149 = vmatpush1.bf16.msra.mxu0 0
        %7150 = vmatprep.subr.bf16.mxu0 0
        %7151 = vmatpush1.bf16.msra.mxu0 0
        %7152 = vmatprep.subr.bf16.mxu0 0
        %7153 = vmatpush1.bf16.msra.mxu0 0
        %7154 = vmatprep.subr.bf16.mxu0 0
        %7155 = vmatpush1.bf16.msra.mxu0 0
        %7156 = vmatprep.subr.bf16.mxu0 0
        %7157 = vmatpush1.bf16.msra.mxu0 0
        %7158 = vmatprep.subr.bf16.mxu0 0
        %7159 = vmatpush1.bf16.msra.mxu0 0
        %7160 = vmatprep.subr.bf16.mxu0 0
        %7161 = vmatpush1.bf16.msra.mxu0 0
        %7162 = vmatprep.subr.bf16.mxu0 0
        %7163 = vmatpush1.bf16.msra.mxu0 0
        %7164 = vmatprep.mubr.bf16.mxu0 0
        %7165 = vmatmul.mubr.bf16.gmra.mrb[0].mxu0 %v7059
        %v7166 = vpop.f32.mrb[0].mxu0
        %v7167 = vadd.f32 0.0, %v7166
        %v7168 = vpop.f32.mrb[0].mxu0
        %v7169 = vpop.f32.mrb[0].mxu0
        %v7170 = vadd.f32 0.0, %v7169
        %v7171 = vpop.f32.mrb[0].mxu0
        %7172 = vmatprep.mubr.bf16.mxu0 0
        %7173 = vmatmul.mubr.bf16.gmra.mrb[0].mxu0 %v7060
        %v7174 = vpop.f32.mrb[0].mxu0
        %v7175 = vadd.f32 0.0, %v7174
        %v7176 = vpop.f32.mrb[0].mxu0
        %v7177 = vpop.f32.mrb[0].mxu0
        %v7178 = vadd.f32 0.0, %v7177
        %v7179 = vpop.f32.mrb[0].mxu0
        %7180 = vmatprep.mubr.bf16.mxu0 0
        %7181 = vmatmul.mubr.bf16.gmra.mrb[0].mxu0 %v7061
        %v7182 = vpop.f32.mrb[0].mxu0
        %v7183 = vadd.f32 0.0, %v7182
        %v7184 = vpop.f32.mrb[0].mxu0
        %v7185 = vpop.f32.mrb[0].mxu0
        %v7186 = vadd.f32 0.0, %v7185
        %v7187 = vpop.f32.mrb[0].mxu0
        %7188 = vmatprep.mubr.bf16.mxu0 0
        %7189 = vmatmul.mubr.bf16.gmra.mrb[0].mxu0 %v7062
        %v7190 = vpop.f32.mrb[0].mxu0
        %v7191 = vadd.f32 0.0, %v7190
        %v7192 = vpop.f32.mrb[0].mxu0
        %v7193 = vpop.f32.mrb[0].mxu0
        %v7194 = vadd.f32 0.0, %v7193
        %v7195 = vpop.f32.mrb[0].mxu0
        %7196 = vmatprep.mubr.bf16.mxu0 0
        %7197 = vmatmul.mubr.bf16.gmra.mrb[0].mxu0 %v7063
        %v7198 = vpop.f32.mrb[0].mxu0
        %v7199 = vadd.f32 0.0, %v7198
        %v7200 = vpop.f32.mrb[0].mxu0
        %v7201 = vpop.f32.mrb[0].mxu0
        %v7202 = vadd.f32 0.0, %v7201
        %v7203 = vpop.f32.mrb[0].mxu0
        %7204 = vmatprep.mubr.bf16.mxu0 0
        %7205 = vmatmul.mubr.bf16.gmra.mrb[0].mxu0 %v7064
        %v7206 = vpop.f32.mrb[0].mxu0
        %v7207 = vadd.f32 0.0, %v7206
        %v7208 = vpop.f32.mrb[0].mxu0
        %v7209 = vpop.f32.mrb[0].mxu0
        %v7210 = vadd.f32 0.0, %v7209
        %v7211 = vpop.f32.mrb[0].mxu0
        %7212 = vmatprep.mubr.bf16.mxu0 0
        %7213 = vmatmul.mubr.bf16.gmra.mrb[0].mxu0 %v7065
        %v7214 = vpop.f32.mrb[0].mxu0
        %v7215 = vadd.f32 0.0, %v7214
        %v7216 = vpop.f32.mrb[0].mxu0
        %v7217 = vpop.f32.mrb[0].mxu0
        %v7218 = vadd.f32 0.0, %v7217
        %v7219 = vpop.f32.mrb[0].mxu0
        %7220 = vmatprep.mubr.bf16.mxu0 0
        %7221 = vmatmul.mubr.bf16.gmra.mrb[0].mxu0 %v7066
        %v7222 = vpop.f32.mrb[0].mxu0
        %v7223 = vadd.f32 0.0, %v7222
        %v7224 = vpop.f32.mrb[0].mxu0
        %v7225 = vpop.f32.mrb[0].mxu0
        %v7226 = vadd.f32 0.0, %v7225
        %v7227 = vpop.f32.mrb[0].mxu0
        %7228 = vdwg.mxu0
        %v7229 = vadd.f32 %v7043, %v7167
        %v7230 = vadd.f32 %v7044, %v7170
        %v7231 = vadd.f32 %v7045, %v7175
        %v7232 = vadd.f32 %v7046, %v7178
        %v7233 = vadd.f32 %v7047, %v7183
        %v7234 = vadd.f32 %v7048, %v7186
        %v7235 = vadd.f32 %v7049, %v7191
        %v7236 = vadd.f32 %v7050, %v7194
        %v7237 = vadd.f32 %v7051, %v7199
        %v7238 = vadd.f32 %v7052, %v7202
        %v7239 = vadd.f32 %v7053, %v7207
        %v7240 = vadd.f32 %v7054, %v7210
        %v7241 = vadd.f32 %v7055, %v7215
        %v7242 = vadd.f32 %v7056, %v7218
        %v7243 = vadd.f32 %v7057, %v7223
        %v7244 = vadd.f32 %v7058, %v7226
        %v7245 = vld [vmem:[%s6190 + $0x8] sm:$0xff]
        %v7246 = vld [vmem:[%s6190 + $0x10] sm:$0xff]
        %v7247 = vld [vmem:[%s6190 + $0x18] sm:$0xff]
        %v7248 = vld [vmem:[%s6190 + $0x20] sm:$0xff]
        %v7249 = vld [vmem:[%s6190 + $0x28] sm:$0xff]
        %v7250 = vld [vmem:[%s6190 + $0x30] sm:$0xff]
        %v7251 = vld [vmem:[%s6190 + $0x38] sm:$0xff]
        %v7252 = vld [vmem:[%s6190 + $0x40] sm:$0xff]
        %s7253 = scalar_lea.vmem [#allocation6], 256
        %v7254 = vld [vmem:[%s7253] sm:$0xf]
        %v7255 = vld [vmem:[%s7253 + $0x4] sm:$0xf]
        %v7256 = vld [vmem:[%s7253 + $0x8] sm:$0xf]
        %v7257 = vld [vmem:[%s7253 + $0xc] sm:$0xf]
        %v7258 = vld [vmem:[%s7253 + $0x10] sm:$0xf]
        %v7259 = vld [vmem:[%s7253 + $0x14] sm:$0xf]
        %v7260 = vld [vmem:[%s7253 + $0x18] sm:$0xf]
        %v7261 = vld [vmem:[%s7253 + $0x1c] sm:$0xf]
        %v7262 = vld [vmem:[%s7253 + $0x20] sm:$0xf]
        %v7263 = vld [vmem:[%s7253 + $0x24] sm:$0xf]
        %v7264 = vld [vmem:[%s7253 + $0x28] sm:$0xf]
        %v7265 = vld [vmem:[%s7253 + $0x2c] sm:$0xf]
        %v7266 = vld [vmem:[%s7253 + $0x30] sm:$0xf]
        %v7267 = vld [vmem:[%s7253 + $0x34] sm:$0xf]
        %v7268 = vld [vmem:[%s7253 + $0x38] sm:$0xf]
        %v7269 = vld [vmem:[%s7253 + $0x3c] sm:$0xf]
        %v7286 = vunpack.c.l.b16 %v7254
        %v7287 = vunpack.c.l.b16 %v7255
        %v7288 = vunpack.c.l.b16 %v7256
        %v7289 = vunpack.c.l.b16 %v7257
        %v7290 = vunpack.c.l.b16 %v7258
        %v7291 = vunpack.c.l.b16 %v7259
        %v7292 = vunpack.c.l.b16 %v7260
        %v7293 = vunpack.c.l.b16 %v7261
        %v7294 = vunpack.c.l.b16 %v7262
        %v7295 = vunpack.c.l.b16 %v7263
        %v7296 = vunpack.c.l.b16 %v7264
        %v7297 = vunpack.c.l.b16 %v7265
        %v7298 = vunpack.c.l.b16 %v7266
        %v7299 = vunpack.c.l.b16 %v7267
        %v7300 = vunpack.c.l.b16 %v7268
        %v7301 = vunpack.c.l.b16 %v7269
        %v7302 = vpack.c.b16 %v7287, %v7286
        %v7303 = vpack.c.b16 %v7289, %v7288
        %v7304 = vpack.c.b16 %v7291, %v7290
        %v7305 = vpack.c.b16 %v7293, %v7292
        %v7306 = vpack.c.b16 %v7295, %v7294
        %v7307 = vpack.c.b16 %v7297, %v7296
        %v7308 = vpack.c.b16 %v7299, %v7298
        %v7309 = vpack.c.b16 %v7301, %v7300
        %7318 = vmatprep.subr.bf16.mxu0 0
        %7319 = vmatpush1.bf16.msra.mxu0 %v7302
        %7320 = vmatprep.subr.bf16.mxu0 0
        %7321 = vmatpush1.bf16.msra.mxu0 %v7303
        %7322 = vmatprep.subr.bf16.mxu0 0
        %7323 = vmatpush1.bf16.msra.mxu0 %v7304
        %7324 = vmatprep.subr.bf16.mxu0 0
        %7325 = vmatpush1.bf16.msra.mxu0 %v7305
        %7326 = vmatprep.subr.bf16.mxu0 0
        %7327 = vmatpush1.bf16.msra.mxu0 %v7306
        %7328 = vmatprep.subr.bf16.mxu0 0
        %7329 = vmatpush1.bf16.msra.mxu0 %v7307
        %7330 = vmatprep.subr.bf16.mxu0 0
        %7331 = vmatpush1.bf16.msra.mxu0 %v7308
        %7332 = vmatprep.subr.bf16.mxu0 0
        %7333 = vmatpush1.bf16.msra.mxu0 %v7309
        %7334 = vmatprep.subr.bf16.mxu0 0
        %7335 = vmatpush1.bf16.msra.mxu0 0
        %7336 = vmatprep.subr.bf16.mxu0 0
        %7337 = vmatpush1.bf16.msra.mxu0 0
        %7338 = vmatprep.subr.bf16.mxu0 0
        %7339 = vmatpush1.bf16.msra.mxu0 0
        %7340 = vmatprep.subr.bf16.mxu0 0
        %7341 = vmatpush1.bf16.msra.mxu0 0
        %7342 = vmatprep.subr.bf16.mxu0 0
        %7343 = vmatpush1.bf16.msra.mxu0 0
        %7344 = vmatprep.subr.bf16.mxu0 0
        %7345 = vmatpush1.bf16.msra.mxu0 0
        %7346 = vmatprep.subr.bf16.mxu0 0
        %7347 = vmatpush1.bf16.msra.mxu0 0
        %7348 = vmatprep.subr.bf16.mxu0 0
        %7349 = vmatpush1.bf16.msra.mxu0 0
        %7350 = vmatprep.mubr.bf16.mxu0 0
        %7351 = vmatmul.mubr.bf16.gmra.mrb[0].mxu0 %v7245
        %v7352 = vpop.f32.mrb[0].mxu0
        %v7353 = vadd.f32 0.0, %v7352
        %v7354 = vpop.f32.mrb[0].mxu0
        %v7355 = vpop.f32.mrb[0].mxu0
        %v7356 = vadd.f32 0.0, %v7355
        %v7357 = vpop.f32.mrb[0].mxu0
        %7358 = vmatprep.mubr.bf16.mxu0 0
        %7359 = vmatmul.mubr.bf16.gmra.mrb[0].mxu0 %v7246
        %v7360 = vpop.f32.mrb[0].mxu0
        %v7361 = vadd.f32 0.0, %v7360
        %v7362 = vpop.f32.mrb[0].mxu0
        %v7363 = vpop.f32.mrb[0].mxu0
        %v7364 = vadd.f32 0.0, %v7363
        %v7365 = vpop.f32.mrb[0].mxu0
        %7366 = vmatprep.mubr.bf16.mxu0 0
        %7367 = vmatmul.mubr.bf16.gmra.mrb[0].mxu0 %v7247
        %v7368 = vpop.f32.mrb[0].mxu0
        %v7369 = vadd.f32 0.0, %v7368
        %v7370 = vpop.f32.mrb[0].mxu0
        %v7371 = vpop.f32.mrb[0].mxu0
        %v7372 = vadd.f32 0.0, %v7371
        %v7373 = vpop.f32.mrb[0].mxu0
        %7374 = vmatprep.mubr.bf16.mxu0 0
        %7375 = vmatmul.mubr.bf16.gmra.mrb[0].mxu0 %v7248
        %v7376 = vpop.f32.mrb[0].mxu0
        %v7377 = vadd.f32 0.0, %v7376
        %v7378 = vpop.f32.mrb[0].mxu0
        %v7379 = vpop.f32.mrb[0].mxu0
        %v7380 = vadd.f32 0.0, %v7379
        %v7381 = vpop.f32.mrb[0].mxu0
        %7382 = vmatprep.mubr.bf16.mxu0 0
        %7383 = vmatmul.mubr.bf16.gmra.mrb[0].mxu0 %v7249
        %v7384 = vpop.f32.mrb[0].mxu0
        %v7385 = vadd.f32 0.0, %v7384
        %v7386 = vpop.f32.mrb[0].mxu0
        %v7387 = vpop.f32.mrb[0].mxu0
        %v7388 = vadd.f32 0.0, %v7387
        %v7389 = vpop.f32.mrb[0].mxu0
        %7390 = vmatprep.mubr.bf16.mxu0 0
        %7391 = vmatmul.mubr.bf16.gmra.mrb[0].mxu0 %v7250
        %v7392 = vpop.f32.mrb[0].mxu0
        %v7393 = vadd.f32 0.0, %v7392
        %v7394 = vpop.f32.mrb[0].mxu0
        %v7395 = vpop.f32.mrb[0].mxu0
        %v7396 = vadd.f32 0.0, %v7395
        %v7397 = vpop.f32.mrb[0].mxu0
        %7398 = vmatprep.mubr.bf16.mxu0 0
        %7399 = vmatmul.mubr.bf16.gmra.mrb[0].mxu0 %v7251
        %v7400 = vpop.f32.mrb[0].mxu0
        %v7401 = vadd.f32 0.0, %v7400
        %v7402 = vpop.f32.mrb[0].mxu0
        %v7403 = vpop.f32.mrb[0].mxu0
        %v7404 = vadd.f32 0.0, %v7403
        %v7405 = vpop.f32.mrb[0].mxu0
        %7406 = vmatprep.mubr.bf16.mxu0 0
        %7407 = vmatmul.mubr.bf16.gmra.mrb[0].mxu0 %v7252
        %v7408 = vpop.f32.mrb[0].mxu0
        %v7409 = vadd.f32 0.0, %v7408
        %v7410 = vpop.f32.mrb[0].mxu0
        %v7411 = vpop.f32.mrb[0].mxu0
        %v7412 = vadd.f32 0.0, %v7411
        %v7413 = vpop.f32.mrb[0].mxu0
        %7414 = vdwg.mxu0
        %v7415 = vadd.f32 %v7229, %v7353
        %v7416 = vadd.f32 %v7230, %v7356
        %v7417 = vadd.f32 %v7231, %v7361
        %v7418 = vadd.f32 %v7232, %v7364
        %v7419 = vadd.f32 %v7233, %v7369
        %v7420 = vadd.f32 %v7234, %v7372
        %v7421 = vadd.f32 %v7235, %v7377
        %v7422 = vadd.f32 %v7236, %v7380
        %v7423 = vadd.f32 %v7237, %v7385
        %v7424 = vadd.f32 %v7238, %v7388
        %v7425 = vadd.f32 %v7239, %v7393
        %v7426 = vadd.f32 %v7240, %v7396
        %v7427 = vadd.f32 %v7241, %v7401
        %v7428 = vadd.f32 %v7242, %v7404
        %v7429 = vadd.f32 %v7243, %v7409
        %v7430 = vadd.f32 %v7244, %v7412
        %v7431 = vld [vmem:[%s6515 + $0x8] sm:$0xff]
        %v7432 = vld [vmem:[%s6515 + $0x10] sm:$0xff]
        %v7433 = vld [vmem:[%s6515 + $0x18] sm:$0xff]
        %v7434 = vld [vmem:[%s6515 + $0x20] sm:$0xff]
        %v7435 = vld [vmem:[%s6515 + $0x28] sm:$0xff]
        %v7436 = vld [vmem:[%s6515 + $0x30] sm:$0xff]
        %v7437 = vld [vmem:[%s6515 + $0x38] sm:$0xff]
        %v7438 = vld [vmem:[%s6515 + $0x40] sm:$0xff]
        %s7439 = scalar_lea.vmem [#allocation6], 320
        %v7440 = vld [vmem:[%s7439] sm:$0xf]
        %v7441 = vld [vmem:[%s7439 + $0x4] sm:$0xf]
        %v7442 = vld [vmem:[%s7439 + $0x8] sm:$0xf]
        %v7443 = vld [vmem:[%s7439 + $0xc] sm:$0xf]
        %v7444 = vld [vmem:[%s7439 + $0x10] sm:$0xf]
        %v7445 = vld [vmem:[%s7439 + $0x14] sm:$0xf]
        %v7446 = vld [vmem:[%s7439 + $0x18] sm:$0xf]
        %v7447 = vld [vmem:[%s7439 + $0x1c] sm:$0xf]
        %v7448 = vld [vmem:[%s7439 + $0x20] sm:$0xf]
        %v7449 = vld [vmem:[%s7439 + $0x24] sm:$0xf]
        %v7450 = vld [vmem:[%s7439 + $0x28] sm:$0xf]
        %v7451 = vld [vmem:[%s7439 + $0x2c] sm:$0xf]
        %v7452 = vld [vmem:[%s7439 + $0x30] sm:$0xf]
        %v7453 = vld [vmem:[%s7439 + $0x34] sm:$0xf]
        %v7454 = vld [vmem:[%s7439 + $0x38] sm:$0xf]
        %v7455 = vld [vmem:[%s7439 + $0x3c] sm:$0xf]
        %v7472 = vunpack.c.l.b16 %v7440
        %v7473 = vunpack.c.l.b16 %v7441
        %v7474 = vunpack.c.l.b16 %v7442
        %v7475 = vunpack.c.l.b16 %v7443
        %v7476 = vunpack.c.l.b16 %v7444
        %v7477 = vunpack.c.l.b16 %v7445
        %v7478 = vunpack.c.l.b16 %v7446
        %v7479 = vunpack.c.l.b16 %v7447
        %v7480 = vunpack.c.l.b16 %v7448
        %v7481 = vunpack.c.l.b16 %v7449
        %v7482 = vunpack.c.l.b16 %v7450
        %v7483 = vunpack.c.l.b16 %v7451
        %v7484 = vunpack.c.l.b16 %v7452
        %v7485 = vunpack.c.l.b16 %v7453
        %v7486 = vunpack.c.l.b16 %v7454
        %v7487 = vunpack.c.l.b16 %v7455
        %v7488 = vpack.c.b16 %v7473, %v7472
        %v7489 = vpack.c.b16 %v7475, %v7474
        %v7490 = vpack.c.b16 %v7477, %v7476
        %v7491 = vpack.c.b16 %v7479, %v7478
        %v7492 = vpack.c.b16 %v7481, %v7480
        %v7493 = vpack.c.b16 %v7483, %v7482
        %v7494 = vpack.c.b16 %v7485, %v7484
        %v7495 = vpack.c.b16 %v7487, %v7486
        %7504 = vmatprep.subr.bf16.mxu0 0
        %7505 = vmatpush1.bf16.msra.mxu0 %v7488
        %7506 = vmatprep.subr.bf16.mxu0 0
        %7507 = vmatpush1.bf16.msra.mxu0 %v7489
        %7508 = vmatprep.subr.bf16.mxu0 0
        %7509 = vmatpush1.bf16.msra.mxu0 %v7490
        %7510 = vmatprep.subr.bf16.mxu0 0
        %7511 = vmatpush1.bf16.msra.mxu0 %v7491
        %7512 = vmatprep.subr.bf16.mxu0 0
        %7513 = vmatpush1.bf16.msra.mxu0 %v7492
        %7514 = vmatprep.subr.bf16.mxu0 0
        %7515 = vmatpush1.bf16.msra.mxu0 %v7493
        %7516 = vmatprep.subr.bf16.mxu0 0
        %7517 = vmatpush1.bf16.msra.mxu0 %v7494
        %7518 = vmatprep.subr.bf16.mxu0 0
        %7519 = vmatpush1.bf16.msra.mxu0 %v7495
        %7520 = vmatprep.subr.bf16.mxu0 0
        %7521 = vmatpush1.bf16.msra.mxu0 0
        %7522 = vmatprep.subr.bf16.mxu0 0
        %7523 = vmatpush1.bf16.msra.mxu0 0
        %7524 = vmatprep.subr.bf16.mxu0 0
        %7525 = vmatpush1.bf16.msra.mxu0 0
        %7526 = vmatprep.subr.bf16.mxu0 0
        %7527 = vmatpush1.bf16.msra.mxu0 0
        %7528 = vmatprep.subr.bf16.mxu0 0
        %7529 = vmatpush1.bf16.msra.mxu0 0
        %7530 = vmatprep.subr.bf16.mxu0 0
        %7531 = vmatpush1.bf16.msra.mxu0 0
        %7532 = vmatprep.subr.bf16.mxu0 0
        %7533 = vmatpush1.bf16.msra.mxu0 0
        %7534 = vmatprep.subr.bf16.mxu0 0
        %7535 = vmatpush1.bf16.msra.mxu0 0
        %7536 = vmatprep.mubr.bf16.mxu0 0
        %7537 = vmatmul.mubr.bf16.gmra.mrb[0].mxu0 %v7431
        %v7538 = vpop.f32.mrb[0].mxu0
        %v7539 = vadd.f32 0.0, %v7538
        %v7540 = vpop.f32.mrb[0].mxu0
        %v7541 = vpop.f32.mrb[0].mxu0
        %v7542 = vadd.f32 0.0, %v7541
        %v7543 = vpop.f32.mrb[0].mxu0
        %7544 = vmatprep.mubr.bf16.mxu0 0
        %7545 = vmatmul.mubr.bf16.gmra.mrb[0].mxu0 %v7432
        %v7546 = vpop.f32.mrb[0].mxu0
        %v7547 = vadd.f32 0.0, %v7546
        %v7548 = vpop.f32.mrb[0].mxu0
        %v7549 = vpop.f32.mrb[0].mxu0
        %v7550 = vadd.f32 0.0, %v7549
        %v7551 = vpop.f32.mrb[0].mxu0
        %7552 = vmatprep.mubr.bf16.mxu0 0
        %7553 = vmatmul.mubr.bf16.gmra.mrb[0].mxu0 %v7433
        %v7554 = vpop.f32.mrb[0].mxu0
        %v7555 = vadd.f32 0.0, %v7554
        %v7556 = vpop.f32.mrb[0].mxu0
        %v7557 = vpop.f32.mrb[0].mxu0
        %v7558 = vadd.f32 0.0, %v7557
        %v7559 = vpop.f32.mrb[0].mxu0
        %7560 = vmatprep.mubr.bf16.mxu0 0
        %7561 = vmatmul.mubr.bf16.gmra.mrb[0].mxu0 %v7434
        %v7562 = vpop.f32.mrb[0].mxu0
        %v7563 = vadd.f32 0.0, %v7562
        %v7564 = vpop.f32.mrb[0].mxu0
        %v7565 = vpop.f32.mrb[0].mxu0
        %v7566 = vadd.f32 0.0, %v7565
        %v7567 = vpop.f32.mrb[0].mxu0
        %7568 = vmatprep.mubr.bf16.mxu0 0
        %7569 = vmatmul.mubr.bf16.gmra.mrb[0].mxu0 %v7435
        %v7570 = vpop.f32.mrb[0].mxu0
        %v7571 = vadd.f32 0.0, %v7570
        %v7572 = vpop.f32.mrb[0].mxu0
        %v7573 = vpop.f32.mrb[0].mxu0
        %v7574 = vadd.f32 0.0, %v7573
        %v7575 = vpop.f32.mrb[0].mxu0
        %7576 = vmatprep.mubr.bf16.mxu0 0
        %7577 = vmatmul.mubr.bf16.gmra.mrb[0].mxu0 %v7436
        %v7578 = vpop.f32.mrb[0].mxu0
        %v7579 = vadd.f32 0.0, %v7578
        %v7580 = vpop.f32.mrb[0].mxu0
        %v7581 = vpop.f32.mrb[0].mxu0
        %v7582 = vadd.f32 0.0, %v7581
        %v7583 = vpop.f32.mrb[0].mxu0
        %7584 = vmatprep.mubr.bf16.mxu0 0
        %7585 = vmatmul.mubr.bf16.gmra.mrb[0].mxu0 %v7437
        %v7586 = vpop.f32.mrb[0].mxu0
        %v7587 = vadd.f32 0.0, %v7586
        %v7588 = vpop.f32.mrb[0].mxu0
        %v7589 = vpop.f32.mrb[0].mxu0
        %v7590 = vadd.f32 0.0, %v7589
        %v7591 = vpop.f32.mrb[0].mxu0
        %7592 = vmatprep.mubr.bf16.mxu0 0
        %7593 = vmatmul.mubr.bf16.gmra.mrb[0].mxu0 %v7438
        %v7594 = vpop.f32.mrb[0].mxu0
        %v7595 = vadd.f32 0.0, %v7594
        %v7596 = vpop.f32.mrb[0].mxu0
        %v7597 = vpop.f32.mrb[0].mxu0
        %v7598 = vadd.f32 0.0, %v7597
        %v7599 = vpop.f32.mrb[0].mxu0
        %7600 = vdwg.mxu0
        %v7601 = vadd.f32 %v7415, %v7539
        %v7602 = vadd.f32 %v7416, %v7542
        %v7603 = vadd.f32 %v7417, %v7547
        %v7604 = vadd.f32 %v7418, %v7550
        %v7605 = vadd.f32 %v7419, %v7555
        %v7606 = vadd.f32 %v7420, %v7558
        %v7607 = vadd.f32 %v7421, %v7563
        %v7608 = vadd.f32 %v7422, %v7566
        %v7609 = vadd.f32 %v7423, %v7571
        %v7610 = vadd.f32 %v7424, %v7574
        %v7611 = vadd.f32 %v7425, %v7579
        %v7612 = vadd.f32 %v7426, %v7582
        %v7613 = vadd.f32 %v7427, %v7587
        %v7614 = vadd.f32 %v7428, %v7590
        %v7615 = vadd.f32 %v7429, %v7595
        %v7616 = vadd.f32 %v7430, %v7598
        %v7617 = vld [vmem:[#allocation3 + $0x10] sm:$0xff]
        %v7618 = vld [vmem:[#allocation3 + $0x18] sm:$0xff]
        %v7619 = vld [vmem:[#allocation3 + $0x20] sm:$0xff]
        %v7620 = vld [vmem:[#allocation3 + $0x28] sm:$0xff]
        %v7621 = vld [vmem:[#allocation3 + $0x30] sm:$0xff]
        %v7622 = vld [vmem:[#allocation3 + $0x38] sm:$0xff]
        %v7623 = vld [vmem:[#allocation3 + $0x40] sm:$0xff]
        %v7624 = vld [vmem:[#allocation3 + $0x48] sm:$0xff]
        %s7625 = scalar_lea.vmem [#allocation6], 384
        %v7626 = vld [vmem:[%s7625] sm:$0xf]
        %v7627 = vld [vmem:[%s7625 + $0x4] sm:$0xf]
        %v7628 = vld [vmem:[%s7625 + $0x8] sm:$0xf]
        %v7629 = vld [vmem:[%s7625 + $0xc] sm:$0xf]
        %v7630 = vld [vmem:[%s7625 + $0x10] sm:$0xf]
        %v7631 = vld [vmem:[%s7625 + $0x14] sm:$0xf]
        %v7632 = vld [vmem:[%s7625 + $0x18] sm:$0xf]
        %v7633 = vld [vmem:[%s7625 + $0x1c] sm:$0xf]
        %v7634 = vld [vmem:[%s7625 + $0x20] sm:$0xf]
        %v7635 = vld [vmem:[%s7625 + $0x24] sm:$0xf]
        %v7636 = vld [vmem:[%s7625 + $0x28] sm:$0xf]
        %v7637 = vld [vmem:[%s7625 + $0x2c] sm:$0xf]
        %v7638 = vld [vmem:[%s7625 + $0x30] sm:$0xf]
        %v7639 = vld [vmem:[%s7625 + $0x34] sm:$0xf]
        %v7640 = vld [vmem:[%s7625 + $0x38] sm:$0xf]
        %v7641 = vld [vmem:[%s7625 + $0x3c] sm:$0xf]
        %v7658 = vunpack.c.l.b16 %v7626
        %v7659 = vunpack.c.l.b16 %v7627
        %v7660 = vunpack.c.l.b16 %v7628
        %v7661 = vunpack.c.l.b16 %v7629
        %v7662 = vunpack.c.l.b16 %v7630
        %v7663 = vunpack.c.l.b16 %v7631
        %v7664 = vunpack.c.l.b16 %v7632
        %v7665 = vunpack.c.l.b16 %v7633
        %v7666 = vunpack.c.l.b16 %v7634
        %v7667 = vunpack.c.l.b16 %v7635
        %v7668 = vunpack.c.l.b16 %v7636
        %v7669 = vunpack.c.l.b16 %v7637
        %v7670 = vunpack.c.l.b16 %v7638
        %v7671 = vunpack.c.l.b16 %v7639
        %v7672 = vunpack.c.l.b16 %v7640
        %v7673 = vunpack.c.l.b16 %v7641
        %v7674 = vpack.c.b16 %v7659, %v7658
        %v7675 = vpack.c.b16 %v7661, %v7660
        %v7676 = vpack.c.b16 %v7663, %v7662
        %v7677 = vpack.c.b16 %v7665, %v7664
        %v7678 = vpack.c.b16 %v7667, %v7666
        %v7679 = vpack.c.b16 %v7669, %v7668
        %v7680 = vpack.c.b16 %v7671, %v7670
        %v7681 = vpack.c.b16 %v7673, %v7672
        %7690 = vmatprep.subr.bf16.mxu0 0
        %7691 = vmatpush1.bf16.msra.mxu0 %v7674
        %7692 = vmatprep.subr.bf16.mxu0 0
        %7693 = vmatpush1.bf16.msra.mxu0 %v7675
        %7694 = vmatprep.subr.bf16.mxu0 0
        %7695 = vmatpush1.bf16.msra.mxu0 %v7676
        %7696 = vmatprep.subr.bf16.mxu0 0
        %7697 = vmatpush1.bf16.msra.mxu0 %v7677
        %7698 = vmatprep.subr.bf16.mxu0 0
        %7699 = vmatpush1.bf16.msra.mxu0 %v7678
        %7700 = vmatprep.subr.bf16.mxu0 0
        %7701 = vmatpush1.bf16.msra.mxu0 %v7679
        %7702 = vmatprep.subr.bf16.mxu0 0
        %7703 = vmatpush1.bf16.msra.mxu0 %v7680
        %7704 = vmatprep.subr.bf16.mxu0 0
        %7705 = vmatpush1.bf16.msra.mxu0 %v7681
        %7706 = vmatprep.subr.bf16.mxu0 0
        %7707 = vmatpush1.bf16.msra.mxu0 0
        %7708 = vmatprep.subr.bf16.mxu0 0
        %7709 = vmatpush1.bf16.msra.mxu0 0
        %7710 = vmatprep.subr.bf16.mxu0 0
        %7711 = vmatpush1.bf16.msra.mxu0 0
        %7712 = vmatprep.subr.bf16.mxu0 0
        %7713 = vmatpush1.bf16.msra.mxu0 0
        %7714 = vmatprep.subr.bf16.mxu0 0
        %7715 = vmatpush1.bf16.msra.mxu0 0
        %7716 = vmatprep.subr.bf16.mxu0 0
        %7717 = vmatpush1.bf16.msra.mxu0 0
        %7718 = vmatprep.subr.bf16.mxu0 0
        %7719 = vmatpush1.bf16.msra.mxu0 0
        %7720 = vmatprep.subr.bf16.mxu0 0
        %7721 = vmatpush1.bf16.msra.mxu0 0
        %7722 = vmatprep.mubr.bf16.mxu0 0
        %7723 = vmatmul.mubr.bf16.gmra.mrb[0].mxu0 %v7617
        %v7724 = vpop.f32.mrb[0].mxu0
        %v7725 = vadd.f32 0.0, %v7724
        %v7726 = vpop.f32.mrb[0].mxu0
        %v7727 = vpop.f32.mrb[0].mxu0
        %v7728 = vadd.f32 0.0, %v7727
        %v7729 = vpop.f32.mrb[0].mxu0
        %7730 = vmatprep.mubr.bf16.mxu0 0
        %7731 = vmatmul.mubr.bf16.gmra.mrb[0].mxu0 %v7618
        %v7732 = vpop.f32.mrb[0].mxu0
        %v7733 = vadd.f32 0.0, %v7732
        %v7734 = vpop.f32.mrb[0].mxu0
        %v7735 = vpop.f32.mrb[0].mxu0
        %v7736 = vadd.f32 0.0, %v7735
        %v7737 = vpop.f32.mrb[0].mxu0
        %7738 = vmatprep.mubr.bf16.mxu0 0
        %7739 = vmatmul.mubr.bf16.gmra.mrb[0].mxu0 %v7619
        %v7740 = vpop.f32.mrb[0].mxu0
        %v7741 = vadd.f32 0.0, %v7740
        %v7742 = vpop.f32.mrb[0].mxu0
        %v7743 = vpop.f32.mrb[0].mxu0
        %v7744 = vadd.f32 0.0, %v7743
        %v7745 = vpop.f32.mrb[0].mxu0
        %7746 = vmatprep.mubr.bf16.mxu0 0
        %7747 = vmatmul.mubr.bf16.gmra.mrb[0].mxu0 %v7620
        %v7748 = vpop.f32.mrb[0].mxu0
        %v7749 = vadd.f32 0.0, %v7748
        %v7750 = vpop.f32.mrb[0].mxu0
        %v7751 = vpop.f32.mrb[0].mxu0
        %v7752 = vadd.f32 0.0, %v7751
        %v7753 = vpop.f32.mrb[0].mxu0
        %7754 = vmatprep.mubr.bf16.mxu0 0
        %7755 = vmatmul.mubr.bf16.gmra.mrb[0].mxu0 %v7621
        %v7756 = vpop.f32.mrb[0].mxu0
        %v7757 = vadd.f32 0.0, %v7756
        %v7758 = vpop.f32.mrb[0].mxu0
        %v7759 = vpop.f32.mrb[0].mxu0
        %v7760 = vadd.f32 0.0, %v7759
        %v7761 = vpop.f32.mrb[0].mxu0
        %7762 = vmatprep.mubr.bf16.mxu0 0
        %7763 = vmatmul.mubr.bf16.gmra.mrb[0].mxu0 %v7622
        %v7764 = vpop.f32.mrb[0].mxu0
        %v7765 = vadd.f32 0.0, %v7764
        %v7766 = vpop.f32.mrb[0].mxu0
        %v7767 = vpop.f32.mrb[0].mxu0
        %v7768 = vadd.f32 0.0, %v7767
        %v7769 = vpop.f32.mrb[0].mxu0
        %7770 = vmatprep.mubr.bf16.mxu0 0
        %7771 = vmatmul.mubr.bf16.gmra.mrb[0].mxu0 %v7623
        %v7772 = vpop.f32.mrb[0].mxu0
        %v7773 = vadd.f32 0.0, %v7772
        %v7774 = vpop.f32.mrb[0].mxu0
        %v7775 = vpop.f32.mrb[0].mxu0
        %v7776 = vadd.f32 0.0, %v7775
        %v7777 = vpop.f32.mrb[0].mxu0
        %7778 = vmatprep.mubr.bf16.mxu0 0
        %7779 = vmatmul.mubr.bf16.gmra.mrb[0].mxu0 %v7624
        %v7780 = vpop.f32.mrb[0].mxu0
        %v7781 = vadd.f32 0.0, %v7780
        %v7782 = vpop.f32.mrb[0].mxu0
        %v7783 = vpop.f32.mrb[0].mxu0
        %v7784 = vadd.f32 0.0, %v7783
        %v7785 = vpop.f32.mrb[0].mxu0
        %7786 = vdwg.mxu0
        %v7787 = vadd.f32 %v7601, %v7725
        %v7788 = vadd.f32 %v7602, %v7728
        %v7789 = vadd.f32 %v7603, %v7733
        %v7790 = vadd.f32 %v7604, %v7736
        %v7791 = vadd.f32 %v7605, %v7741
        %v7792 = vadd.f32 %v7606, %v7744
        %v7793 = vadd.f32 %v7607, %v7749
        %v7794 = vadd.f32 %v7608, %v7752
        %v7795 = vadd.f32 %v7609, %v7757
        %v7796 = vadd.f32 %v7610, %v7760
        %v7797 = vadd.f32 %v7611, %v7765
        %v7798 = vadd.f32 %v7612, %v7768
        %v7799 = vadd.f32 %v7613, %v7773
        %v7800 = vadd.f32 %v7614, %v7776
        %v7801 = vadd.f32 %v7615, %v7781
        %v7802 = vadd.f32 %v7616, %v7784
        %v7803 = vld [vmem:[%s6190 + $0x10] sm:$0xff]
        %v7804 = vld [vmem:[%s6190 + $0x18] sm:$0xff]
        %v7805 = vld [vmem:[%s6190 + $0x20] sm:$0xff]
        %v7806 = vld [vmem:[%s6190 + $0x28] sm:$0xff]
        %v7807 = vld [vmem:[%s6190 + $0x30] sm:$0xff]
        %v7808 = vld [vmem:[%s6190 + $0x38] sm:$0xff]
        %v7809 = vld [vmem:[%s6190 + $0x40] sm:$0xff]
        %v7810 = vld [vmem:[%s6190 + $0x48] sm:$0xff]
        %s7811 = scalar_lea.vmem [#allocation6], 448
        %v7812 = vld [vmem:[%s7811] sm:$0xf]
        %v7813 = vld [vmem:[%s7811 + $0x4] sm:$0xf]
        %v7814 = vld [vmem:[%s7811 + $0x8] sm:$0xf]
        %v7815 = vld [vmem:[%s7811 + $0xc] sm:$0xf]
        %v7816 = vld [vmem:[%s7811 + $0x10] sm:$0xf]
        %v7817 = vld [vmem:[%s7811 + $0x14] sm:$0xf]
        %v7818 = vld [vmem:[%s7811 + $0x18] sm:$0xf]
        %v7819 = vld [vmem:[%s7811 + $0x1c] sm:$0xf]
        %v7820 = vld [vmem:[%s7811 + $0x20] sm:$0xf]
        %v7821 = vld [vmem:[%s7811 + $0x24] sm:$0xf]
        %v7822 = vld [vmem:[%s7811 + $0x28] sm:$0xf]
        %v7823 = vld [vmem:[%s7811 + $0x2c] sm:$0xf]
        %v7824 = vld [vmem:[%s7811 + $0x30] sm:$0xf]
        %v7825 = vld [vmem:[%s7811 + $0x34] sm:$0xf]
        %v7826 = vld [vmem:[%s7811 + $0x38] sm:$0xf]
        %v7827 = vld [vmem:[%s7811 + $0x3c] sm:$0xf]
        %v7844 = vunpack.c.l.b16 %v7812
        %v7845 = vunpack.c.l.b16 %v7813
        %v7846 = vunpack.c.l.b16 %v7814
        %v7847 = vunpack.c.l.b16 %v7815
        %v7848 = vunpack.c.l.b16 %v7816
        %v7849 = vunpack.c.l.b16 %v7817
        %v7850 = vunpack.c.l.b16 %v7818
        %v7851 = vunpack.c.l.b16 %v7819
        %v7852 = vunpack.c.l.b16 %v7820
        %v7853 = vunpack.c.l.b16 %v7821
        %v7854 = vunpack.c.l.b16 %v7822
        %v7855 = vunpack.c.l.b16 %v7823
        %v7856 = vunpack.c.l.b16 %v7824
        %v7857 = vunpack.c.l.b16 %v7825
        %v7858 = vunpack.c.l.b16 %v7826
        %v7859 = vunpack.c.l.b16 %v7827
        %v7860 = vpack.c.b16 %v7845, %v7844
        %v7861 = vpack.c.b16 %v7847, %v7846
        %v7862 = vpack.c.b16 %v7849, %v7848
        %v7863 = vpack.c.b16 %v7851, %v7850
        %v7864 = vpack.c.b16 %v7853, %v7852
        %v7865 = vpack.c.b16 %v7855, %v7854
        %v7866 = vpack.c.b16 %v7857, %v7856
        %v7867 = vpack.c.b16 %v7859, %v7858
        %7876 = vmatprep.subr.bf16.mxu0 0
        %7877 = vmatpush1.bf16.msra.mxu0 %v7860
        %7878 = vmatprep.subr.bf16.mxu0 0
        %7879 = vmatpush1.bf16.msra.mxu0 %v7861
        %7880 = vmatprep.subr.bf16.mxu0 0
        %7881 = vmatpush1.bf16.msra.mxu0 %v7862
        %7882 = vmatprep.subr.bf16.mxu0 0
        %7883 = vmatpush1.bf16.msra.mxu0 %v7863
        %7884 = vmatprep.subr.bf16.mxu0 0
        %7885 = vmatpush1.bf16.msra.mxu0 %v7864
        %7886 = vmatprep.subr.bf16.mxu0 0
        %7887 = vmatpush1.bf16.msra.mxu0 %v7865
        %7888 = vmatprep.subr.bf16.mxu0 0
        %7889 = vmatpush1.bf16.msra.mxu0 %v7866
        %7890 = vmatprep.subr.bf16.mxu0 0
        %7891 = vmatpush1.bf16.msra.mxu0 %v7867
        %7892 = vmatprep.subr.bf16.mxu0 0
        %7893 = vmatpush1.bf16.msra.mxu0 0
        %7894 = vmatprep.subr.bf16.mxu0 0
        %7895 = vmatpush1.bf16.msra.mxu0 0
        %7896 = vmatprep.subr.bf16.mxu0 0
        %7897 = vmatpush1.bf16.msra.mxu0 0
        %7898 = vmatprep.subr.bf16.mxu0 0
        %7899 = vmatpush1.bf16.msra.mxu0 0
        %7900 = vmatprep.subr.bf16.mxu0 0
        %7901 = vmatpush1.bf16.msra.mxu0 0
        %7902 = vmatprep.subr.bf16.mxu0 0
        %7903 = vmatpush1.bf16.msra.mxu0 0
        %7904 = vmatprep.subr.bf16.mxu0 0
        %7905 = vmatpush1.bf16.msra.mxu0 0
        %7906 = vmatprep.subr.bf16.mxu0 0
        %7907 = vmatpush1.bf16.msra.mxu0 0
        %7908 = vmatprep.mubr.bf16.mxu0 0
        %7909 = vmatmul.mubr.bf16.gmra.mrb[0].mxu0 %v7803
        %v7910 = vpop.f32.mrb[0].mxu0
        %v7911 = vadd.f32 0.0, %v7910
        %v7912 = vpop.f32.mrb[0].mxu0
        %v7913 = vpop.f32.mrb[0].mxu0
        %v7914 = vadd.f32 0.0, %v7913
        %v7915 = vpop.f32.mrb[0].mxu0
        %7916 = vmatprep.mubr.bf16.mxu0 0
        %7917 = vmatmul.mubr.bf16.gmra.mrb[0].mxu0 %v7804
        %v7918 = vpop.f32.mrb[0].mxu0
        %v7919 = vadd.f32 0.0, %v7918
        %v7920 = vpop.f32.mrb[0].mxu0
        %v7921 = vpop.f32.mrb[0].mxu0
        %v7922 = vadd.f32 0.0, %v7921
        %v7923 = vpop.f32.mrb[0].mxu0
        %7924 = vmatprep.mubr.bf16.mxu0 0
        %7925 = vmatmul.mubr.bf16.gmra.mrb[0].mxu0 %v7805
        %v7926 = vpop.f32.mrb[0].mxu0
        %v7927 = vadd.f32 0.0, %v7926
        %v7928 = vpop.f32.mrb[0].mxu0
        %v7929 = vpop.f32.mrb[0].mxu0
        %v7930 = vadd.f32 0.0, %v7929
        %v7931 = vpop.f32.mrb[0].mxu0
        %7932 = vmatprep.mubr.bf16.mxu0 0
        %7933 = vmatmul.mubr.bf16.gmra.mrb[0].mxu0 %v7806
        %v7934 = vpop.f32.mrb[0].mxu0
        %v7935 = vadd.f32 0.0, %v7934
        %v7936 = vpop.f32.mrb[0].mxu0
        %v7937 = vpop.f32.mrb[0].mxu0
        %v7938 = vadd.f32 0.0, %v7937
        %v7939 = vpop.f32.mrb[0].mxu0
        %7940 = vmatprep.mubr.bf16.mxu0 0
        %7941 = vmatmul.mubr.bf16.gmra.mrb[0].mxu0 %v7807
        %v7942 = vpop.f32.mrb[0].mxu0
        %v7943 = vadd.f32 0.0, %v7942
        %v7944 = vpop.f32.mrb[0].mxu0
        %v7945 = vpop.f32.mrb[0].mxu0
        %v7946 = vadd.f32 0.0, %v7945
        %v7947 = vpop.f32.mrb[0].mxu0
        %7948 = vmatprep.mubr.bf16.mxu0 0
        %7949 = vmatmul.mubr.bf16.gmra.mrb[0].mxu0 %v7808
        %v7950 = vpop.f32.mrb[0].mxu0
        %v7951 = vadd.f32 0.0, %v7950
        %v7952 = vpop.f32.mrb[0].mxu0
        %v7953 = vpop.f32.mrb[0].mxu0
        %v7954 = vadd.f32 0.0, %v7953
        %v7955 = vpop.f32.mrb[0].mxu0
        %7956 = vmatprep.mubr.bf16.mxu0 0
        %7957 = vmatmul.mubr.bf16.gmra.mrb[0].mxu0 %v7809
        %v7958 = vpop.f32.mrb[0].mxu0
        %v7959 = vadd.f32 0.0, %v7958
        %v7960 = vpop.f32.mrb[0].mxu0
        %v7961 = vpop.f32.mrb[0].mxu0
        %v7962 = vadd.f32 0.0, %v7961
        %v7963 = vpop.f32.mrb[0].mxu0
        %7964 = vmatprep.mubr.bf16.mxu0 0
        %7965 = vmatmul.mubr.bf16.gmra.mrb[0].mxu0 %v7810
        %v7966 = vpop.f32.mrb[0].mxu0
        %v7967 = vadd.f32 0.0, %v7966
        %v7968 = vpop.f32.mrb[0].mxu0
        %v7969 = vpop.f32.mrb[0].mxu0
        %v7970 = vadd.f32 0.0, %v7969
        %v7971 = vpop.f32.mrb[0].mxu0
        %7972 = vdwg.mxu0
        %v7973 = vadd.f32 %v7787, %v7911
        %v7974 = vadd.f32 %v7788, %v7914
        %v7975 = vadd.f32 %v7789, %v7919
        %v7976 = vadd.f32 %v7790, %v7922
        %v7977 = vadd.f32 %v7791, %v7927
        %v7978 = vadd.f32 %v7792, %v7930
        %v7979 = vadd.f32 %v7793, %v7935
        %v7980 = vadd.f32 %v7794, %v7938
        %v7981 = vadd.f32 %v7795, %v7943
        %v7982 = vadd.f32 %v7796, %v7946
        %v7983 = vadd.f32 %v7797, %v7951
        %v7984 = vadd.f32 %v7798, %v7954
        %v7985 = vadd.f32 %v7799, %v7959
        %v7986 = vadd.f32 %v7800, %v7962
        %v7987 = vadd.f32 %v7801, %v7967
        %v7988 = vadd.f32 %v7802, %v7970
        %v7989 = vld [vmem:[%s6515 + $0x10] sm:$0xff]
        %v7990 = vld [vmem:[%s6515 + $0x18] sm:$0xff]
        %v7991 = vld [vmem:[%s6515 + $0x20] sm:$0xff]
        %v7992 = vld [vmem:[%s6515 + $0x28] sm:$0xff]
        %v7993 = vld [vmem:[%s6515 + $0x30] sm:$0xff]
        %v7994 = vld [vmem:[%s6515 + $0x38] sm:$0xff]
        %v7995 = vld [vmem:[%s6515 + $0x40] sm:$0xff]
        %v7996 = vld [vmem:[%s6515 + $0x48] sm:$0xff]
        %s7997 = scalar_lea.vmem [#allocation6], 512
        %v7998 = vld [vmem:[%s7997] sm:$0xf]
        %v7999 = vld [vmem:[%s7997 + $0x4] sm:$0xf]
        %v8000 = vld [vmem:[%s7997 + $0x8] sm:$0xf]
        %v8001 = vld [vmem:[%s7997 + $0xc] sm:$0xf]
        %v8002 = vld [vmem:[%s7997 + $0x10] sm:$0xf]
        %v8003 = vld [vmem:[%s7997 + $0x14] sm:$0xf]
        %v8004 = vld [vmem:[%s7997 + $0x18] sm:$0xf]
        %v8005 = vld [vmem:[%s7997 + $0x1c] sm:$0xf]
        %v8006 = vld [vmem:[%s7997 + $0x20] sm:$0xf]
        %v8007 = vld [vmem:[%s7997 + $0x24] sm:$0xf]
        %v8008 = vld [vmem:[%s7997 + $0x28] sm:$0xf]
        %v8009 = vld [vmem:[%s7997 + $0x2c] sm:$0xf]
        %v8010 = vld [vmem:[%s7997 + $0x30] sm:$0xf]
        %v8011 = vld [vmem:[%s7997 + $0x34] sm:$0xf]
        %v8012 = vld [vmem:[%s7997 + $0x38] sm:$0xf]
        %v8013 = vld [vmem:[%s7997 + $0x3c] sm:$0xf]
        %v8030 = vunpack.c.l.b16 %v7998
        %v8031 = vunpack.c.l.b16 %v7999
        %v8032 = vunpack.c.l.b16 %v8000
        %v8033 = vunpack.c.l.b16 %v8001
        %v8034 = vunpack.c.l.b16 %v8002
        %v8035 = vunpack.c.l.b16 %v8003
        %v8036 = vunpack.c.l.b16 %v8004
        %v8037 = vunpack.c.l.b16 %v8005
        %v8038 = vunpack.c.l.b16 %v8006
        %v8039 = vunpack.c.l.b16 %v8007
        %v8040 = vunpack.c.l.b16 %v8008
        %v8041 = vunpack.c.l.b16 %v8009
        %v8042 = vunpack.c.l.b16 %v8010
        %v8043 = vunpack.c.l.b16 %v8011
        %v8044 = vunpack.c.l.b16 %v8012
        %v8045 = vunpack.c.l.b16 %v8013
        %v8046 = vpack.c.b16 %v8031, %v8030
        %v8047 = vpack.c.b16 %v8033, %v8032
        %v8048 = vpack.c.b16 %v8035, %v8034
        %v8049 = vpack.c.b16 %v8037, %v8036
        %v8050 = vpack.c.b16 %v8039, %v8038
        %v8051 = vpack.c.b16 %v8041, %v8040
        %v8052 = vpack.c.b16 %v8043, %v8042
        %v8053 = vpack.c.b16 %v8045, %v8044
        %8062 = vmatprep.subr.bf16.mxu0 0
        %8063 = vmatpush1.bf16.msra.mxu0 %v8046
        %8064 = vmatprep.subr.bf16.mxu0 0
        %8065 = vmatpush1.bf16.msra.mxu0 %v8047
        %8066 = vmatprep.subr.bf16.mxu0 0
        %8067 = vmatpush1.bf16.msra.mxu0 %v8048
        %8068 = vmatprep.subr.bf16.mxu0 0
        %8069 = vmatpush1.bf16.msra.mxu0 %v8049
        %8070 = vmatprep.subr.bf16.mxu0 0
        %8071 = vmatpush1.bf16.msra.mxu0 %v8050
        %8072 = vmatprep.subr.bf16.mxu0 0
        %8073 = vmatpush1.bf16.msra.mxu0 %v8051
        %8074 = vmatprep.subr.bf16.mxu0 0
        %8075 = vmatpush1.bf16.msra.mxu0 %v8052
        %8076 = vmatprep.subr.bf16.mxu0 0
        %8077 = vmatpush1.bf16.msra.mxu0 %v8053
        %8078 = vmatprep.subr.bf16.mxu0 0
        %8079 = vmatpush1.bf16.msra.mxu0 0
        %8080 = vmatprep.subr.bf16.mxu0 0
        %8081 = vmatpush1.bf16.msra.mxu0 0
        %8082 = vmatprep.subr.bf16.mxu0 0
        %8083 = vmatpush1.bf16.msra.mxu0 0
        %8084 = vmatprep.subr.bf16.mxu0 0
        %8085 = vmatpush1.bf16.msra.mxu0 0
        %8086 = vmatprep.subr.bf16.mxu0 0
        %8087 = vmatpush1.bf16.msra.mxu0 0
        %8088 = vmatprep.subr.bf16.mxu0 0
        %8089 = vmatpush1.bf16.msra.mxu0 0
        %8090 = vmatprep.subr.bf16.mxu0 0
        %8091 = vmatpush1.bf16.msra.mxu0 0
        %8092 = vmatprep.subr.bf16.mxu0 0
        %8093 = vmatpush1.bf16.msra.mxu0 0
        %8094 = vmatprep.mubr.bf16.mxu0 0
        %8095 = vmatmul.mubr.bf16.gmra.mrb[0].mxu0 %v7989
        %v8096 = vpop.f32.mrb[0].mxu0
        %v8097 = vadd.f32 0.0, %v8096
        %v8098 = vpop.f32.mrb[0].mxu0
        %v8099 = vpop.f32.mrb[0].mxu0
        %v8100 = vadd.f32 0.0, %v8099
        %v8101 = vpop.f32.mrb[0].mxu0
        %8102 = vmatprep.mubr.bf16.mxu0 0
        %8103 = vmatmul.mubr.bf16.gmra.mrb[0].mxu0 %v7990
        %v8104 = vpop.f32.mrb[0].mxu0
        %v8105 = vadd.f32 0.0, %v8104
        %v8106 = vpop.f32.mrb[0].mxu0
        %v8107 = vpop.f32.mrb[0].mxu0
        %v8108 = vadd.f32 0.0, %v8107
        %v8109 = vpop.f32.mrb[0].mxu0
        %8110 = vmatprep.mubr.bf16.mxu0 0
        %8111 = vmatmul.mubr.bf16.gmra.mrb[0].mxu0 %v7991
        %v8112 = vpop.f32.mrb[0].mxu0
        %v8113 = vadd.f32 0.0, %v8112
        %v8114 = vpop.f32.mrb[0].mxu0
        %v8115 = vpop.f32.mrb[0].mxu0
        %v8116 = vadd.f32 0.0, %v8115
        %v8117 = vpop.f32.mrb[0].mxu0
        %8118 = vmatprep.mubr.bf16.mxu0 0
        %8119 = vmatmul.mubr.bf16.gmra.mrb[0].mxu0 %v7992
        %v8120 = vpop.f32.mrb[0].mxu0
        %v8121 = vadd.f32 0.0, %v8120
        %v8122 = vpop.f32.mrb[0].mxu0
        %v8123 = vpop.f32.mrb[0].mxu0
        %v8124 = vadd.f32 0.0, %v8123
        %v8125 = vpop.f32.mrb[0].mxu0
        %8126 = vmatprep.mubr.bf16.mxu0 0
        %8127 = vmatmul.mubr.bf16.gmra.mrb[0].mxu0 %v7993
        %v8128 = vpop.f32.mrb[0].mxu0
        %v8129 = vadd.f32 0.0, %v8128
        %v8130 = vpop.f32.mrb[0].mxu0
        %v8131 = vpop.f32.mrb[0].mxu0
        %v8132 = vadd.f32 0.0, %v8131
        %v8133 = vpop.f32.mrb[0].mxu0
        %8134 = vmatprep.mubr.bf16.mxu0 0
        %8135 = vmatmul.mubr.bf16.gmra.mrb[0].mxu0 %v7994
        %v8136 = vpop.f32.mrb[0].mxu0
        %v8137 = vadd.f32 0.0, %v8136
        %v8138 = vpop.f32.mrb[0].mxu0
        %v8139 = vpop.f32.mrb[0].mxu0
        %v8140 = vadd.f32 0.0, %v8139
        %v8141 = vpop.f32.mrb[0].mxu0
        %8142 = vmatprep.mubr.bf16.mxu0 0
        %8143 = vmatmul.mubr.bf16.gmra.mrb[0].mxu0 %v7995
        %v8144 = vpop.f32.mrb[0].mxu0
        %v8145 = vadd.f32 0.0, %v8144
        %v8146 = vpop.f32.mrb[0].mxu0
        %v8147 = vpop.f32.mrb[0].mxu0
        %v8148 = vadd.f32 0.0, %v8147
        %v8149 = vpop.f32.mrb[0].mxu0
        %8150 = vmatprep.mubr.bf16.mxu0 0
        %8151 = vmatmul.mubr.bf16.gmra.mrb[0].mxu0 %v7996
        %v8152 = vpop.f32.mrb[0].mxu0
        %v8153 = vadd.f32 0.0, %v8152
        %v8154 = vpop.f32.mrb[0].mxu0
        %v8155 = vpop.f32.mrb[0].mxu0
        %v8156 = vadd.f32 0.0, %v8155
        %v8157 = vpop.f32.mrb[0].mxu0
        %8158 = vdwg.mxu0
        %v8159 = vadd.f32 %v7973, %v8097
        %v8160 = vadd.f32 %v7974, %v8100
        %v8161 = vadd.f32 %v7975, %v8105
        %v8162 = vadd.f32 %v7976, %v8108
        %v8163 = vadd.f32 %v7977, %v8113
        %v8164 = vadd.f32 %v7978, %v8116
        %v8165 = vadd.f32 %v7979, %v8121
        %v8166 = vadd.f32 %v7980, %v8124
        %v8167 = vadd.f32 %v7981, %v8129
        %v8168 = vadd.f32 %v7982, %v8132
        %v8169 = vadd.f32 %v7983, %v8137
        %v8170 = vadd.f32 %v7984, %v8140
        %v8171 = vadd.f32 %v7985, %v8145
        %v8172 = vadd.f32 %v7986, %v8148
        %v8173 = vadd.f32 %v7987, %v8153
        %v8174 = vadd.f32 %v7988, %v8156
        %8175 = vst [vmem:[#allocation5] sm:$0xff] %v8159
        %8176 = vst [vmem:[#allocation5 + $0x8] sm:$0xff] %v8160
        %8177 = vst [vmem:[#allocation5 + $0x10] sm:$0xff] %v8161
        %8178 = vst [vmem:[#allocation5 + $0x18] sm:$0xff] %v8162
        %8179 = vst [vmem:[#allocation5 + $0x20] sm:$0xff] %v8163
        %8180 = vst [vmem:[#allocation5 + $0x28] sm:$0xff] %v8164
        %8181 = vst [vmem:[#allocation5 + $0x30] sm:$0xff] %v8165
        %8182 = vst [vmem:[#allocation5 + $0x38] sm:$0xff] %v8166
        %8183 = vst [vmem:[#allocation5 + $0x40] sm:$0xff] %v8167
        %8184 = vst [vmem:[#allocation5 + $0x48] sm:$0xff] %v8168
        %8185 = vst [vmem:[#allocation5 + $0x50] sm:$0xff] %v8169
        %8186 = vst [vmem:[#allocation5 + $0x58] sm:$0xff] %v8170
        %8187 = vst [vmem:[#allocation5 + $0x60] sm:$0xff] %v8171
        %8188 = vst [vmem:[#allocation5 + $0x68] sm:$0xff] %v8172
        %8189 = vst [vmem:[#allocation5 + $0x70] sm:$0xff] %v8173
        %8190 = vst [vmem:[#allocation5 + $0x78] sm:$0xff] %v8174
        %v8191 = vadd.f32 %v8159, %v8160
        %v8192 = vadd.f32 %v8191, %v8161
        %v8193 = vadd.f32 %v8192, %v8162
        %v8194 = vadd.f32 %v8193, %v8163
        %v8195 = vadd.f32 %v8194, %v8164
        %v8196 = vadd.f32 %v8195, %v8165
        %v8197 = vadd.f32 %v8196, %v8166
        %v8198 = vadd.f32 %v8197, %v8167
        %v8199 = vadd.f32 %v8198, %v8168
        %v8200 = vadd.f32 %v8199, %v8169
        %v8201 = vadd.f32 %v8200, %v8170
        %v8202 = vadd.f32 %v8201, %v8171
        %v8203 = vadd.f32 %v8202, %v8172
        %v8204 = vadd.f32 %v8203, %v8173
        %v8205 = vadd.f32 %v8204, %v8174
        %v8206 = vrot.slane %v8205, 4
        %v8207 = vadd.f32 %v8205, %v8206
        %v8208 = vrot.slane %v8207, 2
        %v8209 = vadd.f32 %v8207, %v8208
        %v8210 = vrot.slane %v8209, 1
        %v8211 = vadd.f32 %v8209, %v8210
        %v8212 = vadd.f32 %v8211, 0.0
        %v8213 = vmul.f32 %v8159, %v8159
        %v8214 = vmul.f32 %v8160, %v8160
        %v8215 = vmul.f32 %v8161, %v8161
        %v8216 = vmul.f32 %v8162, %v8162
        %v8217 = vmul.f32 %v8163, %v8163
        %v8218 = vmul.f32 %v8164, %v8164
        %v8219 = vmul.f32 %v8165, %v8165
        %v8220 = vmul.f32 %v8166, %v8166
        %v8221 = vmul.f32 %v8167, %v8167
        %v8222 = vmul.f32 %v8168, %v8168
        %v8223 = vmul.f32 %v8169, %v8169
        %v8224 = vmul.f32 %v8170, %v8170
        %v8225 = vmul.f32 %v8171, %v8171
        %v8226 = vmul.f32 %v8172, %v8172
        %v8227 = vmul.f32 %v8173, %v8173
        %v8228 = vmul.f32 %v8174, %v8174
        %v8229 = vadd.f32 %v8213, %v8214
        %v8230 = vadd.f32 %v8229, %v8215
        %v8231 = vadd.f32 %v8230, %v8216
        %v8232 = vadd.f32 %v8231, %v8217
        %v8233 = vadd.f32 %v8232, %v8218
        %v8234 = vadd.f32 %v8233, %v8219
        %v8235 = vadd.f32 %v8234, %v8220
        %v8236 = vadd.f32 %v8235, %v8221
        %v8237 = vadd.f32 %v8236, %v8222
        %v8238 = vadd.f32 %v8237, %v8223
        %v8239 = vadd.f32 %v8238, %v8224
        %v8240 = vadd.f32 %v8239, %v8225
        %v8241 = vadd.f32 %v8240, %v8226
        %v8242 = vadd.f32 %v8241, %v8227
        %v8243 = vadd.f32 %v8242, %v8228
        %v8244 = vrot.slane %v8243, 4
        %v8245 = vadd.f32 %v8243, %v8244
        %v8246 = vrot.slane %v8245, 2
        %v8247 = vadd.f32 %v8245, %v8246
        %v8248 = vrot.slane %v8247, 1
        %v8249 = vadd.f32 %v8247, %v8248
        %v8250 = vadd.f32 %v8249, 0.0
        %v8251 = vld [vmem:[#allocation3 + $0x40] sm:$0xff]
        %v8252 = vld [vmem:[#allocation3 + $0x48] sm:$0xff]
        %v8253 = vld [vmem:[#allocation3 + $0x50] sm:$0xff]
        %v8254 = vld [vmem:[#allocation3 + $0x58] sm:$0xff]
        %v8255 = vld [vmem:[#allocation3 + $0x60] sm:$0xff]
        %v8256 = vld [vmem:[#allocation3 + $0x68] sm:$0xff]
        %v8257 = vld [vmem:[#allocation3 + $0x70] sm:$0xff]
        %v8258 = vld [vmem:[#allocation3 + $0x78] sm:$0xff]
        %v8259 = vld [vmem:[#allocation6] sm:$0xf]
        %v8260 = vld [vmem:[#allocation6 + $0x4] sm:$0xf]
        %v8261 = vld [vmem:[#allocation6 + $0x8] sm:$0xf]
        %v8262 = vld [vmem:[#allocation6 + $0xc] sm:$0xf]
        %v8263 = vld [vmem:[#allocation6 + $0x10] sm:$0xf]
        %v8264 = vld [vmem:[#allocation6 + $0x14] sm:$0xf]
        %v8265 = vld [vmem:[#allocation6 + $0x18] sm:$0xf]
        %v8266 = vld [vmem:[#allocation6 + $0x1c] sm:$0xf]
        %v8267 = vld [vmem:[#allocation6 + $0x20] sm:$0xf]
        %v8268 = vld [vmem:[#allocation6 + $0x24] sm:$0xf]
        %v8269 = vld [vmem:[#allocation6 + $0x28] sm:$0xf]
        %v8270 = vld [vmem:[#allocation6 + $0x2c] sm:$0xf]
        %v8271 = vld [vmem:[#allocation6 + $0x30] sm:$0xf]
        %v8272 = vld [vmem:[#allocation6 + $0x34] sm:$0xf]
        %v8273 = vld [vmem:[#allocation6 + $0x38] sm:$0xf]
        %v8274 = vld [vmem:[#allocation6 + $0x3c] sm:$0xf]
        %v8275 = vld [vmem:[%s6190 + $0x40] sm:$0xff]
        %v8276 = vld [vmem:[%s6190 + $0x48] sm:$0xff]
        %v8277 = vld [vmem:[%s6190 + $0x50] sm:$0xff]
        %v8278 = vld [vmem:[%s6190 + $0x58] sm:$0xff]
        %v8279 = vld [vmem:[%s6190 + $0x60] sm:$0xff]
        %v8280 = vld [vmem:[%s6190 + $0x68] sm:$0xff]
        %v8281 = vld [vmem:[%s6190 + $0x70] sm:$0xff]
        %v8282 = vld [vmem:[%s6190 + $0x78] sm:$0xff]
        %v8283 = vld [vmem:[%s6566] sm:$0xf]
        %v8284 = vld [vmem:[%s6566 + $0x4] sm:$0xf]
        %v8285 = vld [vmem:[%s6566 + $0x8] sm:$0xf]
        %v8286 = vld [vmem:[%s6566 + $0xc] sm:$0xf]
        %v8287 = vld [vmem:[%s6566 + $0x10] sm:$0xf]
        %v8288 = vld [vmem:[%s6566 + $0x14] sm:$0xf]
        %v8289 = vld [vmem:[%s6566 + $0x18] sm:$0xf]
        %v8290 = vld [vmem:[%s6566 + $0x1c] sm:$0xf]
        %v8291 = vld [vmem:[%s6566 + $0x20] sm:$0xf]
        %v8292 = vld [vmem:[%s6566 + $0x24] sm:$0xf]
        %v8293 = vld [vmem:[%s6566 + $0x28] sm:$0xf]
        %v8294 = vld [vmem:[%s6566 + $0x2c] sm:$0xf]
        %v8295 = vld [vmem:[%s6566 + $0x30] sm:$0xf]
        %v8296 = vld [vmem:[%s6566 + $0x34] sm:$0xf]
        %v8297 = vld [vmem:[%s6566 + $0x38] sm:$0xf]
        %v8298 = vld [vmem:[%s6566 + $0x3c] sm:$0xf]
        %v8315 = vunpack.c.l.b16 %v8283
        %v8316 = vunpack.c.l.b16 %v8284
        %v8317 = vunpack.c.l.b16 %v8285
        %v8318 = vunpack.c.l.b16 %v8286
        %v8319 = vunpack.c.l.b16 %v8287
        %v8320 = vunpack.c.l.b16 %v8288
        %v8321 = vunpack.c.l.b16 %v8289
        %v8322 = vunpack.c.l.b16 %v8290
        %v8323 = vunpack.c.l.b16 %v8291
        %v8324 = vunpack.c.l.b16 %v8292
        %v8325 = vunpack.c.l.b16 %v8293
        %v8326 = vunpack.c.l.b16 %v8294
        %v8327 = vunpack.c.l.b16 %v8295
        %v8328 = vunpack.c.l.b16 %v8296
        %v8329 = vunpack.c.l.b16 %v8297
        %v8330 = vunpack.c.l.b16 %v8298
        %v8331 = vpack.c.b16 %v8316, %v8315
        %v8332 = vpack.c.b16 %v8318, %v8317
        %v8333 = vpack.c.b16 %v8320, %v8319
        %v8334 = vpack.c.b16 %v8322, %v8321
        %v8335 = vpack.c.b16 %v8324, %v8323
        %v8336 = vpack.c.b16 %v8326, %v8325
        %v8337 = vpack.c.b16 %v8328, %v8327
        %v8338 = vpack.c.b16 %v8330, %v8329
        %8347 = vmatprep.subr.bf16.mxu0 0
        %8348 = vmatpush1.bf16.msra.mxu0 %v8331
        %8349 = vmatprep.subr.bf16.mxu0 0
        %8350 = vmatpush1.bf16.msra.mxu0 %v8332
        %8351 = vmatprep.subr.bf16.mxu0 0
        %8352 = vmatpush1.bf16.msra.mxu0 %v8333
        %8353 = vmatprep.subr.bf16.mxu0 0
        %8354 = vmatpush1.bf16.msra.mxu0 %v8334
        %8355 = vmatprep.subr.bf16.mxu0 0
        %8356 = vmatpush1.bf16.msra.mxu0 %v8335
        %8357 = vmatprep.subr.bf16.mxu0 0
        %8358 = vmatpush1.bf16.msra.mxu0 %v8336
        %8359 = vmatprep.subr.bf16.mxu0 0
        %8360 = vmatpush1.bf16.msra.mxu0 %v8337
        %8361 = vmatprep.subr.bf16.mxu0 0
        %8362 = vmatpush1.bf16.msra.mxu0 %v8338
        %8363 = vmatprep.subr.bf16.mxu0 0
        %8364 = vmatpush1.bf16.msra.mxu0 0
        %8365 = vmatprep.subr.bf16.mxu0 0
        %8366 = vmatpush1.bf16.msra.mxu0 0
        %8367 = vmatprep.subr.bf16.mxu0 0
        %8368 = vmatpush1.bf16.msra.mxu0 0
        %8369 = vmatprep.subr.bf16.mxu0 0
        %8370 = vmatpush1.bf16.msra.mxu0 0
        %8371 = vmatprep.subr.bf16.mxu0 0
        %8372 = vmatpush1.bf16.msra.mxu0 0
        %8373 = vmatprep.subr.bf16.mxu0 0
        %8374 = vmatpush1.bf16.msra.mxu0 0
        %8375 = vmatprep.subr.bf16.mxu0 0
        %8376 = vmatpush1.bf16.msra.mxu0 0
        %8377 = vmatprep.subr.bf16.mxu0 0
        %8378 = vmatpush1.bf16.msra.mxu0 0
        %8379 = vmatprep.mubr.bf16.mxu0 0
        %8380 = vmatmul.mubr.bf16.gmra.mrb[0].mxu0 %v8275
        %v8381 = vpop.f32.mrb[0].mxu0
        %v8382 = vadd.f32 0.0, %v8381
        %v8383 = vpop.f32.mrb[0].mxu0
        %v8384 = vpop.f32.mrb[0].mxu0
        %v8385 = vadd.f32 0.0, %v8384
        %v8386 = vpop.f32.mrb[0].mxu0
        %8387 = vmatprep.mubr.bf16.mxu0 0
        %8388 = vmatmul.mubr.bf16.gmra.mrb[0].mxu0 %v8276
        %v8389 = vpop.f32.mrb[0].mxu0
        %v8390 = vadd.f32 0.0, %v8389
        %v8391 = vpop.f32.mrb[0].mxu0
        %v8392 = vpop.f32.mrb[0].mxu0
        %v8393 = vadd.f32 0.0, %v8392
        %v8394 = vpop.f32.mrb[0].mxu0
        %8395 = vmatprep.mubr.bf16.mxu0 0
        %8396 = vmatmul.mubr.bf16.gmra.mrb[0].mxu0 %v8277
        %v8397 = vpop.f32.mrb[0].mxu0
        %v8398 = vadd.f32 0.0, %v8397
        %v8399 = vpop.f32.mrb[0].mxu0
        %v8400 = vpop.f32.mrb[0].mxu0
        %v8401 = vadd.f32 0.0, %v8400
        %v8402 = vpop.f32.mrb[0].mxu0
        %8403 = vmatprep.mubr.bf16.mxu0 0
        %8404 = vmatmul.mubr.bf16.gmra.mrb[0].mxu0 %v8278
        %v8405 = vpop.f32.mrb[0].mxu0
        %v8406 = vadd.f32 0.0, %v8405
        %v8407 = vpop.f32.mrb[0].mxu0
        %v8408 = vpop.f32.mrb[0].mxu0
        %v8409 = vadd.f32 0.0, %v8408
        %v8410 = vpop.f32.mrb[0].mxu0
        %8411 = vmatprep.mubr.bf16.mxu0 0
        %8412 = vmatmul.mubr.bf16.gmra.mrb[0].mxu0 %v8279
        %v8413 = vpop.f32.mrb[0].mxu0
        %v8414 = vadd.f32 0.0, %v8413
        %v8415 = vpop.f32.mrb[0].mxu0
        %v8416 = vpop.f32.mrb[0].mxu0
        %v8417 = vadd.f32 0.0, %v8416
        %v8418 = vpop.f32.mrb[0].mxu0
        %8419 = vmatprep.mubr.bf16.mxu0 0
        %8420 = vmatmul.mubr.bf16.gmra.mrb[0].mxu0 %v8280
        %v8421 = vpop.f32.mrb[0].mxu0
        %v8422 = vadd.f32 0.0, %v8421
        %v8423 = vpop.f32.mrb[0].mxu0
        %v8424 = vpop.f32.mrb[0].mxu0
        %v8425 = vadd.f32 0.0, %v8424
        %v8426 = vpop.f32.mrb[0].mxu0
        %8427 = vmatprep.mubr.bf16.mxu0 0
        %8428 = vmatmul.mubr.bf16.gmra.mrb[0].mxu0 %v8281
        %v8429 = vpop.f32.mrb[0].mxu0
        %v8430 = vadd.f32 0.0, %v8429
        %v8431 = vpop.f32.mrb[0].mxu0
        %v8432 = vpop.f32.mrb[0].mxu0
        %v8433 = vadd.f32 0.0, %v8432
        %v8434 = vpop.f32.mrb[0].mxu0
        %8435 = vmatprep.mubr.bf16.mxu0 0
        %8436 = vmatmul.mubr.bf16.gmra.mrb[0].mxu0 %v8282
        %v8437 = vpop.f32.mrb[0].mxu0
        %v8438 = vadd.f32 0.0, %v8437
        %v8439 = vpop.f32.mrb[0].mxu0
        %v8440 = vpop.f32.mrb[0].mxu0
        %v8441 = vadd.f32 0.0, %v8440
        %v8442 = vpop.f32.mrb[0].mxu0
        %8443 = vdwg.mxu0
        %v8460 = vunpack.c.l.b16 %v8259
        %v8461 = vunpack.c.l.b16 %v8260
        %v8462 = vunpack.c.l.b16 %v8261
        %v8463 = vunpack.c.l.b16 %v8262
        %v8464 = vunpack.c.l.b16 %v8263
        %v8465 = vunpack.c.l.b16 %v8264
        %v8466 = vunpack.c.l.b16 %v8265
        %v8467 = vunpack.c.l.b16 %v8266
        %v8468 = vunpack.c.l.b16 %v8267
        %v8469 = vunpack.c.l.b16 %v8268
        %v8470 = vunpack.c.l.b16 %v8269
        %v8471 = vunpack.c.l.b16 %v8270
        %v8472 = vunpack.c.l.b16 %v8271
        %v8473 = vunpack.c.l.b16 %v8272
        %v8474 = vunpack.c.l.b16 %v8273
        %v8475 = vunpack.c.l.b16 %v8274
        %v8476 = vpack.c.b16 %v8461, %v8460
        %v8477 = vpack.c.b16 %v8463, %v8462
        %v8478 = vpack.c.b16 %v8465, %v8464
        %v8479 = vpack.c.b16 %v8467, %v8466
        %v8480 = vpack.c.b16 %v8469, %v8468
        %v8481 = vpack.c.b16 %v8471, %v8470
        %v8482 = vpack.c.b16 %v8473, %v8472
        %v8483 = vpack.c.b16 %v8475, %v8474
        %8492 = vmatprep.subr.bf16.mxu0 0
        %8493 = vmatpush1.bf16.msra.mxu0 %v8476
        %8494 = vmatprep.subr.bf16.mxu0 0
        %8495 = vmatpush1.bf16.msra.mxu0 %v8477
        %8496 = vmatprep.subr.bf16.mxu0 0
        %8497 = vmatpush1.bf16.msra.mxu0 %v8478
        %8498 = vmatprep.subr.bf16.mxu0 0
        %8499 = vmatpush1.bf16.msra.mxu0 %v8479
        %8500 = vmatprep.subr.bf16.mxu0 0
        %8501 = vmatpush1.bf16.msra.mxu0 %v8480
        %8502 = vmatprep.subr.bf16.mxu0 0
        %8503 = vmatpush1.bf16.msra.mxu0 %v8481
        %8504 = vmatprep.subr.bf16.mxu0 0
        %8505 = vmatpush1.bf16.msra.mxu0 %v8482
        %8506 = vmatprep.subr.bf16.mxu0 0
        %8507 = vmatpush1.bf16.msra.mxu0 %v8483
        %8508 = vmatprep.subr.bf16.mxu0 0
        %8509 = vmatpush1.bf16.msra.mxu0 0
        %8510 = vmatprep.subr.bf16.mxu0 0
        %8511 = vmatpush1.bf16.msra.mxu0 0
        %8512 = vmatprep.subr.bf16.mxu0 0
        %8513 = vmatpush1.bf16.msra.mxu0 0
        %8514 = vmatprep.subr.bf16.mxu0 0
        %8515 = vmatpush1.bf16.msra.mxu0 0
        %8516 = vmatprep.subr.bf16.mxu0 0
        %8517 = vmatpush1.bf16.msra.mxu0 0
        %8518 = vmatprep.subr.bf16.mxu0 0
        %8519 = vmatpush1.bf16.msra.mxu0 0
        %8520 = vmatprep.subr.bf16.mxu0 0
        %8521 = vmatpush1.bf16.msra.mxu0 0
        %8522 = vmatprep.subr.bf16.mxu0 0
        %8523 = vmatpush1.bf16.msra.mxu0 0
        %8524 = vmatprep.mubr.bf16.mxu0 0
        %8525 = vmatmul.mubr.bf16.gmra.mrb[0].mxu0 %v8251
        %v8526 = vpop.f32.mrb[0].mxu0
        %v8527 = vadd.f32 %v8382, %v8526
        %v8528 = vpop.f32.mrb[0].mxu0
        %v8529 = vpop.f32.mrb[0].mxu0
        %v8530 = vadd.f32 %v8385, %v8529
        %v8531 = vpop.f32.mrb[0].mxu0
        %8532 = vmatprep.mubr.bf16.mxu0 0
        %8533 = vmatmul.mubr.bf16.gmra.mrb[0].mxu0 %v8252
        %v8534 = vpop.f32.mrb[0].mxu0
        %v8535 = vadd.f32 %v8390, %v8534
        %v8536 = vpop.f32.mrb[0].mxu0
        %v8537 = vpop.f32.mrb[0].mxu0
        %v8538 = vadd.f32 %v8393, %v8537
        %v8539 = vpop.f32.mrb[0].mxu0
        %8540 = vmatprep.mubr.bf16.mxu0 0
        %8541 = vmatmul.mubr.bf16.gmra.mrb[0].mxu0 %v8253
        %v8542 = vpop.f32.mrb[0].mxu0
        %v8543 = vadd.f32 %v8398, %v8542
        %v8544 = vpop.f32.mrb[0].mxu0
        %v8545 = vpop.f32.mrb[0].mxu0
        %v8546 = vadd.f32 %v8401, %v8545
        %v8547 = vpop.f32.mrb[0].mxu0
        %8548 = vmatprep.mubr.bf16.mxu0 0
        %8549 = vmatmul.mubr.bf16.gmra.mrb[0].mxu0 %v8254
        %v8550 = vpop.f32.mrb[0].mxu0
        %v8551 = vadd.f32 %v8406, %v8550
        %v8552 = vpop.f32.mrb[0].mxu0
        %v8553 = vpop.f32.mrb[0].mxu0
        %v8554 = vadd.f32 %v8409, %v8553
        %v8555 = vpop.f32.mrb[0].mxu0
        %8556 = vmatprep.mubr.bf16.mxu0 0
        %8557 = vmatmul.mubr.bf16.gmra.mrb[0].mxu0 %v8255
        %v8558 = vpop.f32.mrb[0].mxu0
        %v8559 = vadd.f32 %v8414, %v8558
        %v8560 = vpop.f32.mrb[0].mxu0
        %v8561 = vpop.f32.mrb[0].mxu0
        %v8562 = vadd.f32 %v8417, %v8561
        %v8563 = vpop.f32.mrb[0].mxu0
        %8564 = vmatprep.mubr.bf16.mxu0 0
        %8565 = vmatmul.mubr.bf16.gmra.mrb[0].mxu0 %v8256
        %v8566 = vpop.f32.mrb[0].mxu0
        %v8567 = vadd.f32 %v8422, %v8566
        %v8568 = vpop.f32.mrb[0].mxu0
        %v8569 = vpop.f32.mrb[0].mxu0
        %v8570 = vadd.f32 %v8425, %v8569
        %v8571 = vpop.f32.mrb[0].mxu0
        %8572 = vmatprep.mubr.bf16.mxu0 0
        %8573 = vmatmul.mubr.bf16.gmra.mrb[0].mxu0 %v8257
        %v8574 = vpop.f32.mrb[0].mxu0
        %v8575 = vadd.f32 %v8430, %v8574
        %v8576 = vpop.f32.mrb[0].mxu0
        %v8577 = vpop.f32.mrb[0].mxu0
        %v8578 = vadd.f32 %v8433, %v8577
        %v8579 = vpop.f32.mrb[0].mxu0
        %8580 = vmatprep.mubr.bf16.mxu0 0
        %8581 = vmatmul.mubr.bf16.gmra.mrb[0].mxu0 %v8258
        %v8582 = vpop.f32.mrb[0].mxu0
        %v8583 = vadd.f32 %v8438, %v8582
        %v8584 = vpop.f32.mrb[0].mxu0
        %v8585 = vpop.f32.mrb[0].mxu0
        %v8586 = vadd.f32 %v8441, %v8585
        %v8587 = vpop.f32.mrb[0].mxu0
        %8588 = vdwg.mxu0
        %v8589 = vld [vmem:[%s6515 + $0x40] sm:$0xff]
        %v8590 = vld [vmem:[%s6515 + $0x48] sm:$0xff]
        %v8591 = vld [vmem:[%s6515 + $0x50] sm:$0xff]
        %v8592 = vld [vmem:[%s6515 + $0x58] sm:$0xff]
        %v8593 = vld [vmem:[%s6515 + $0x60] sm:$0xff]
        %v8594 = vld [vmem:[%s6515 + $0x68] sm:$0xff]
        %v8595 = vld [vmem:[%s6515 + $0x70] sm:$0xff]
        %v8596 = vld [vmem:[%s6515 + $0x78] sm:$0xff]
        %v8597 = vld [vmem:[%s6881] sm:$0xf]
        %v8598 = vld [vmem:[%s6881 + $0x4] sm:$0xf]
        %v8599 = vld [vmem:[%s6881 + $0x8] sm:$0xf]
        %v8600 = vld [vmem:[%s6881 + $0xc] sm:$0xf]
        %v8601 = vld [vmem:[%s6881 + $0x10] sm:$0xf]
        %v8602 = vld [vmem:[%s6881 + $0x14] sm:$0xf]
        %v8603 = vld [vmem:[%s6881 + $0x18] sm:$0xf]
        %v8604 = vld [vmem:[%s6881 + $0x1c] sm:$0xf]
        %v8605 = vld [vmem:[%s6881 + $0x20] sm:$0xf]
        %v8606 = vld [vmem:[%s6881 + $0x24] sm:$0xf]
        %v8607 = vld [vmem:[%s6881 + $0x28] sm:$0xf]
        %v8608 = vld [vmem:[%s6881 + $0x2c] sm:$0xf]
        %v8609 = vld [vmem:[%s6881 + $0x30] sm:$0xf]
        %v8610 = vld [vmem:[%s6881 + $0x34] sm:$0xf]
        %v8611 = vld [vmem:[%s6881 + $0x38] sm:$0xf]
        %v8612 = vld [vmem:[%s6881 + $0x3c] sm:$0xf]
        %v8629 = vunpack.c.l.b16 %v8597
        %v8630 = vunpack.c.l.b16 %v8598
        %v8631 = vunpack.c.l.b16 %v8599
        %v8632 = vunpack.c.l.b16 %v8600
        %v8633 = vunpack.c.l.b16 %v8601
        %v8634 = vunpack.c.l.b16 %v8602
        %v8635 = vunpack.c.l.b16 %v8603
        %v8636 = vunpack.c.l.b16 %v8604
        %v8637 = vunpack.c.l.b16 %v8605
        %v8638 = vunpack.c.l.b16 %v8606
        %v8639 = vunpack.c.l.b16 %v8607
        %v8640 = vunpack.c.l.b16 %v8608
        %v8641 = vunpack.c.l.b16 %v8609
        %v8642 = vunpack.c.l.b16 %v8610
        %v8643 = vunpack.c.l.b16 %v8611
        %v8644 = vunpack.c.l.b16 %v8612
        %v8645 = vpack.c.b16 %v8630, %v8629
        %v8646 = vpack.c.b16 %v8632, %v8631
        %v8647 = vpack.c.b16 %v8634, %v8633
        %v8648 = vpack.c.b16 %v8636, %v8635
        %v8649 = vpack.c.b16 %v8638, %v8637
        %v8650 = vpack.c.b16 %v8640, %v8639
        %v8651 = vpack.c.b16 %v8642, %v8641
        %v8652 = vpack.c.b16 %v8644, %v8643
        %8661 = vmatprep.subr.bf16.mxu0 0
        %8662 = vmatpush1.bf16.msra.mxu0 %v8645
        %8663 = vmatprep.subr.bf16.mxu0 0
        %8664 = vmatpush1.bf16.msra.mxu0 %v8646
        %8665 = vmatprep.subr.bf16.mxu0 0
        %8666 = vmatpush1.bf16.msra.mxu0 %v8647
        %8667 = vmatprep.subr.bf16.mxu0 0
        %8668 = vmatpush1.bf16.msra.mxu0 %v8648
        %8669 = vmatprep.subr.bf16.mxu0 0
        %8670 = vmatpush1.bf16.msra.mxu0 %v8649
        %8671 = vmatprep.subr.bf16.mxu0 0
        %8672 = vmatpush1.bf16.msra.mxu0 %v8650
        %8673 = vmatprep.subr.bf16.mxu0 0
        %8674 = vmatpush1.bf16.msra.mxu0 %v8651
        %8675 = vmatprep.subr.bf16.mxu0 0
        %8676 = vmatpush1.bf16.msra.mxu0 %v8652
        %8677 = vmatprep.subr.bf16.mxu0 0
        %8678 = vmatpush1.bf16.msra.mxu0 0
        %8679 = vmatprep.subr.bf16.mxu0 0
        %8680 = vmatpush1.bf16.msra.mxu0 0
        %8681 = vmatprep.subr.bf16.mxu0 0
        %8682 = vmatpush1.bf16.msra.mxu0 0
        %8683 = vmatprep.subr.bf16.mxu0 0
        %8684 = vmatpush1.bf16.msra.mxu0 0
        %8685 = vmatprep.subr.bf16.mxu0 0
        %8686 = vmatpush1.bf16.msra.mxu0 0
        %8687 = vmatprep.subr.bf16.mxu0 0
        %8688 = vmatpush1.bf16.msra.mxu0 0
        %8689 = vmatprep.subr.bf16.mxu0 0
        %8690 = vmatpush1.bf16.msra.mxu0 0
        %8691 = vmatprep.subr.bf16.mxu0 0
        %8692 = vmatpush1.bf16.msra.mxu0 0
        %8693 = vmatprep.mubr.bf16.mxu0 0
        %8694 = vmatmul.mubr.bf16.gmra.mrb[0].mxu0 %v8589
        %v8695 = vpop.f32.mrb[0].mxu0
        %v8696 = vadd.f32 0.0, %v8695
        %v8697 = vpop.f32.mrb[0].mxu0
        %v8698 = vpop.f32.mrb[0].mxu0
        %v8699 = vadd.f32 0.0, %v8698
        %v8700 = vpop.f32.mrb[0].mxu0
        %8701 = vmatprep.mubr.bf16.mxu0 0
        %8702 = vmatmul.mubr.bf16.gmra.mrb[0].mxu0 %v8590
        %v8703 = vpop.f32.mrb[0].mxu0
        %v8704 = vadd.f32 0.0, %v8703
        %v8705 = vpop.f32.mrb[0].mxu0
        %v8706 = vpop.f32.mrb[0].mxu0
        %v8707 = vadd.f32 0.0, %v8706
        %v8708 = vpop.f32.mrb[0].mxu0
        %8709 = vmatprep.mubr.bf16.mxu0 0
        %8710 = vmatmul.mubr.bf16.gmra.mrb[0].mxu0 %v8591
        %v8711 = vpop.f32.mrb[0].mxu0
        %v8712 = vadd.f32 0.0, %v8711
        %v8713 = vpop.f32.mrb[0].mxu0
        %v8714 = vpop.f32.mrb[0].mxu0
        %v8715 = vadd.f32 0.0, %v8714
        %v8716 = vpop.f32.mrb[0].mxu0
        %8717 = vmatprep.mubr.bf16.mxu0 0
        %8718 = vmatmul.mubr.bf16.gmra.mrb[0].mxu0 %v8592
        %v8719 = vpop.f32.mrb[0].mxu0
        %v8720 = vadd.f32 0.0, %v8719
        %v8721 = vpop.f32.mrb[0].mxu0
        %v8722 = vpop.f32.mrb[0].mxu0
        %v8723 = vadd.f32 0.0, %v8722
        %v8724 = vpop.f32.mrb[0].mxu0
        %8725 = vmatprep.mubr.bf16.mxu0 0
        %8726 = vmatmul.mubr.bf16.gmra.mrb[0].mxu0 %v8593
        %v8727 = vpop.f32.mrb[0].mxu0
        %v8728 = vadd.f32 0.0, %v8727
        %v8729 = vpop.f32.mrb[0].mxu0
        %v8730 = vpop.f32.mrb[0].mxu0
        %v8731 = vadd.f32 0.0, %v8730
        %v8732 = vpop.f32.mrb[0].mxu0
        %8733 = vmatprep.mubr.bf16.mxu0 0
        %8734 = vmatmul.mubr.bf16.gmra.mrb[0].mxu0 %v8594
        %v8735 = vpop.f32.mrb[0].mxu0
        %v8736 = vadd.f32 0.0, %v8735
        %v8737 = vpop.f32.mrb[0].mxu0
        %v8738 = vpop.f32.mrb[0].mxu0
        %v8739 = vadd.f32 0.0, %v8738
        %v8740 = vpop.f32.mrb[0].mxu0
        %8741 = vmatprep.mubr.bf16.mxu0 0
        %8742 = vmatmul.mubr.bf16.gmra.mrb[0].mxu0 %v8595
        %v8743 = vpop.f32.mrb[0].mxu0
        %v8744 = vadd.f32 0.0, %v8743
        %v8745 = vpop.f32.mrb[0].mxu0
        %v8746 = vpop.f32.mrb[0].mxu0
        %v8747 = vadd.f32 0.0, %v8746
        %v8748 = vpop.f32.mrb[0].mxu0
        %8749 = vmatprep.mubr.bf16.mxu0 0
        %8750 = vmatmul.mubr.bf16.gmra.mrb[0].mxu0 %v8596
        %v8751 = vpop.f32.mrb[0].mxu0
        %v8752 = vadd.f32 0.0, %v8751
        %v8753 = vpop.f32.mrb[0].mxu0
        %v8754 = vpop.f32.mrb[0].mxu0
        %v8755 = vadd.f32 0.0, %v8754
        %v8756 = vpop.f32.mrb[0].mxu0
        %8757 = vdwg.mxu0
        %v8758 = vadd.f32 %v8527, %v8696
        %v8759 = vadd.f32 %v8530, %v8699
        %v8760 = vadd.f32 %v8535, %v8704
        %v8761 = vadd.f32 %v8538, %v8707
        %v8762 = vadd.f32 %v8543, %v8712
        %v8763 = vadd.f32 %v8546, %v8715
        %v8764 = vadd.f32 %v8551, %v8720
        %v8765 = vadd.f32 %v8554, %v8723
        %v8766 = vadd.f32 %v8559, %v8728
        %v8767 = vadd.f32 %v8562, %v8731
        %v8768 = vadd.f32 %v8567, %v8736
        %v8769 = vadd.f32 %v8570, %v8739
        %v8770 = vadd.f32 %v8575, %v8744
        %v8771 = vadd.f32 %v8578, %v8747
        %v8772 = vadd.f32 %v8583, %v8752
        %v8773 = vadd.f32 %v8586, %v8755
        %v8774 = vld [vmem:[#allocation3 + $0x48] sm:$0xff]
        %v8775 = vld [vmem:[#allocation3 + $0x50] sm:$0xff]
        %v8776 = vld [vmem:[#allocation3 + $0x58] sm:$0xff]
        %v8777 = vld [vmem:[#allocation3 + $0x60] sm:$0xff]
        %v8778 = vld [vmem:[#allocation3 + $0x68] sm:$0xff]
        %v8779 = vld [vmem:[#allocation3 + $0x70] sm:$0xff]
        %v8780 = vld [vmem:[#allocation3 + $0x78] sm:$0xff]
        %v8781 = vld [vmem:[#allocation3 + $0x80] sm:$0xff]
        %v8782 = vld [vmem:[%s7067] sm:$0xf]
        %v8783 = vld [vmem:[%s7067 + $0x4] sm:$0xf]
        %v8784 = vld [vmem:[%s7067 + $0x8] sm:$0xf]
        %v8785 = vld [vmem:[%s7067 + $0xc] sm:$0xf]
        %v8786 = vld [vmem:[%s7067 + $0x10] sm:$0xf]
        %v8787 = vld [vmem:[%s7067 + $0x14] sm:$0xf]
        %v8788 = vld [vmem:[%s7067 + $0x18] sm:$0xf]
        %v8789 = vld [vmem:[%s7067 + $0x1c] sm:$0xf]
        %v8790 = vld [vmem:[%s7067 + $0x20] sm:$0xf]
        %v8791 = vld [vmem:[%s7067 + $0x24] sm:$0xf]
        %v8792 = vld [vmem:[%s7067 + $0x28] sm:$0xf]
        %v8793 = vld [vmem:[%s7067 + $0x2c] sm:$0xf]
        %v8794 = vld [vmem:[%s7067 + $0x30] sm:$0xf]
        %v8795 = vld [vmem:[%s7067 + $0x34] sm:$0xf]
        %v8796 = vld [vmem:[%s7067 + $0x38] sm:$0xf]
        %v8797 = vld [vmem:[%s7067 + $0x3c] sm:$0xf]
        %v8814 = vunpack.c.l.b16 %v8782
        %v8815 = vunpack.c.l.b16 %v8783
        %v8816 = vunpack.c.l.b16 %v8784
        %v8817 = vunpack.c.l.b16 %v8785
        %v8818 = vunpack.c.l.b16 %v8786
        %v8819 = vunpack.c.l.b16 %v8787
        %v8820 = vunpack.c.l.b16 %v8788
        %v8821 = vunpack.c.l.b16 %v8789
        %v8822 = vunpack.c.l.b16 %v8790
        %v8823 = vunpack.c.l.b16 %v8791
        %v8824 = vunpack.c.l.b16 %v8792
        %v8825 = vunpack.c.l.b16 %v8793
        %v8826 = vunpack.c.l.b16 %v8794
        %v8827 = vunpack.c.l.b16 %v8795
        %v8828 = vunpack.c.l.b16 %v8796
        %v8829 = vunpack.c.l.b16 %v8797
        %v8830 = vpack.c.b16 %v8815, %v8814
        %v8831 = vpack.c.b16 %v8817, %v8816
        %v8832 = vpack.c.b16 %v8819, %v8818
        %v8833 = vpack.c.b16 %v8821, %v8820
        %v8834 = vpack.c.b16 %v8823, %v8822
        %v8835 = vpack.c.b16 %v8825, %v8824
        %v8836 = vpack.c.b16 %v8827, %v8826
        %v8837 = vpack.c.b16 %v8829, %v8828
        %8846 = vmatprep.subr.bf16.mxu0 0
        %8847 = vmatpush1.bf16.msra.mxu0 %v8830
        %8848 = vmatprep.subr.bf16.mxu0 0
        %8849 = vmatpush1.bf16.msra.mxu0 %v8831
        %8850 = vmatprep.subr.bf16.mxu0 0
        %8851 = vmatpush1.bf16.msra.mxu0 %v8832
        %8852 = vmatprep.subr.bf16.mxu0 0
        %8853 = vmatpush1.bf16.msra.mxu0 %v8833
        %8854 = vmatprep.subr.bf16.mxu0 0
        %8855 = vmatpush1.bf16.msra.mxu0 %v8834
        %8856 = vmatprep.subr.bf16.mxu0 0
        %8857 = vmatpush1.bf16.msra.mxu0 %v8835
        %8858 = vmatprep.subr.bf16.mxu0 0
        %8859 = vmatpush1.bf16.msra.mxu0 %v8836
        %8860 = vmatprep.subr.bf16.mxu0 0
        %8861 = vmatpush1.bf16.msra.mxu0 %v8837
        %8862 = vmatprep.subr.bf16.mxu0 0
        %8863 = vmatpush1.bf16.msra.mxu0 0
        %8864 = vmatprep.subr.bf16.mxu0 0
        %8865 = vmatpush1.bf16.msra.mxu0 0
        %8866 = vmatprep.subr.bf16.mxu0 0
        %8867 = vmatpush1.bf16.msra.mxu0 0
        %8868 = vmatprep.subr.bf16.mxu0 0
        %8869 = vmatpush1.bf16.msra.mxu0 0
        %8870 = vmatprep.subr.bf16.mxu0 0
        %8871 = vmatpush1.bf16.msra.mxu0 0
        %8872 = vmatprep.subr.bf16.mxu0 0
        %8873 = vmatpush1.bf16.msra.mxu0 0
        %8874 = vmatprep.subr.bf16.mxu0 0
        %8875 = vmatpush1.bf16.msra.mxu0 0
        %8876 = vmatprep.subr.bf16.mxu0 0
        %8877 = vmatpush1.bf16.msra.mxu0 0
        %8878 = vmatprep.mubr.bf16.mxu0 0
        %8879 = vmatmul.mubr.bf16.gmra.mrb[0].mxu0 %v8774
        %v8880 = vpop.f32.mrb[0].mxu0
        %v8881 = vadd.f32 0.0, %v8880
        %v8882 = vpop.f32.mrb[0].mxu0
        %v8883 = vpop.f32.mrb[0].mxu0
        %v8884 = vadd.f32 0.0, %v8883
        %v8885 = vpop.f32.mrb[0].mxu0
        %8886 = vmatprep.mubr.bf16.mxu0 0
        %8887 = vmatmul.mubr.bf16.gmra.mrb[0].mxu0 %v8775
        %v8888 = vpop.f32.mrb[0].mxu0
        %v8889 = vadd.f32 0.0, %v8888
        %v8890 = vpop.f32.mrb[0].mxu0
        %v8891 = vpop.f32.mrb[0].mxu0
        %v8892 = vadd.f32 0.0, %v8891
        %v8893 = vpop.f32.mrb[0].mxu0
        %8894 = vmatprep.mubr.bf16.mxu0 0
        %8895 = vmatmul.mubr.bf16.gmra.mrb[0].mxu0 %v8776
        %v8896 = vpop.f32.mrb[0].mxu0
        %v8897 = vadd.f32 0.0, %v8896
        %v8898 = vpop.f32.mrb[0].mxu0
        %v8899 = vpop.f32.mrb[0].mxu0
        %v8900 = vadd.f32 0.0, %v8899
        %v8901 = vpop.f32.mrb[0].mxu0
        %8902 = vmatprep.mubr.bf16.mxu0 0
        %8903 = vmatmul.mubr.bf16.gmra.mrb[0].mxu0 %v8777
        %v8904 = vpop.f32.mrb[0].mxu0
        %v8905 = vadd.f32 0.0, %v8904
        %v8906 = vpop.f32.mrb[0].mxu0
        %v8907 = vpop.f32.mrb[0].mxu0
        %v8908 = vadd.f32 0.0, %v8907
        %v8909 = vpop.f32.mrb[0].mxu0
        %8910 = vmatprep.mubr.bf16.mxu0 0
        %8911 = vmatmul.mubr.bf16.gmra.mrb[0].mxu0 %v8778
        %v8912 = vpop.f32.mrb[0].mxu0
        %v8913 = vadd.f32 0.0, %v8912
        %v8914 = vpop.f32.mrb[0].mxu0
        %v8915 = vpop.f32.mrb[0].mxu0
        %v8916 = vadd.f32 0.0, %v8915
        %v8917 = vpop.f32.mrb[0].mxu0
        %8918 = vmatprep.mubr.bf16.mxu0 0
        %8919 = vmatmul.mubr.bf16.gmra.mrb[0].mxu0 %v8779
        %v8920 = vpop.f32.mrb[0].mxu0
        %v8921 = vadd.f32 0.0, %v8920
        %v8922 = vpop.f32.mrb[0].mxu0
        %v8923 = vpop.f32.mrb[0].mxu0
        %v8924 = vadd.f32 0.0, %v8923
        %v8925 = vpop.f32.mrb[0].mxu0
        %8926 = vmatprep.mubr.bf16.mxu0 0
        %8927 = vmatmul.mubr.bf16.gmra.mrb[0].mxu0 %v8780
        %v8928 = vpop.f32.mrb[0].mxu0
        %v8929 = vadd.f32 0.0, %v8928
        %v8930 = vpop.f32.mrb[0].mxu0
        %v8931 = vpop.f32.mrb[0].mxu0
        %v8932 = vadd.f32 0.0, %v8931
        %v8933 = vpop.f32.mrb[0].mxu0
        %8934 = vmatprep.mubr.bf16.mxu0 0
        %8935 = vmatmul.mubr.bf16.gmra.mrb[0].mxu0 %v8781
        %v8936 = vpop.f32.mrb[0].mxu0
        %v8937 = vadd.f32 0.0, %v8936
        %v8938 = vpop.f32.mrb[0].mxu0
        %v8939 = vpop.f32.mrb[0].mxu0
        %v8940 = vadd.f32 0.0, %v8939
        %v8941 = vpop.f32.mrb[0].mxu0
        %8942 = vdwg.mxu0
        %v8943 = vadd.f32 %v8758, %v8881
        %v8944 = vadd.f32 %v8759, %v8884
        %v8945 = vadd.f32 %v8760, %v8889
        %v8946 = vadd.f32 %v8761, %v8892
        %v8947 = vadd.f32 %v8762, %v8897
        %v8948 = vadd.f32 %v8763, %v8900
        %v8949 = vadd.f32 %v8764, %v8905
        %v8950 = vadd.f32 %v8765, %v8908
        %v8951 = vadd.f32 %v8766, %v8913
        %v8952 = vadd.f32 %v8767, %v8916
        %v8953 = vadd.f32 %v8768, %v8921
        %v8954 = vadd.f32 %v8769, %v8924
        %v8955 = vadd.f32 %v8770, %v8929
        %v8956 = vadd.f32 %v8771, %v8932
        %v8957 = vadd.f32 %v8772, %v8937
        %v8958 = vadd.f32 %v8773, %v8940
        %v8959 = vld [vmem:[%s6190 + $0x48] sm:$0xff]
        %v8960 = vld [vmem:[%s6190 + $0x50] sm:$0xff]
        %v8961 = vld [vmem:[%s6190 + $0x58] sm:$0xff]
        %v8962 = vld [vmem:[%s6190 + $0x60] sm:$0xff]
        %v8963 = vld [vmem:[%s6190 + $0x68] sm:$0xff]
        %v8964 = vld [vmem:[%s6190 + $0x70] sm:$0xff]
        %v8965 = vld [vmem:[%s6190 + $0x78] sm:$0xff]
        %v8966 = vld [vmem:[%s6190 + $0x80] sm:$0xff]
        %v8967 = vld [vmem:[%s7253] sm:$0xf]
        %v8968 = vld [vmem:[%s7253 + $0x4] sm:$0xf]
        %v8969 = vld [vmem:[%s7253 + $0x8] sm:$0xf]
        %v8970 = vld [vmem:[%s7253 + $0xc] sm:$0xf]
        %v8971 = vld [vmem:[%s7253 + $0x10] sm:$0xf]
        %v8972 = vld [vmem:[%s7253 + $0x14] sm:$0xf]
        %v8973 = vld [vmem:[%s7253 + $0x18] sm:$0xf]
        %v8974 = vld [vmem:[%s7253 + $0x1c] sm:$0xf]
        %v8975 = vld [vmem:[%s7253 + $0x20] sm:$0xf]
        %v8976 = vld [vmem:[%s7253 + $0x24] sm:$0xf]
        %v8977 = vld [vmem:[%s7253 + $0x28] sm:$0xf]
        %v8978 = vld [vmem:[%s7253 + $0x2c] sm:$0xf]
        %v8979 = vld [vmem:[%s7253 + $0x30] sm:$0xf]
        %v8980 = vld [vmem:[%s7253 + $0x34] sm:$0xf]
        %v8981 = vld [vmem:[%s7253 + $0x38] sm:$0xf]
        %v8982 = vld [vmem:[%s7253 + $0x3c] sm:$0xf]
        %v8999 = vunpack.c.l.b16 %v8967
        %v9000 = vunpack.c.l.b16 %v8968
        %v9001 = vunpack.c.l.b16 %v8969
        %v9002 = vunpack.c.l.b16 %v8970
        %v9003 = vunpack.c.l.b16 %v8971
        %v9004 = vunpack.c.l.b16 %v8972
        %v9005 = vunpack.c.l.b16 %v8973
        %v9006 = vunpack.c.l.b16 %v8974
        %v9007 = vunpack.c.l.b16 %v8975
        %v9008 = vunpack.c.l.b16 %v8976
        %v9009 = vunpack.c.l.b16 %v8977
        %v9010 = vunpack.c.l.b16 %v8978
        %v9011 = vunpack.c.l.b16 %v8979
        %v9012 = vunpack.c.l.b16 %v8980
        %v9013 = vunpack.c.l.b16 %v8981
        %v9014 = vunpack.c.l.b16 %v8982
        %v9015 = vpack.c.b16 %v9000, %v8999
        %v9016 = vpack.c.b16 %v9002, %v9001
        %v9017 = vpack.c.b16 %v9004, %v9003
        %v9018 = vpack.c.b16 %v9006, %v9005
        %v9019 = vpack.c.b16 %v9008, %v9007
        %v9020 = vpack.c.b16 %v9010, %v9009
        %v9021 = vpack.c.b16 %v9012, %v9011
        %v9022 = vpack.c.b16 %v9014, %v9013
        %9031 = vmatprep.subr.bf16.mxu0 0
        %9032 = vmatpush1.bf16.msra.mxu0 %v9015
        %9033 = vmatprep.subr.bf16.mxu0 0
        %9034 = vmatpush1.bf16.msra.mxu0 %v9016
        %9035 = vmatprep.subr.bf16.mxu0 0
        %9036 = vmatpush1.bf16.msra.mxu0 %v9017
        %9037 = vmatprep.subr.bf16.mxu0 0
        %9038 = vmatpush1.bf16.msra.mxu0 %v9018
        %9039 = vmatprep.subr.bf16.mxu0 0
        %9040 = vmatpush1.bf16.msra.mxu0 %v9019
        %9041 = vmatprep.subr.bf16.mxu0 0
        %9042 = vmatpush1.bf16.msra.mxu0 %v9020
        %9043 = vmatprep.subr.bf16.mxu0 0
        %9044 = vmatpush1.bf16.msra.mxu0 %v9021
        %9045 = vmatprep.subr.bf16.mxu0 0
        %9046 = vmatpush1.bf16.msra.mxu0 %v9022
        %9047 = vmatprep.subr.bf16.mxu0 0
        %9048 = vmatpush1.bf16.msra.mxu0 0
        %9049 = vmatprep.subr.bf16.mxu0 0
        %9050 = vmatpush1.bf16.msra.mxu0 0
        %9051 = vmatprep.subr.bf16.mxu0 0
        %9052 = vmatpush1.bf16.msra.mxu0 0
        %9053 = vmatprep.subr.bf16.mxu0 0
        %9054 = vmatpush1.bf16.msra.mxu0 0
        %9055 = vmatprep.subr.bf16.mxu0 0
        %9056 = vmatpush1.bf16.msra.mxu0 0
        %9057 = vmatprep.subr.bf16.mxu0 0
        %9058 = vmatpush1.bf16.msra.mxu0 0
        %9059 = vmatprep.subr.bf16.mxu0 0
        %9060 = vmatpush1.bf16.msra.mxu0 0
        %9061 = vmatprep.subr.bf16.mxu0 0
        %9062 = vmatpush1.bf16.msra.mxu0 0
        %9063 = vmatprep.mubr.bf16.mxu0 0
        %9064 = vmatmul.mubr.bf16.gmra.mrb[0].mxu0 %v8959
        %v9065 = vpop.f32.mrb[0].mxu0
        %v9066 = vadd.f32 0.0, %v9065
        %v9067 = vpop.f32.mrb[0].mxu0
        %v9068 = vpop.f32.mrb[0].mxu0
        %v9069 = vadd.f32 0.0, %v9068
        %v9070 = vpop.f32.mrb[0].mxu0
        %9071 = vmatprep.mubr.bf16.mxu0 0
        %9072 = vmatmul.mubr.bf16.gmra.mrb[0].mxu0 %v8960
        %v9073 = vpop.f32.mrb[0].mxu0
        %v9074 = vadd.f32 0.0, %v9073
        %v9075 = vpop.f32.mrb[0].mxu0
        %v9076 = vpop.f32.mrb[0].mxu0
        %v9077 = vadd.f32 0.0, %v9076
        %v9078 = vpop.f32.mrb[0].mxu0
        %9079 = vmatprep.mubr.bf16.mxu0 0
        %9080 = vmatmul.mubr.bf16.gmra.mrb[0].mxu0 %v8961
        %v9081 = vpop.f32.mrb[0].mxu0
        %v9082 = vadd.f32 0.0, %v9081
        %v9083 = vpop.f32.mrb[0].mxu0
        %v9084 = vpop.f32.mrb[0].mxu0
        %v9085 = vadd.f32 0.0, %v9084
        %v9086 = vpop.f32.mrb[0].mxu0
        %9087 = vmatprep.mubr.bf16.mxu0 0
        %9088 = vmatmul.mubr.bf16.gmra.mrb[0].mxu0 %v8962
        %v9089 = vpop.f32.mrb[0].mxu0
        %v9090 = vadd.f32 0.0, %v9089
        %v9091 = vpop.f32.mrb[0].mxu0
        %v9092 = vpop.f32.mrb[0].mxu0
        %v9093 = vadd.f32 0.0, %v9092
        %v9094 = vpop.f32.mrb[0].mxu0
        %9095 = vmatprep.mubr.bf16.mxu0 0
        %9096 = vmatmul.mubr.bf16.gmra.mrb[0].mxu0 %v8963
        %v9097 = vpop.f32.mrb[0].mxu0
        %v9098 = vadd.f32 0.0, %v9097
        %v9099 = vpop.f32.mrb[0].mxu0
        %v9100 = vpop.f32.mrb[0].mxu0
        %v9101 = vadd.f32 0.0, %v9100
        %v9102 = vpop.f32.mrb[0].mxu0
        %9103 = vmatprep.mubr.bf16.mxu0 0
        %9104 = vmatmul.mubr.bf16.gmra.mrb[0].mxu0 %v8964
        %v9105 = vpop.f32.mrb[0].mxu0
        %v9106 = vadd.f32 0.0, %v9105
        %v9107 = vpop.f32.mrb[0].mxu0
        %v9108 = vpop.f32.mrb[0].mxu0
        %v9109 = vadd.f32 0.0, %v9108
        %v9110 = vpop.f32.mrb[0].mxu0
        %9111 = vmatprep.mubr.bf16.mxu0 0
        %9112 = vmatmul.mubr.bf16.gmra.mrb[0].mxu0 %v8965
        %v9113 = vpop.f32.mrb[0].mxu0
        %v9114 = vadd.f32 0.0, %v9113
        %v9115 = vpop.f32.mrb[0].mxu0
        %v9116 = vpop.f32.mrb[0].mxu0
        %v9117 = vadd.f32 0.0, %v9116
        %v9118 = vpop.f32.mrb[0].mxu0
        %9119 = vmatprep.mubr.bf16.mxu0 0
        %9120 = vmatmul.mubr.bf16.gmra.mrb[0].mxu0 %v8966
        %v9121 = vpop.f32.mrb[0].mxu0
        %v9122 = vadd.f32 0.0, %v9121
        %v9123 = vpop.f32.mrb[0].mxu0
        %v9124 = vpop.f32.mrb[0].mxu0
        %v9125 = vadd.f32 0.0, %v9124
        %v9126 = vpop.f32.mrb[0].mxu0
        %9127 = vdwg.mxu0
        %v9128 = vadd.f32 %v8943, %v9066
        %v9129 = vadd.f32 %v8944, %v9069
        %v9130 = vadd.f32 %v8945, %v9074
        %v9131 = vadd.f32 %v8946, %v9077
        %v9132 = vadd.f32 %v8947, %v9082
        %v9133 = vadd.f32 %v8948, %v9085
        %v9134 = vadd.f32 %v8949, %v9090
        %v9135 = vadd.f32 %v8950, %v9093
        %v9136 = vadd.f32 %v8951, %v9098
        %v9137 = vadd.f32 %v8952, %v9101
        %v9138 = vadd.f32 %v8953, %v9106
        %v9139 = vadd.f32 %v8954, %v9109
        %v9140 = vadd.f32 %v8955, %v9114
        %v9141 = vadd.f32 %v8956, %v9117
        %v9142 = vadd.f32 %v8957, %v9122
        %v9143 = vadd.f32 %v8958, %v9125
        %v9144 = vld [vmem:[%s6515 + $0x48] sm:$0xff]
        %v9145 = vld [vmem:[%s6515 + $0x50] sm:$0xff]
        %v9146 = vld [vmem:[%s6515 + $0x58] sm:$0xff]
        %v9147 = vld [vmem:[%s6515 + $0x60] sm:$0xff]
        %v9148 = vld [vmem:[%s6515 + $0x68] sm:$0xff]
        %v9149 = vld [vmem:[%s6515 + $0x70] sm:$0xff]
        %v9150 = vld [vmem:[%s6515 + $0x78] sm:$0xff]
        %v9151 = vld [vmem:[%s6515 + $0x80] sm:$0xff]
        %v9152 = vld [vmem:[%s7439] sm:$0xf]
        %v9153 = vld [vmem:[%s7439 + $0x4] sm:$0xf]
        %v9154 = vld [vmem:[%s7439 + $0x8] sm:$0xf]
        %v9155 = vld [vmem:[%s7439 + $0xc] sm:$0xf]
        %v9156 = vld [vmem:[%s7439 + $0x10] sm:$0xf]
        %v9157 = vld [vmem:[%s7439 + $0x14] sm:$0xf]
        %v9158 = vld [vmem:[%s7439 + $0x18] sm:$0xf]
        %v9159 = vld [vmem:[%s7439 + $0x1c] sm:$0xf]
        %v9160 = vld [vmem:[%s7439 + $0x20] sm:$0xf]
        %v9161 = vld [vmem:[%s7439 + $0x24] sm:$0xf]
        %v9162 = vld [vmem:[%s7439 + $0x28] sm:$0xf]
        %v9163 = vld [vmem:[%s7439 + $0x2c] sm:$0xf]
        %v9164 = vld [vmem:[%s7439 + $0x30] sm:$0xf]
        %v9165 = vld [vmem:[%s7439 + $0x34] sm:$0xf]
        %v9166 = vld [vmem:[%s7439 + $0x38] sm:$0xf]
        %v9167 = vld [vmem:[%s7439 + $0x3c] sm:$0xf]
        %v9184 = vunpack.c.l.b16 %v9152
        %v9185 = vunpack.c.l.b16 %v9153
        %v9186 = vunpack.c.l.b16 %v9154
        %v9187 = vunpack.c.l.b16 %v9155
        %v9188 = vunpack.c.l.b16 %v9156
        %v9189 = vunpack.c.l.b16 %v9157
        %v9190 = vunpack.c.l.b16 %v9158
        %v9191 = vunpack.c.l.b16 %v9159
        %v9192 = vunpack.c.l.b16 %v9160
        %v9193 = vunpack.c.l.b16 %v9161
        %v9194 = vunpack.c.l.b16 %v9162
        %v9195 = vunpack.c.l.b16 %v9163
        %v9196 = vunpack.c.l.b16 %v9164
        %v9197 = vunpack.c.l.b16 %v9165
        %v9198 = vunpack.c.l.b16 %v9166
        %v9199 = vunpack.c.l.b16 %v9167
        %v9200 = vpack.c.b16 %v9185, %v9184
        %v9201 = vpack.c.b16 %v9187, %v9186
        %v9202 = vpack.c.b16 %v9189, %v9188
        %v9203 = vpack.c.b16 %v9191, %v9190
        %v9204 = vpack.c.b16 %v9193, %v9192
        %v9205 = vpack.c.b16 %v9195, %v9194
        %v9206 = vpack.c.b16 %v9197, %v9196
        %v9207 = vpack.c.b16 %v9199, %v9198
        %9216 = vmatprep.subr.bf16.mxu0 0
        %9217 = vmatpush1.bf16.msra.mxu0 %v9200
        %9218 = vmatprep.subr.bf16.mxu0 0
        %9219 = vmatpush1.bf16.msra.mxu0 %v9201
        %9220 = vmatprep.subr.bf16.mxu0 0
        %9221 = vmatpush1.bf16.msra.mxu0 %v9202
        %9222 = vmatprep.subr.bf16.mxu0 0
        %9223 = vmatpush1.bf16.msra.mxu0 %v9203
        %9224 = vmatprep.subr.bf16.mxu0 0
        %9225 = vmatpush1.bf16.msra.mxu0 %v9204
        %9226 = vmatprep.subr.bf16.mxu0 0
        %9227 = vmatpush1.bf16.msra.mxu0 %v9205
        %9228 = vmatprep.subr.bf16.mxu0 0
        %9229 = vmatpush1.bf16.msra.mxu0 %v9206
        %9230 = vmatprep.subr.bf16.mxu0 0
        %9231 = vmatpush1.bf16.msra.mxu0 %v9207
        %9232 = vmatprep.subr.bf16.mxu0 0
        %9233 = vmatpush1.bf16.msra.mxu0 0
        %9234 = vmatprep.subr.bf16.mxu0 0
        %9235 = vmatpush1.bf16.msra.mxu0 0
        %9236 = vmatprep.subr.bf16.mxu0 0
        %9237 = vmatpush1.bf16.msra.mxu0 0
        %9238 = vmatprep.subr.bf16.mxu0 0
        %9239 = vmatpush1.bf16.msra.mxu0 0
        %9240 = vmatprep.subr.bf16.mxu0 0
        %9241 = vmatpush1.bf16.msra.mxu0 0
        %9242 = vmatprep.subr.bf16.mxu0 0
        %9243 = vmatpush1.bf16.msra.mxu0 0
        %9244 = vmatprep.subr.bf16.mxu0 0
        %9245 = vmatpush1.bf16.msra.mxu0 0
        %9246 = vmatprep.subr.bf16.mxu0 0
        %9247 = vmatpush1.bf16.msra.mxu0 0
        %9248 = vmatprep.mubr.bf16.mxu0 0
        %9249 = vmatmul.mubr.bf16.gmra.mrb[0].mxu0 %v9144
        %v9250 = vpop.f32.mrb[0].mxu0
        %v9251 = vadd.f32 0.0, %v9250
        %v9252 = vpop.f32.mrb[0].mxu0
        %v9253 = vpop.f32.mrb[0].mxu0
        %v9254 = vadd.f32 0.0, %v9253
        %v9255 = vpop.f32.mrb[0].mxu0
        %9256 = vmatprep.mubr.bf16.mxu0 0
        %9257 = vmatmul.mubr.bf16.gmra.mrb[0].mxu0 %v9145
        %v9258 = vpop.f32.mrb[0].mxu0
        %v9259 = vadd.f32 0.0, %v9258
        %v9260 = vpop.f32.mrb[0].mxu0
        %v9261 = vpop.f32.mrb[0].mxu0
        %v9262 = vadd.f32 0.0, %v9261
        %v9263 = vpop.f32.mrb[0].mxu0
        %9264 = vmatprep.mubr.bf16.mxu0 0
        %9265 = vmatmul.mubr.bf16.gmra.mrb[0].mxu0 %v9146
        %v9266 = vpop.f32.mrb[0].mxu0
        %v9267 = vadd.f32 0.0, %v9266
        %v9268 = vpop.f32.mrb[0].mxu0
        %v9269 = vpop.f32.mrb[0].mxu0
        %v9270 = vadd.f32 0.0, %v9269
        %v9271 = vpop.f32.mrb[0].mxu0
        %9272 = vmatprep.mubr.bf16.mxu0 0
        %9273 = vmatmul.mubr.bf16.gmra.mrb[0].mxu0 %v9147
        %v9274 = vpop.f32.mrb[0].mxu0
        %v9275 = vadd.f32 0.0, %v9274
        %v9276 = vpop.f32.mrb[0].mxu0
        %v9277 = vpop.f32.mrb[0].mxu0
        %v9278 = vadd.f32 0.0, %v9277
        %v9279 = vpop.f32.mrb[0].mxu0
        %9280 = vmatprep.mubr.bf16.mxu0 0
        %9281 = vmatmul.mubr.bf16.gmra.mrb[0].mxu0 %v9148
        %v9282 = vpop.f32.mrb[0].mxu0
        %v9283 = vadd.f32 0.0, %v9282
        %v9284 = vpop.f32.mrb[0].mxu0
        %v9285 = vpop.f32.mrb[0].mxu0
        %v9286 = vadd.f32 0.0, %v9285
        %v9287 = vpop.f32.mrb[0].mxu0
        %9288 = vmatprep.mubr.bf16.mxu0 0
        %9289 = vmatmul.mubr.bf16.gmra.mrb[0].mxu0 %v9149
        %v9290 = vpop.f32.mrb[0].mxu0
        %v9291 = vadd.f32 0.0, %v9290
        %v9292 = vpop.f32.mrb[0].mxu0
        %v9293 = vpop.f32.mrb[0].mxu0
        %v9294 = vadd.f32 0.0, %v9293
        %v9295 = vpop.f32.mrb[0].mxu0
        %9296 = vmatprep.mubr.bf16.mxu0 0
        %9297 = vmatmul.mubr.bf16.gmra.mrb[0].mxu0 %v9150
        %v9298 = vpop.f32.mrb[0].mxu0
        %v9299 = vadd.f32 0.0, %v9298
        %v9300 = vpop.f32.mrb[0].mxu0
        %v9301 = vpop.f32.mrb[0].mxu0
        %v9302 = vadd.f32 0.0, %v9301
        %v9303 = vpop.f32.mrb[0].mxu0
        %9304 = vmatprep.mubr.bf16.mxu0 0
        %9305 = vmatmul.mubr.bf16.gmra.mrb[0].mxu0 %v9151
        %v9306 = vpop.f32.mrb[0].mxu0
        %v9307 = vadd.f32 0.0, %v9306
        %v9308 = vpop.f32.mrb[0].mxu0
        %v9309 = vpop.f32.mrb[0].mxu0
        %v9310 = vadd.f32 0.0, %v9309
        %v9311 = vpop.f32.mrb[0].mxu0
        %9312 = vdwg.mxu0
        %v9313 = vadd.f32 %v9128, %v9251
        %v9314 = vadd.f32 %v9129, %v9254
        %v9315 = vadd.f32 %v9130, %v9259
        %v9316 = vadd.f32 %v9131, %v9262
        %v9317 = vadd.f32 %v9132, %v9267
        %v9318 = vadd.f32 %v9133, %v9270
        %v9319 = vadd.f32 %v9134, %v9275
        %v9320 = vadd.f32 %v9135, %v9278
        %v9321 = vadd.f32 %v9136, %v9283
        %v9322 = vadd.f32 %v9137, %v9286
        %v9323 = vadd.f32 %v9138, %v9291
        %v9324 = vadd.f32 %v9139, %v9294
        %v9325 = vadd.f32 %v9140, %v9299
        %v9326 = vadd.f32 %v9141, %v9302
        %v9327 = vadd.f32 %v9142, %v9307
        %v9328 = vadd.f32 %v9143, %v9310
        %v9329 = vld [vmem:[#allocation3 + $0x50] sm:$0xff]
        %v9330 = vld [vmem:[#allocation3 + $0x58] sm:$0xff]
        %v9331 = vld [vmem:[#allocation3 + $0x60] sm:$0xff]
        %v9332 = vld [vmem:[#allocation3 + $0x68] sm:$0xff]
        %v9333 = vld [vmem:[#allocation3 + $0x70] sm:$0xff]
        %v9334 = vld [vmem:[#allocation3 + $0x78] sm:$0xff]
        %v9335 = vld [vmem:[#allocation3 + $0x80] sm:$0xff]
        %v9336 = vld [vmem:[#allocation3 + $0x88] sm:$0xff]
        %v9337 = vld [vmem:[%s7625] sm:$0xf]
        %v9338 = vld [vmem:[%s7625 + $0x4] sm:$0xf]
        %v9339 = vld [vmem:[%s7625 + $0x8] sm:$0xf]
        %v9340 = vld [vmem:[%s7625 + $0xc] sm:$0xf]
        %v9341 = vld [vmem:[%s7625 + $0x10] sm:$0xf]
        %v9342 = vld [vmem:[%s7625 + $0x14] sm:$0xf]
        %v9343 = vld [vmem:[%s7625 + $0x18] sm:$0xf]
        %v9344 = vld [vmem:[%s7625 + $0x1c] sm:$0xf]
        %v9345 = vld [vmem:[%s7625 + $0x20] sm:$0xf]
        %v9346 = vld [vmem:[%s7625 + $0x24] sm:$0xf]
        %v9347 = vld [vmem:[%s7625 + $0x28] sm:$0xf]
        %v9348 = vld [vmem:[%s7625 + $0x2c] sm:$0xf]
        %v9349 = vld [vmem:[%s7625 + $0x30] sm:$0xf]
        %v9350 = vld [vmem:[%s7625 + $0x34] sm:$0xf]
        %v9351 = vld [vmem:[%s7625 + $0x38] sm:$0xf]
        %v9352 = vld [vmem:[%s7625 + $0x3c] sm:$0xf]
        %v9369 = vunpack.c.l.b16 %v9337
        %v9370 = vunpack.c.l.b16 %v9338
        %v9371 = vunpack.c.l.b16 %v9339
        %v9372 = vunpack.c.l.b16 %v9340
        %v9373 = vunpack.c.l.b16 %v9341
        %v9374 = vunpack.c.l.b16 %v9342
        %v9375 = vunpack.c.l.b16 %v9343
        %v9376 = vunpack.c.l.b16 %v9344
        %v9377 = vunpack.c.l.b16 %v9345
        %v9378 = vunpack.c.l.b16 %v9346
        %v9379 = vunpack.c.l.b16 %v9347
        %v9380 = vunpack.c.l.b16 %v9348
        %v9381 = vunpack.c.l.b16 %v9349
        %v9382 = vunpack.c.l.b16 %v9350
        %v9383 = vunpack.c.l.b16 %v9351
        %v9384 = vunpack.c.l.b16 %v9352
        %v9385 = vpack.c.b16 %v9370, %v9369
        %v9386 = vpack.c.b16 %v9372, %v9371
        %v9387 = vpack.c.b16 %v9374, %v9373
        %v9388 = vpack.c.b16 %v9376, %v9375
        %v9389 = vpack.c.b16 %v9378, %v9377
        %v9390 = vpack.c.b16 %v9380, %v9379
        %v9391 = vpack.c.b16 %v9382, %v9381
        %v9392 = vpack.c.b16 %v9384, %v9383
        %9401 = vmatprep.subr.bf16.mxu0 0
        %9402 = vmatpush1.bf16.msra.mxu0 %v9385
        %9403 = vmatprep.subr.bf16.mxu0 0
        %9404 = vmatpush1.bf16.msra.mxu0 %v9386
        %9405 = vmatprep.subr.bf16.mxu0 0
        %9406 = vmatpush1.bf16.msra.mxu0 %v9387
        %9407 = vmatprep.subr.bf16.mxu0 0
        %9408 = vmatpush1.bf16.msra.mxu0 %v9388
        %9409 = vmatprep.subr.bf16.mxu0 0
        %9410 = vmatpush1.bf16.msra.mxu0 %v9389
        %9411 = vmatprep.subr.bf16.mxu0 0
        %9412 = vmatpush1.bf16.msra.mxu0 %v9390
        %9413 = vmatprep.subr.bf16.mxu0 0
        %9414 = vmatpush1.bf16.msra.mxu0 %v9391
        %9415 = vmatprep.subr.bf16.mxu0 0
        %9416 = vmatpush1.bf16.msra.mxu0 %v9392
        %9417 = vmatprep.subr.bf16.mxu0 0
        %9418 = vmatpush1.bf16.msra.mxu0 0
        %9419 = vmatprep.subr.bf16.mxu0 0
        %9420 = vmatpush1.bf16.msra.mxu0 0
        %9421 = vmatprep.subr.bf16.mxu0 0
        %9422 = vmatpush1.bf16.msra.mxu0 0
        %9423 = vmatprep.subr.bf16.mxu0 0
        %9424 = vmatpush1.bf16.msra.mxu0 0
        %9425 = vmatprep.subr.bf16.mxu0 0
        %9426 = vmatpush1.bf16.msra.mxu0 0
        %9427 = vmatprep.subr.bf16.mxu0 0
        %9428 = vmatpush1.bf16.msra.mxu0 0
        %9429 = vmatprep.subr.bf16.mxu0 0
        %9430 = vmatpush1.bf16.msra.mxu0 0
        %9431 = vmatprep.subr.bf16.mxu0 0
        %9432 = vmatpush1.bf16.msra.mxu0 0
        %9433 = vmatprep.mubr.bf16.mxu0 0
        %9434 = vmatmul.mubr.bf16.gmra.mrb[0].mxu0 %v9329
        %v9435 = vpop.f32.mrb[0].mxu0
        %v9436 = vadd.f32 0.0, %v9435
        %v9437 = vpop.f32.mrb[0].mxu0
        %v9438 = vpop.f32.mrb[0].mxu0
        %v9439 = vadd.f32 0.0, %v9438
        %v9440 = vpop.f32.mrb[0].mxu0
        %9441 = vmatprep.mubr.bf16.mxu0 0
        %9442 = vmatmul.mubr.bf16.gmra.mrb[0].mxu0 %v9330
        %v9443 = vpop.f32.mrb[0].mxu0
        %v9444 = vadd.f32 0.0, %v9443
        %v9445 = vpop.f32.mrb[0].mxu0
        %v9446 = vpop.f32.mrb[0].mxu0
        %v9447 = vadd.f32 0.0, %v9446
        %v9448 = vpop.f32.mrb[0].mxu0
        %9449 = vmatprep.mubr.bf16.mxu0 0
        %9450 = vmatmul.mubr.bf16.gmra.mrb[0].mxu0 %v9331
        %v9451 = vpop.f32.mrb[0].mxu0
        %v9452 = vadd.f32 0.0, %v9451
        %v9453 = vpop.f32.mrb[0].mxu0
        %v9454 = vpop.f32.mrb[0].mxu0
        %v9455 = vadd.f32 0.0, %v9454
        %v9456 = vpop.f32.mrb[0].mxu0
        %9457 = vmatprep.mubr.bf16.mxu0 0
        %9458 = vmatmul.mubr.bf16.gmra.mrb[0].mxu0 %v9332
        %v9459 = vpop.f32.mrb[0].mxu0
        %v9460 = vadd.f32 0.0, %v9459
        %v9461 = vpop.f32.mrb[0].mxu0
        %v9462 = vpop.f32.mrb[0].mxu0
        %v9463 = vadd.f32 0.0, %v9462
        %v9464 = vpop.f32.mrb[0].mxu0
        %9465 = vmatprep.mubr.bf16.mxu0 0
        %9466 = vmatmul.mubr.bf16.gmra.mrb[0].mxu0 %v9333
        %v9467 = vpop.f32.mrb[0].mxu0
        %v9468 = vadd.f32 0.0, %v9467
        %v9469 = vpop.f32.mrb[0].mxu0
        %v9470 = vpop.f32.mrb[0].mxu0
        %v9471 = vadd.f32 0.0, %v9470
        %v9472 = vpop.f32.mrb[0].mxu0
        %9473 = vmatprep.mubr.bf16.mxu0 0
        %9474 = vmatmul.mubr.bf16.gmra.mrb[0].mxu0 %v9334
        %v9475 = vpop.f32.mrb[0].mxu0
        %v9476 = vadd.f32 0.0, %v9475
        %v9477 = vpop.f32.mrb[0].mxu0
        %v9478 = vpop.f32.mrb[0].mxu0
        %v9479 = vadd.f32 0.0, %v9478
        %v9480 = vpop.f32.mrb[0].mxu0
        %9481 = vmatprep.mubr.bf16.mxu0 0
        %9482 = vmatmul.mubr.bf16.gmra.mrb[0].mxu0 %v9335
        %v9483 = vpop.f32.mrb[0].mxu0
        %v9484 = vadd.f32 0.0, %v9483
        %v9485 = vpop.f32.mrb[0].mxu0
        %v9486 = vpop.f32.mrb[0].mxu0
        %v9487 = vadd.f32 0.0, %v9486
        %v9488 = vpop.f32.mrb[0].mxu0
        %9489 = vmatprep.mubr.bf16.mxu0 0
        %9490 = vmatmul.mubr.bf16.gmra.mrb[0].mxu0 %v9336
        %v9491 = vpop.f32.mrb[0].mxu0
        %v9492 = vadd.f32 0.0, %v9491
        %v9493 = vpop.f32.mrb[0].mxu0
        %v9494 = vpop.f32.mrb[0].mxu0
        %v9495 = vadd.f32 0.0, %v9494
        %v9496 = vpop.f32.mrb[0].mxu0
        %9497 = vdwg.mxu0
        %v9498 = vadd.f32 %v9313, %v9436
        %v9499 = vadd.f32 %v9314, %v9439
        %v9500 = vadd.f32 %v9315, %v9444
        %v9501 = vadd.f32 %v9316, %v9447
        %v9502 = vadd.f32 %v9317, %v9452
        %v9503 = vadd.f32 %v9318, %v9455
        %v9504 = vadd.f32 %v9319, %v9460
        %v9505 = vadd.f32 %v9320, %v9463
        %v9506 = vadd.f32 %v9321, %v9468
        %v9507 = vadd.f32 %v9322, %v9471
        %v9508 = vadd.f32 %v9323, %v9476
        %v9509 = vadd.f32 %v9324, %v9479
        %v9510 = vadd.f32 %v9325, %v9484
        %v9511 = vadd.f32 %v9326, %v9487
        %v9512 = vadd.f32 %v9327, %v9492
        %v9513 = vadd.f32 %v9328, %v9495
        %v9514 = vld [vmem:[%s6190 + $0x50] sm:$0xff]
        %v9515 = vld [vmem:[%s6190 + $0x58] sm:$0xff]
        %v9516 = vld [vmem:[%s6190 + $0x60] sm:$0xff]
        %v9517 = vld [vmem:[%s6190 + $0x68] sm:$0xff]
        %v9518 = vld [vmem:[%s6190 + $0x70] sm:$0xff]
        %v9519 = vld [vmem:[%s6190 + $0x78] sm:$0xff]
        %v9520 = vld [vmem:[%s6190 + $0x80] sm:$0xff]
        %v9521 = vld [vmem:[%s6190 + $0x88] sm:$0xff]
        %v9522 = vld [vmem:[%s7811] sm:$0xf]
        %v9523 = vld [vmem:[%s7811 + $0x4] sm:$0xf]
        %v9524 = vld [vmem:[%s7811 + $0x8] sm:$0xf]
        %v9525 = vld [vmem:[%s7811 + $0xc] sm:$0xf]
        %v9526 = vld [vmem:[%s7811 + $0x10] sm:$0xf]
        %v9527 = vld [vmem:[%s7811 + $0x14] sm:$0xf]
        %v9528 = vld [vmem:[%s7811 + $0x18] sm:$0xf]
        %v9529 = vld [vmem:[%s7811 + $0x1c] sm:$0xf]
        %v9530 = vld [vmem:[%s7811 + $0x20] sm:$0xf]
        %v9531 = vld [vmem:[%s7811 + $0x24] sm:$0xf]
        %v9532 = vld [vmem:[%s7811 + $0x28] sm:$0xf]
        %v9533 = vld [vmem:[%s7811 + $0x2c] sm:$0xf]
        %v9534 = vld [vmem:[%s7811 + $0x30] sm:$0xf]
        %v9535 = vld [vmem:[%s7811 + $0x34] sm:$0xf]
        %v9536 = vld [vmem:[%s7811 + $0x38] sm:$0xf]
        %v9537 = vld [vmem:[%s7811 + $0x3c] sm:$0xf]
        %v9554 = vunpack.c.l.b16 %v9522
        %v9555 = vunpack.c.l.b16 %v9523
        %v9556 = vunpack.c.l.b16 %v9524
        %v9557 = vunpack.c.l.b16 %v9525
        %v9558 = vunpack.c.l.b16 %v9526
        %v9559 = vunpack.c.l.b16 %v9527
        %v9560 = vunpack.c.l.b16 %v9528
        %v9561 = vunpack.c.l.b16 %v9529
        %v9562 = vunpack.c.l.b16 %v9530
        %v9563 = vunpack.c.l.b16 %v9531
        %v9564 = vunpack.c.l.b16 %v9532
        %v9565 = vunpack.c.l.b16 %v9533
        %v9566 = vunpack.c.l.b16 %v9534
        %v9567 = vunpack.c.l.b16 %v9535
        %v9568 = vunpack.c.l.b16 %v9536
        %v9569 = vunpack.c.l.b16 %v9537
        %v9570 = vpack.c.b16 %v9555, %v9554
        %v9571 = vpack.c.b16 %v9557, %v9556
        %v9572 = vpack.c.b16 %v9559, %v9558
        %v9573 = vpack.c.b16 %v9561, %v9560
        %v9574 = vpack.c.b16 %v9563, %v9562
        %v9575 = vpack.c.b16 %v9565, %v9564
        %v9576 = vpack.c.b16 %v9567, %v9566
        %v9577 = vpack.c.b16 %v9569, %v9568
        %9586 = vmatprep.subr.bf16.mxu0 0
        %9587 = vmatpush1.bf16.msra.mxu0 %v9570
        %9588 = vmatprep.subr.bf16.mxu0 0
        %9589 = vmatpush1.bf16.msra.mxu0 %v9571
        %9590 = vmatprep.subr.bf16.mxu0 0
        %9591 = vmatpush1.bf16.msra.mxu0 %v9572
        %9592 = vmatprep.subr.bf16.mxu0 0
        %9593 = vmatpush1.bf16.msra.mxu0 %v9573
        %9594 = vmatprep.subr.bf16.mxu0 0
        %9595 = vmatpush1.bf16.msra.mxu0 %v9574
        %9596 = vmatprep.subr.bf16.mxu0 0
        %9597 = vmatpush1.bf16.msra.mxu0 %v9575
        %9598 = vmatprep.subr.bf16.mxu0 0
        %9599 = vmatpush1.bf16.msra.mxu0 %v9576
        %9600 = vmatprep.subr.bf16.mxu0 0
        %9601 = vmatpush1.bf16.msra.mxu0 %v9577
        %9602 = vmatprep.subr.bf16.mxu0 0
        %9603 = vmatpush1.bf16.msra.mxu0 0
        %9604 = vmatprep.subr.bf16.mxu0 0
        %9605 = vmatpush1.bf16.msra.mxu0 0
        %9606 = vmatprep.subr.bf16.mxu0 0
        %9607 = vmatpush1.bf16.msra.mxu0 0
        %9608 = vmatprep.subr.bf16.mxu0 0
        %9609 = vmatpush1.bf16.msra.mxu0 0
        %9610 = vmatprep.subr.bf16.mxu0 0
        %9611 = vmatpush1.bf16.msra.mxu0 0
        %9612 = vmatprep.subr.bf16.mxu0 0
        %9613 = vmatpush1.bf16.msra.mxu0 0
        %9614 = vmatprep.subr.bf16.mxu0 0
        %9615 = vmatpush1.bf16.msra.mxu0 0
        %9616 = vmatprep.subr.bf16.mxu0 0
        %9617 = vmatpush1.bf16.msra.mxu0 0
        %9618 = vmatprep.mubr.bf16.mxu0 0
        %9619 = vmatmul.mubr.bf16.gmra.mrb[0].mxu0 %v9514
        %v9620 = vpop.f32.mrb[0].mxu0
        %v9621 = vadd.f32 0.0, %v9620
        %v9622 = vpop.f32.mrb[0].mxu0
        %v9623 = vpop.f32.mrb[0].mxu0
        %v9624 = vadd.f32 0.0, %v9623
        %v9625 = vpop.f32.mrb[0].mxu0
        %9626 = vmatprep.mubr.bf16.mxu0 0
        %9627 = vmatmul.mubr.bf16.gmra.mrb[0].mxu0 %v9515
        %v9628 = vpop.f32.mrb[0].mxu0
        %v9629 = vadd.f32 0.0, %v9628
        %v9630 = vpop.f32.mrb[0].mxu0
        %v9631 = vpop.f32.mrb[0].mxu0
        %v9632 = vadd.f32 0.0, %v9631
        %v9633 = vpop.f32.mrb[0].mxu0
        %9634 = vmatprep.mubr.bf16.mxu0 0
        %9635 = vmatmul.mubr.bf16.gmra.mrb[0].mxu0 %v9516
        %v9636 = vpop.f32.mrb[0].mxu0
        %v9637 = vadd.f32 0.0, %v9636
        %v9638 = vpop.f32.mrb[0].mxu0
        %v9639 = vpop.f32.mrb[0].mxu0
        %v9640 = vadd.f32 0.0, %v9639
        %v9641 = vpop.f32.mrb[0].mxu0
        %9642 = vmatprep.mubr.bf16.mxu0 0
        %9643 = vmatmul.mubr.bf16.gmra.mrb[0].mxu0 %v9517
        %v9644 = vpop.f32.mrb[0].mxu0
        %v9645 = vadd.f32 0.0, %v9644
        %v9646 = vpop.f32.mrb[0].mxu0
        %v9647 = vpop.f32.mrb[0].mxu0
        %v9648 = vadd.f32 0.0, %v9647
        %v9649 = vpop.f32.mrb[0].mxu0
        %9650 = vmatprep.mubr.bf16.mxu0 0
        %9651 = vmatmul.mubr.bf16.gmra.mrb[0].mxu0 %v9518
        %v9652 = vpop.f32.mrb[0].mxu0
        %v9653 = vadd.f32 0.0, %v9652
        %v9654 = vpop.f32.mrb[0].mxu0
        %v9655 = vpop.f32.mrb[0].mxu0
        %v9656 = vadd.f32 0.0, %v9655
        %v9657 = vpop.f32.mrb[0].mxu0
        %9658 = vmatprep.mubr.bf16.mxu0 0
        %9659 = vmatmul.mubr.bf16.gmra.mrb[0].mxu0 %v9519
        %v9660 = vpop.f32.mrb[0].mxu0
        %v9661 = vadd.f32 0.0, %v9660
        %v9662 = vpop.f32.mrb[0].mxu0
        %v9663 = vpop.f32.mrb[0].mxu0
        %v9664 = vadd.f32 0.0, %v9663
        %v9665 = vpop.f32.mrb[0].mxu0
        %9666 = vmatprep.mubr.bf16.mxu0 0
        %9667 = vmatmul.mubr.bf16.gmra.mrb[0].mxu0 %v9520
        %v9668 = vpop.f32.mrb[0].mxu0
        %v9669 = vadd.f32 0.0, %v9668
        %v9670 = vpop.f32.mrb[0].mxu0
        %v9671 = vpop.f32.mrb[0].mxu0
        %v9672 = vadd.f32 0.0, %v9671
        %v9673 = vpop.f32.mrb[0].mxu0
        %9674 = vmatprep.mubr.bf16.mxu0 0
        %9675 = vmatmul.mubr.bf16.gmra.mrb[0].mxu0 %v9521
        %v9676 = vpop.f32.mrb[0].mxu0
        %v9677 = vadd.f32 0.0, %v9676
        %v9678 = vpop.f32.mrb[0].mxu0
        %v9679 = vpop.f32.mrb[0].mxu0
        %v9680 = vadd.f32 0.0, %v9679
        %v9681 = vpop.f32.mrb[0].mxu0
        %9682 = vdwg.mxu0
        %v9683 = vadd.f32 %v9498, %v9621
        %v9684 = vadd.f32 %v9499, %v9624
        %v9685 = vadd.f32 %v9500, %v9629
        %v9686 = vadd.f32 %v9501, %v9632
        %v9687 = vadd.f32 %v9502, %v9637
        %v9688 = vadd.f32 %v9503, %v9640
        %v9689 = vadd.f32 %v9504, %v9645
        %v9690 = vadd.f32 %v9505, %v9648
        %v9691 = vadd.f32 %v9506, %v9653
        %v9692 = vadd.f32 %v9507, %v9656
        %v9693 = vadd.f32 %v9508, %v9661
        %v9694 = vadd.f32 %v9509, %v9664
        %v9695 = vadd.f32 %v9510, %v9669
        %v9696 = vadd.f32 %v9511, %v9672
        %v9697 = vadd.f32 %v9512, %v9677
        %v9698 = vadd.f32 %v9513, %v9680
        %v9699 = vld [vmem:[%s6515 + $0x50] sm:$0xff]
        %v9700 = vld [vmem:[%s6515 + $0x58] sm:$0xff]
        %v9701 = vld [vmem:[%s6515 + $0x60] sm:$0xff]
        %v9702 = vld [vmem:[%s6515 + $0x68] sm:$0xff]
        %v9703 = vld [vmem:[%s6515 + $0x70] sm:$0xff]
        %v9704 = vld [vmem:[%s6515 + $0x78] sm:$0xff]
        %v9705 = vld [vmem:[%s6515 + $0x80] sm:$0xff]
        %v9706 = vld [vmem:[%s6515 + $0x88] sm:$0xff]
        %v9707 = vld [vmem:[%s7997] sm:$0xf]
        %v9708 = vld [vmem:[%s7997 + $0x4] sm:$0xf]
        %v9709 = vld [vmem:[%s7997 + $0x8] sm:$0xf]
        %v9710 = vld [vmem:[%s7997 + $0xc] sm:$0xf]
        %v9711 = vld [vmem:[%s7997 + $0x10] sm:$0xf]
        %v9712 = vld [vmem:[%s7997 + $0x14] sm:$0xf]
        %v9713 = vld [vmem:[%s7997 + $0x18] sm:$0xf]
        %v9714 = vld [vmem:[%s7997 + $0x1c] sm:$0xf]
        %v9715 = vld [vmem:[%s7997 + $0x20] sm:$0xf]
        %v9716 = vld [vmem:[%s7997 + $0x24] sm:$0xf]
        %v9717 = vld [vmem:[%s7997 + $0x28] sm:$0xf]
        %v9718 = vld [vmem:[%s7997 + $0x2c] sm:$0xf]
        %v9719 = vld [vmem:[%s7997 + $0x30] sm:$0xf]
        %v9720 = vld [vmem:[%s7997 + $0x34] sm:$0xf]
        %v9721 = vld [vmem:[%s7997 + $0x38] sm:$0xf]
        %v9722 = vld [vmem:[%s7997 + $0x3c] sm:$0xf]
        %v9739 = vunpack.c.l.b16 %v9707
        %v9740 = vunpack.c.l.b16 %v9708
        %v9741 = vunpack.c.l.b16 %v9709
        %v9742 = vunpack.c.l.b16 %v9710
        %v9743 = vunpack.c.l.b16 %v9711
        %v9744 = vunpack.c.l.b16 %v9712
        %v9745 = vunpack.c.l.b16 %v9713
        %v9746 = vunpack.c.l.b16 %v9714
        %v9747 = vunpack.c.l.b16 %v9715
        %v9748 = vunpack.c.l.b16 %v9716
        %v9749 = vunpack.c.l.b16 %v9717
        %v9750 = vunpack.c.l.b16 %v9718
        %v9751 = vunpack.c.l.b16 %v9719
        %v9752 = vunpack.c.l.b16 %v9720
        %v9753 = vunpack.c.l.b16 %v9721
        %v9754 = vunpack.c.l.b16 %v9722
        %v9755 = vpack.c.b16 %v9740, %v9739
        %v9756 = vpack.c.b16 %v9742, %v9741
        %v9757 = vpack.c.b16 %v9744, %v9743
        %v9758 = vpack.c.b16 %v9746, %v9745
        %v9759 = vpack.c.b16 %v9748, %v9747
        %v9760 = vpack.c.b16 %v9750, %v9749
        %v9761 = vpack.c.b16 %v9752, %v9751
        %v9762 = vpack.c.b16 %v9754, %v9753
        %9771 = vmatprep.subr.bf16.mxu0 0
        %9772 = vmatpush1.bf16.msra.mxu0 %v9755
        %9773 = vmatprep.subr.bf16.mxu0 0
        %9774 = vmatpush1.bf16.msra.mxu0 %v9756
        %9775 = vmatprep.subr.bf16.mxu0 0
        %9776 = vmatpush1.bf16.msra.mxu0 %v9757
        %9777 = vmatprep.subr.bf16.mxu0 0
        %9778 = vmatpush1.bf16.msra.mxu0 %v9758
        %9779 = vmatprep.subr.bf16.mxu0 0
        %9780 = vmatpush1.bf16.msra.mxu0 %v9759
        %9781 = vmatprep.subr.bf16.mxu0 0
        %9782 = vmatpush1.bf16.msra.mxu0 %v9760
        %9783 = vmatprep.subr.bf16.mxu0 0
        %9784 = vmatpush1.bf16.msra.mxu0 %v9761
        %9785 = vmatprep.subr.bf16.mxu0 0
        %9786 = vmatpush1.bf16.msra.mxu0 %v9762
        %9787 = vmatprep.subr.bf16.mxu0 0
        %9788 = vmatpush1.bf16.msra.mxu0 0
        %9789 = vmatprep.subr.bf16.mxu0 0
        %9790 = vmatpush1.bf16.msra.mxu0 0
        %9791 = vmatprep.subr.bf16.mxu0 0
        %9792 = vmatpush1.bf16.msra.mxu0 0
        %9793 = vmatprep.subr.bf16.mxu0 0
        %9794 = vmatpush1.bf16.msra.mxu0 0
        %9795 = vmatprep.subr.bf16.mxu0 0
        %9796 = vmatpush1.bf16.msra.mxu0 0
        %9797 = vmatprep.subr.bf16.mxu0 0
        %9798 = vmatpush1.bf16.msra.mxu0 0
        %9799 = vmatprep.subr.bf16.mxu0 0
        %9800 = vmatpush1.bf16.msra.mxu0 0
        %9801 = vmatprep.subr.bf16.mxu0 0
        %9802 = vmatpush1.bf16.msra.mxu0 0
        %9803 = vmatprep.mubr.bf16.mxu0 0
        %9804 = vmatmul.mubr.bf16.gmra.mrb[0].mxu0 %v9699
        %v9805 = vpop.f32.mrb[0].mxu0
        %v9806 = vadd.f32 0.0, %v9805
        %v9807 = vpop.f32.mrb[0].mxu0
        %v9808 = vpop.f32.mrb[0].mxu0
        %v9809 = vadd.f32 0.0, %v9808
        %v9810 = vpop.f32.mrb[0].mxu0
        %9811 = vmatprep.mubr.bf16.mxu0 0
        %9812 = vmatmul.mubr.bf16.gmra.mrb[0].mxu0 %v9700
        %v9813 = vpop.f32.mrb[0].mxu0
        %v9814 = vadd.f32 0.0, %v9813
        %v9815 = vpop.f32.mrb[0].mxu0
        %v9816 = vpop.f32.mrb[0].mxu0
        %v9817 = vadd.f32 0.0, %v9816
        %v9818 = vpop.f32.mrb[0].mxu0
        %9819 = vmatprep.mubr.bf16.mxu0 0
        %9820 = vmatmul.mubr.bf16.gmra.mrb[0].mxu0 %v9701
        %v9821 = vpop.f32.mrb[0].mxu0
        %v9822 = vadd.f32 0.0, %v9821
        %v9823 = vpop.f32.mrb[0].mxu0
        %v9824 = vpop.f32.mrb[0].mxu0
        %v9825 = vadd.f32 0.0, %v9824
        %v9826 = vpop.f32.mrb[0].mxu0
        %9827 = vmatprep.mubr.bf16.mxu0 0
        %9828 = vmatmul.mubr.bf16.gmra.mrb[0].mxu0 %v9702
        %v9829 = vpop.f32.mrb[0].mxu0
        %v9830 = vadd.f32 0.0, %v9829
        %v9831 = vpop.f32.mrb[0].mxu0
        %v9832 = vpop.f32.mrb[0].mxu0
        %v9833 = vadd.f32 0.0, %v9832
        %v9834 = vpop.f32.mrb[0].mxu0
        %9835 = vmatprep.mubr.bf16.mxu0 0
        %9836 = vmatmul.mubr.bf16.gmra.mrb[0].mxu0 %v9703
        %v9837 = vpop.f32.mrb[0].mxu0
        %v9838 = vadd.f32 0.0, %v9837
        %v9839 = vpop.f32.mrb[0].mxu0
        %v9840 = vpop.f32.mrb[0].mxu0
        %v9841 = vadd.f32 0.0, %v9840
        %v9842 = vpop.f32.mrb[0].mxu0
        %9843 = vmatprep.mubr.bf16.mxu0 0
        %9844 = vmatmul.mubr.bf16.gmra.mrb[0].mxu0 %v9704
        %v9845 = vpop.f32.mrb[0].mxu0
        %v9846 = vadd.f32 0.0, %v9845
        %v9847 = vpop.f32.mrb[0].mxu0
        %v9848 = vpop.f32.mrb[0].mxu0
        %v9849 = vadd.f32 0.0, %v9848
        %v9850 = vpop.f32.mrb[0].mxu0
        %9851 = vmatprep.mubr.bf16.mxu0 0
        %9852 = vmatmul.mubr.bf16.gmra.mrb[0].mxu0 %v9705
        %v9853 = vpop.f32.mrb[0].mxu0
        %v9854 = vadd.f32 0.0, %v9853
        %v9855 = vpop.f32.mrb[0].mxu0
        %v9856 = vpop.f32.mrb[0].mxu0
        %v9857 = vadd.f32 0.0, %v9856
        %v9858 = vpop.f32.mrb[0].mxu0
        %9859 = vmatprep.mubr.bf16.mxu0 0
        %9860 = vmatmul.mubr.bf16.gmra.mrb[0].mxu0 %v9706
        %v9861 = vpop.f32.mrb[0].mxu0
        %v9862 = vadd.f32 0.0, %v9861
        %v9863 = vpop.f32.mrb[0].mxu0
        %v9864 = vpop.f32.mrb[0].mxu0
        %v9865 = vadd.f32 0.0, %v9864
        %v9866 = vpop.f32.mrb[0].mxu0
        %9867 = vdwg.mxu0
        %v9868 = vadd.f32 %v9683, %v9806
        %v9869 = vadd.f32 %v9684, %v9809
        %v9870 = vadd.f32 %v9685, %v9814
        %v9871 = vadd.f32 %v9686, %v9817
        %v9872 = vadd.f32 %v9687, %v9822
        %v9873 = vadd.f32 %v9688, %v9825
        %v9874 = vadd.f32 %v9689, %v9830
        %v9875 = vadd.f32 %v9690, %v9833
        %v9876 = vadd.f32 %v9691, %v9838
        %v9877 = vadd.f32 %v9692, %v9841
        %v9878 = vadd.f32 %v9693, %v9846
        %v9879 = vadd.f32 %v9694, %v9849
        %v9880 = vadd.f32 %v9695, %v9854
        %v9881 = vadd.f32 %v9696, %v9857
        %v9882 = vadd.f32 %v9697, %v9862
        %v9883 = vadd.f32 %v9698, %v9865
        %9884 = vst [vmem:[#allocation5 + $0x80] sm:$0xff] %v9868
        %9885 = vst [vmem:[#allocation5 + $0x88] sm:$0xff] %v9869
        %9886 = vst [vmem:[#allocation5 + $0x90] sm:$0xff] %v9870
        %9887 = vst [vmem:[#allocation5 + $0x98] sm:$0xff] %v9871
        %9888 = vst [vmem:[#allocation5 + $0xa0] sm:$0xff] %v9872
        %9889 = vst [vmem:[#allocation5 + $0xa8] sm:$0xff] %v9873
        %9890 = vst [vmem:[#allocation5 + $0xb0] sm:$0xff] %v9874
        %9891 = vst [vmem:[#allocation5 + $0xb8] sm:$0xff] %v9875
        %9892 = vst [vmem:[#allocation5 + $0xc0] sm:$0xff] %v9876
        %9893 = vst [vmem:[#allocation5 + $0xc8] sm:$0xff] %v9877
        %9894 = vst [vmem:[#allocation5 + $0xd0] sm:$0xff] %v9878
        %9895 = vst [vmem:[#allocation5 + $0xd8] sm:$0xff] %v9879
        %9896 = vst [vmem:[#allocation5 + $0xe0] sm:$0xff] %v9880
        %9897 = vst [vmem:[#allocation5 + $0xe8] sm:$0xff] %v9881
        %9898 = vst [vmem:[#allocation5 + $0xf0] sm:$0xff] %v9882
        %9899 = vst [vmem:[#allocation5 + $0xf8] sm:$0xff] %v9883
        %v9900 = vadd.f32 %v9868, %v9869
        %v9901 = vadd.f32 %v9900, %v9870
        %v9902 = vadd.f32 %v9901, %v9871
        %v9903 = vadd.f32 %v9902, %v9872
        %v9904 = vadd.f32 %v9903, %v9873
        %v9905 = vadd.f32 %v9904, %v9874
        %v9906 = vadd.f32 %v9905, %v9875
        %v9907 = vadd.f32 %v9906, %v9876
        %v9908 = vadd.f32 %v9907, %v9877
        %v9909 = vadd.f32 %v9908, %v9878
        %v9910 = vadd.f32 %v9909, %v9879
        %v9911 = vadd.f32 %v9910, %v9880
        %v9912 = vadd.f32 %v9911, %v9881
        %v9913 = vadd.f32 %v9912, %v9882
        %v9914 = vadd.f32 %v9913, %v9883
        %v9915 = vrot.slane %v9914, 4
        %v9916 = vadd.f32 %v9914, %v9915
        %v9917 = vrot.slane %v9916, 2
        %v9918 = vadd.f32 %v9916, %v9917
        %v9919 = vrot.slane %v9918, 1
        %v9920 = vadd.f32 %v9918, %v9919
        %v9921 = vadd.f32 %v8212, %v9920
        %v9922 = vmul.f32 %v9868, %v9868
        %v9923 = vmul.f32 %v9869, %v9869
        %v9924 = vmul.f32 %v9870, %v9870
        %v9925 = vmul.f32 %v9871, %v9871
        %v9926 = vmul.f32 %v9872, %v9872
        %v9927 = vmul.f32 %v9873, %v9873
        %v9928 = vmul.f32 %v9874, %v9874
        %v9929 = vmul.f32 %v9875, %v9875
        %v9930 = vmul.f32 %v9876, %v9876
        %v9931 = vmul.f32 %v9877, %v9877
        %v9932 = vmul.f32 %v9878, %v9878
        %v9933 = vmul.f32 %v9879, %v9879
        %v9934 = vmul.f32 %v9880, %v9880
        %v9935 = vmul.f32 %v9881, %v9881
        %v9936 = vmul.f32 %v9882, %v9882
        %v9937 = vmul.f32 %v9883, %v9883
        %v9938 = vadd.f32 %v9922, %v9923
        %v9939 = vadd.f32 %v9938, %v9924
        %v9940 = vadd.f32 %v9939, %v9925
        %v9941 = vadd.f32 %v9940, %v9926
        %v9942 = vadd.f32 %v9941, %v9927
        %v9943 = vadd.f32 %v9942, %v9928
        %v9944 = vadd.f32 %v9943, %v9929
        %v9945 = vadd.f32 %v9944, %v9930
        %v9946 = vadd.f32 %v9945, %v9931
        %v9947 = vadd.f32 %v9946, %v9932
        %v9948 = vadd.f32 %v9947, %v9933
        %v9949 = vadd.f32 %v9948, %v9934
        %v9950 = vadd.f32 %v9949, %v9935
        %v9951 = vadd.f32 %v9950, %v9936
        %v9952 = vadd.f32 %v9951, %v9937
        %v9953 = vrot.slane %v9952, 4
        %v9954 = vadd.f32 %v9952, %v9953
        %v9955 = vrot.slane %v9954, 2
        %v9956 = vadd.f32 %v9954, %v9955
        %v9957 = vrot.slane %v9956, 1
        %v9958 = vadd.f32 %v9956, %v9957
        %v9959 = vadd.f32 %v8250, %v9958
        %v9960 = vmul.f32 %v9921, 0.00390625
        %v9961 = vmul.f32 %v9959, 0.00390625
        %v9962 = vmul.f32 %v9960, %v9960
        %v9963 = vsub.f32 %v9961, %v9962
        %v9964 = vmax.f32 %v9963, 0.0
        %v9965 = vadd.f32 %v9964, 1e-05
        %v9966 = vrsqrt.pop %v9965
        %v9967 = vld [vmem:[#allocation5] sm:$0xff]
        %v9968 = vld [vmem:[#allocation5 + $0x8] sm:$0xff]
        %v9969 = vld [vmem:[#allocation5 + $0x10] sm:$0xff]
        %v9970 = vld [vmem:[#allocation5 + $0x18] sm:$0xff]
        %v9971 = vld [vmem:[#allocation5 + $0x20] sm:$0xff]
        %v9972 = vld [vmem:[#allocation5 + $0x28] sm:$0xff]
        %v9973 = vld [vmem:[#allocation5 + $0x30] sm:$0xff]
        %v9974 = vld [vmem:[#allocation5 + $0x38] sm:$0xff]
        %v9975 = vld [vmem:[#allocation5 + $0x40] sm:$0xff]
        %v9976 = vld [vmem:[#allocation5 + $0x48] sm:$0xff]
        %v9977 = vld [vmem:[#allocation5 + $0x50] sm:$0xff]
        %v9978 = vld [vmem:[#allocation5 + $0x58] sm:$0xff]
        %v9979 = vld [vmem:[#allocation5 + $0x60] sm:$0xff]
        %v9980 = vld [vmem:[#allocation5 + $0x68] sm:$0xff]
        %v9981 = vld [vmem:[#allocation5 + $0x70] sm:$0xff]
        %v9982 = vld [vmem:[#allocation5 + $0x78] sm:$0xff]
        %v9983 = vsub.f32 %v9967, %v9960
        %v9984 = vsub.f32 %v9968, %v9960
        %v9985 = vsub.f32 %v9969, %v9960
        %v9986 = vsub.f32 %v9970, %v9960
        %v9987 = vsub.f32 %v9971, %v9960
        %v9988 = vsub.f32 %v9972, %v9960
        %v9989 = vsub.f32 %v9973, %v9960
        %v9990 = vsub.f32 %v9974, %v9960
        %v9991 = vsub.f32 %v9975, %v9960
        %v9992 = vsub.f32 %v9976, %v9960
        %v9993 = vsub.f32 %v9977, %v9960
        %v9994 = vsub.f32 %v9978, %v9960
        %v9995 = vsub.f32 %v9979, %v9960
        %v9996 = vsub.f32 %v9980, %v9960
        %v9997 = vsub.f32 %v9981, %v9960
        %v9998 = vsub.f32 %v9982, %v9960
        %v9999 = vmul.f32 %v9983, %v9966
        %v10000 = vmul.f32 %v9984, %v9966
        %v10001 = vmul.f32 %v9985, %v9966
        %v10002 = vmul.f32 %v9986, %v9966
        %v10003 = vmul.f32 %v9987, %v9966
        %v10004 = vmul.f32 %v9988, %v9966
        %v10005 = vmul.f32 %v9989, %v9966
        %v10006 = vmul.f32 %v9990, %v9966
        %v10007 = vmul.f32 %v9991, %v9966
        %v10008 = vmul.f32 %v9992, %v9966
        %v10009 = vmul.f32 %v9993, %v9966
        %v10010 = vmul.f32 %v9994, %v9966
        %v10011 = vmul.f32 %v9995, %v9966
        %v10012 = vmul.f32 %v9996, %v9966
        %v10013 = vmul.f32 %v9997, %v9966
        %v10014 = vmul.f32 %v9998, %v9966
        %v10015 = vld [vmem:[%s908 + $0x8] sm:$0xff]
        %v10016 = vld [vmem:[%s908 + $0x10] sm:$0xff]
        %v10017 = vld [vmem:[%s908 + $0x18] sm:$0xff]
        %v10018 = vld [vmem:[%s908 + $0x20] sm:$0xff]
        %v10019 = vld [vmem:[%s908 + $0x28] sm:$0xff]
        %v10020 = vld [vmem:[%s908 + $0x30] sm:$0xff]
        %v10021 = vld [vmem:[%s908 + $0x38] sm:$0xff]
        %v10022 = vld [vmem:[%s908 + $0x40] sm:$0xff]
        %v10023 = vunpack.c.l.bf16 %v10015
        %v10024 = vunpack.c.h.bf16 %v10015
        %v10025 = vunpack.c.l.bf16 %v10016
        %v10026 = vunpack.c.h.bf16 %v10016
        %v10027 = vunpack.c.l.bf16 %v10017
        %v10028 = vunpack.c.h.bf16 %v10017
        %v10029 = vunpack.c.l.bf16 %v10018
        %v10030 = vunpack.c.h.bf16 %v10018
        %v10031 = vunpack.c.l.bf16 %v10019
        %v10032 = vunpack.c.h.bf16 %v10019
        %v10033 = vunpack.c.l.bf16 %v10020
        %v10034 = vunpack.c.h.bf16 %v10020
        %v10035 = vunpack.c.l.bf16 %v10021
        %v10036 = vunpack.c.h.bf16 %v10021
        %v10037 = vunpack.c.l.bf16 %v10022
        %v10038 = vunpack.c.h.bf16 %v10022
        %v10039 = vadd.f32 %v10023, %v9999
        %v10040 = vadd.f32 %v10024, %v10000
        %v10041 = vadd.f32 %v10025, %v10001
        %v10042 = vadd.f32 %v10026, %v10002
        %v10043 = vadd.f32 %v10027, %v10003
        %v10044 = vadd.f32 %v10028, %v10004
        %v10045 = vadd.f32 %v10029, %v10005
        %v10046 = vadd.f32 %v10030, %v10006
        %v10047 = vadd.f32 %v10031, %v10007
        %v10048 = vadd.f32 %v10032, %v10008
        %v10049 = vadd.f32 %v10033, %v10009
        %v10050 = vadd.f32 %v10034, %v10010
        %v10051 = vadd.f32 %v10035, %v10011
        %v10052 = vadd.f32 %v10036, %v10012
        %v10053 = vadd.f32 %v10037, %v10013
        %v10054 = vadd.f32 %v10038, %v10014
        %10055 = vst [vmem:[%s178] sm:$0xff] %v10039
        %10056 = vst [vmem:[%s178 + $0x8] sm:$0xff] %v10040
        %10057 = vst [vmem:[%s178 + $0x10] sm:$0xff] %v10041
        %10058 = vst [vmem:[%s178 + $0x18] sm:$0xff] %v10042
        %10059 = vst [vmem:[%s178 + $0x20] sm:$0xff] %v10043
        %10060 = vst [vmem:[%s178 + $0x28] sm:$0xff] %v10044
        %10061 = vst [vmem:[%s178 + $0x30] sm:$0xff] %v10045
        %10062 = vst [vmem:[%s178 + $0x38] sm:$0xff] %v10046
        %10063 = vst [vmem:[%s178 + $0x40] sm:$0xff] %v10047
        %10064 = vst [vmem:[%s178 + $0x48] sm:$0xff] %v10048
        %10065 = vst [vmem:[%s178 + $0x50] sm:$0xff] %v10049
        %10066 = vst [vmem:[%s178 + $0x58] sm:$0xff] %v10050
        %10067 = vst [vmem:[%s178 + $0x60] sm:$0xff] %v10051
        %10068 = vst [vmem:[%s178 + $0x68] sm:$0xff] %v10052
        %10069 = vst [vmem:[%s178 + $0x70] sm:$0xff] %v10053
        %10070 = vst [vmem:[%s178 + $0x78] sm:$0xff] %v10054
        %v10071 = vld [vmem:[#allocation5 + $0x80] sm:$0xff]
        %v10072 = vld [vmem:[#allocation5 + $0x88] sm:$0xff]
        %v10073 = vld [vmem:[#allocation5 + $0x90] sm:$0xff]
        %v10074 = vld [vmem:[#allocation5 + $0x98] sm:$0xff]
        %v10075 = vld [vmem:[#allocation5 + $0xa0] sm:$0xff]
        %v10076 = vld [vmem:[#allocation5 + $0xa8] sm:$0xff]
        %v10077 = vld [vmem:[#allocation5 + $0xb0] sm:$0xff]
        %v10078 = vld [vmem:[#allocation5 + $0xb8] sm:$0xff]
        %v10079 = vld [vmem:[#allocation5 + $0xc0] sm:$0xff]
        %v10080 = vld [vmem:[#allocation5 + $0xc8] sm:$0xff]
        %v10081 = vld [vmem:[#allocation5 + $0xd0] sm:$0xff]
        %v10082 = vld [vmem:[#allocation5 + $0xd8] sm:$0xff]
        %v10083 = vld [vmem:[#allocation5 + $0xe0] sm:$0xff]
        %v10084 = vld [vmem:[#allocation5 + $0xe8] sm:$0xff]
        %v10085 = vld [vmem:[#allocation5 + $0xf0] sm:$0xff]
        %v10086 = vld [vmem:[#allocation5 + $0xf8] sm:$0xff]
        %v10087 = vsub.f32 %v10071, %v9960
        %v10088 = vsub.f32 %v10072, %v9960
        %v10089 = vsub.f32 %v10073, %v9960
        %v10090 = vsub.f32 %v10074, %v9960
        %v10091 = vsub.f32 %v10075, %v9960
        %v10092 = vsub.f32 %v10076, %v9960
        %v10093 = vsub.f32 %v10077, %v9960
        %v10094 = vsub.f32 %v10078, %v9960
        %v10095 = vsub.f32 %v10079, %v9960
        %v10096 = vsub.f32 %v10080, %v9960
        %v10097 = vsub.f32 %v10081, %v9960
        %v10098 = vsub.f32 %v10082, %v9960
        %v10099 = vsub.f32 %v10083, %v9960
        %v10100 = vsub.f32 %v10084, %v9960
        %v10101 = vsub.f32 %v10085, %v9960
        %v10102 = vsub.f32 %v10086, %v9960
        %v10103 = vmul.f32 %v10087, %v9966
        %v10104 = vmul.f32 %v10088, %v9966
        %v10105 = vmul.f32 %v10089, %v9966
        %v10106 = vmul.f32 %v10090, %v9966
        %v10107 = vmul.f32 %v10091, %v9966
        %v10108 = vmul.f32 %v10092, %v9966
        %v10109 = vmul.f32 %v10093, %v9966
        %v10110 = vmul.f32 %v10094, %v9966
        %v10111 = vmul.f32 %v10095, %v9966
        %v10112 = vmul.f32 %v10096, %v9966
        %v10113 = vmul.f32 %v10097, %v9966
        %v10114 = vmul.f32 %v10098, %v9966
        %v10115 = vmul.f32 %v10099, %v9966
        %v10116 = vmul.f32 %v10100, %v9966
        %v10117 = vmul.f32 %v10101, %v9966
        %v10118 = vmul.f32 %v10102, %v9966
        %v10119 = vld [vmem:[%s908 + $0x48] sm:$0xff]
        %v10120 = vld [vmem:[%s908 + $0x50] sm:$0xff]
        %v10121 = vld [vmem:[%s908 + $0x58] sm:$0xff]
        %v10122 = vld [vmem:[%s908 + $0x60] sm:$0xff]
        %v10123 = vld [vmem:[%s908 + $0x68] sm:$0xff]
        %v10124 = vld [vmem:[%s908 + $0x70] sm:$0xff]
        %v10125 = vld [vmem:[%s908 + $0x78] sm:$0xff]
        %v10126 = vld [vmem:[%s908 + $0x80] sm:$0xff]
        %v10127 = vunpack.c.l.bf16 %v10119
        %v10128 = vunpack.c.h.bf16 %v10119
        %v10129 = vunpack.c.l.bf16 %v10120
        %v10130 = vunpack.c.h.bf16 %v10120
        %v10131 = vunpack.c.l.bf16 %v10121
        %v10132 = vunpack.c.h.bf16 %v10121
        %v10133 = vunpack.c.l.bf16 %v10122
        %v10134 = vunpack.c.h.bf16 %v10122
        %v10135 = vunpack.c.l.bf16 %v10123
        %v10136 = vunpack.c.h.bf16 %v10123
        %v10137 = vunpack.c.l.bf16 %v10124
        %v10138 = vunpack.c.h.bf16 %v10124
        %v10139 = vunpack.c.l.bf16 %v10125
        %v10140 = vunpack.c.h.bf16 %v10125
        %v10141 = vunpack.c.l.bf16 %v10126
        %v10142 = vunpack.c.h.bf16 %v10126
        %v10143 = vadd.f32 %v10127, %v10103
        %v10144 = vadd.f32 %v10128, %v10104
        %v10145 = vadd.f32 %v10129, %v10105
        %v10146 = vadd.f32 %v10130, %v10106
        %v10147 = vadd.f32 %v10131, %v10107
        %v10148 = vadd.f32 %v10132, %v10108
        %v10149 = vadd.f32 %v10133, %v10109
        %v10150 = vadd.f32 %v10134, %v10110
        %v10151 = vadd.f32 %v10135, %v10111
        %v10152 = vadd.f32 %v10136, %v10112
        %v10153 = vadd.f32 %v10137, %v10113
        %v10154 = vadd.f32 %v10138, %v10114
        %v10155 = vadd.f32 %v10139, %v10115
        %v10156 = vadd.f32 %v10140, %v10116
        %v10157 = vadd.f32 %v10141, %v10117
        %v10158 = vadd.f32 %v10142, %v10118
        %s10159 = scalar_lea.vmem %s178, 128 [#allocation9]
        %10160 = vst [vmem:[%s10159] sm:$0xff] %v10143
        %10161 = vst [vmem:[%s10159 + $0x8] sm:$0xff] %v10144
        %10162 = vst [vmem:[%s10159 + $0x10] sm:$0xff] %v10145
        %10163 = vst [vmem:[%s10159 + $0x18] sm:$0xff] %v10146
        %10164 = vst [vmem:[%s10159 + $0x20] sm:$0xff] %v10147
        %10165 = vst [vmem:[%s10159 + $0x28] sm:$0xff] %v10148
        %10166 = vst [vmem:[%s10159 + $0x30] sm:$0xff] %v10149
        %10167 = vst [vmem:[%s10159 + $0x38] sm:$0xff] %v10150
        %10168 = vst [vmem:[%s10159 + $0x40] sm:$0xff] %v10151
        %10169 = vst [vmem:[%s10159 + $0x48] sm:$0xff] %v10152
        %10170 = vst [vmem:[%s10159 + $0x50] sm:$0xff] %v10153
        %10171 = vst [vmem:[%s10159 + $0x58] sm:$0xff] %v10154
        %10172 = vst [vmem:[%s10159 + $0x60] sm:$0xff] %v10155
        %10173 = vst [vmem:[%s10159 + $0x68] sm:$0xff] %v10156
        %10174 = vst [vmem:[%s10159 + $0x70] sm:$0xff] %v10157
        %10175 = vst [vmem:[%s10159 + $0x78] sm:$0xff] %v10158
        %s10176 = sand.u32 %s94, 1
        %s10177 = scalar_lea.sflag [#allocation8], %s10176
        %s10178 = sand.u32 %s94, 1
        %s10179 = smul.addr %s10178, 256
        %s10180 = scalar_lea.vmem [#allocation9], %s10179
        // Predicated region
        $region37: #{tpu_custom_call.1} parent=31 // pred_check
          %p10181 = pneg %p104
        $region38: #{tpu_custom_call.1} parent=31 // pred_check_branch
          %10183 = sbr.rel (%p10181) target = $region40
        $region39: #{tpu_custom_call.1} parent=31 // pred_region
          %s10185 = ssub.s32 4096, 4096
          %10186 = vsyncadd %s10177, %s10185
          %s10187 = smul.addr %s18, 32
          %s10188 = smul.addr %s10187, 128
          %s10189 = scalar_lea.hbm %s3, %s10188
          %s10190 = sshll.u32 %s10180, 4
          %s10191 = int_to_ptr.vmem [resolvable:$true] %s10190
          %10196 = dma.vmem_to_hbm [thread:$0]  %s10191, 4096, %s10189, %s10177, 128, 128, 8
        $region40: #{tpu_custom_call.1} parent=31 // pred_fallthru
          _
      $region32: #{tpu_custom_call.1} parent=5 // pred_fallthru
        _
      %p10197 = scmp.le.s32.totalorder 2, %s13
      // Predicated region
      $region41: #{tpu_custom_call.1} parent=5 // pred_check
        %p10198 = pneg %p10197
      $region42: #{tpu_custom_call.1} parent=5 // pred_check_branch
        %10200 = sbr.rel (%p10198) target = $region44
      $region43: #{tpu_custom_call.1} parent=5 // pred_region
        %s10201 = ssub.s32 %s13, 2
        // Predicated region
        $region45: #{tpu_custom_call.1} parent=43 // pred_check
          %p10202 = pneg %p110
        $region46: #{tpu_custom_call.1} parent=43 // pred_check_branch
          %10204 = sbr.rel (%p10202) target = $region48
        $region47: #{tpu_custom_call.1} parent=43 // pred_region
          %s10205 = sand.u32 %s95, 1
          %s10206 = scalar_lea.sflag [#allocation8], %s10205
          %s10207 = sand.u32 %s95, 1
          %s10208 = smul.addr %s10207, 256
          %s10209 = scalar_lea.vmem [#allocation9], %s10208
          %10210 = dma.done %s10206, 4096
        $region48: #{tpu_custom_call.1} parent=43 // pred_fallthru
          _
      $region44: #{tpu_custom_call.1} parent=5 // pred_fallthru
        _
    $region6: #{tpu_custom_call.1} parent=1 // loop_footer
      %s17 = sadd.s32 1, %s13
    $region7: #{tpu_custom_call.1} parent=1 // loop_footer_branch
      %12 = sbr.rel target = $region3
    $region8: #{tpu_custom_call.1} parent=1 // loop_exit
      _
    %10211 = vsyncpa [#allocation7], 1
    %s10212 = scalar_lea.sflag [#allocation7], 1
    %10213 = vsyncpa %s10212, 1
    %10214 = vsyncpa [#allocation8], 1
    %s10215 = scalar_lea.sflag [#allocation8], 1
    %10216 = vsyncpa %s10215, 1

</llo_original>
